<compile_context>
chip_gen: v5e
topology: v5e:2x2
jax: 0.10.0
libtpu: 0.0.40
codegen_flags: <defaults>
</compile_context>

<pallas_src>
import jax
import jax.numpy as jnp
from jax.experimental import pallas as pl
from jax.experimental.pallas import tpu as pltpu

# ---------------------------------------------------------------------------
# Hyper-parameters (small, consistent with the module: nz latent, ngf == ndf).
# ---------------------------------------------------------------------------
NZ = 8      # nz
NGF = 8     # ngf == ndf (module mixes them; they must match for valid shapes)
NC = 3      # nc (output image channels)
BATCH = 2
K = 4       # kernel size of every ConvTranspose2d
EPS = 1e-5  # GroupNorm eps (PyTorch default)

# (output-parity py, input-offset dy) -> kernel tap ky, for stride=2, pad=1, k=4:
#   out[2q+py, 2p+px] = sum_{dy,dx,ci} in[q+dy-1, p+dx-1] * w[ci, co, ky(py,dy), kx(px,dx)]
_KTAP = {(0, 0): 3, (0, 1): 1, (1, 1): 2, (1, 2): 0}


# ---------------------------------------------------------------------------
# One-time parameter preparation (runs ONCE, outside the jitted forward).
# ---------------------------------------------------------------------------
def _fused_subpixel_weight(w):
    """ConvTranspose2d weight (Cin, Cout, 4, 4), stride 2, pad 1  ->
    fused-phase GEMM matrix (4*Cout, 9*Cin) bf16.  Rows are phase-major
    (ph = py*2 + px); columns are (dy, dx, ci) over the 3x3 input window."""
    cin, cout = w.shape[0], w.shape[1]
    wc = jnp.zeros((2, 2, cout, 3, 3, cin), jnp.float32)
    for (py, dy), ky in _KTAP.items():
        for (px, dx), kx in _KTAP.items():
            wc = wc.at[py, px, :, dy, dx, :].set(w[:, :, ky, kx].T)
    return wc.reshape(4 * cout, 9 * cin).astype(jnp.bfloat16)


def _spread_matrices(hw):
    """0/1 column-spread matrices, stacked as (2, hw, 2*hw) bf16:
       (Y @ E)[:, 2j]   = Y[:, j]   (even output columns, px = 0)
       (Y @ O)[:, 2j+1] = Y[:, j]   (odd  output columns, px = 1)."""
    j = jnp.arange(hw)[:, None]
    m = jnp.arange(2 * hw)[None, :]
    e = (m == 2 * j).astype(jnp.bfloat16)
    o = (m == 2 * j + 1).astype(jnp.bfloat16)
    return jnp.stack([e, o], axis=0)


def _pair_sum_matrix(c, group_size):
    """(c, c) f32 indicator: P[i, j] = 1 iff channels i, j share a group."""
    i = jnp.arange(c)[:, None] // group_size
    j = jnp.arange(c)[None, :] // group_size
    return (i == j).astype(jnp.float32)


def prepare_params(params):
    """Re-lay the PyTorch-style parameters into GEMM-ready kernel constants."""
    col = lambda v: v.reshape(-1, 1).astype(jnp.float32)
    return {
        "w1": params["w1"].reshape(NZ, NGF * 8, K * K).astype(jnp.float32),
        "g1": col(params["g1"]), "b1": col(params["b1"]),
        "pmat": _pair_sum_matrix(NGF * 8, 2),          # layer-1 group size 2
        "w2": _fused_subpixel_weight(params["w2"]),
        "g2": col(params["g2"]), "b2": col(params["b2"]),
        "eo2": _spread_matrices(16),                   # 4x4  -> 8x8
        "w3": _fused_subpixel_weight(params["w3"]),
        "g3": col(params["g3"]), "b3": col(params["b3"]),
        "eo3": _spread_matrices(64),                   # 8x8  -> 16x16
        "w4": _fused_subpixel_weight(params["w4"]),
        "g4": col(params["g4"]), "b4": col(params["b4"]),
        "eo4": _spread_matrices(256),                  # 16x16 -> 32x32
        "w5": _fused_subpixel_weight(params["w5"]),
    }


# ---------------------------------------------------------------------------
# In-kernel building blocks (one sample; operate on VMEM refs / values).
# ---------------------------------------------------------------------------
def _build_patches(pad_ref, patch_ref, *, h, w, cin):
    """im2col for the sub-pixel transposed conv (3x3 effective input window).

    pad_ref:   (cin, h*w + 2*(w+1)) bf16, flat zero-padded activation.
    patch_ref: (9*cin, h*w) bf16, tap-major (dy, dx, ci) rows."""
    assert w & (w - 1) == 0, "spatial width must be a power of two"
    hw = h * w
    wpad = w + 1
    # Masks hoisted out of the 9-tap loop (JAX does not CSE broadcast chains).
    col = jax.lax.broadcasted_iota(jnp.int32, (cin, hw), 1) & (w - 1)
    mask_l = col >= 1          # source column p-1 must exist
    mask_r = col <= w - 2      # source column p+1 must exist
    for t in range(9):         # 3x3 taps, ordered (dy, dx)
        dy, dx = t // 3, t % 3
        start = wpad + (dy - 1) * w + (dx - 1)
        sl = pad_ref[:, start:start + hw]
        if dx == 0:
            sl = jnp.where(mask_l, sl, jnp.zeros_like(sl))
        elif dx == 2:
            sl = jnp.where(mask_r, sl, jnp.zeros_like(sl))
        patch_ref[t * cin:(t + 1) * cin, :] = sl


def _gn_relu_fused(y, gamma, beta, cout, n_el):
    """Per-channel GroupNorm (group size 1) + ReLU on a fused-phase activation.

    y: (4*cout, hw) f32 (phase-major row blocks).  Stats per channel are
    accumulated across the 4 phase blocks; two-pass variance in f32."""
    inv_n = 1.0 / float(n_el)
    rs = jnp.sum(y, axis=1, keepdims=True)                            # (4C, 1)
    mean = (rs[0:cout] + rs[cout:2 * cout] +
            rs[2 * cout:3 * cout] + rs[3 * cout:4 * cout]) * inv_n    # (C, 1)
    mean4 = jnp.concatenate([mean] * 4, axis=0)                       # (4C, 1)
    d = y - mean4
    rs2 = jnp.sum(d * d, axis=1, keepdims=True)
    var = (rs2[0:cout] + rs2[cout:2 * cout] +
           rs2[2 * cout:3 * cout] + rs2[3 * cout:4 * cout]) * inv_n
    scale = gamma * jax.lax.rsqrt(var + EPS)                          # (C, 1)
    scale4 = jnp.concatenate([scale] * 4, axis=0)
    beta4 = jnp.concatenate([beta] * 4, axis=0)
    return jnp.maximum(d * scale4 + beta4, 0.0)                       # (4C, hw)


def _shuffle_into_pad(yn, e_mat, o_mat, next_pad_ref, *, h, w, cout):
    """In-kernel pixel shuffle: scatter the fused-phase activation into the
    NEXT layer's flat zero-padded input buffer.

    yn: (4*cout, h*w) f32 (phase-major, post GN+ReLU).  px interleave is done
    by the 0/1 spread matmuls E/O; py/row placement by contiguous lane-block
    stores.  Boundary stripes of the pad buffer are re-zeroed here."""
    hw = h * w
    bw = 2 * w            # next layer's row width W
    wpad = bw + 1
    y00 = yn[0:cout].astype(jnp.bfloat16)          # phase (py=0, px=0)
    y01 = yn[cout:2 * cout].astype(jnp.bfloat16)   # phase (0, 1)
    y10 = yn[2 * cout:3 * cout].astype(jnp.bfloat16)
    y11 = yn[3 * cout:4 * cout].astype(jnp.bfloat16)
    z0 = (jnp.dot(y00, e_mat, preferred_element_type=jnp.float32) +
          jnp.dot(y01, o_mat, preferred_element_type=jnp.float32)
          ).astype(jnp.bfloat16)                   # even output rows, (C, h*bw)
    z1 = (jnp.dot(y10, e_mat, preferred_element_type=jnp.float32) +
          jnp.dot(y11, o_mat, preferred_element_type=jnp.float32)
          ).astype(jnp.bfloat16)                   # odd output rows
    stripe = jnp.zeros((cout, wpad), jnp.bfloat16)
    next_pad_ref[:, 0:wpad] = stripe
    next_pad_ref[:, wpad + 4 * hw:wpad + 4 * hw + wpad] = stripe
    for q in range(h):                             # static, unrolled
        base = wpad + 2 * q * bw
        next_pad_ref[:, base:base + bw] = z0[:, q * bw:(q + 1) * bw]
        next_pad_ref[:, base + bw:base + 2 * bw] = z1[:, q * bw:(q + 1) * bw]


# ---------------------------------------------------------------------------
# The fused generator kernel (whole forward, one sample per grid step).
# ---------------------------------------------------------------------------
def _generator_kernel(z_ref, w1_ref, g1_ref, b1_ref, pmat_ref,
                      w2_ref, g2_ref, b2_ref, eo2_ref,
                      w3_ref, g3_ref, b3_ref, eo3_ref,
                      w4_ref, g4_ref, b4_ref, eo4_ref,
                      w5_ref, o_ref,
                      pad2, patch2, pad3, patch3, pad4, patch4, pad5, patch5):
    b = pl.program_id(0)
    c1 = NGF * 8

    # ---- Layer 1: ConvT(nz -> 8*ngf, 4, 1, 0) on the 1x1 latent -> (64, 16)
    # (sub-vreg operand; a single-dot form would need a (1,1024)->(64,16)
    #  relayout, so the NZ-step scalar-FMA loop is the cheapest legal form)
    a1 = z_ref[b, 0] * w1_ref[0]
    for ci in range(1, NZ):
        a1 = a1 + z_ref[b, ci] * w1_ref[ci]

    # GroupNorm(32 groups over 64 channels -> group size 2) + ReLU, two-pass.
    pmat = pmat_ref[...]
    gmean = jnp.dot(pmat, jnp.sum(a1, axis=1, keepdims=True),
                    preferred_element_type=jnp.float32) * (1.0 / 32.0)
    d1 = a1 - gmean
    gvar = jnp.dot(pmat, jnp.sum(d1 * d1, axis=1, keepdims=True),
                   preferred_element_type=jnp.float32) * (1.0 / 32.0)
    a1n = jnp.maximum(
        d1 * (g1_ref[...] * jax.lax.rsqrt(gvar + EPS)) + b1_ref[...], 0.0)

    # Layer-1 output is already a plain 4x4 image -> drop into layer-2's pad
    # buffer (interior at offset wpad=5); only the stripes need zeroing.
    stripe1 = jnp.zeros((c1, 5), jnp.bfloat16)
    pad2[:, 0:5] = stripe1
    pad2[:, 21:26] = stripe1
    pad2[:, 5:21] = a1n.astype(jnp.bfloat16)

    # ---- Layers 2..4: fused-phase sub-pixel ConvT + GN + ReLU + pixel shuffle
    def mid_layer(pad_ref, patch_ref, w_ref, g_ref, bb_ref, eo_ref,
                  next_pad_ref, h, cin, cout):
        hw = h * h
        _build_patches(pad_ref, patch_ref, h=h, w=h, cin=cin)
        y = jnp.dot(w_ref[...], patch_ref[...],
                    preferred_element_type=jnp.float32)        # (4*cout, hw)
        yn = _gn_relu_fused(y, g_ref[...], bb_ref[...], cout, 4 * hw)
        _shuffle_into_pad(yn, eo_ref[0], eo_ref[1], next_pad_ref,
                          h=h, w=h, cout=cout)

    mid_layer(pad2, patch2, w2_ref, g2_ref, b2_ref, eo2_ref, pad3,
              4, NGF * 8, NGF * 4)                              # 4x4  -> 8x8
    mid_layer(pad3, patch3, w3_ref, g3_ref, b3_ref, eo3_ref, pad4,
              8, NGF * 4, NGF * 2)                              # 8x8  -> 16x16
    mid_layer(pad4, patch4, w4_ref, g4_ref, b4_ref, eo4_ref, pad5,
              16, NGF * 2, NGF)                                 # 16x16 -> 32x32

    # ---- Layer 5: ConvT(ngf -> nc, 4, 2, 1) + Tanh; phase-major, 1024 lanes.
    _build_patches(pad5, patch5, h=32, w=32, cin=NGF)
    y5 = jnp.dot(w5_ref[...], patch5[...], preferred_element_type=jnp.float32)
    o_ref[0, :, :] = jnp.tanh(y5)                               # (12, 1024) f32


# ---------------------------------------------------------------------------
# pallas_call wrapper + forward pass
# ---------------------------------------------------------------------------
def _generator_pallas(z, p):
    n = z.shape[0]
    c1 = NGF * 8

    def full(a):
        zeros = (0,) * a.ndim
        return pl.BlockSpec(a.shape, lambda b, _z=zeros: _z)

    return pl.pallas_call(
        _generator_kernel,
        out_shape=jax.ShapeDtypeStruct((n, 4 * NC, 1024), jnp.float32),
        grid=(n,),
        in_specs=[
            pl.BlockSpec((n, NZ), lambda b: (0, 0),
                         memory_space=pltpu.MemorySpace.SMEM),
            full(p["w1"]), full(p["g1"]), full(p["b1"]), full(p["pmat"]),
            full(p["w2"]), full(p["g2"]), full(p["b2"]), full(p["eo2"]),
            full(p["w3"]), full(p["g3"]), full(p["b3"]), full(p["eo3"]),
            full(p["w4"]), full(p["g4"]), full(p["b4"]), full(p["eo4"]),
            full(p["w5"]),
        ],
        out_specs=pl.BlockSpec((1, 4 * NC, 1024), lambda b: (b, 0, 0)),
        scratch_shapes=[
            pltpu.VMEM((c1, 16 + 2 * 5), jnp.bfloat16),          # pad2  (4x4)
            pltpu.VMEM((9 * c1, 16), jnp.bfloat16),              # patch2
            pltpu.VMEM((NGF * 4, 64 + 2 * 9), jnp.bfloat16),     # pad3  (8x8)
            pltpu.VMEM((9 * NGF * 4, 64), jnp.bfloat16),         # patch3
            pltpu.VMEM((NGF * 2, 256 + 2 * 17), jnp.bfloat16),   # pad4  (16x16)
            pltpu.VMEM((9 * NGF * 2, 256), jnp.bfloat16),        # patch4
            pltpu.VMEM((NGF, 1024 + 2 * 33), jnp.bfloat16),      # pad5  (32x32)
            pltpu.VMEM((9 * NGF, 1024), jnp.bfloat16),           # patch5
        ],
        compiler_params=pltpu.CompilerParams(
            dimension_semantics=("parallel",),      # one sample per TC on v7x
            vmem_limit_bytes=32 * 1024 * 1024),     # usage ~3 MiB, v7x-safe
    )(z, p["w1"], p["g1"], p["b1"], p["pmat"],
      p["w2"], p["g2"], p["b2"], p["eo2"],
      p["w3"], p["g3"], p["b3"], p["eo3"],
      p["w4"], p["g4"], p["b4"], p["eo4"],
      p["w5"])


def generator_forward(z_nchw, kp):
    """kp: GEMM-layout params from prepare_params (built once, outside jit)."""
    n = z_nchw.shape[0]
    z = z_nchw.reshape(n, NZ).astype(jnp.float32)
    y = _generator_pallas(z, kp)                  # (n, 4*nc, 1024) phase-major
    # TODO(synk): fold this final output pixel shuffle (pure layout) into the
    #             kernel once a cheap 4096-wide lane interleave exists.
    y = y.reshape(n, 2, 2, NC, 32, 32)            # (n, py, px, c, q, p)
    y = jnp.transpose(y, (0, 3, 4, 1, 5, 2))      # (n, c, q, py, p, px)
    return y.reshape(n, NC, 64, 64)


# ---------------------------------------------------------------------------
# Deterministic example parameters / driver
# ---------------------------------------------------------------------------
def init_params(key):
    ks = jax.random.split(key, 16)

    def w(k, cin, cout):
        return jax.random.normal(k, (cin, cout, K, K), jnp.float32) * 0.05

    p = {
        "w1": w(ks[0], NZ, NGF * 8),
        "w2": w(ks[1], NGF * 8, NGF * 4),
        "w3": w(ks[2], NGF * 4, NGF * 2),
        "w4": w(ks[3], NGF * 2, NGF),
        "w5": w(ks[4], NGF, NC),
    }
    for i, c in enumerate([NGF * 8, NGF * 4, NGF * 2, NGF], start=1):
        p[f"g{i}"] = 1.0 + 0.01 * jax.random.normal(ks[5 + i], (c,), jnp.float32)
        p[f"b{i}"] = 0.01 * jax.random.normal(ks[10 + i], (c,), jnp.float32)
    return p


if __name__ == "__main__":
    key = jax.random.PRNGKey(0)
    kz, kp_key = jax.random.split(key)
    z = jax.random.normal(kz, (BATCH, NZ, 1, 1), jnp.float32)   # NCHW latent
    params = init_params(kp_key)
    kparams = prepare_params(params)          # one-time weight re-layout

    fwd = jax.jit(generator_forward)
    out = jax.block_until_ready(fwd(z, kparams))

    assert out.shape == (BATCH, NC, 64, 64), out.shape
    assert bool(jnp.all(jnp.isfinite(out)))
    print("KERNEL_OK")
</pallas_src>

<mosaic_0001>
module attributes {stable_mosaic.version = 11 : i64} {
  func.func @_generator_kernel(%arg0: i32, %arg1: memref<2x8xf32, #tpu.memory_space<smem>>, %arg2: memref<8x64x16xf32, #tpu.memory_space<vmem>>, %arg3: memref<64x1xf32, #tpu.memory_space<vmem>>, %arg4: memref<64x1xf32, #tpu.memory_space<vmem>>, %arg5: memref<64x64xf32, #tpu.memory_space<vmem>>, %arg6: memref<128x576xbf16, #tpu.memory_space<vmem>>, %arg7: memref<32x1xf32, #tpu.memory_space<vmem>>, %arg8: memref<32x1xf32, #tpu.memory_space<vmem>>, %arg9: memref<2x16x32xbf16, #tpu.memory_space<vmem>>, %arg10: memref<64x288xbf16, #tpu.memory_space<vmem>>, %arg11: memref<16x1xf32, #tpu.memory_space<vmem>>, %arg12: memref<16x1xf32, #tpu.memory_space<vmem>>, %arg13: memref<2x64x128xbf16, #tpu.memory_space<vmem>>, %arg14: memref<32x144xbf16, #tpu.memory_space<vmem>>, %arg15: memref<8x1xf32, #tpu.memory_space<vmem>>, %arg16: memref<8x1xf32, #tpu.memory_space<vmem>>, %arg17: memref<2x256x512xbf16, #tpu.memory_space<vmem>>, %arg18: memref<12x72xbf16, #tpu.memory_space<vmem>>, %arg19: memref<1x12x1024xf32, #tpu.memory_space<vmem>>, %arg20: memref<64x26xbf16, #tpu.memory_space<vmem>>, %arg21: memref<576x16xbf16, #tpu.memory_space<vmem>>, %arg22: memref<32x82xbf16, #tpu.memory_space<vmem>>, %arg23: memref<288x64xbf16, #tpu.memory_space<vmem>>, %arg24: memref<16x290xbf16, #tpu.memory_space<vmem>>, %arg25: memref<144x256xbf16, #tpu.memory_space<vmem>>, %arg26: memref<8x1090xbf16, #tpu.memory_space<vmem>>, %arg27: memref<72x1024xbf16, #tpu.memory_space<vmem>>) attributes {dimension_semantics = [#tpu.dimension_semantics<parallel>], iteration_bounds = array<i64: 2>, scalar_prefetch = 0 : i64, scratch_operands = 8 : i64, tpu.core_type = #tpu.core_type<tc>, window_params = [{transform_indices = @transform_0, window_bounds = array<i64: 2, 8>}, {pipeline_mode = #tpu.pipeline_mode<synchronous>, transform_indices = @transform_1, window_bounds = array<i64: 8, 64, 16>}, {pipeline_mode = #tpu.pipeline_mode<synchronous>, transform_indices = @transform_2, window_bounds = array<i64: 64, 1>}, {pipeline_mode = #tpu.pipeline_mode<synchronous>, transform_indices = @transform_3, window_bounds = array<i64: 64, 1>}, {pipeline_mode = #tpu.pipeline_mode<synchronous>, transform_indices = @transform_4, window_bounds = array<i64: 64, 64>}, {pipeline_mode = #tpu.pipeline_mode<synchronous>, transform_indices = @transform_5, window_bounds = array<i64: 128, 576>}, {pipeline_mode = #tpu.pipeline_mode<synchronous>, transform_indices = @transform_6, window_bounds = array<i64: 32, 1>}, {pipeline_mode = #tpu.pipeline_mode<synchronous>, transform_indices = @transform_7, window_bounds = array<i64: 32, 1>}, {pipeline_mode = #tpu.pipeline_mode<synchronous>, transform_indices = @transform_8, window_bounds = array<i64: 2, 16, 32>}, {pipeline_mode = #tpu.pipeline_mode<synchronous>, transform_indices = @transform_9, window_bounds = array<i64: 64, 288>}, {pipeline_mode = #tpu.pipeline_mode<synchronous>, transform_indices = @transform_10, window_bounds = array<i64: 16, 1>}, {pipeline_mode = #tpu.pipeline_mode<synchronous>, transform_indices = @transform_11, window_bounds = array<i64: 16, 1>}, {pipeline_mode = #tpu.pipeline_mode<synchronous>, transform_indices = @transform_12, window_bounds = array<i64: 2, 64, 128>}, {pipeline_mode = #tpu.pipeline_mode<synchronous>, transform_indices = @transform_13, window_bounds = array<i64: 32, 144>}, {pipeline_mode = #tpu.pipeline_mode<synchronous>, transform_indices = @transform_14, window_bounds = array<i64: 8, 1>}, {pipeline_mode = #tpu.pipeline_mode<synchronous>, transform_indices = @transform_15, window_bounds = array<i64: 8, 1>}, {pipeline_mode = #tpu.pipeline_mode<synchronous>, transform_indices = @transform_16, window_bounds = array<i64: 2, 256, 512>}, {pipeline_mode = #tpu.pipeline_mode<synchronous>, transform_indices = @transform_17, window_bounds = array<i64: 12, 72>}, {transform_indices = @transform_18, window_bounds = array<i64: 1, 12, 1024>}]} {
    %0 = arith.index_cast %arg0 : i32 to index
    %c0 = arith.constant 0 : index
    %1 = memref.load %arg1[%0, %c0] : memref<2x8xf32, #tpu.memory_space<smem>>
    %c0_0 = arith.constant 0 : index
    %c0_1 = arith.constant 0 : index
    %c0_2 = arith.constant 0 : index
    %2 = vector.load %arg2[%c0_0, %c0_1, %c0_2] : memref<8x64x16xf32, #tpu.memory_space<vmem>>, vector<1x64x16xf32>
    %3 = vector.shape_cast %2 : vector<1x64x16xf32> to vector<64x16xf32>
    %4 = vector.broadcast %1 : f32 to vector<64x16xf32>
    %5 = arith.mulf %4, %3 : vector<64x16xf32>
    %6 = arith.index_cast %arg0 : i32 to index
    %c1 = arith.constant 1 : index
    %7 = memref.load %arg1[%6, %c1] : memref<2x8xf32, #tpu.memory_space<smem>>
    %c1_3 = arith.constant 1 : index
    %c0_4 = arith.constant 0 : index
    %c0_5 = arith.constant 0 : index
    %8 = vector.load %arg2[%c1_3, %c0_4, %c0_5] : memref<8x64x16xf32, #tpu.memory_space<vmem>>, vector<1x64x16xf32>
    %9 = vector.shape_cast %8 : vector<1x64x16xf32> to vector<64x16xf32>
    %10 = vector.broadcast %7 : f32 to vector<64x16xf32>
    %11 = arith.mulf %10, %9 : vector<64x16xf32>
    %12 = arith.addf %5, %11 : vector<64x16xf32>
    %13 = arith.index_cast %arg0 : i32 to index
    %c2 = arith.constant 2 : index
    %14 = memref.load %arg1[%13, %c2] : memref<2x8xf32, #tpu.memory_space<smem>>
    %c2_6 = arith.constant 2 : index
    %c0_7 = arith.constant 0 : index
    %c0_8 = arith.constant 0 : index
    %15 = vector.load %arg2[%c2_6, %c0_7, %c0_8] : memref<8x64x16xf32, #tpu.memory_space<vmem>>, vector<1x64x16xf32>
    %16 = vector.shape_cast %15 : vector<1x64x16xf32> to vector<64x16xf32>
    %17 = vector.broadcast %14 : f32 to vector<64x16xf32>
    %18 = arith.mulf %17, %16 : vector<64x16xf32>
    %19 = arith.addf %12, %18 : vector<64x16xf32>
    %20 = arith.index_cast %arg0 : i32 to index
    %c3 = arith.constant 3 : index
    %21 = memref.load %arg1[%20, %c3] : memref<2x8xf32, #tpu.memory_space<smem>>
    %c3_9 = arith.constant 3 : index
    %c0_10 = arith.constant 0 : index
    %c0_11 = arith.constant 0 : index
    %22 = vector.load %arg2[%c3_9, %c0_10, %c0_11] : memref<8x64x16xf32, #tpu.memory_space<vmem>>, vector<1x64x16xf32>
    %23 = vector.shape_cast %22 : vector<1x64x16xf32> to vector<64x16xf32>
    %24 = vector.broadcast %21 : f32 to vector<64x16xf32>
    %25 = arith.mulf %24, %23 : vector<64x16xf32>
    %26 = arith.addf %19, %25 : vector<64x16xf32>
    %27 = arith.index_cast %arg0 : i32 to index
    %c4 = arith.constant 4 : index
    %28 = memref.load %arg1[%27, %c4] : memref<2x8xf32, #tpu.memory_space<smem>>
    %c4_12 = arith.constant 4 : index
    %c0_13 = arith.constant 0 : index
    %c0_14 = arith.constant 0 : index
    %29 = vector.load %arg2[%c4_12, %c0_13, %c0_14] : memref<8x64x16xf32, #tpu.memory_space<vmem>>, vector<1x64x16xf32>
    %30 = vector.shape_cast %29 : vector<1x64x16xf32> to vector<64x16xf32>
    %31 = vector.broadcast %28 : f32 to vector<64x16xf32>
    %32 = arith.mulf %31, %30 : vector<64x16xf32>
    %33 = arith.addf %26, %32 : vector<64x16xf32>
    %34 = arith.index_cast %arg0 : i32 to index
    %c5 = arith.constant 5 : index
    %35 = memref.load %arg1[%34, %c5] : memref<2x8xf32, #tpu.memory_space<smem>>
    %c5_15 = arith.constant 5 : index
    %c0_16 = arith.constant 0 : index
    %c0_17 = arith.constant 0 : index
    %36 = vector.load %arg2[%c5_15, %c0_16, %c0_17] : memref<8x64x16xf32, #tpu.memory_space<vmem>>, vector<1x64x16xf32>
    %37 = vector.shape_cast %36 : vector<1x64x16xf32> to vector<64x16xf32>
    %38 = vector.broadcast %35 : f32 to vector<64x16xf32>
    %39 = arith.mulf %38, %37 : vector<64x16xf32>
    %40 = arith.addf %33, %39 : vector<64x16xf32>
    %41 = arith.index_cast %arg0 : i32 to index
    %c6 = arith.constant 6 : index
    %42 = memref.load %arg1[%41, %c6] : memref<2x8xf32, #tpu.memory_space<smem>>
    %c6_18 = arith.constant 6 : index
    %c0_19 = arith.constant 0 : index
    %c0_20 = arith.constant 0 : index
    %43 = vector.load %arg2[%c6_18, %c0_19, %c0_20] : memref<8x64x16xf32, #tpu.memory_space<vmem>>, vector<1x64x16xf32>
    %44 = vector.shape_cast %43 : vector<1x64x16xf32> to vector<64x16xf32>
    %45 = vector.broadcast %42 : f32 to vector<64x16xf32>
    %46 = arith.mulf %45, %44 : vector<64x16xf32>
    %47 = arith.addf %40, %46 : vector<64x16xf32>
    %48 = arith.index_cast %arg0 : i32 to index
    %c7 = arith.constant 7 : index
    %49 = memref.load %arg1[%48, %c7] : memref<2x8xf32, #tpu.memory_space<smem>>
    %c7_21 = arith.constant 7 : index
    %c0_22 = arith.constant 0 : index
    %c0_23 = arith.constant 0 : index
    %50 = vector.load %arg2[%c7_21, %c0_22, %c0_23] : memref<8x64x16xf32, #tpu.memory_space<vmem>>, vector<1x64x16xf32>
    %51 = vector.shape_cast %50 : vector<1x64x16xf32> to vector<64x16xf32>
    %52 = vector.broadcast %49 : f32 to vector<64x16xf32>
    %53 = arith.mulf %52, %51 : vector<64x16xf32>
    %54 = arith.addf %47, %53 : vector<64x16xf32>
    %c0_24 = arith.constant 0 : index
    %c0_25 = arith.constant 0 : index
    %55 = vector.load %arg5[%c0_24, %c0_25] : memref<64x64xf32, #tpu.memory_space<vmem>>, vector<64x64xf32>
    %cst = arith.constant dense<0.000000e+00> : vector<64xf32>
    %56 = vector.multi_reduction <add>, %54, %cst [1] : vector<64x16xf32> to vector<64xf32>
    %57 = vector.shape_cast %56 : vector<64xf32> to vector<64x1xf32>
    %cst_26 = arith.constant dense<0.000000e+00> : vector<64x1xf32>
    %58 = tpu.matmul %55, %57, %cst_26 {dimension_numbers = #tpu.dot_dimension_numbers<[1], [0], [0], [1], [0, 0, 1, 1], [], []>} : vector<64x64xf32>, vector<64x1xf32>, vector<64x1xf32> -> vector<64x1xf32>
    %cst_27 = arith.constant 3.125000e-02 : f32
    %59 = vector.broadcast %cst_27 : f32 to vector<64x1xf32>
    %60 = arith.mulf %58, %59 : vector<64x1xf32>
    %61 = vector.broadcast %60 : vector<64x1xf32> to vector<64x16xf32>
    %62 = arith.subf %54, %61 : vector<64x16xf32>
    %63 = arith.mulf %62, %62 : vector<64x16xf32>
    %cst_28 = arith.constant dense<0.000000e+00> : vector<64xf32>
    %64 = vector.multi_reduction <add>, %63, %cst_28 [1] : vector<64x16xf32> to vector<64xf32>
    %65 = vector.shape_cast %64 : vector<64xf32> to vector<64x1xf32>
    %cst_29 = arith.constant dense<0.000000e+00> : vector<64x1xf32>
    %66 = tpu.matmul %55, %65, %cst_29 {dimension_numbers = #tpu.dot_dimension_numbers<[1], [0], [0], [1], [0, 0, 1, 1], [], []>} : vector<64x64xf32>, vector<64x1xf32>, vector<64x1xf32> -> vector<64x1xf32>
    %cst_30 = arith.constant 3.125000e-02 : f32
    %67 = vector.broadcast %cst_30 : f32 to vector<64x1xf32>
    %68 = arith.mulf %66, %67 : vector<64x1xf32>
    %c0_31 = arith.constant 0 : index
    %c0_32 = arith.constant 0 : index
    %69 = vector.load %arg3[%c0_31, %c0_32] : memref<64x1xf32, #tpu.memory_space<vmem>>, vector<64x1xf32>
    %cst_33 = arith.constant 9.99999974E-6 : f32
    %70 = vector.broadcast %cst_33 : f32 to vector<64x1xf32>
    %71 = arith.addf %68, %70 : vector<64x1xf32>
    %72 = math.rsqrt %71 : vector<64x1xf32>
    %73 = arith.mulf %69, %72 : vector<64x1xf32>
    %74 = vector.broadcast %73 : vector<64x1xf32> to vector<64x16xf32>
    %75 = arith.mulf %62, %74 : vector<64x16xf32>
    %c0_34 = arith.constant 0 : index
    %c0_35 = arith.constant 0 : index
    %76 = vector.load %arg4[%c0_34, %c0_35] : memref<64x1xf32, #tpu.memory_space<vmem>>, vector<64x1xf32>
    %77 = vector.broadcast %76 : vector<64x1xf32> to vector<64x16xf32>
    %78 = arith.addf %75, %77 : vector<64x16xf32>
    %cst_36 = arith.constant 0.000000e+00 : f32
    %79 = vector.broadcast %cst_36 : f32 to vector<64x16xf32>
    %80 = arith.maximumf %78, %79 : vector<64x16xf32>
    %cst_37 = arith.constant 0.000000e+00 : bf16
    %81 = vector.broadcast %cst_37 : bf16 to vector<64x5xbf16>
    %c0_38 = arith.constant 0 : index
    %c0_39 = arith.constant 0 : index
    %82 = vector.load %arg20[%c0_38, %c0_39] : memref<64x26xbf16, #tpu.memory_space<vmem>>, vector<64x5xbf16>
    tpu.vector_store %arg20[%c0_38, %c0_39], %81 {strides = array<i32>} : memref<64x26xbf16, #tpu.memory_space<vmem>>, vector<64x5xbf16>,
    %c0_40 = arith.constant 0 : index
    %c21 = arith.constant 21 : index
    %83 = vector.load %arg20[%c0_40, %c21] : memref<64x26xbf16, #tpu.memory_space<vmem>>, vector<64x5xbf16>
    tpu.vector_store %arg20[%c0_40, %c21], %81 {strides = array<i32>} : memref<64x26xbf16, #tpu.memory_space<vmem>>, vector<64x5xbf16>,
    %84 = arith.truncf %80 : vector<64x16xf32> to vector<64x16xbf16>
    %c0_41 = arith.constant 0 : index
    %c5_42 = arith.constant 5 : index
    %85 = vector.load %arg20[%c0_41, %c5_42] : memref<64x26xbf16, #tpu.memory_space<vmem>>, vector<64x16xbf16>
    tpu.vector_store %arg20[%c0_41, %c5_42], %84 {strides = array<i32>} : memref<64x26xbf16, #tpu.memory_space<vmem>>, vector<64x16xbf16>,
    %86 = tpu.iota {dimensions = array<i32: 1>} : vector<64x16xi32>
    %c3_i32 = arith.constant 3 : i32
    %87 = vector.broadcast %c3_i32 : i32 to vector<64x16xi32>
    %88 = arith.andi %86, %87 : vector<64x16xi32>
    %c1_i32 = arith.constant 1 : i32
    %89 = vector.broadcast %c1_i32 : i32 to vector<64x16xi32>
    %90 = arith.cmpi sge, %88, %89 : vector<64x16xi32>
    %c2_i32 = arith.constant 2 : i32
    %91 = vector.broadcast %c2_i32 : i32 to vector<64x16xi32>
    %92 = arith.cmpi sle, %88, %91 : vector<64x16xi32>
    %c0_43 = arith.constant 0 : index
    %c0_44 = arith.constant 0 : index
    %93 = vector.load %arg20[%c0_43, %c0_44] : memref<64x26xbf16, #tpu.memory_space<vmem>>, vector<64x16xbf16>
    %cst_45 = arith.constant 0.000000e+00 : bf16
    %94 = vector.broadcast %cst_45 : bf16 to vector<64x16xbf16>
    %95 = arith.select %90, %93, %94 : vector<64x16xi1>, vector<64x16xbf16>
    %c0_46 = arith.constant 0 : index
    %c0_47 = arith.constant 0 : index
    %96 = vector.load %arg21[%c0_46, %c0_47] : memref<576x16xbf16, #tpu.memory_space<vmem>>, vector<64x16xbf16>
    tpu.vector_store %arg21[%c0_46, %c0_47], %95 {strides = array<i32>} : memref<576x16xbf16, #tpu.memory_space<vmem>>, vector<64x16xbf16>,
    %c0_48 = arith.constant 0 : index
    %c1_49 = arith.constant 1 : index
    %97 = vector.load %arg20[%c0_48, %c1_49] : memref<64x26xbf16, #tpu.memory_space<vmem>>, vector<64x16xbf16>
    %c64 = arith.constant 64 : index
    %c0_50 = arith.constant 0 : index
    %98 = vector.load %arg21[%c64, %c0_50] : memref<576x16xbf16, #tpu.memory_space<vmem>>, vector<64x16xbf16>
    tpu.vector_store %arg21[%c64, %c0_50], %97 {strides = array<i32>} : memref<576x16xbf16, #tpu.memory_space<vmem>>, vector<64x16xbf16>,
    %c0_51 = arith.constant 0 : index
    %c2_52 = arith.constant 2 : index
    %99 = vector.load %arg20[%c0_51, %c2_52] : memref<64x26xbf16, #tpu.memory_space<vmem>>, vector<64x16xbf16>
    %cst_53 = arith.constant 0.000000e+00 : bf16
    %100 = vector.broadcast %cst_53 : bf16 to vector<64x16xbf16>
    %101 = arith.select %92, %99, %100 : vector<64x16xi1>, vector<64x16xbf16>
    %c128 = arith.constant 128 : index
    %c0_54 = arith.constant 0 : index
    %102 = vector.load %arg21[%c128, %c0_54] : memref<576x16xbf16, #tpu.memory_space<vmem>>, vector<64x16xbf16>
    tpu.vector_store %arg21[%c128, %c0_54], %101 {strides = array<i32>} : memref<576x16xbf16, #tpu.memory_space<vmem>>, vector<64x16xbf16>,
    %c0_55 = arith.constant 0 : index
    %c4_56 = arith.constant 4 : index
    %103 = vector.load %arg20[%c0_55, %c4_56] : memref<64x26xbf16, #tpu.memory_space<vmem>>, vector<64x16xbf16>
    %cst_57 = arith.constant 0.000000e+00 : bf16
    %104 = vector.broadcast %cst_57 : bf16 to vector<64x16xbf16>
    %105 = arith.select %90, %103, %104 : vector<64x16xi1>, vector<64x16xbf16>
    %c192 = arith.constant 192 : index
    %c0_58 = arith.constant 0 : index
    %106 = vector.load %arg21[%c192, %c0_58] : memref<576x16xbf16, #tpu.memory_space<vmem>>, vector<64x16xbf16>
    tpu.vector_store %arg21[%c192, %c0_58], %105 {strides = array<i32>} : memref<576x16xbf16, #tpu.memory_space<vmem>>, vector<64x16xbf16>,
    %c0_59 = arith.constant 0 : index
    %c5_60 = arith.constant 5 : index
    %107 = vector.load %arg20[%c0_59, %c5_60] : memref<64x26xbf16, #tpu.memory_space<vmem>>, vector<64x16xbf16>
    %c256 = arith.constant 256 : index
    %c0_61 = arith.constant 0 : index
    %108 = vector.load %arg21[%c256, %c0_61] : memref<576x16xbf16, #tpu.memory_space<vmem>>, vector<64x16xbf16>
    tpu.vector_store %arg21[%c256, %c0_61], %107 {strides = array<i32>} : memref<576x16xbf16, #tpu.memory_space<vmem>>, vector<64x16xbf16>,
    %c0_62 = arith.constant 0 : index
    %c6_63 = arith.constant 6 : index
    %109 = vector.load %arg20[%c0_62, %c6_63] : memref<64x26xbf16, #tpu.memory_space<vmem>>, vector<64x16xbf16>
    %cst_64 = arith.constant 0.000000e+00 : bf16
    %110 = vector.broadcast %cst_64 : bf16 to vector<64x16xbf16>
    %111 = arith.select %92, %109, %110 : vector<64x16xi1>, vector<64x16xbf16>
    %c320 = arith.constant 320 : index
    %c0_65 = arith.constant 0 : index
    %112 = vector.load %arg21[%c320, %c0_65] : memref<576x16xbf16, #tpu.memory_space<vmem>>, vector<64x16xbf16>
    tpu.vector_store %arg21[%c320, %c0_65], %111 {strides = array<i32>} : memref<576x16xbf16, #tpu.memory_space<vmem>>, vector<64x16xbf16>,
    %c0_66 = arith.constant 0 : index
    %c8 = arith.constant 8 : index
    %113 = vector.load %arg20[%c0_66, %c8] : memref<64x26xbf16, #tpu.memory_space<vmem>>, vector<64x16xbf16>
    %cst_67 = arith.constant 0.000000e+00 : bf16
    %114 = vector.broadcast %cst_67 : bf16 to vector<64x16xbf16>
    %115 = arith.select %90, %113, %114 : vector<64x16xi1>, vector<64x16xbf16>
    %c384 = arith.constant 384 : index
    %c0_68 = arith.constant 0 : index
    %116 = vector.load %arg21[%c384, %c0_68] : memref<576x16xbf16, #tpu.memory_space<vmem>>, vector<64x16xbf16>
    tpu.vector_store %arg21[%c384, %c0_68], %115 {strides = array<i32>} : memref<576x16xbf16, #tpu.memory_space<vmem>>, vector<64x16xbf16>,
    %c0_69 = arith.constant 0 : index
    %c9 = arith.constant 9 : index
    %117 = vector.load %arg20[%c0_69, %c9] : memref<64x26xbf16, #tpu.memory_space<vmem>>, vector<64x16xbf16>
    %c448 = arith.constant 448 : index
    %c0_70 = arith.constant 0 : index
    %118 = vector.load %arg21[%c448, %c0_70] : memref<576x16xbf16, #tpu.memory_space<vmem>>, vector<64x16xbf16>
    tpu.vector_store %arg21[%c448, %c0_70], %117 {strides = array<i32>} : memref<576x16xbf16, #tpu.memory_space<vmem>>, vector<64x16xbf16>,
    %c0_71 = arith.constant 0 : index
    %c10 = arith.constant 10 : index
    %119 = vector.load %arg20[%c0_71, %c10] : memref<64x26xbf16, #tpu.memory_space<vmem>>, vector<64x16xbf16>
    %cst_72 = arith.constant 0.000000e+00 : bf16
    %120 = vector.broadcast %cst_72 : bf16 to vector<64x16xbf16>
    %121 = arith.select %92, %119, %120 : vector<64x16xi1>, vector<64x16xbf16>
    %c512 = arith.constant 512 : index
    %c0_73 = arith.constant 0 : index
    %122 = vector.load %arg21[%c512, %c0_73] : memref<576x16xbf16, #tpu.memory_space<vmem>>, vector<64x16xbf16>
    tpu.vector_store %arg21[%c512, %c0_73], %121 {strides = array<i32>} : memref<576x16xbf16, #tpu.memory_space<vmem>>, vector<64x16xbf16>,
    %c0_74 = arith.constant 0 : index
    %c0_75 = arith.constant 0 : index
    %123 = vector.load %arg6[%c0_74, %c0_75] : memref<128x576xbf16, #tpu.memory_space<vmem>>, vector<128x576xbf16>
    %c0_76 = arith.constant 0 : index
    %c0_77 = arith.constant 0 : index
    %124 = vector.load %arg21[%c0_76, %c0_77] : memref<576x16xbf16, #tpu.memory_space<vmem>>, vector<576x16xbf16>
    %cst_78 = arith.constant dense<0.000000e+00> : vector<128x16xf32>
    %125 = tpu.matmul %123, %124, %cst_78 {dimension_numbers = #tpu.dot_dimension_numbers<[1], [0], [0], [1], [0, 0, 1, 1], [], []>} : vector<128x576xbf16>, vector<576x16xbf16>, vector<128x16xf32> -> vector<128x16xf32>
    %c0_79 = arith.constant 0 : index
    %c0_80 = arith.constant 0 : index
    %126 = vector.load %arg7[%c0_79, %c0_80] : memref<32x1xf32, #tpu.memory_space<vmem>>, vector<32x1xf32>
    %c0_81 = arith.constant 0 : index
    %c0_82 = arith.constant 0 : index
    %127 = vector.load %arg8[%c0_81, %c0_82] : memref<32x1xf32, #tpu.memory_space<vmem>>, vector<32x1xf32>
    %cst_83 = arith.constant dense<0.000000e+00> : vector<128xf32>
    %128 = vector.multi_reduction <add>, %125, %cst_83 [1] : vector<128x16xf32> to vector<128xf32>
    %129 = vector.shape_cast %128 : vector<128xf32> to vector<128x1xf32>
    %130 = vector.extract_strided_slice %129 {offsets = [0, 0], sizes = [32, 1], strides = [1, 1]} : vector<128x1xf32> to vector<32x1xf32>
    %131 = vector.extract_strided_slice %129 {offsets = [32, 0], sizes = [32, 1], strides = [1, 1]} : vector<128x1xf32> to vector<32x1xf32>
    %132 = arith.addf %130, %131 : vector<32x1xf32>
    %133 = vector.extract_strided_slice %129 {offsets = [64, 0], sizes = [32, 1], strides = [1, 1]} : vector<128x1xf32> to vector<32x1xf32>
    %134 = arith.addf %132, %133 : vector<32x1xf32>
    %135 = vector.extract_strided_slice %129 {offsets = [96, 0], sizes = [32, 1], strides = [1, 1]} : vector<128x1xf32> to vector<32x1xf32>
    %136 = arith.addf %134, %135 : vector<32x1xf32>
    %cst_84 = arith.constant 1.562500e-02 : f32
    %137 = vector.broadcast %cst_84 : f32 to vector<32x1xf32>
    %138 = arith.mulf %136, %137 : vector<32x1xf32>
    %139 = tpu.concatenate %138, %138, %138, %138 in 0 : vector<32x1xf32>, vector<32x1xf32>, vector<32x1xf32>, vector<32x1xf32> -> vector<128x1xf32>
    %140 = vector.broadcast %139 : vector<128x1xf32> to vector<128x16xf32>
    %141 = arith.subf %125, %140 : vector<128x16xf32>
    %142 = arith.mulf %141, %141 : vector<128x16xf32>
    %cst_85 = arith.constant dense<0.000000e+00> : vector<128xf32>
    %143 = vector.multi_reduction <add>, %142, %cst_85 [1] : vector<128x16xf32> to vector<128xf32>
    %144 = vector.shape_cast %143 : vector<128xf32> to vector<128x1xf32>
    %145 = vector.extract_strided_slice %144 {offsets = [0, 0], sizes = [32, 1], strides = [1, 1]} : vector<128x1xf32> to vector<32x1xf32>
    %146 = vector.extract_strided_slice %144 {offsets = [32, 0], sizes = [32, 1], strides = [1, 1]} : vector<128x1xf32> to vector<32x1xf32>
    %147 = arith.addf %145, %146 : vector<32x1xf32>
    %148 = vector.extract_strided_slice %144 {offsets = [64, 0], sizes = [32, 1], strides = [1, 1]} : vector<128x1xf32> to vector<32x1xf32>
    %149 = arith.addf %147, %148 : vector<32x1xf32>
    %150 = vector.extract_strided_slice %144 {offsets = [96, 0], sizes = [32, 1], strides = [1, 1]} : vector<128x1xf32> to vector<32x1xf32>
    %151 = arith.addf %149, %150 : vector<32x1xf32>
    %cst_86 = arith.constant 1.562500e-02 : f32
    %152 = vector.broadcast %cst_86 : f32 to vector<32x1xf32>
    %153 = arith.mulf %151, %152 : vector<32x1xf32>
    %cst_87 = arith.constant 9.99999974E-6 : f32
    %154 = vector.broadcast %cst_87 : f32 to vector<32x1xf32>
    %155 = arith.addf %153, %154 : vector<32x1xf32>
    %156 = math.rsqrt %155 : vector<32x1xf32>
    %157 = arith.mulf %126, %156 : vector<32x1xf32>
    %158 = tpu.concatenate %157, %157, %157, %157 in 0 : vector<32x1xf32>, vector<32x1xf32>, vector<32x1xf32>, vector<32x1xf32> -> vector<128x1xf32>
    %159 = tpu.concatenate %127, %127, %127, %127 in 0 : vector<32x1xf32>, vector<32x1xf32>, vector<32x1xf32>, vector<32x1xf32> -> vector<128x1xf32>
    %160 = vector.broadcast %158 : vector<128x1xf32> to vector<128x16xf32>
    %161 = arith.mulf %141, %160 : vector<128x16xf32>
    %162 = vector.broadcast %159 : vector<128x1xf32> to vector<128x16xf32>
    %163 = arith.addf %161, %162 : vector<128x16xf32>
    %cst_88 = arith.constant 0.000000e+00 : f32
    %164 = vector.broadcast %cst_88 : f32 to vector<128x16xf32>
    %165 = arith.maximumf %163, %164 : vector<128x16xf32>
    %c0_89 = arith.constant 0 : index
    %c0_90 = arith.constant 0 : index
    %c0_91 = arith.constant 0 : index
    %166 = vector.load %arg9[%c0_89, %c0_90, %c0_91] : memref<2x16x32xbf16, #tpu.memory_space<vmem>>, vector<1x16x32xbf16>
    %167 = vector.shape_cast %166 : vector<1x16x32xbf16> to vector<16x32xbf16>
    %c1_92 = arith.constant 1 : index
    %c0_93 = arith.constant 0 : index
    %c0_94 = arith.constant 0 : index
    %168 = vector.load %arg9[%c1_92, %c0_93, %c0_94] : memref<2x16x32xbf16, #tpu.memory_space<vmem>>, vector<1x16x32xbf16>
    %169 = vector.shape_cast %168 : vector<1x16x32xbf16> to vector<16x32xbf16>
    %170 = vector.extract_strided_slice %165 {offsets = [0, 0], sizes = [32, 16], strides = [1, 1]} : vector<128x16xf32> to vector<32x16xf32>
    %171 = arith.truncf %170 : vector<32x16xf32> to vector<32x16xbf16>
    %172 = vector.extract_strided_slice %165 {offsets = [32, 0], sizes = [32, 16], strides = [1, 1]} : vector<128x16xf32> to vector<32x16xf32>
    %173 = arith.truncf %172 : vector<32x16xf32> to vector<32x16xbf16>
    %174 = vector.extract_strided_slice %165 {offsets = [64, 0], sizes = [32, 16], strides = [1, 1]} : vector<128x16xf32> to vector<32x16xf32>
    %175 = arith.truncf %174 : vector<32x16xf32> to vector<32x16xbf16>
    %176 = vector.extract_strided_slice %165 {offsets = [96, 0], sizes = [32, 16], strides = [1, 1]} : vector<128x16xf32> to vector<32x16xf32>
    %177 = arith.truncf %176 : vector<32x16xf32> to vector<32x16xbf16>
    %cst_95 = arith.constant dense<0.000000e+00> : vector<32x32xf32>
    %178 = tpu.matmul %171, %167, %cst_95 {dimension_numbers = #tpu.dot_dimension_numbers<[1], [0], [0], [1], [0, 0, 1, 1], [], []>} : vector<32x16xbf16>, vector<16x32xbf16>, vector<32x32xf32> -> vector<32x32xf32>
    %cst_96 = arith.constant dense<0.000000e+00> : vector<32x32xf32>
    %179 = tpu.matmul %173, %169, %cst_96 {dimension_numbers = #tpu.dot_dimension_numbers<[1], [0], [0], [1], [0, 0, 1, 1], [], []>} : vector<32x16xbf16>, vector<16x32xbf16>, vector<32x32xf32> -> vector<32x32xf32>
    %180 = arith.addf %178, %179 : vector<32x32xf32>
    %181 = arith.truncf %180 : vector<32x32xf32> to vector<32x32xbf16>
    %cst_97 = arith.constant dense<0.000000e+00> : vector<32x32xf32>
    %182 = tpu.matmul %175, %167, %cst_97 {dimension_numbers = #tpu.dot_dimension_numbers<[1], [0], [0], [1], [0, 0, 1, 1], [], []>} : vector<32x16xbf16>, vector<16x32xbf16>, vector<32x32xf32> -> vector<32x32xf32>
    %cst_98 = arith.constant dense<0.000000e+00> : vector<32x32xf32>
    %183 = tpu.matmul %177, %169, %cst_98 {dimension_numbers = #tpu.dot_dimension_numbers<[1], [0], [0], [1], [0, 0, 1, 1], [], []>} : vector<32x16xbf16>, vector<16x32xbf16>, vector<32x32xf32> -> vector<32x32xf32>
    %184 = arith.addf %182, %183 : vector<32x32xf32>
    %185 = arith.truncf %184 : vector<32x32xf32> to vector<32x32xbf16>
    %cst_99 = arith.constant 0.000000e+00 : bf16
    %186 = vector.broadcast %cst_99 : bf16 to vector<32x9xbf16>
    %c0_100 = arith.constant 0 : index
    %c0_101 = arith.constant 0 : index
    %187 = vector.load %arg22[%c0_100, %c0_101] : memref<32x82xbf16, #tpu.memory_space<vmem>>, vector<32x9xbf16>
    tpu.vector_store %arg22[%c0_100, %c0_101], %186 {strides = array<i32>} : memref<32x82xbf16, #tpu.memory_space<vmem>>, vector<32x9xbf16>,
    %c0_102 = arith.constant 0 : index
    %c73 = arith.constant 73 : index
    %188 = vector.load %arg22[%c0_102, %c73] : memref<32x82xbf16, #tpu.memory_space<vmem>>, vector<32x9xbf16>
    tpu.vector_store %arg22[%c0_102, %c73], %186 {strides = array<i32>} : memref<32x82xbf16, #tpu.memory_space<vmem>>, vector<32x9xbf16>,
    %189 = vector.extract_strided_slice %181 {offsets = [0, 0], sizes = [32, 8], strides = [1, 1]} : vector<32x32xbf16> to vector<32x8xbf16>
    %c0_103 = arith.constant 0 : index
    %c9_104 = arith.constant 9 : index
    %190 = vector.load %arg22[%c0_103, %c9_104] : memref<32x82xbf16, #tpu.memory_space<vmem>>, vector<32x8xbf16>
    tpu.vector_store %arg22[%c0_103, %c9_104], %189 {strides = array<i32>} : memref<32x82xbf16, #tpu.memory_space<vmem>>, vector<32x8xbf16>,
    %191 = vector.extract_strided_slice %185 {offsets = [0, 0], sizes = [32, 8], strides = [1, 1]} : vector<32x32xbf16> to vector<32x8xbf16>
    %c0_105 = arith.constant 0 : index
    %c17 = arith.constant 17 : index
    %192 = vector.load %arg22[%c0_105, %c17] : memref<32x82xbf16, #tpu.memory_space<vmem>>, vector<32x8xbf16>
    tpu.vector_store %arg22[%c0_105, %c17], %191 {strides = array<i32>} : memref<32x82xbf16, #tpu.memory_space<vmem>>, vector<32x8xbf16>,
    %193 = vector.extract_strided_slice %181 {offsets = [0, 8], sizes = [32, 8], strides = [1, 1]} : vector<32x32xbf16> to vector<32x8xbf16>
    %c0_106 = arith.constant 0 : index
    %c25 = arith.constant 25 : index
    %194 = vector.load %arg22[%c0_106, %c25] : memref<32x82xbf16, #tpu.memory_space<vmem>>, vector<32x8xbf16>
    tpu.vector_store %arg22[%c0_106, %c25], %193 {strides = array<i32>} : memref<32x82xbf16, #tpu.memory_space<vmem>>, vector<32x8xbf16>,
    %195 = vector.extract_strided_slice %185 {offsets = [0, 8], sizes = [32, 8], strides = [1, 1]} : vector<32x32xbf16> to vector<32x8xbf16>
    %c0_107 = arith.constant 0 : index
    %c33 = arith.constant 33 : index
    %196 = vector.load %arg22[%c0_107, %c33] : memref<32x82xbf16, #tpu.memory_space<vmem>>, vector<32x8xbf16>
    tpu.vector_store %arg22[%c0_107, %c33], %195 {strides = array<i32>} : memref<32x82xbf16, #tpu.memory_space<vmem>>, vector<32x8xbf16>,
    %197 = vector.extract_strided_slice %181 {offsets = [0, 16], sizes = [32, 8], strides = [1, 1]} : vector<32x32xbf16> to vector<32x8xbf16>
    %c0_108 = arith.constant 0 : index
    %c41 = arith.constant 41 : index
    %198 = vector.load %arg22[%c0_108, %c41] : memref<32x82xbf16, #tpu.memory_space<vmem>>, vector<32x8xbf16>
    tpu.vector_store %arg22[%c0_108, %c41], %197 {strides = array<i32>} : memref<32x82xbf16, #tpu.memory_space<vmem>>, vector<32x8xbf16>,
    %199 = vector.extract_strided_slice %185 {offsets = [0, 16], sizes = [32, 8], strides = [1, 1]} : vector<32x32xbf16> to vector<32x8xbf16>
    %c0_109 = arith.constant 0 : index
    %c49 = arith.constant 49 : index
    %200 = vector.load %arg22[%c0_109, %c49] : memref<32x82xbf16, #tpu.memory_space<vmem>>, vector<32x8xbf16>
    tpu.vector_store %arg22[%c0_109, %c49], %199 {strides = array<i32>} : memref<32x82xbf16, #tpu.memory_space<vmem>>, vector<32x8xbf16>,
    %201 = vector.extract_strided_slice %181 {offsets = [0, 24], sizes = [32, 8], strides = [1, 1]} : vector<32x32xbf16> to vector<32x8xbf16>
    %c0_110 = arith.constant 0 : index
    %c57 = arith.constant 57 : index
    %202 = vector.load %arg22[%c0_110, %c57] : memref<32x82xbf16, #tpu.memory_space<vmem>>, vector<32x8xbf16>
    tpu.vector_store %arg22[%c0_110, %c57], %201 {strides = array<i32>} : memref<32x82xbf16, #tpu.memory_space<vmem>>, vector<32x8xbf16>,
    %203 = vector.extract_strided_slice %185 {offsets = [0, 24], sizes = [32, 8], strides = [1, 1]} : vector<32x32xbf16> to vector<32x8xbf16>
    %c0_111 = arith.constant 0 : index
    %c65 = arith.constant 65 : index
    %204 = vector.load %arg22[%c0_111, %c65] : memref<32x82xbf16, #tpu.memory_space<vmem>>, vector<32x8xbf16>
    tpu.vector_store %arg22[%c0_111, %c65], %203 {strides = array<i32>} : memref<32x82xbf16, #tpu.memory_space<vmem>>, vector<32x8xbf16>,
    %205 = tpu.iota {dimensions = array<i32: 1>} : vector<32x64xi32>
    %c7_i32 = arith.constant 7 : i32
    %206 = vector.broadcast %c7_i32 : i32 to vector<32x64xi32>
    %207 = arith.andi %205, %206 : vector<32x64xi32>
    %c1_i32_112 = arith.constant 1 : i32
    %208 = vector.broadcast %c1_i32_112 : i32 to vector<32x64xi32>
    %209 = arith.cmpi sge, %207, %208 : vector<32x64xi32>
    %c6_i32 = arith.constant 6 : i32
    %210 = vector.broadcast %c6_i32 : i32 to vector<32x64xi32>
    %211 = arith.cmpi sle, %207, %210 : vector<32x64xi32>
    %c0_113 = arith.constant 0 : index
    %c0_114 = arith.constant 0 : index
    %212 = vector.load %arg22[%c0_113, %c0_114] : memref<32x82xbf16, #tpu.memory_space<vmem>>, vector<32x64xbf16>
    %cst_115 = arith.constant 0.000000e+00 : bf16
    %213 = vector.broadcast %cst_115 : bf16 to vector<32x64xbf16>
    %214 = arith.select %209, %212, %213 : vector<32x64xi1>, vector<32x64xbf16>
    %c0_116 = arith.constant 0 : index
    %c0_117 = arith.constant 0 : index
    %215 = vector.load %arg23[%c0_116, %c0_117] : memref<288x64xbf16, #tpu.memory_space<vmem>>, vector<32x64xbf16>
    tpu.vector_store %arg23[%c0_116, %c0_117], %214 {strides = array<i32>} : memref<288x64xbf16, #tpu.memory_space<vmem>>, vector<32x64xbf16>,
    %c0_118 = arith.constant 0 : index
    %c1_119 = arith.constant 1 : index
    %216 = vector.load %arg22[%c0_118, %c1_119] : memref<32x82xbf16, #tpu.memory_space<vmem>>, vector<32x64xbf16>
    %c32 = arith.constant 32 : index
    %c0_120 = arith.constant 0 : index
    %217 = vector.load %arg23[%c32, %c0_120] : memref<288x64xbf16, #tpu.memory_space<vmem>>, vector<32x64xbf16>
    tpu.vector_store %arg23[%c32, %c0_120], %216 {strides = array<i32>} : memref<288x64xbf16, #tpu.memory_space<vmem>>, vector<32x64xbf16>,
    %c0_121 = arith.constant 0 : index
    %c2_122 = arith.constant 2 : index
    %218 = vector.load %arg22[%c0_121, %c2_122] : memref<32x82xbf16, #tpu.memory_space<vmem>>, vector<32x64xbf16>
    %cst_123 = arith.constant 0.000000e+00 : bf16
    %219 = vector.broadcast %cst_123 : bf16 to vector<32x64xbf16>
    %220 = arith.select %211, %218, %219 : vector<32x64xi1>, vector<32x64xbf16>
    %c64_124 = arith.constant 64 : index
    %c0_125 = arith.constant 0 : index
    %221 = vector.load %arg23[%c64_124, %c0_125] : memref<288x64xbf16, #tpu.memory_space<vmem>>, vector<32x64xbf16>
    tpu.vector_store %arg23[%c64_124, %c0_125], %220 {strides = array<i32>} : memref<288x64xbf16, #tpu.memory_space<vmem>>, vector<32x64xbf16>,
    %c0_126 = arith.constant 0 : index
    %c8_127 = arith.constant 8 : index
    %222 = vector.load %arg22[%c0_126, %c8_127] : memref<32x82xbf16, #tpu.memory_space<vmem>>, vector<32x64xbf16>
    %cst_128 = arith.constant 0.000000e+00 : bf16
    %223 = vector.broadcast %cst_128 : bf16 to vector<32x64xbf16>
    %224 = arith.select %209, %222, %223 : vector<32x64xi1>, vector<32x64xbf16>
    %c96 = arith.constant 96 : index
    %c0_129 = arith.constant 0 : index
    %225 = vector.load %arg23[%c96, %c0_129] : memref<288x64xbf16, #tpu.memory_space<vmem>>, vector<32x64xbf16>
    tpu.vector_store %arg23[%c96, %c0_129], %224 {strides = array<i32>} : memref<288x64xbf16, #tpu.memory_space<vmem>>, vector<32x64xbf16>,
    %c0_130 = arith.constant 0 : index
    %c9_131 = arith.constant 9 : index
    %226 = vector.load %arg22[%c0_130, %c9_131] : memref<32x82xbf16, #tpu.memory_space<vmem>>, vector<32x64xbf16>
    %c128_132 = arith.constant 128 : index
    %c0_133 = arith.constant 0 : index
    %227 = vector.load %arg23[%c128_132, %c0_133] : memref<288x64xbf16, #tpu.memory_space<vmem>>, vector<32x64xbf16>
    tpu.vector_store %arg23[%c128_132, %c0_133], %226 {strides = array<i32>} : memref<288x64xbf16, #tpu.memory_space<vmem>>, vector<32x64xbf16>,
    %c0_134 = arith.constant 0 : index
    %c10_135 = arith.constant 10 : index
    %228 = vector.load %arg22[%c0_134, %c10_135] : memref<32x82xbf16, #tpu.memory_space<vmem>>, vector<32x64xbf16>
    %cst_136 = arith.constant 0.000000e+00 : bf16
    %229 = vector.broadcast %cst_136 : bf16 to vector<32x64xbf16>
    %230 = arith.select %211, %228, %229 : vector<32x64xi1>, vector<32x64xbf16>
    %c160 = arith.constant 160 : index
    %c0_137 = arith.constant 0 : index
    %231 = vector.load %arg23[%c160, %c0_137] : memref<288x64xbf16, #tpu.memory_space<vmem>>, vector<32x64xbf16>
    tpu.vector_store %arg23[%c160, %c0_137], %230 {strides = array<i32>} : memref<288x64xbf16, #tpu.memory_space<vmem>>, vector<32x64xbf16>,
    %c0_138 = arith.constant 0 : index
    %c16 = arith.constant 16 : index
    %232 = vector.load %arg22[%c0_138, %c16] : memref<32x82xbf16, #tpu.memory_space<vmem>>, vector<32x64xbf16>
    %cst_139 = arith.constant 0.000000e+00 : bf16
    %233 = vector.broadcast %cst_139 : bf16 to vector<32x64xbf16>
    %234 = arith.select %209, %232, %233 : vector<32x64xi1>, vector<32x64xbf16>
    %c192_140 = arith.constant 192 : index
    %c0_141 = arith.constant 0 : index
    %235 = vector.load %arg23[%c192_140, %c0_141] : memref<288x64xbf16, #tpu.memory_space<vmem>>, vector<32x64xbf16>
    tpu.vector_store %arg23[%c192_140, %c0_141], %234 {strides = array<i32>} : memref<288x64xbf16, #tpu.memory_space<vmem>>, vector<32x64xbf16>,
    %c0_142 = arith.constant 0 : index
    %c17_143 = arith.constant 17 : index
    %236 = vector.load %arg22[%c0_142, %c17_143] : memref<32x82xbf16, #tpu.memory_space<vmem>>, vector<32x64xbf16>
    %c224 = arith.constant 224 : index
    %c0_144 = arith.constant 0 : index
    %237 = vector.load %arg23[%c224, %c0_144] : memref<288x64xbf16, #tpu.memory_space<vmem>>, vector<32x64xbf16>
    tpu.vector_store %arg23[%c224, %c0_144], %236 {strides = array<i32>} : memref<288x64xbf16, #tpu.memory_space<vmem>>, vector<32x64xbf16>,
    %c0_145 = arith.constant 0 : index
    %c18 = arith.constant 18 : index
    %238 = vector.load %arg22[%c0_145, %c18] : memref<32x82xbf16, #tpu.memory_space<vmem>>, vector<32x64xbf16>
    %cst_146 = arith.constant 0.000000e+00 : bf16
    %239 = vector.broadcast %cst_146 : bf16 to vector<32x64xbf16>
    %240 = arith.select %211, %238, %239 : vector<32x64xi1>, vector<32x64xbf16>
    %c256_147 = arith.constant 256 : index
    %c0_148 = arith.constant 0 : index
    %241 = vector.load %arg23[%c256_147, %c0_148] : memref<288x64xbf16, #tpu.memory_space<vmem>>, vector<32x64xbf16>
    tpu.vector_store %arg23[%c256_147, %c0_148], %240 {strides = array<i32>} : memref<288x64xbf16, #tpu.memory_space<vmem>>, vector<32x64xbf16>,
    %c0_149 = arith.constant 0 : index
    %c0_150 = arith.constant 0 : index
    %242 = vector.load %arg10[%c0_149, %c0_150] : memref<64x288xbf16, #tpu.memory_space<vmem>>, vector<64x288xbf16>
    %c0_151 = arith.constant 0 : index
    %c0_152 = arith.constant 0 : index
    %243 = vector.load %arg23[%c0_151, %c0_152] : memref<288x64xbf16, #tpu.memory_space<vmem>>, vector<288x64xbf16>
    %cst_153 = arith.constant dense<0.000000e+00> : vector<64x64xf32>
    %244 = tpu.matmul %242, %243, %cst_153 {dimension_numbers = #tpu.dot_dimension_numbers<[1], [0], [0], [1], [0, 0, 1, 1], [], []>} : vector<64x288xbf16>, vector<288x64xbf16>, vector<64x64xf32> -> vector<64x64xf32>
    %c0_154 = arith.constant 0 : index
    %c0_155 = arith.constant 0 : index
    %245 = vector.load %arg11[%c0_154, %c0_155] : memref<16x1xf32, #tpu.memory_space<vmem>>, vector<16x1xf32>
    %c0_156 = arith.constant 0 : index
    %c0_157 = arith.constant 0 : index
    %246 = vector.load %arg12[%c0_156, %c0_157] : memref<16x1xf32, #tpu.memory_space<vmem>>, vector<16x1xf32>
    %cst_158 = arith.constant dense<0.000000e+00> : vector<64xf32>
    %247 = vector.multi_reduction <add>, %244, %cst_158 [1] : vector<64x64xf32> to vector<64xf32>
    %248 = vector.shape_cast %247 : vector<64xf32> to vector<64x1xf32>
    %249 = vector.extract_strided_slice %248 {offsets = [0, 0], sizes = [16, 1], strides = [1, 1]} : vector<64x1xf32> to vector<16x1xf32>
    %250 = vector.extract_strided_slice %248 {offsets = [16, 0], sizes = [16, 1], strides = [1, 1]} : vector<64x1xf32> to vector<16x1xf32>
    %251 = arith.addf %249, %250 : vector<16x1xf32>
    %252 = vector.extract_strided_slice %248 {offsets = [32, 0], sizes = [16, 1], strides = [1, 1]} : vector<64x1xf32> to vector<16x1xf32>
    %253 = arith.addf %251, %252 : vector<16x1xf32>
    %254 = vector.extract_strided_slice %248 {offsets = [48, 0], sizes = [16, 1], strides = [1, 1]} : vector<64x1xf32> to vector<16x1xf32>
    %255 = arith.addf %253, %254 : vector<16x1xf32>
    %cst_159 = arith.constant 3.906250e-03 : f32
    %256 = vector.broadcast %cst_159 : f32 to vector<16x1xf32>
    %257 = arith.mulf %255, %256 : vector<16x1xf32>
    %258 = tpu.concatenate %257, %257, %257, %257 in 0 : vector<16x1xf32>, vector<16x1xf32>, vector<16x1xf32>, vector<16x1xf32> -> vector<64x1xf32>
    %259 = vector.broadcast %258 : vector<64x1xf32> to vector<64x64xf32>
    %260 = arith.subf %244, %259 : vector<64x64xf32>
    %261 = arith.mulf %260, %260 : vector<64x64xf32>
    %cst_160 = arith.constant dense<0.000000e+00> : vector<64xf32>
    %262 = vector.multi_reduction <add>, %261, %cst_160 [1] : vector<64x64xf32> to vector<64xf32>
    %263 = vector.shape_cast %262 : vector<64xf32> to vector<64x1xf32>
    %264 = vector.extract_strided_slice %263 {offsets = [0, 0], sizes = [16, 1], strides = [1, 1]} : vector<64x1xf32> to vector<16x1xf32>
    %265 = vector.extract_strided_slice %263 {offsets = [16, 0], sizes = [16, 1], strides = [1, 1]} : vector<64x1xf32> to vector<16x1xf32>
    %266 = arith.addf %264, %265 : vector<16x1xf32>
    %267 = vector.extract_strided_slice %263 {offsets = [32, 0], sizes = [16, 1], strides = [1, 1]} : vector<64x1xf32> to vector<16x1xf32>
    %268 = arith.addf %266, %267 : vector<16x1xf32>
    %269 = vector.extract_strided_slice %263 {offsets = [48, 0], sizes = [16, 1], strides = [1, 1]} : vector<64x1xf32> to vector<16x1xf32>
    %270 = arith.addf %268, %269 : vector<16x1xf32>
    %cst_161 = arith.constant 3.906250e-03 : f32
    %271 = vector.broadcast %cst_161 : f32 to vector<16x1xf32>
    %272 = arith.mulf %270, %271 : vector<16x1xf32>
    %cst_162 = arith.constant 9.99999974E-6 : f32
    %273 = vector.broadcast %cst_162 : f32 to vector<16x1xf32>
    %274 = arith.addf %272, %273 : vector<16x1xf32>
    %275 = math.rsqrt %274 : vector<16x1xf32>
    %276 = arith.mulf %245, %275 : vector<16x1xf32>
    %277 = tpu.concatenate %276, %276, %276, %276 in 0 : vector<16x1xf32>, vector<16x1xf32>, vector<16x1xf32>, vector<16x1xf32> -> vector<64x1xf32>
    %278 = tpu.concatenate %246, %246, %246, %246 in 0 : vector<16x1xf32>, vector<16x1xf32>, vector<16x1xf32>, vector<16x1xf32> -> vector<64x1xf32>
    %279 = vector.broadcast %277 : vector<64x1xf32> to vector<64x64xf32>
    %280 = arith.mulf %260, %279 : vector<64x64xf32>
    %281 = vector.broadcast %278 : vector<64x1xf32> to vector<64x64xf32>
    %282 = arith.addf %280, %281 : vector<64x64xf32>
    %cst_163 = arith.constant 0.000000e+00 : f32
    %283 = vector.broadcast %cst_163 : f32 to vector<64x64xf32>
    %284 = arith.maximumf %282, %283 : vector<64x64xf32>
    %c0_164 = arith.constant 0 : index
    %c0_165 = arith.constant 0 : index
    %c0_166 = arith.constant 0 : index
    %285 = vector.load %arg13[%c0_164, %c0_165, %c0_166] : memref<2x64x128xbf16, #tpu.memory_space<vmem>>, vector<1x64x128xbf16>
    %286 = vector.shape_cast %285 : vector<1x64x128xbf16> to vector<64x128xbf16>
    %c1_167 = arith.constant 1 : index
    %c0_168 = arith.constant 0 : index
    %c0_169 = arith.constant 0 : index
    %287 = vector.load %arg13[%c1_167, %c0_168, %c0_169] : memref<2x64x128xbf16, #tpu.memory_space<vmem>>, vector<1x64x128xbf16>
    %288 = vector.shape_cast %287 : vector<1x64x128xbf16> to vector<64x128xbf16>
    %289 = vector.extract_strided_slice %284 {offsets = [0, 0], sizes = [16, 64], strides = [1, 1]} : vector<64x64xf32> to vector<16x64xf32>
    %290 = arith.truncf %289 : vector<16x64xf32> to vector<16x64xbf16>
    %291 = vector.extract_strided_slice %284 {offsets = [16, 0], sizes = [16, 64], strides = [1, 1]} : vector<64x64xf32> to vector<16x64xf32>
    %292 = arith.truncf %291 : vector<16x64xf32> to vector<16x64xbf16>
    %293 = vector.extract_strided_slice %284 {offsets = [32, 0], sizes = [16, 64], strides = [1, 1]} : vector<64x64xf32> to vector<16x64xf32>
    %294 = arith.truncf %293 : vector<16x64xf32> to vector<16x64xbf16>
    %295 = vector.extract_strided_slice %284 {offsets = [48, 0], sizes = [16, 64], strides = [1, 1]} : vector<64x64xf32> to vector<16x64xf32>
    %296 = arith.truncf %295 : vector<16x64xf32> to vector<16x64xbf16>
    %cst_170 = arith.constant dense<0.000000e+00> : vector<16x128xf32>
    %297 = tpu.matmul %290, %286, %cst_170 {dimension_numbers = #tpu.dot_dimension_numbers<[1], [0], [0], [1], [0, 0, 1, 1], [], []>} : vector<16x64xbf16>, vector<64x128xbf16>, vector<16x128xf32> -> vector<16x128xf32>
    %cst_171 = arith.constant dense<0.000000e+00> : vector<16x128xf32>
    %298 = tpu.matmul %292, %288, %cst_171 {dimension_numbers = #tpu.dot_dimension_numbers<[1], [0], [0], [1], [0, 0, 1, 1], [], []>} : vector<16x64xbf16>, vector<64x128xbf16>, vector<16x128xf32> -> vector<16x128xf32>
    %299 = arith.addf %297, %298 : vector<16x128xf32>
    %300 = arith.truncf %299 : vector<16x128xf32> to vector<16x128xbf16>
    %cst_172 = arith.constant dense<0.000000e+00> : vector<16x128xf32>
    %301 = tpu.matmul %294, %286, %cst_172 {dimension_numbers = #tpu.dot_dimension_numbers<[1], [0], [0], [1], [0, 0, 1, 1], [], []>} : vector<16x64xbf16>, vector<64x128xbf16>, vector<16x128xf32> -> vector<16x128xf32>
    %cst_173 = arith.constant dense<0.000000e+00> : vector<16x128xf32>
    %302 = tpu.matmul %296, %288, %cst_173 {dimension_numbers = #tpu.dot_dimension_numbers<[1], [0], [0], [1], [0, 0, 1, 1], [], []>} : vector<16x64xbf16>, vector<64x128xbf16>, vector<16x128xf32> -> vector<16x128xf32>
    %303 = arith.addf %301, %302 : vector<16x128xf32>
    %304 = arith.truncf %303 : vector<16x128xf32> to vector<16x128xbf16>
    %cst_174 = arith.constant 0.000000e+00 : bf16
    %305 = vector.broadcast %cst_174 : bf16 to vector<16x17xbf16>
    %c0_175 = arith.constant 0 : index
    %c0_176 = arith.constant 0 : index
    %306 = vector.load %arg24[%c0_175, %c0_176] : memref<16x290xbf16, #tpu.memory_space<vmem>>, vector<16x17xbf16>
    tpu.vector_store %arg24[%c0_175, %c0_176], %305 {strides = array<i32>} : memref<16x290xbf16, #tpu.memory_space<vmem>>, vector<16x17xbf16>,
    %c0_177 = arith.constant 0 : index
    %c273 = arith.constant 273 : index
    %307 = vector.load %arg24[%c0_177, %c273] : memref<16x290xbf16, #tpu.memory_space<vmem>>, vector<16x17xbf16>
    tpu.vector_store %arg24[%c0_177, %c273], %305 {strides = array<i32>} : memref<16x290xbf16, #tpu.memory_space<vmem>>, vector<16x17xbf16>,
    %308 = vector.extract_strided_slice %300 {offsets = [0, 0], sizes = [16, 16], strides = [1, 1]} : vector<16x128xbf16> to vector<16x16xbf16>
    %c0_178 = arith.constant 0 : index
    %c17_179 = arith.constant 17 : index
    %309 = vector.load %arg24[%c0_178, %c17_179] : memref<16x290xbf16, #tpu.memory_space<vmem>>, vector<16x16xbf16>
    tpu.vector_store %arg24[%c0_178, %c17_179], %308 {strides = array<i32>} : memref<16x290xbf16, #tpu.memory_space<vmem>>, vector<16x16xbf16>,
    %310 = vector.extract_strided_slice %304 {offsets = [0, 0], sizes = [16, 16], strides = [1, 1]} : vector<16x128xbf16> to vector<16x16xbf16>
    %c0_180 = arith.constant 0 : index
    %c33_181 = arith.constant 33 : index
    %311 = vector.load %arg24[%c0_180, %c33_181] : memref<16x290xbf16, #tpu.memory_space<vmem>>, vector<16x16xbf16>
    tpu.vector_store %arg24[%c0_180, %c33_181], %310 {strides = array<i32>} : memref<16x290xbf16, #tpu.memory_space<vmem>>, vector<16x16xbf16>,
    %312 = vector.extract_strided_slice %300 {offsets = [0, 16], sizes = [16, 16], strides = [1, 1]} : vector<16x128xbf16> to vector<16x16xbf16>
    %c0_182 = arith.constant 0 : index
    %c49_183 = arith.constant 49 : index
    %313 = vector.load %arg24[%c0_182, %c49_183] : memref<16x290xbf16, #tpu.memory_space<vmem>>, vector<16x16xbf16>
    tpu.vector_store %arg24[%c0_182, %c49_183], %312 {strides = array<i32>} : memref<16x290xbf16, #tpu.memory_space<vmem>>, vector<16x16xbf16>,
    %314 = vector.extract_strided_slice %304 {offsets = [0, 16], sizes = [16, 16], strides = [1, 1]} : vector<16x128xbf16> to vector<16x16xbf16>
    %c0_184 = arith.constant 0 : index
    %c65_185 = arith.constant 65 : index
    %315 = vector.load %arg24[%c0_184, %c65_185] : memref<16x290xbf16, #tpu.memory_space<vmem>>, vector<16x16xbf16>
    tpu.vector_store %arg24[%c0_184, %c65_185], %314 {strides = array<i32>} : memref<16x290xbf16, #tpu.memory_space<vmem>>, vector<16x16xbf16>,
    %316 = vector.extract_strided_slice %300 {offsets = [0, 32], sizes = [16, 16], strides = [1, 1]} : vector<16x128xbf16> to vector<16x16xbf16>
    %c0_186 = arith.constant 0 : index
    %c81 = arith.constant 81 : index
    %317 = vector.load %arg24[%c0_186, %c81] : memref<16x290xbf16, #tpu.memory_space<vmem>>, vector<16x16xbf16>
    tpu.vector_store %arg24[%c0_186, %c81], %316 {strides = array<i32>} : memref<16x290xbf16, #tpu.memory_space<vmem>>, vector<16x16xbf16>,
    %318 = vector.extract_strided_slice %304 {offsets = [0, 32], sizes = [16, 16], strides = [1, 1]} : vector<16x128xbf16> to vector<16x16xbf16>
    %c0_187 = arith.constant 0 : index
    %c97 = arith.constant 97 : index
    %319 = vector.load %arg24[%c0_187, %c97] : memref<16x290xbf16, #tpu.memory_space<vmem>>, vector<16x16xbf16>
    tpu.vector_store %arg24[%c0_187, %c97], %318 {strides = array<i32>} : memref<16x290xbf16, #tpu.memory_space<vmem>>, vector<16x16xbf16>,
    %320 = vector.extract_strided_slice %300 {offsets = [0, 48], sizes = [16, 16], strides = [1, 1]} : vector<16x128xbf16> to vector<16x16xbf16>
    %c0_188 = arith.constant 0 : index
    %c113 = arith.constant 113 : index
    %321 = vector.load %arg24[%c0_188, %c113] : memref<16x290xbf16, #tpu.memory_space<vmem>>, vector<16x16xbf16>
    tpu.vector_store %arg24[%c0_188, %c113], %320 {strides = array<i32>} : memref<16x290xbf16, #tpu.memory_space<vmem>>, vector<16x16xbf16>,
    %322 = vector.extract_strided_slice %304 {offsets = [0, 48], sizes = [16, 16], strides = [1, 1]} : vector<16x128xbf16> to vector<16x16xbf16>
    %c0_189 = arith.constant 0 : index
    %c129 = arith.constant 129 : index
    %323 = vector.load %arg24[%c0_189, %c129] : memref<16x290xbf16, #tpu.memory_space<vmem>>, vector<16x16xbf16>
    tpu.vector_store %arg24[%c0_189, %c129], %322 {strides = array<i32>} : memref<16x290xbf16, #tpu.memory_space<vmem>>, vector<16x16xbf16>,
    %324 = vector.extract_strided_slice %300 {offsets = [0, 64], sizes = [16, 16], strides = [1, 1]} : vector<16x128xbf16> to vector<16x16xbf16>
    %c0_190 = arith.constant 0 : index
    %c145 = arith.constant 145 : index
    %325 = vector.load %arg24[%c0_190, %c145] : memref<16x290xbf16, #tpu.memory_space<vmem>>, vector<16x16xbf16>
    tpu.vector_store %arg24[%c0_190, %c145], %324 {strides = array<i32>} : memref<16x290xbf16, #tpu.memory_space<vmem>>, vector<16x16xbf16>,
    %326 = vector.extract_strided_slice %304 {offsets = [0, 64], sizes = [16, 16], strides = [1, 1]} : vector<16x128xbf16> to vector<16x16xbf16>
    %c0_191 = arith.constant 0 : index
    %c161 = arith.constant 161 : index
    %327 = vector.load %arg24[%c0_191, %c161] : memref<16x290xbf16, #tpu.memory_space<vmem>>, vector<16x16xbf16>
    tpu.vector_store %arg24[%c0_191, %c161], %326 {strides = array<i32>} : memref<16x290xbf16, #tpu.memory_space<vmem>>, vector<16x16xbf16>,
    %328 = vector.extract_strided_slice %300 {offsets = [0, 80], sizes = [16, 16], strides = [1, 1]} : vector<16x128xbf16> to vector<16x16xbf16>
    %c0_192 = arith.constant 0 : index
    %c177 = arith.constant 177 : index
    %329 = vector.load %arg24[%c0_192, %c177] : memref<16x290xbf16, #tpu.memory_space<vmem>>, vector<16x16xbf16>
    tpu.vector_store %arg24[%c0_192, %c177], %328 {strides = array<i32>} : memref<16x290xbf16, #tpu.memory_space<vmem>>, vector<16x16xbf16>,
    %330 = vector.extract_strided_slice %304 {offsets = [0, 80], sizes = [16, 16], strides = [1, 1]} : vector<16x128xbf16> to vector<16x16xbf16>
    %c0_193 = arith.constant 0 : index
    %c193 = arith.constant 193 : index
    %331 = vector.load %arg24[%c0_193, %c193] : memref<16x290xbf16, #tpu.memory_space<vmem>>, vector<16x16xbf16>
    tpu.vector_store %arg24[%c0_193, %c193], %330 {strides = array<i32>} : memref<16x290xbf16, #tpu.memory_space<vmem>>, vector<16x16xbf16>,
    %332 = vector.extract_strided_slice %300 {offsets = [0, 96], sizes = [16, 16], strides = [1, 1]} : vector<16x128xbf16> to vector<16x16xbf16>
    %c0_194 = arith.constant 0 : index
    %c209 = arith.constant 209 : index
    %333 = vector.load %arg24[%c0_194, %c209] : memref<16x290xbf16, #tpu.memory_space<vmem>>, vector<16x16xbf16>
    tpu.vector_store %arg24[%c0_194, %c209], %332 {strides = array<i32>} : memref<16x290xbf16, #tpu.memory_space<vmem>>, vector<16x16xbf16>,
    %334 = vector.extract_strided_slice %304 {offsets = [0, 96], sizes = [16, 16], strides = [1, 1]} : vector<16x128xbf16> to vector<16x16xbf16>
    %c0_195 = arith.constant 0 : index
    %c225 = arith.constant 225 : index
    %335 = vector.load %arg24[%c0_195, %c225] : memref<16x290xbf16, #tpu.memory_space<vmem>>, vector<16x16xbf16>
    tpu.vector_store %arg24[%c0_195, %c225], %334 {strides = array<i32>} : memref<16x290xbf16, #tpu.memory_space<vmem>>, vector<16x16xbf16>,
    %336 = vector.extract_strided_slice %300 {offsets = [0, 112], sizes = [16, 16], strides = [1, 1]} : vector<16x128xbf16> to vector<16x16xbf16>
    %c0_196 = arith.constant 0 : index
    %c241 = arith.constant 241 : index
    %337 = vector.load %arg24[%c0_196, %c241] : memref<16x290xbf16, #tpu.memory_space<vmem>>, vector<16x16xbf16>
    tpu.vector_store %arg24[%c0_196, %c241], %336 {strides = array<i32>} : memref<16x290xbf16, #tpu.memory_space<vmem>>, vector<16x16xbf16>,
    %338 = vector.extract_strided_slice %304 {offsets = [0, 112], sizes = [16, 16], strides = [1, 1]} : vector<16x128xbf16> to vector<16x16xbf16>
    %c0_197 = arith.constant 0 : index
    %c257 = arith.constant 257 : index
    %339 = vector.load %arg24[%c0_197, %c257] : memref<16x290xbf16, #tpu.memory_space<vmem>>, vector<16x16xbf16>
    tpu.vector_store %arg24[%c0_197, %c257], %338 {strides = array<i32>} : memref<16x290xbf16, #tpu.memory_space<vmem>>, vector<16x16xbf16>,
    %340 = tpu.iota {dimensions = array<i32: 1>} : vector<16x256xi32>
    %c15_i32 = arith.constant 15 : i32
    %341 = vector.broadcast %c15_i32 : i32 to vector<16x256xi32>
    %342 = arith.andi %340, %341 : vector<16x256xi32>
    %c1_i32_198 = arith.constant 1 : i32
    %343 = vector.broadcast %c1_i32_198 : i32 to vector<16x256xi32>
    %344 = arith.cmpi sge, %342, %343 : vector<16x256xi32>
    %c14_i32 = arith.constant 14 : i32
    %345 = vector.broadcast %c14_i32 : i32 to vector<16x256xi32>
    %346 = arith.cmpi sle, %342, %345 : vector<16x256xi32>
    %c0_199 = arith.constant 0 : index
    %c0_200 = arith.constant 0 : index
    %347 = vector.load %arg24[%c0_199, %c0_200] : memref<16x290xbf16, #tpu.memory_space<vmem>>, vector<16x256xbf16>
    %cst_201 = arith.constant 0.000000e+00 : bf16
    %348 = vector.broadcast %cst_201 : bf16 to vector<16x256xbf16>
    %349 = arith.select %344, %347, %348 : vector<16x256xi1>, vector<16x256xbf16>
    %c0_202 = arith.constant 0 : index
    %c0_203 = arith.constant 0 : index
    %350 = vector.load %arg25[%c0_202, %c0_203] : memref<144x256xbf16, #tpu.memory_space<vmem>>, vector<16x256xbf16>
    tpu.vector_store %arg25[%c0_202, %c0_203], %349 {strides = array<i32>} : memref<144x256xbf16, #tpu.memory_space<vmem>>, vector<16x256xbf16>,
    %c0_204 = arith.constant 0 : index
    %c1_205 = arith.constant 1 : index
    %351 = vector.load %arg24[%c0_204, %c1_205] : memref<16x290xbf16, #tpu.memory_space<vmem>>, vector<16x256xbf16>
    %c16_206 = arith.constant 16 : index
    %c0_207 = arith.constant 0 : index
    %352 = vector.load %arg25[%c16_206, %c0_207] : memref<144x256xbf16, #tpu.memory_space<vmem>>, vector<16x256xbf16>
    tpu.vector_store %arg25[%c16_206, %c0_207], %351 {strides = array<i32>} : memref<144x256xbf16, #tpu.memory_space<vmem>>, vector<16x256xbf16>,
    %c0_208 = arith.constant 0 : index
    %c2_209 = arith.constant 2 : index
    %353 = vector.load %arg24[%c0_208, %c2_209] : memref<16x290xbf16, #tpu.memory_space<vmem>>, vector<16x256xbf16>
    %cst_210 = arith.constant 0.000000e+00 : bf16
    %354 = vector.broadcast %cst_210 : bf16 to vector<16x256xbf16>
    %355 = arith.select %346, %353, %354 : vector<16x256xi1>, vector<16x256xbf16>
    %c32_211 = arith.constant 32 : index
    %c0_212 = arith.constant 0 : index
    %356 = vector.load %arg25[%c32_211, %c0_212] : memref<144x256xbf16, #tpu.memory_space<vmem>>, vector<16x256xbf16>
    tpu.vector_store %arg25[%c32_211, %c0_212], %355 {strides = array<i32>} : memref<144x256xbf16, #tpu.memory_space<vmem>>, vector<16x256xbf16>,
    %c0_213 = arith.constant 0 : index
    %c16_214 = arith.constant 16 : index
    %357 = vector.load %arg24[%c0_213, %c16_214] : memref<16x290xbf16, #tpu.memory_space<vmem>>, vector<16x256xbf16>
    %cst_215 = arith.constant 0.000000e+00 : bf16
    %358 = vector.broadcast %cst_215 : bf16 to vector<16x256xbf16>
    %359 = arith.select %344, %357, %358 : vector<16x256xi1>, vector<16x256xbf16>
    %c48 = arith.constant 48 : index
    %c0_216 = arith.constant 0 : index
    %360 = vector.load %arg25[%c48, %c0_216] : memref<144x256xbf16, #tpu.memory_space<vmem>>, vector<16x256xbf16>
    tpu.vector_store %arg25[%c48, %c0_216], %359 {strides = array<i32>} : memref<144x256xbf16, #tpu.memory_space<vmem>>, vector<16x256xbf16>,
    %c0_217 = arith.constant 0 : index
    %c17_218 = arith.constant 17 : index
    %361 = vector.load %arg24[%c0_217, %c17_218] : memref<16x290xbf16, #tpu.memory_space<vmem>>, vector<16x256xbf16>
    %c64_219 = arith.constant 64 : index
    %c0_220 = arith.constant 0 : index
    %362 = vector.load %arg25[%c64_219, %c0_220] : memref<144x256xbf16, #tpu.memory_space<vmem>>, vector<16x256xbf16>
    tpu.vector_store %arg25[%c64_219, %c0_220], %361 {strides = array<i32>} : memref<144x256xbf16, #tpu.memory_space<vmem>>, vector<16x256xbf16>,
    %c0_221 = arith.constant 0 : index
    %c18_222 = arith.constant 18 : index
    %363 = vector.load %arg24[%c0_221, %c18_222] : memref<16x290xbf16, #tpu.memory_space<vmem>>, vector<16x256xbf16>
    %cst_223 = arith.constant 0.000000e+00 : bf16
    %364 = vector.broadcast %cst_223 : bf16 to vector<16x256xbf16>
    %365 = arith.select %346, %363, %364 : vector<16x256xi1>, vector<16x256xbf16>
    %c80 = arith.constant 80 : index
    %c0_224 = arith.constant 0 : index
    %366 = vector.load %arg25[%c80, %c0_224] : memref<144x256xbf16, #tpu.memory_space<vmem>>, vector<16x256xbf16>
    tpu.vector_store %arg25[%c80, %c0_224], %365 {strides = array<i32>} : memref<144x256xbf16, #tpu.memory_space<vmem>>, vector<16x256xbf16>,
    %c0_225 = arith.constant 0 : index
    %c32_226 = arith.constant 32 : index
    %367 = vector.load %arg24[%c0_225, %c32_226] : memref<16x290xbf16, #tpu.memory_space<vmem>>, vector<16x256xbf16>
    %cst_227 = arith.constant 0.000000e+00 : bf16
    %368 = vector.broadcast %cst_227 : bf16 to vector<16x256xbf16>
    %369 = arith.select %344, %367, %368 : vector<16x256xi1>, vector<16x256xbf16>
    %c96_228 = arith.constant 96 : index
    %c0_229 = arith.constant 0 : index
    %370 = vector.load %arg25[%c96_228, %c0_229] : memref<144x256xbf16, #tpu.memory_space<vmem>>, vector<16x256xbf16>
    tpu.vector_store %arg25[%c96_228, %c0_229], %369 {strides = array<i32>} : memref<144x256xbf16, #tpu.memory_space<vmem>>, vector<16x256xbf16>,
    %c0_230 = arith.constant 0 : index
    %c33_231 = arith.constant 33 : index
    %371 = vector.load %arg24[%c0_230, %c33_231] : memref<16x290xbf16, #tpu.memory_space<vmem>>, vector<16x256xbf16>
    %c112 = arith.constant 112 : index
    %c0_232 = arith.constant 0 : index
    %372 = vector.load %arg25[%c112, %c0_232] : memref<144x256xbf16, #tpu.memory_space<vmem>>, vector<16x256xbf16>
    tpu.vector_store %arg25[%c112, %c0_232], %371 {strides = array<i32>} : memref<144x256xbf16, #tpu.memory_space<vmem>>, vector<16x256xbf16>,
    %c0_233 = arith.constant 0 : index
    %c34 = arith.constant 34 : index
    %373 = vector.load %arg24[%c0_233, %c34] : memref<16x290xbf16, #tpu.memory_space<vmem>>, vector<16x256xbf16>
    %cst_234 = arith.constant 0.000000e+00 : bf16
    %374 = vector.broadcast %cst_234 : bf16 to vector<16x256xbf16>
    %375 = arith.select %346, %373, %374 : vector<16x256xi1>, vector<16x256xbf16>
    %c128_235 = arith.constant 128 : index
    %c0_236 = arith.constant 0 : index
    %376 = vector.load %arg25[%c128_235, %c0_236] : memref<144x256xbf16, #tpu.memory_space<vmem>>, vector<16x256xbf16>
    tpu.vector_store %arg25[%c128_235, %c0_236], %375 {strides = array<i32>} : memref<144x256xbf16, #tpu.memory_space<vmem>>, vector<16x256xbf16>,
    %c0_237 = arith.constant 0 : index
    %c0_238 = arith.constant 0 : index
    %377 = vector.load %arg14[%c0_237, %c0_238] : memref<32x144xbf16, #tpu.memory_space<vmem>>, vector<32x144xbf16>
    %c0_239 = arith.constant 0 : index
    %c0_240 = arith.constant 0 : index
    %378 = vector.load %arg25[%c0_239, %c0_240] : memref<144x256xbf16, #tpu.memory_space<vmem>>, vector<144x256xbf16>
    %cst_241 = arith.constant dense<0.000000e+00> : vector<32x256xf32>
    %379 = tpu.matmul %377, %378, %cst_241 {dimension_numbers = #tpu.dot_dimension_numbers<[1], [0], [0], [1], [0, 0, 1, 1], [], []>} : vector<32x144xbf16>, vector<144x256xbf16>, vector<32x256xf32> -> vector<32x256xf32>
    %c0_242 = arith.constant 0 : index
    %c0_243 = arith.constant 0 : index
    %380 = vector.load %arg15[%c0_242, %c0_243] : memref<8x1xf32, #tpu.memory_space<vmem>>, vector<8x1xf32>
    %c0_244 = arith.constant 0 : index
    %c0_245 = arith.constant 0 : index
    %381 = vector.load %arg16[%c0_244, %c0_245] : memref<8x1xf32, #tpu.memory_space<vmem>>, vector<8x1xf32>
    %cst_246 = arith.constant dense<0.000000e+00> : vector<32xf32>
    %382 = vector.multi_reduction <add>, %379, %cst_246 [1] : vector<32x256xf32> to vector<32xf32>
    %383 = vector.shape_cast %382 : vector<32xf32> to vector<32x1xf32>
    %384 = vector.extract_strided_slice %383 {offsets = [0, 0], sizes = [8, 1], strides = [1, 1]} : vector<32x1xf32> to vector<8x1xf32>
    %385 = vector.extract_strided_slice %383 {offsets = [8, 0], sizes = [8, 1], strides = [1, 1]} : vector<32x1xf32> to vector<8x1xf32>
    %386 = arith.addf %384, %385 : vector<8x1xf32>
    %387 = vector.extract_strided_slice %383 {offsets = [16, 0], sizes = [8, 1], strides = [1, 1]} : vector<32x1xf32> to vector<8x1xf32>
    %388 = arith.addf %386, %387 : vector<8x1xf32>
    %389 = vector.extract_strided_slice %383 {offsets = [24, 0], sizes = [8, 1], strides = [1, 1]} : vector<32x1xf32> to vector<8x1xf32>
    %390 = arith.addf %388, %389 : vector<8x1xf32>
    %cst_247 = arith.constant 9.765625E-4 : f32
    %391 = vector.broadcast %cst_247 : f32 to vector<8x1xf32>
    %392 = arith.mulf %390, %391 : vector<8x1xf32>
    %393 = tpu.concatenate %392, %392, %392, %392 in 0 : vector<8x1xf32>, vector<8x1xf32>, vector<8x1xf32>, vector<8x1xf32> -> vector<32x1xf32>
    %394 = vector.broadcast %393 : vector<32x1xf32> to vector<32x256xf32>
    %395 = arith.subf %379, %394 : vector<32x256xf32>
    %396 = arith.mulf %395, %395 : vector<32x256xf32>
    %cst_248 = arith.constant dense<0.000000e+00> : vector<32xf32>
    %397 = vector.multi_reduction <add>, %396, %cst_248 [1] : vector<32x256xf32> to vector<32xf32>
    %398 = vector.shape_cast %397 : vector<32xf32> to vector<32x1xf32>
    %399 = vector.extract_strided_slice %398 {offsets = [0, 0], sizes = [8, 1], strides = [1, 1]} : vector<32x1xf32> to vector<8x1xf32>
    %400 = vector.extract_strided_slice %398 {offsets = [8, 0], sizes = [8, 1], strides = [1, 1]} : vector<32x1xf32> to vector<8x1xf32>
    %401 = arith.addf %399, %400 : vector<8x1xf32>
    %402 = vector.extract_strided_slice %398 {offsets = [16, 0], sizes = [8, 1], strides = [1, 1]} : vector<32x1xf32> to vector<8x1xf32>
    %403 = arith.addf %401, %402 : vector<8x1xf32>
    %404 = vector.extract_strided_slice %398 {offsets = [24, 0], sizes = [8, 1], strides = [1, 1]} : vector<32x1xf32> to vector<8x1xf32>
    %405 = arith.addf %403, %404 : vector<8x1xf32>
    %cst_249 = arith.constant 9.765625E-4 : f32
    %406 = vector.broadcast %cst_249 : f32 to vector<8x1xf32>
    %407 = arith.mulf %405, %406 : vector<8x1xf32>
    %cst_250 = arith.constant 9.99999974E-6 : f32
    %408 = vector.broadcast %cst_250 : f32 to vector<8x1xf32>
    %409 = arith.addf %407, %408 : vector<8x1xf32>
    %410 = math.rsqrt %409 : vector<8x1xf32>
    %411 = arith.mulf %380, %410 : vector<8x1xf32>
    %412 = tpu.concatenate %411, %411, %411, %411 in 0 : vector<8x1xf32>, vector<8x1xf32>, vector<8x1xf32>, vector<8x1xf32> -> vector<32x1xf32>
    %413 = tpu.concatenate %381, %381, %381, %381 in 0 : vector<8x1xf32>, vector<8x1xf32>, vector<8x1xf32>, vector<8x1xf32> -> vector<32x1xf32>
    %414 = vector.broadcast %412 : vector<32x1xf32> to vector<32x256xf32>
    %415 = arith.mulf %395, %414 : vector<32x256xf32>
    %416 = vector.broadcast %413 : vector<32x1xf32> to vector<32x256xf32>
    %417 = arith.addf %415, %416 : vector<32x256xf32>
    %cst_251 = arith.constant 0.000000e+00 : f32
    %418 = vector.broadcast %cst_251 : f32 to vector<32x256xf32>
    %419 = arith.maximumf %417, %418 : vector<32x256xf32>
    %c0_252 = arith.constant 0 : index
    %c0_253 = arith.constant 0 : index
    %c0_254 = arith.constant 0 : index
    %420 = vector.load %arg17[%c0_252, %c0_253, %c0_254] : memref<2x256x512xbf16, #tpu.memory_space<vmem>>, vector<1x256x512xbf16>
    %421 = vector.shape_cast %420 : vector<1x256x512xbf16> to vector<256x512xbf16>
    %c1_255 = arith.constant 1 : index
    %c0_256 = arith.constant 0 : index
    %c0_257 = arith.constant 0 : index
    %422 = vector.load %arg17[%c1_255, %c0_256, %c0_257] : memref<2x256x512xbf16, #tpu.memory_space<vmem>>, vector<1x256x512xbf16>
    %423 = vector.shape_cast %422 : vector<1x256x512xbf16> to vector<256x512xbf16>
    %424 = vector.extract_strided_slice %419 {offsets = [0, 0], sizes = [8, 256], strides = [1, 1]} : vector<32x256xf32> to vector<8x256xf32>
    %425 = arith.truncf %424 : vector<8x256xf32> to vector<8x256xbf16>
    %426 = vector.extract_strided_slice %419 {offsets = [8, 0], sizes = [8, 256], strides = [1, 1]} : vector<32x256xf32> to vector<8x256xf32>
    %427 = arith.truncf %426 : vector<8x256xf32> to vector<8x256xbf16>
    %428 = vector.extract_strided_slice %419 {offsets = [16, 0], sizes = [8, 256], strides = [1, 1]} : vector<32x256xf32> to vector<8x256xf32>
    %429 = arith.truncf %428 : vector<8x256xf32> to vector<8x256xbf16>
    %430 = vector.extract_strided_slice %419 {offsets = [24, 0], sizes = [8, 256], strides = [1, 1]} : vector<32x256xf32> to vector<8x256xf32>
    %431 = arith.truncf %430 : vector<8x256xf32> to vector<8x256xbf16>
    %cst_258 = arith.constant dense<0.000000e+00> : vector<8x512xf32>
    %432 = tpu.matmul %425, %421, %cst_258 {dimension_numbers = #tpu.dot_dimension_numbers<[1], [0], [0], [1], [0, 0, 1, 1], [], []>} : vector<8x256xbf16>, vector<256x512xbf16>, vector<8x512xf32> -> vector<8x512xf32>
    %cst_259 = arith.constant dense<0.000000e+00> : vector<8x512xf32>
    %433 = tpu.matmul %427, %423, %cst_259 {dimension_numbers = #tpu.dot_dimension_numbers<[1], [0], [0], [1], [0, 0, 1, 1], [], []>} : vector<8x256xbf16>, vector<256x512xbf16>, vector<8x512xf32> -> vector<8x512xf32>
    %434 = arith.addf %432, %433 : vector<8x512xf32>
    %435 = arith.truncf %434 : vector<8x512xf32> to vector<8x512xbf16>
    %cst_260 = arith.constant dense<0.000000e+00> : vector<8x512xf32>
    %436 = tpu.matmul %429, %421, %cst_260 {dimension_numbers = #tpu.dot_dimension_numbers<[1], [0], [0], [1], [0, 0, 1, 1], [], []>} : vector<8x256xbf16>, vector<256x512xbf16>, vector<8x512xf32> -> vector<8x512xf32>
    %cst_261 = arith.constant dense<0.000000e+00> : vector<8x512xf32>
    %437 = tpu.matmul %431, %423, %cst_261 {dimension_numbers = #tpu.dot_dimension_numbers<[1], [0], [0], [1], [0, 0, 1, 1], [], []>} : vector<8x256xbf16>, vector<256x512xbf16>, vector<8x512xf32> -> vector<8x512xf32>
    %438 = arith.addf %436, %437 : vector<8x512xf32>
    %439 = arith.truncf %438 : vector<8x512xf32> to vector<8x512xbf16>
    %cst_262 = arith.constant 0.000000e+00 : bf16
    %440 = vector.broadcast %cst_262 : bf16 to vector<8x33xbf16>
    %c0_263 = arith.constant 0 : index
    %c0_264 = arith.constant 0 : index
    %441 = vector.load %arg26[%c0_263, %c0_264] : memref<8x1090xbf16, #tpu.memory_space<vmem>>, vector<8x33xbf16>
    tpu.vector_store %arg26[%c0_263, %c0_264], %440 {strides = array<i32>} : memref<8x1090xbf16, #tpu.memory_space<vmem>>, vector<8x33xbf16>,
    %c0_265 = arith.constant 0 : index
    %c1057 = arith.constant 1057 : index
    %442 = vector.load %arg26[%c0_265, %c1057] : memref<8x1090xbf16, #tpu.memory_space<vmem>>, vector<8x33xbf16>
    tpu.vector_store %arg26[%c0_265, %c1057], %440 {strides = array<i32>} : memref<8x1090xbf16, #tpu.memory_space<vmem>>, vector<8x33xbf16>,
    %443 = vector.extract_strided_slice %435 {offsets = [0, 0], sizes = [8, 32], strides = [1, 1]} : vector<8x512xbf16> to vector<8x32xbf16>
    %c0_266 = arith.constant 0 : index
    %c33_267 = arith.constant 33 : index
    %444 = vector.load %arg26[%c0_266, %c33_267] : memref<8x1090xbf16, #tpu.memory_space<vmem>>, vector<8x32xbf16>
    tpu.vector_store %arg26[%c0_266, %c33_267], %443 {strides = array<i32>} : memref<8x1090xbf16, #tpu.memory_space<vmem>>, vector<8x32xbf16>,
    %445 = vector.extract_strided_slice %439 {offsets = [0, 0], sizes = [8, 32], strides = [1, 1]} : vector<8x512xbf16> to vector<8x32xbf16>
    %c0_268 = arith.constant 0 : index
    %c65_269 = arith.constant 65 : index
    %446 = vector.load %arg26[%c0_268, %c65_269] : memref<8x1090xbf16, #tpu.memory_space<vmem>>, vector<8x32xbf16>
    tpu.vector_store %arg26[%c0_268, %c65_269], %445 {strides = array<i32>} : memref<8x1090xbf16, #tpu.memory_space<vmem>>, vector<8x32xbf16>,
    %447 = vector.extract_strided_slice %435 {offsets = [0, 32], sizes = [8, 32], strides = [1, 1]} : vector<8x512xbf16> to vector<8x32xbf16>
    %c0_270 = arith.constant 0 : index
    %c97_271 = arith.constant 97 : index
    %448 = vector.load %arg26[%c0_270, %c97_271] : memref<8x1090xbf16, #tpu.memory_space<vmem>>, vector<8x32xbf16>
    tpu.vector_store %arg26[%c0_270, %c97_271], %447 {strides = array<i32>} : memref<8x1090xbf16, #tpu.memory_space<vmem>>, vector<8x32xbf16>,
    %449 = vector.extract_strided_slice %439 {offsets = [0, 32], sizes = [8, 32], strides = [1, 1]} : vector<8x512xbf16> to vector<8x32xbf16>
    %c0_272 = arith.constant 0 : index
    %c129_273 = arith.constant 129 : index
    %450 = vector.load %arg26[%c0_272, %c129_273] : memref<8x1090xbf16, #tpu.memory_space<vmem>>, vector<8x32xbf16>
    tpu.vector_store %arg26[%c0_272, %c129_273], %449 {strides = array<i32>} : memref<8x1090xbf16, #tpu.memory_space<vmem>>, vector<8x32xbf16>,
    %451 = vector.extract_strided_slice %435 {offsets = [0, 64], sizes = [8, 32], strides = [1, 1]} : vector<8x512xbf16> to vector<8x32xbf16>
    %c0_274 = arith.constant 0 : index
    %c161_275 = arith.constant 161 : index
    %452 = vector.load %arg26[%c0_274, %c161_275] : memref<8x1090xbf16, #tpu.memory_space<vmem>>, vector<8x32xbf16>
    tpu.vector_store %arg26[%c0_274, %c161_275], %451 {strides = array<i32>} : memref<8x1090xbf16, #tpu.memory_space<vmem>>, vector<8x32xbf16>,
    %453 = vector.extract_strided_slice %439 {offsets = [0, 64], sizes = [8, 32], strides = [1, 1]} : vector<8x512xbf16> to vector<8x32xbf16>
    %c0_276 = arith.constant 0 : index
    %c193_277 = arith.constant 193 : index
    %454 = vector.load %arg26[%c0_276, %c193_277] : memref<8x1090xbf16, #tpu.memory_space<vmem>>, vector<8x32xbf16>
    tpu.vector_store %arg26[%c0_276, %c193_277], %453 {strides = array<i32>} : memref<8x1090xbf16, #tpu.memory_space<vmem>>, vector<8x32xbf16>,
    %455 = vector.extract_strided_slice %435 {offsets = [0, 96], sizes = [8, 32], strides = [1, 1]} : vector<8x512xbf16> to vector<8x32xbf16>
    %c0_278 = arith.constant 0 : index
    %c225_279 = arith.constant 225 : index
    %456 = vector.load %arg26[%c0_278, %c225_279] : memref<8x1090xbf16, #tpu.memory_space<vmem>>, vector<8x32xbf16>
    tpu.vector_store %arg26[%c0_278, %c225_279], %455 {strides = array<i32>} : memref<8x1090xbf16, #tpu.memory_space<vmem>>, vector<8x32xbf16>,
    %457 = vector.extract_strided_slice %439 {offsets = [0, 96], sizes = [8, 32], strides = [1, 1]} : vector<8x512xbf16> to vector<8x32xbf16>
    %c0_280 = arith.constant 0 : index
    %c257_281 = arith.constant 257 : index
    %458 = vector.load %arg26[%c0_280, %c257_281] : memref<8x1090xbf16, #tpu.memory_space<vmem>>, vector<8x32xbf16>
    tpu.vector_store %arg26[%c0_280, %c257_281], %457 {strides = array<i32>} : memref<8x1090xbf16, #tpu.memory_space<vmem>>, vector<8x32xbf16>,
    %459 = vector.extract_strided_slice %435 {offsets = [0, 128], sizes = [8, 32], strides = [1, 1]} : vector<8x512xbf16> to vector<8x32xbf16>
    %c0_282 = arith.constant 0 : index
    %c289 = arith.constant 289 : index
    %460 = vector.load %arg26[%c0_282, %c289] : memref<8x1090xbf16, #tpu.memory_space<vmem>>, vector<8x32xbf16>
    tpu.vector_store %arg26[%c0_282, %c289], %459 {strides = array<i32>} : memref<8x1090xbf16, #tpu.memory_space<vmem>>, vector<8x32xbf16>,
    %461 = vector.extract_strided_slice %439 {offsets = [0, 128], sizes = [8, 32], strides = [1, 1]} : vector<8x512xbf16> to vector<8x32xbf16>
    %c0_283 = arith.constant 0 : index
    %c321 = arith.constant 321 : index
    %462 = vector.load %arg26[%c0_283, %c321] : memref<8x1090xbf16, #tpu.memory_space<vmem>>, vector<8x32xbf16>
    tpu.vector_store %arg26[%c0_283, %c321], %461 {strides = array<i32>} : memref<8x1090xbf16, #tpu.memory_space<vmem>>, vector<8x32xbf16>,
    %463 = vector.extract_strided_slice %435 {offsets = [0, 160], sizes = [8, 32], strides = [1, 1]} : vector<8x512xbf16> to vector<8x32xbf16>
    %c0_284 = arith.constant 0 : index
    %c353 = arith.constant 353 : index
    %464 = vector.load %arg26[%c0_284, %c353] : memref<8x1090xbf16, #tpu.memory_space<vmem>>, vector<8x32xbf16>
    tpu.vector_store %arg26[%c0_284, %c353], %463 {strides = array<i32>} : memref<8x1090xbf16, #tpu.memory_space<vmem>>, vector<8x32xbf16>,
    %465 = vector.extract_strided_slice %439 {offsets = [0, 160], sizes = [8, 32], strides = [1, 1]} : vector<8x512xbf16> to vector<8x32xbf16>
    %c0_285 = arith.constant 0 : index
    %c385 = arith.constant 385 : index
    %466 = vector.load %arg26[%c0_285, %c385] : memref<8x1090xbf16, #tpu.memory_space<vmem>>, vector<8x32xbf16>
    tpu.vector_store %arg26[%c0_285, %c385], %465 {strides = array<i32>} : memref<8x1090xbf16, #tpu.memory_space<vmem>>, vector<8x32xbf16>,
    %467 = vector.extract_strided_slice %435 {offsets = [0, 192], sizes = [8, 32], strides = [1, 1]} : vector<8x512xbf16> to vector<8x32xbf16>
    %c0_286 = arith.constant 0 : index
    %c417 = arith.constant 417 : index
    %468 = vector.load %arg26[%c0_286, %c417] : memref<8x1090xbf16, #tpu.memory_space<vmem>>, vector<8x32xbf16>
    tpu.vector_store %arg26[%c0_286, %c417], %467 {strides = array<i32>} : memref<8x1090xbf16, #tpu.memory_space<vmem>>, vector<8x32xbf16>,
    %469 = vector.extract_strided_slice %439 {offsets = [0, 192], sizes = [8, 32], strides = [1, 1]} : vector<8x512xbf16> to vector<8x32xbf16>
    %c0_287 = arith.constant 0 : index
    %c449 = arith.constant 449 : index
    %470 = vector.load %arg26[%c0_287, %c449] : memref<8x1090xbf16, #tpu.memory_space<vmem>>, vector<8x32xbf16>
    tpu.vector_store %arg26[%c0_287, %c449], %469 {strides = array<i32>} : memref<8x1090xbf16, #tpu.memory_space<vmem>>, vector<8x32xbf16>,
    %471 = vector.extract_strided_slice %435 {offsets = [0, 224], sizes = [8, 32], strides = [1, 1]} : vector<8x512xbf16> to vector<8x32xbf16>
    %c0_288 = arith.constant 0 : index
    %c481 = arith.constant 481 : index
    %472 = vector.load %arg26[%c0_288, %c481] : memref<8x1090xbf16, #tpu.memory_space<vmem>>, vector<8x32xbf16>
    tpu.vector_store %arg26[%c0_288, %c481], %471 {strides = array<i32>} : memref<8x1090xbf16, #tpu.memory_space<vmem>>, vector<8x32xbf16>,
    %473 = vector.extract_strided_slice %439 {offsets = [0, 224], sizes = [8, 32], strides = [1, 1]} : vector<8x512xbf16> to vector<8x32xbf16>
    %c0_289 = arith.constant 0 : index
    %c513 = arith.constant 513 : index
    %474 = vector.load %arg26[%c0_289, %c513] : memref<8x1090xbf16, #tpu.memory_space<vmem>>, vector<8x32xbf16>
    tpu.vector_store %arg26[%c0_289, %c513], %473 {strides = array<i32>} : memref<8x1090xbf16, #tpu.memory_space<vmem>>, vector<8x32xbf16>,
    %475 = vector.extract_strided_slice %435 {offsets = [0, 256], sizes = [8, 32], strides = [1, 1]} : vector<8x512xbf16> to vector<8x32xbf16>
    %c0_290 = arith.constant 0 : index
    %c545 = arith.constant 545 : index
    %476 = vector.load %arg26[%c0_290, %c545] : memref<8x1090xbf16, #tpu.memory_space<vmem>>, vector<8x32xbf16>
    tpu.vector_store %arg26[%c0_290, %c545], %475 {strides = array<i32>} : memref<8x1090xbf16, #tpu.memory_space<vmem>>, vector<8x32xbf16>,
    %477 = vector.extract_strided_slice %439 {offsets = [0, 256], sizes = [8, 32], strides = [1, 1]} : vector<8x512xbf16> to vector<8x32xbf16>
    %c0_291 = arith.constant 0 : index
    %c577 = arith.constant 577 : index
    %478 = vector.load %arg26[%c0_291, %c577] : memref<8x1090xbf16, #tpu.memory_space<vmem>>, vector<8x32xbf16>
    tpu.vector_store %arg26[%c0_291, %c577], %477 {strides = array<i32>} : memref<8x1090xbf16, #tpu.memory_space<vmem>>, vector<8x32xbf16>,
    %479 = vector.extract_strided_slice %435 {offsets = [0, 288], sizes = [8, 32], strides = [1, 1]} : vector<8x512xbf16> to vector<8x32xbf16>
    %c0_292 = arith.constant 0 : index
    %c609 = arith.constant 609 : index
    %480 = vector.load %arg26[%c0_292, %c609] : memref<8x1090xbf16, #tpu.memory_space<vmem>>, vector<8x32xbf16>
    tpu.vector_store %arg26[%c0_292, %c609], %479 {strides = array<i32>} : memref<8x1090xbf16, #tpu.memory_space<vmem>>, vector<8x32xbf16>,
    %481 = vector.extract_strided_slice %439 {offsets = [0, 288], sizes = [8, 32], strides = [1, 1]} : vector<8x512xbf16> to vector<8x32xbf16>
    %c0_293 = arith.constant 0 : index
    %c641 = arith.constant 641 : index
    %482 = vector.load %arg26[%c0_293, %c641] : memref<8x1090xbf16, #tpu.memory_space<vmem>>, vector<8x32xbf16>
    tpu.vector_store %arg26[%c0_293, %c641], %481 {strides = array<i32>} : memref<8x1090xbf16, #tpu.memory_space<vmem>>, vector<8x32xbf16>,
    %483 = vector.extract_strided_slice %435 {offsets = [0, 320], sizes = [8, 32], strides = [1, 1]} : vector<8x512xbf16> to vector<8x32xbf16>
    %c0_294 = arith.constant 0 : index
    %c673 = arith.constant 673 : index
    %484 = vector.load %arg26[%c0_294, %c673] : memref<8x1090xbf16, #tpu.memory_space<vmem>>, vector<8x32xbf16>
    tpu.vector_store %arg26[%c0_294, %c673], %483 {strides = array<i32>} : memref<8x1090xbf16, #tpu.memory_space<vmem>>, vector<8x32xbf16>,
    %485 = vector.extract_strided_slice %439 {offsets = [0, 320], sizes = [8, 32], strides = [1, 1]} : vector<8x512xbf16> to vector<8x32xbf16>
    %c0_295 = arith.constant 0 : index
    %c705 = arith.constant 705 : index
    %486 = vector.load %arg26[%c0_295, %c705] : memref<8x1090xbf16, #tpu.memory_space<vmem>>, vector<8x32xbf16>
    tpu.vector_store %arg26[%c0_295, %c705], %485 {strides = array<i32>} : memref<8x1090xbf16, #tpu.memory_space<vmem>>, vector<8x32xbf16>,
    %487 = vector.extract_strided_slice %435 {offsets = [0, 352], sizes = [8, 32], strides = [1, 1]} : vector<8x512xbf16> to vector<8x32xbf16>
    %c0_296 = arith.constant 0 : index
    %c737 = arith.constant 737 : index
    %488 = vector.load %arg26[%c0_296, %c737] : memref<8x1090xbf16, #tpu.memory_space<vmem>>, vector<8x32xbf16>
    tpu.vector_store %arg26[%c0_296, %c737], %487 {strides = array<i32>} : memref<8x1090xbf16, #tpu.memory_space<vmem>>, vector<8x32xbf16>,
    %489 = vector.extract_strided_slice %439 {offsets = [0, 352], sizes = [8, 32], strides = [1, 1]} : vector<8x512xbf16> to vector<8x32xbf16>
    %c0_297 = arith.constant 0 : index
    %c769 = arith.constant 769 : index
    %490 = vector.load %arg26[%c0_297, %c769] : memref<8x1090xbf16, #tpu.memory_space<vmem>>, vector<8x32xbf16>
    tpu.vector_store %arg26[%c0_297, %c769], %489 {strides = array<i32>} : memref<8x1090xbf16, #tpu.memory_space<vmem>>, vector<8x32xbf16>,
    %491 = vector.extract_strided_slice %435 {offsets = [0, 384], sizes = [8, 32], strides = [1, 1]} : vector<8x512xbf16> to vector<8x32xbf16>
    %c0_298 = arith.constant 0 : index
    %c801 = arith.constant 801 : index
    %492 = vector.load %arg26[%c0_298, %c801] : memref<8x1090xbf16, #tpu.memory_space<vmem>>, vector<8x32xbf16>
    tpu.vector_store %arg26[%c0_298, %c801], %491 {strides = array<i32>} : memref<8x1090xbf16, #tpu.memory_space<vmem>>, vector<8x32xbf16>,
    %493 = vector.extract_strided_slice %439 {offsets = [0, 384], sizes = [8, 32], strides = [1, 1]} : vector<8x512xbf16> to vector<8x32xbf16>
    %c0_299 = arith.constant 0 : index
    %c833 = arith.constant 833 : index
    %494 = vector.load %arg26[%c0_299, %c833] : memref<8x1090xbf16, #tpu.memory_space<vmem>>, vector<8x32xbf16>
    tpu.vector_store %arg26[%c0_299, %c833], %493 {strides = array<i32>} : memref<8x1090xbf16, #tpu.memory_space<vmem>>, vector<8x32xbf16>,
    %495 = vector.extract_strided_slice %435 {offsets = [0, 416], sizes = [8, 32], strides = [1, 1]} : vector<8x512xbf16> to vector<8x32xbf16>
    %c0_300 = arith.constant 0 : index
    %c865 = arith.constant 865 : index
    %496 = vector.load %arg26[%c0_300, %c865] : memref<8x1090xbf16, #tpu.memory_space<vmem>>, vector<8x32xbf16>
    tpu.vector_store %arg26[%c0_300, %c865], %495 {strides = array<i32>} : memref<8x1090xbf16, #tpu.memory_space<vmem>>, vector<8x32xbf16>,
    %497 = vector.extract_strided_slice %439 {offsets = [0, 416], sizes = [8, 32], strides = [1, 1]} : vector<8x512xbf16> to vector<8x32xbf16>
    %c0_301 = arith.constant 0 : index
    %c897 = arith.constant 897 : index
    %498 = vector.load %arg26[%c0_301, %c897] : memref<8x1090xbf16, #tpu.memory_space<vmem>>, vector<8x32xbf16>
    tpu.vector_store %arg26[%c0_301, %c897], %497 {strides = array<i32>} : memref<8x1090xbf16, #tpu.memory_space<vmem>>, vector<8x32xbf16>,
    %499 = vector.extract_strided_slice %435 {offsets = [0, 448], sizes = [8, 32], strides = [1, 1]} : vector<8x512xbf16> to vector<8x32xbf16>
    %c0_302 = arith.constant 0 : index
    %c929 = arith.constant 929 : index
    %500 = vector.load %arg26[%c0_302, %c929] : memref<8x1090xbf16, #tpu.memory_space<vmem>>, vector<8x32xbf16>
    tpu.vector_store %arg26[%c0_302, %c929], %499 {strides = array<i32>} : memref<8x1090xbf16, #tpu.memory_space<vmem>>, vector<8x32xbf16>,
    %501 = vector.extract_strided_slice %439 {offsets = [0, 448], sizes = [8, 32], strides = [1, 1]} : vector<8x512xbf16> to vector<8x32xbf16>
    %c0_303 = arith.constant 0 : index
    %c961 = arith.constant 961 : index
    %502 = vector.load %arg26[%c0_303, %c961] : memref<8x1090xbf16, #tpu.memory_space<vmem>>, vector<8x32xbf16>
    tpu.vector_store %arg26[%c0_303, %c961], %501 {strides = array<i32>} : memref<8x1090xbf16, #tpu.memory_space<vmem>>, vector<8x32xbf16>,
    %503 = vector.extract_strided_slice %435 {offsets = [0, 480], sizes = [8, 32], strides = [1, 1]} : vector<8x512xbf16> to vector<8x32xbf16>
    %c0_304 = arith.constant 0 : index
    %c993 = arith.constant 993 : index
    %504 = vector.load %arg26[%c0_304, %c993] : memref<8x1090xbf16, #tpu.memory_space<vmem>>, vector<8x32xbf16>
    tpu.vector_store %arg26[%c0_304, %c993], %503 {strides = array<i32>} : memref<8x1090xbf16, #tpu.memory_space<vmem>>, vector<8x32xbf16>,
    %505 = vector.extract_strided_slice %439 {offsets = [0, 480], sizes = [8, 32], strides = [1, 1]} : vector<8x512xbf16> to vector<8x32xbf16>
    %c0_305 = arith.constant 0 : index
    %c1025 = arith.constant 1025 : index
    %506 = vector.load %arg26[%c0_305, %c1025] : memref<8x1090xbf16, #tpu.memory_space<vmem>>, vector<8x32xbf16>
    tpu.vector_store %arg26[%c0_305, %c1025], %505 {strides = array<i32>} : memref<8x1090xbf16, #tpu.memory_space<vmem>>, vector<8x32xbf16>,
    %507 = tpu.iota {dimensions = array<i32: 1>} : vector<8x1024xi32>
    %c31_i32 = arith.constant 31 : i32
    %508 = vector.broadcast %c31_i32 : i32 to vector<8x1024xi32>
    %509 = arith.andi %507, %508 : vector<8x1024xi32>
    %c1_i32_306 = arith.constant 1 : i32
    %510 = vector.broadcast %c1_i32_306 : i32 to vector<8x1024xi32>
    %511 = arith.cmpi sge, %509, %510 : vector<8x1024xi32>
    %c30_i32 = arith.constant 30 : i32
    %512 = vector.broadcast %c30_i32 : i32 to vector<8x1024xi32>
    %513 = arith.cmpi sle, %509, %512 : vector<8x1024xi32>
    %c0_307 = arith.constant 0 : index
    %c0_308 = arith.constant 0 : index
    %514 = vector.load %arg26[%c0_307, %c0_308] : memref<8x1090xbf16, #tpu.memory_space<vmem>>, vector<8x1024xbf16>
    %cst_309 = arith.constant 0.000000e+00 : bf16
    %515 = vector.broadcast %cst_309 : bf16 to vector<8x1024xbf16>
    %516 = arith.select %511, %514, %515 : vector<8x1024xi1>, vector<8x1024xbf16>
    %c0_310 = arith.constant 0 : index
    %c0_311 = arith.constant 0 : index
    %517 = vector.load %arg27[%c0_310, %c0_311] : memref<72x1024xbf16, #tpu.memory_space<vmem>>, vector<8x1024xbf16>
    tpu.vector_store %arg27[%c0_310, %c0_311], %516 {strides = array<i32>} : memref<72x1024xbf16, #tpu.memory_space<vmem>>, vector<8x1024xbf16>,
    %c0_312 = arith.constant 0 : index
    %c1_313 = arith.constant 1 : index
    %518 = vector.load %arg26[%c0_312, %c1_313] : memref<8x1090xbf16, #tpu.memory_space<vmem>>, vector<8x1024xbf16>
    %c8_314 = arith.constant 8 : index
    %c0_315 = arith.constant 0 : index
    %519 = vector.load %arg27[%c8_314, %c0_315] : memref<72x1024xbf16, #tpu.memory_space<vmem>>, vector<8x1024xbf16>
    tpu.vector_store %arg27[%c8_314, %c0_315], %518 {strides = array<i32>} : memref<72x1024xbf16, #tpu.memory_space<vmem>>, vector<8x1024xbf16>,
    %c0_316 = arith.constant 0 : index
    %c2_317 = arith.constant 2 : index
    %520 = vector.load %arg26[%c0_316, %c2_317] : memref<8x1090xbf16, #tpu.memory_space<vmem>>, vector<8x1024xbf16>
    %cst_318 = arith.constant 0.000000e+00 : bf16
    %521 = vector.broadcast %cst_318 : bf16 to vector<8x1024xbf16>
    %522 = arith.select %513, %520, %521 : vector<8x1024xi1>, vector<8x1024xbf16>
    %c16_319 = arith.constant 16 : index
    %c0_320 = arith.constant 0 : index
    %523 = vector.load %arg27[%c16_319, %c0_320] : memref<72x1024xbf16, #tpu.memory_space<vmem>>, vector<8x1024xbf16>
    tpu.vector_store %arg27[%c16_319, %c0_320], %522 {strides = array<i32>} : memref<72x1024xbf16, #tpu.memory_space<vmem>>, vector<8x1024xbf16>,
    %c0_321 = arith.constant 0 : index
    %c32_322 = arith.constant 32 : index
    %524 = vector.load %arg26[%c0_321, %c32_322] : memref<8x1090xbf16, #tpu.memory_space<vmem>>, vector<8x1024xbf16>
    %cst_323 = arith.constant 0.000000e+00 : bf16
    %525 = vector.broadcast %cst_323 : bf16 to vector<8x1024xbf16>
    %526 = arith.select %511, %524, %525 : vector<8x1024xi1>, vector<8x1024xbf16>
    %c24 = arith.constant 24 : index
    %c0_324 = arith.constant 0 : index
    %527 = vector.load %arg27[%c24, %c0_324] : memref<72x1024xbf16, #tpu.memory_space<vmem>>, vector<8x1024xbf16>
    tpu.vector_store %arg27[%c24, %c0_324], %526 {strides = array<i32>} : memref<72x1024xbf16, #tpu.memory_space<vmem>>, vector<8x1024xbf16>,
    %c0_325 = arith.constant 0 : index
    %c33_326 = arith.constant 33 : index
    %528 = vector.load %arg26[%c0_325, %c33_326] : memref<8x1090xbf16, #tpu.memory_space<vmem>>, vector<8x1024xbf16>
    %c32_327 = arith.constant 32 : index
    %c0_328 = arith.constant 0 : index
    %529 = vector.load %arg27[%c32_327, %c0_328] : memref<72x1024xbf16, #tpu.memory_space<vmem>>, vector<8x1024xbf16>
    tpu.vector_store %arg27[%c32_327, %c0_328], %528 {strides = array<i32>} : memref<72x1024xbf16, #tpu.memory_space<vmem>>, vector<8x1024xbf16>,
    %c0_329 = arith.constant 0 : index
    %c34_330 = arith.constant 34 : index
    %530 = vector.load %arg26[%c0_329, %c34_330] : memref<8x1090xbf16, #tpu.memory_space<vmem>>, vector<8x1024xbf16>
    %cst_331 = arith.constant 0.000000e+00 : bf16
    %531 = vector.broadcast %cst_331 : bf16 to vector<8x1024xbf16>
    %532 = arith.select %513, %530, %531 : vector<8x1024xi1>, vector<8x1024xbf16>
    %c40 = arith.constant 40 : index
    %c0_332 = arith.constant 0 : index
    %533 = vector.load %arg27[%c40, %c0_332] : memref<72x1024xbf16, #tpu.memory_space<vmem>>, vector<8x1024xbf16>
    tpu.vector_store %arg27[%c40, %c0_332], %532 {strides = array<i32>} : memref<72x1024xbf16, #tpu.memory_space<vmem>>, vector<8x1024xbf16>,
    %c0_333 = arith.constant 0 : index
    %c64_334 = arith.constant 64 : index
    %534 = vector.load %arg26[%c0_333, %c64_334] : memref<8x1090xbf16, #tpu.memory_space<vmem>>, vector<8x1024xbf16>
    %cst_335 = arith.constant 0.000000e+00 : bf16
    %535 = vector.broadcast %cst_335 : bf16 to vector<8x1024xbf16>
    %536 = arith.select %511, %534, %535 : vector<8x1024xi1>, vector<8x1024xbf16>
    %c48_336 = arith.constant 48 : index
    %c0_337 = arith.constant 0 : index
    %537 = vector.load %arg27[%c48_336, %c0_337] : memref<72x1024xbf16, #tpu.memory_space<vmem>>, vector<8x1024xbf16>
    tpu.vector_store %arg27[%c48_336, %c0_337], %536 {strides = array<i32>} : memref<72x1024xbf16, #tpu.memory_space<vmem>>, vector<8x1024xbf16>,
    %c0_338 = arith.constant 0 : index
    %c65_339 = arith.constant 65 : index
    %538 = vector.load %arg26[%c0_338, %c65_339] : memref<8x1090xbf16, #tpu.memory_space<vmem>>, vector<8x1024xbf16>
    %c56 = arith.constant 56 : index
    %c0_340 = arith.constant 0 : index
    %539 = vector.load %arg27[%c56, %c0_340] : memref<72x1024xbf16, #tpu.memory_space<vmem>>, vector<8x1024xbf16>
    tpu.vector_store %arg27[%c56, %c0_340], %538 {strides = array<i32>} : memref<72x1024xbf16, #tpu.memory_space<vmem>>, vector<8x1024xbf16>,
    %c0_341 = arith.constant 0 : index
    %c66 = arith.constant 66 : index
    %540 = vector.load %arg26[%c0_341, %c66] : memref<8x1090xbf16, #tpu.memory_space<vmem>>, vector<8x1024xbf16>
    %cst_342 = arith.constant 0.000000e+00 : bf16
    %541 = vector.broadcast %cst_342 : bf16 to vector<8x1024xbf16>
    %542 = arith.select %513, %540, %541 : vector<8x1024xi1>, vector<8x1024xbf16>
    %c64_343 = arith.constant 64 : index
    %c0_344 = arith.constant 0 : index
    %543 = vector.load %arg27[%c64_343, %c0_344] : memref<72x1024xbf16, #tpu.memory_space<vmem>>, vector<8x1024xbf16>
    tpu.vector_store %arg27[%c64_343, %c0_344], %542 {strides = array<i32>} : memref<72x1024xbf16, #tpu.memory_space<vmem>>, vector<8x1024xbf16>,
    %c0_345 = arith.constant 0 : index
    %c0_346 = arith.constant 0 : index
    %544 = vector.load %arg18[%c0_345, %c0_346] : memref<12x72xbf16, #tpu.memory_space<vmem>>, vector<12x72xbf16>
    %c0_347 = arith.constant 0 : index
    %c0_348 = arith.constant 0 : index
    %545 = vector.load %arg27[%c0_347, %c0_348] : memref<72x1024xbf16, #tpu.memory_space<vmem>>, vector<72x1024xbf16>
    %cst_349 = arith.constant dense<0.000000e+00> : vector<12x1024xf32>
    %546 = tpu.matmul %544, %545, %cst_349 {dimension_numbers = #tpu.dot_dimension_numbers<[1], [0], [0], [1], [0, 0, 1, 1], [], []>} : vector<12x72xbf16>, vector<72x1024xbf16>, vector<12x1024xf32> -> vector<12x1024xf32>
    %547 = math.tanh %546 : vector<12x1024xf32>
    %c0_350 = arith.constant 0 : index
    %c0_351 = arith.constant 0 : index
    %c0_352 = arith.constant 0 : index
    %548 = vector.load %arg19[%c0_350, %c0_351, %c0_352] : memref<1x12x1024xf32, #tpu.memory_space<vmem>>, vector<1x12x1024xf32>
    %549 = vector.shape_cast %548 : vector<1x12x1024xf32> to vector<12x1024xf32>
    %550 = vector.shape_cast %547 : vector<12x1024xf32> to vector<1x12x1024xf32>
    tpu.vector_store %arg19[%c0_350, %c0_351, %c0_352], %550 {strides = array<i32>} : memref<1x12x1024xf32, #tpu.memory_space<vmem>>, vector<1x12x1024xf32>,
    return
  }
  func.func @transform_0(%arg0: i32) -> (i32, i32) {
    %c0_i32 = arith.constant 0 : i32
    %c0_i32_0 = arith.constant 0 : i32
    %c0_i32_1 = arith.constant 0 : i32
    return %c0_i32, %c0_i32_0 : i32, i32
  }
  func.func @transform_1(%arg0: i32) -> (i32, i32, i32) {
    %c0_i32 = arith.constant 0 : i32
    %c0_i32_0 = arith.constant 0 : i32
    %c0_i32_1 = arith.constant 0 : i32
    %c0_i32_2 = arith.constant 0 : i32
    return %c0_i32, %c0_i32_0, %c0_i32_1 : i32, i32, i32
  }
  func.func @transform_2(%arg0: i32) -> (i32, i32) {
    %c0_i32 = arith.constant 0 : i32
    %c0_i32_0 = arith.constant 0 : i32
    %c0_i32_1 = arith.constant 0 : i32
    return %c0_i32, %c0_i32_0 : i32, i32
  }
  func.func @transform_3(%arg0: i32) -> (i32, i32) {
    %c0_i32 = arith.constant 0 : i32
    %c0_i32_0 = arith.constant 0 : i32
    %c0_i32_1 = arith.constant 0 : i32
    return %c0_i32, %c0_i32_0 : i32, i32
  }
  func.func @transform_4(%arg0: i32) -> (i32, i32) {
    %c0_i32 = arith.constant 0 : i32
    %c0_i32_0 = arith.constant 0 : i32
    %c0_i32_1 = arith.constant 0 : i32
    return %c0_i32, %c0_i32_0 : i32, i32
  }
  func.func @transform_5(%arg0: i32) -> (i32, i32) {
    %c0_i32 = arith.constant 0 : i32
    %c0_i32_0 = arith.constant 0 : i32
    %c0_i32_1 = arith.constant 0 : i32
    return %c0_i32, %c0_i32_0 : i32, i32
  }
  func.func @transform_6(%arg0: i32) -> (i32, i32) {
    %c0_i32 = arith.constant 0 : i32
    %c0_i32_0 = arith.constant 0 : i32
    %c0_i32_1 = arith.constant 0 : i32
    return %c0_i32, %c0_i32_0 : i32, i32
  }
  func.func @transform_7(%arg0: i32) -> (i32, i32) {
    %c0_i32 = arith.constant 0 : i32
    %c0_i32_0 = arith.constant 0 : i32
    %c0_i32_1 = arith.constant 0 : i32
    return %c0_i32, %c0_i32_0 : i32, i32
  }
  func.func @transform_8(%arg0: i32) -> (i32, i32, i32) {
    %c0_i32 = arith.constant 0 : i32
    %c0_i32_0 = arith.constant 0 : i32
    %c0_i32_1 = arith.constant 0 : i32
    %c0_i32_2 = arith.constant 0 : i32
    return %c0_i32, %c0_i32_0, %c0_i32_1 : i32, i32, i32
  }
  func.func @transform_9(%arg0: i32) -> (i32, i32) {
    %c0_i32 = arith.constant 0 : i32
    %c0_i32_0 = arith.constant 0 : i32
    %c0_i32_1 = arith.constant 0 : i32
    return %c0_i32, %c0_i32_0 : i32, i32
  }
  func.func @transform_10(%arg0: i32) -> (i32, i32) {
    %c0_i32 = arith.constant 0 : i32
    %c0_i32_0 = arith.constant 0 : i32
    %c0_i32_1 = arith.constant 0 : i32
    return %c0_i32, %c0_i32_0 : i32, i32
  }
  func.func @transform_11(%arg0: i32) -> (i32, i32) {
    %c0_i32 = arith.constant 0 : i32
    %c0_i32_0 = arith.constant 0 : i32
    %c0_i32_1 = arith.constant 0 : i32
    return %c0_i32, %c0_i32_0 : i32, i32
  }
  func.func @transform_12(%arg0: i32) -> (i32, i32, i32) {
    %c0_i32 = arith.constant 0 : i32
    %c0_i32_0 = arith.constant 0 : i32
    %c0_i32_1 = arith.constant 0 : i32
    %c0_i32_2 = arith.constant 0 : i32
    return %c0_i32, %c0_i32_0, %c0_i32_1 : i32, i32, i32
  }
  func.func @transform_13(%arg0: i32) -> (i32, i32) {
    %c0_i32 = arith.constant 0 : i32
    %c0_i32_0 = arith.constant 0 : i32
    %c0_i32_1 = arith.constant 0 : i32
    return %c0_i32, %c0_i32_0 : i32, i32
  }
  func.func @transform_14(%arg0: i32) -> (i32, i32) {
    %c0_i32 = arith.constant 0 : i32
    %c0_i32_0 = arith.constant 0 : i32
    %c0_i32_1 = arith.constant 0 : i32
    return %c0_i32, %c0_i32_0 : i32, i32
  }
  func.func @transform_15(%arg0: i32) -> (i32, i32) {
    %c0_i32 = arith.constant 0 : i32
    %c0_i32_0 = arith.constant 0 : i32
    %c0_i32_1 = arith.constant 0 : i32
    return %c0_i32, %c0_i32_0 : i32, i32
  }
  func.func @transform_16(%arg0: i32) -> (i32, i32, i32) {
    %c0_i32 = arith.constant 0 : i32
    %c0_i32_0 = arith.constant 0 : i32
    %c0_i32_1 = arith.constant 0 : i32
    %c0_i32_2 = arith.constant 0 : i32
    return %c0_i32, %c0_i32_0, %c0_i32_1 : i32, i32, i32
  }
  func.func @transform_17(%arg0: i32) -> (i32, i32) {
    %c0_i32 = arith.constant 0 : i32
    %c0_i32_0 = arith.constant 0 : i32
    %c0_i32_1 = arith.constant 0 : i32
    return %c0_i32, %c0_i32_0 : i32, i32
  }
  func.func @transform_18(%arg0: i32) -> (i32, i32, i32) {
    %c0_i32 = arith.constant 0 : i32
    %c0_i32_0 = arith.constant 0 : i32
    %c0_i32_1 = arith.constant 0 : i32
    return %arg0, %c0_i32, %c0_i32_0 : i32, i32, i32
  }
}

</mosaic_0001>

<llo_original>
// kernel: generator_forward.1
$region0: #{generator_forward.1}
  #allocation0 [shape = 'u32[]', space=smem, size = 0x4, offset = 0x4, fixed_abs, tag = 'smem constant byte address 0x4 - core index']
  #allocation1 [shape = 'u32[72,128]{1,0:T(1,128)}', space=vmem, size = 0x9000, scoped, tag = 'internal scratch']
  #allocation2 [shape = 'bf16[64,26]{1,0:T(8,128)(2,1)}', space=vmem, size = 0x4000, scoped, tag = 'scratch operand']
  #allocation3 [shape = 'bf16[576,16]{1,0:T(8,128)(2,1)}', space=vmem, size = 0x24000, scoped, tag = 'scratch operand']
  #allocation4 [shape = 'bf16[32,82]{1,0:T(8,128)(2,1)}', space=vmem, size = 0x2000, scoped, tag = 'scratch operand']
  #allocation5 [shape = 'bf16[288,64]{1,0:T(8,128)(2,1)}', space=vmem, size = 0x12000, scoped, tag = 'scratch operand']
  #allocation6 [shape = 'bf16[16,290]{1,0:T(8,128)(2,1)}', space=vmem, size = 0x3000, scoped, tag = 'scratch operand']
  #allocation7 [shape = 'bf16[144,256]{1,0:T(8,128)(2,1)}', space=vmem, size = 0x12000, scoped, tag = 'scratch operand']
  #allocation8 [shape = 'bf16[8,1090]{1,0:T(8,128)(2,1)}', space=vmem, size = 0x4800, scoped, tag = 'scratch operand']
  #allocation9 [shape = 'bf16[72,1024]{1,0:T(8,128)(2,1)}', space=vmem, size = 0x24000, scoped, tag = 'scratch operand']
  %s0 = inlined_call_operand.hbm [shape: f32[2,8], index: 0, kind: input, shape index: {}]
  %s1 = inlined_call_operand.vmem [shape: f32[8,64,16], index: 1, kind: input, shape index: {}]
  %s2 = inlined_call_operand.vmem [shape: f32[64,1], index: 2, kind: input, shape index: {}]
  %s3 = inlined_call_operand.vmem [shape: f32[64,1], index: 3, kind: input, shape index: {}]
  %s4 = inlined_call_operand.hbm [shape: f32[64,64], index: 4, kind: input, shape index: {}]
  %s5 = inlined_call_operand.vmem [shape: bf16[128,576], index: 5, kind: input, shape index: {}]
  %s6 = inlined_call_operand.vmem [shape: f32[32,1], index: 6, kind: input, shape index: {}]
  %s7 = inlined_call_operand.vmem [shape: f32[32,1], index: 7, kind: input, shape index: {}]
  %s8 = inlined_call_operand.hbm [shape: bf16[2,16,32], index: 8, kind: input, shape index: {}]
  %s9 = inlined_call_operand.hbm [shape: bf16[64,288], index: 9, kind: input, shape index: {}]
  %s10 = inlined_call_operand.vmem [shape: f32[16,1], index: 10, kind: input, shape index: {}]
  %s11 = inlined_call_operand.vmem [shape: f32[16,1], index: 11, kind: input, shape index: {}]
  %s12 = inlined_call_operand.hbm [shape: bf16[2,64,128], index: 12, kind: input, shape index: {}]
  %s13 = inlined_call_operand.hbm [shape: bf16[32,144], index: 13, kind: input, shape index: {}]
  %s14 = inlined_call_operand.vmem [shape: f32[8,1], index: 14, kind: input, shape index: {}]
  %s15 = inlined_call_operand.vmem [shape: f32[8,1], index: 15, kind: input, shape index: {}]
  %s16 = inlined_call_operand.hbm [shape: bf16[2,256,512], index: 16, kind: input, shape index: {}]
  %s17 = inlined_call_operand.hbm [shape: bf16[12,72], index: 17, kind: input, shape index: {}]
  %s18 = inlined_call_operand.vmem [shape: f32[2,12,1024], index: 18, kind: output, shape index: {}]
  %s19 = sld [smem:[#allocation0]]
  $region137: #{generator_forward.1} parent=0
    _
  %s21 = ssub.s32 1, %s19
  %s22 = scalar_select 0, %s21, %s19
  $region1: #{generator_forward.1} parent=0
    #allocation10 [shape = 'u8[1024]{0}', space=smem, size = 0x400, scoped, tag = 'input window, operand 0, single buffered']
    #allocation11 [shape = 's32[2]{0}', space=sflag, size = 0x8, scoped, tag = 'scoped memory for generator_forward.1']
    #allocation12 [shape = 's32[2]{0}', space=sflag, size = 0x8, scoped, tag = 'scoped memory for generator_forward.1']
    #allocation13 [shape = 'u8[32768]{0}', space=vmem, size = 0x8000, scoped, tag = 'input window, operand 4, single buffered']
    #allocation14 [shape = 'u8[8192]{0}', space=vmem, size = 0x2000, scoped, tag = 'input window, operand 8, single buffered']
    #allocation15 [shape = 's32[1]{0}', space=sflag, size = 0x4, scoped, tag = 'scoped memory for generator_forward.1']
    #allocation16 [shape = 'u8[49152]{0}', space=vmem, size = 0xc000, scoped, tag = 'input window, operand 9, single buffered']
    #allocation17 [shape = 'u8[32768]{0}', space=vmem, size = 0x8000, scoped, tag = 'input window, operand 12, single buffered']
    #allocation18 [shape = 's32[1]{0}', space=sflag, size = 0x4, scoped, tag = 'scoped memory for generator_forward.1']
    #allocation19 [shape = 'u8[16384]{0}', space=vmem, size = 0x4000, scoped, tag = 'input window, operand 13, single buffered']
    #allocation20 [shape = 'u8[524288]{0}', space=vmem, size = 0x80000, scoped, tag = 'input window, operand 16, single buffered']
    #allocation21 [shape = 's32[1]{0}', space=sflag, size = 0x4, scoped, tag = 'scoped memory for generator_forward.1']
    #allocation22 [shape = 'u8[4096]{0}', space=vmem, size = 0x1000, scoped, tag = 'input window, operand 17, single buffered']
    %23 = vsyncpa [#allocation12], 0
    %24 = vsyncpa [#allocation11], 0
    %25 = vsyncpa [#allocation15], 0
    %26 = vsyncpa [#allocation18], 0
    %27 = vsyncpa [#allocation21], 0
    loop: start=0, step=1, limit=4
    $region2: #{generator_forward.1} parent=1 // loop_pre_header
      _
    $region3: #{generator_forward.1} parent=1 // loop_header
      %s29 = sphi 0, %s33
      %p30 = scmp.ge.s32.totalorder %s29, 4
      %s37 = sphi 0, %s37
      %s39 = sphi 0, %s37
      %s40 = sphi 0, %s39
      %s54 = sphi 0, %s40
      %s58 = sphi 0, %s58
      %s60 = sphi 0, %s58
      %s61 = sphi 0, %s60
      %s75 = sphi 0, %s61
      %s79 = sphi 0, %s79
      %s81 = sphi 0, %s79
      %s82 = sphi 0, %s81
      %s96 = sphi 0, %s82
      %s100 = sphi 0, %s100
      %s102 = sphi 0, %s100
      %s103 = sphi 0, %s102
      %s117 = sphi 0, %s103
      %s121 = sphi 0, %s121
      %s123 = sphi 0, %s121
      %s124 = sphi 0, %s123
      %s138 = sphi 0, %s124
      %s142 = sphi 0, %s142
      %s144 = sphi 0, %s142
      %s145 = sphi 0, %s144
      %s159 = sphi 0, %s145
      %s163 = sphi 0, %s163
      %s165 = sphi 0, %s163
      %s166 = sphi 0, %s165
      %s180 = sphi 0, %s166
      %s184 = sphi 0, %s184
      %s186 = sphi 0, %s184
      %s187 = sphi 0, %s186
      %s201 = sphi 0, %s187
      %s205 = sphi 0, %s205
      %s207 = sphi 0, %s205
      %s208 = sphi 0, %s207
      %s222 = sphi 0, %s208
      %s226 = sphi 0, %s226
      %s228 = sphi 0, %s226
      %s229 = sphi 0, %s228
      %s243 = sphi 0, %s229
      %s247 = sphi 0, %s247
      %s249 = sphi 0, %s247
      %s250 = sphi 0, %s249
      %s264 = sphi 0, %s250
      %s268 = sphi 0, %s268
      %s270 = sphi 0, %s268
      %s271 = sphi 0, %s270
      %s285 = sphi 0, %s271
      %s289 = sphi 0, %s289
      %s291 = sphi 0, %s289
      %s292 = sphi 0, %s291
      %s306 = sphi 0, %s292
      %s310 = sphi 0, %s310
      %s312 = sphi 0, %s310
      %s313 = sphi 0, %s312
      %s327 = sphi 0, %s313
      %s331 = sphi 0, %s331
      %s333 = sphi 0, %s331
      %s334 = sphi 0, %s333
      %s348 = sphi 0, %s334
      %s352 = sphi 0, %s352
      %s354 = sphi 0, %s352
      %s355 = sphi 0, %s354
      %s369 = sphi 0, %s355
      %s373 = sphi 0, %s373
      %s375 = sphi 0, %s373
      %s376 = sphi 0, %s375
      %s390 = sphi 0, %s376
      %s394 = sphi 0, %s394
      %s396 = sphi 0, %s394
      %s397 = sphi 0, %s396
      %s411 = sphi 0, %s397
      %s417 = sphi 0, %s419
      %s420 = sphi 0, %s417
      %s421 = sphi 0, %s420
      %s437 = sphi 0, %s421
    $region4: #{generator_forward.1} parent=1 // loop_header_branch
      %32 = sbr.rel (%p30) target = $region8
    $region5: #{generator_forward.1} parent=1 // loop_body
      %s34 = ssub.s32 %s29, 1
      %s35 = ssub.s32 %s29, 2
      %s36 = sadd.s32 %s29, 1
      %s38 = sadd.s32 %s37, 1
      %p41 = scmp.eq.s32.totalorder %s29, 1
      %p42 = scmp.ne.s32.totalorder %s37, %s39
      %p43 = scmp.eq.s32.totalorder %s29, 0
      %p44 = por %p42, %p43
      %p45 = scmp.ne.s32.totalorder %s37, %s39
      %p46 = scmp.eq.s32.totalorder %s34, 1
      %p47 = por %p45, %p46
      %p48 = scmp.ne.s32.totalorder %s39, %s40
      %p49 = scmp.eq.s32.totalorder %s34, 0
      %p50 = por %p48, %p49
      %p51 = scmp.ne.s32.totalorder %s39, %s40
      %p52 = scmp.eq.s32.totalorder %s35, 1
      %p53 = por %p51, %p52
      %p55 = scmp.ne.s32.totalorder %s40, %s54
      %p56 = scmp.eq.s32.totalorder %s35, 0
      %p57 = por %p55, %p56
      %s59 = sadd.s32 %s58, 1
      %p62 = scmp.eq.s32.totalorder %s29, 1
      %p63 = scmp.ne.s32.totalorder %s58, %s60
      %p64 = scmp.eq.s32.totalorder %s29, 0
      %p65 = por %p63, %p64
      %p66 = scmp.ne.s32.totalorder %s58, %s60
      %p67 = scmp.eq.s32.totalorder %s34, 1
      %p68 = por %p66, %p67
      %p69 = scmp.ne.s32.totalorder %s60, %s61
      %p70 = scmp.eq.s32.totalorder %s34, 0
      %p71 = por %p69, %p70
      %p72 = scmp.ne.s32.totalorder %s60, %s61
      %p73 = scmp.eq.s32.totalorder %s35, 1
      %p74 = por %p72, %p73
      %p76 = scmp.ne.s32.totalorder %s61, %s75
      %p77 = scmp.eq.s32.totalorder %s35, 0
      %p78 = por %p76, %p77
      %s80 = sadd.s32 %s79, 1
      %p83 = scmp.eq.s32.totalorder %s29, 1
      %p84 = scmp.ne.s32.totalorder %s79, %s81
      %p85 = scmp.eq.s32.totalorder %s29, 0
      %p86 = por %p84, %p85
      %p87 = scmp.ne.s32.totalorder %s79, %s81
      %p88 = scmp.eq.s32.totalorder %s34, 1
      %p89 = por %p87, %p88
      %p90 = scmp.ne.s32.totalorder %s81, %s82
      %p91 = scmp.eq.s32.totalorder %s34, 0
      %p92 = por %p90, %p91
      %p93 = scmp.ne.s32.totalorder %s81, %s82
      %p94 = scmp.eq.s32.totalorder %s35, 1
      %p95 = por %p93, %p94
      %p97 = scmp.ne.s32.totalorder %s82, %s96
      %p98 = scmp.eq.s32.totalorder %s35, 0
      %p99 = por %p97, %p98
      %s101 = sadd.s32 %s100, 1
      %p104 = scmp.eq.s32.totalorder %s29, 1
      %p105 = scmp.ne.s32.totalorder %s100, %s102
      %p106 = scmp.eq.s32.totalorder %s29, 0
      %p107 = por %p105, %p106
      %p108 = scmp.ne.s32.totalorder %s100, %s102
      %p109 = scmp.eq.s32.totalorder %s34, 1
      %p110 = por %p108, %p109
      %p111 = scmp.ne.s32.totalorder %s102, %s103
      %p112 = scmp.eq.s32.totalorder %s34, 0
      %p113 = por %p111, %p112
      %p114 = scmp.ne.s32.totalorder %s102, %s103
      %p115 = scmp.eq.s32.totalorder %s35, 1
      %p116 = por %p114, %p115
      %p118 = scmp.ne.s32.totalorder %s103, %s117
      %p119 = scmp.eq.s32.totalorder %s35, 0
      %p120 = por %p118, %p119
      %s122 = sadd.s32 %s121, 1
      %p125 = scmp.eq.s32.totalorder %s29, 1
      %p126 = scmp.ne.s32.totalorder %s121, %s123
      %p127 = scmp.eq.s32.totalorder %s29, 0
      %p128 = por %p126, %p127
      %p129 = scmp.ne.s32.totalorder %s121, %s123
      %p130 = scmp.eq.s32.totalorder %s34, 1
      %p131 = por %p129, %p130
      %p132 = scmp.ne.s32.totalorder %s123, %s124
      %p133 = scmp.eq.s32.totalorder %s34, 0
      %p134 = por %p132, %p133
      %p135 = scmp.ne.s32.totalorder %s123, %s124
      %p136 = scmp.eq.s32.totalorder %s35, 1
      %p137 = por %p135, %p136
      %p139 = scmp.ne.s32.totalorder %s124, %s138
      %p140 = scmp.eq.s32.totalorder %s35, 0
      %p141 = por %p139, %p140
      %s143 = sadd.s32 %s142, 1
      %p146 = scmp.eq.s32.totalorder %s29, 1
      %p147 = scmp.ne.s32.totalorder %s142, %s144
      %p148 = scmp.eq.s32.totalorder %s29, 0
      %p149 = por %p147, %p148
      %p150 = scmp.ne.s32.totalorder %s142, %s144
      %p151 = scmp.eq.s32.totalorder %s34, 1
      %p152 = por %p150, %p151
      %p153 = scmp.ne.s32.totalorder %s144, %s145
      %p154 = scmp.eq.s32.totalorder %s34, 0
      %p155 = por %p153, %p154
      %p156 = scmp.ne.s32.totalorder %s144, %s145
      %p157 = scmp.eq.s32.totalorder %s35, 1
      %p158 = por %p156, %p157
      %p160 = scmp.ne.s32.totalorder %s145, %s159
      %p161 = scmp.eq.s32.totalorder %s35, 0
      %p162 = por %p160, %p161
      %s164 = sadd.s32 %s163, 1
      %p167 = scmp.eq.s32.totalorder %s29, 1
      %p168 = scmp.ne.s32.totalorder %s163, %s165
      %p169 = scmp.eq.s32.totalorder %s29, 0
      %p170 = por %p168, %p169
      %p171 = scmp.ne.s32.totalorder %s163, %s165
      %p172 = scmp.eq.s32.totalorder %s34, 1
      %p173 = por %p171, %p172
      %p174 = scmp.ne.s32.totalorder %s165, %s166
      %p175 = scmp.eq.s32.totalorder %s34, 0
      %p176 = por %p174, %p175
      %p177 = scmp.ne.s32.totalorder %s165, %s166
      %p178 = scmp.eq.s32.totalorder %s35, 1
      %p179 = por %p177, %p178
      %p181 = scmp.ne.s32.totalorder %s166, %s180
      %p182 = scmp.eq.s32.totalorder %s35, 0
      %p183 = por %p181, %p182
      %s185 = sadd.s32 %s184, 1
      %p188 = scmp.eq.s32.totalorder %s29, 1
      %p189 = scmp.ne.s32.totalorder %s184, %s186
      %p190 = scmp.eq.s32.totalorder %s29, 0
      %p191 = por %p189, %p190
      %p192 = scmp.ne.s32.totalorder %s184, %s186
      %p193 = scmp.eq.s32.totalorder %s34, 1
      %p194 = por %p192, %p193
      %p195 = scmp.ne.s32.totalorder %s186, %s187
      %p196 = scmp.eq.s32.totalorder %s34, 0
      %p197 = por %p195, %p196
      %p198 = scmp.ne.s32.totalorder %s186, %s187
      %p199 = scmp.eq.s32.totalorder %s35, 1
      %p200 = por %p198, %p199
      %p202 = scmp.ne.s32.totalorder %s187, %s201
      %p203 = scmp.eq.s32.totalorder %s35, 0
      %p204 = por %p202, %p203
      %s206 = sadd.s32 %s205, 1
      %p209 = scmp.eq.s32.totalorder %s29, 1
      %p210 = scmp.ne.s32.totalorder %s205, %s207
      %p211 = scmp.eq.s32.totalorder %s29, 0
      %p212 = por %p210, %p211
      %p213 = scmp.ne.s32.totalorder %s205, %s207
      %p214 = scmp.eq.s32.totalorder %s34, 1
      %p215 = por %p213, %p214
      %p216 = scmp.ne.s32.totalorder %s207, %s208
      %p217 = scmp.eq.s32.totalorder %s34, 0
      %p218 = por %p216, %p217
      %p219 = scmp.ne.s32.totalorder %s207, %s208
      %p220 = scmp.eq.s32.totalorder %s35, 1
      %p221 = por %p219, %p220
      %p223 = scmp.ne.s32.totalorder %s208, %s222
      %p224 = scmp.eq.s32.totalorder %s35, 0
      %p225 = por %p223, %p224
      %s227 = sadd.s32 %s226, 1
      %p230 = scmp.eq.s32.totalorder %s29, 1
      %p231 = scmp.ne.s32.totalorder %s226, %s228
      %p232 = scmp.eq.s32.totalorder %s29, 0
      %p233 = por %p231, %p232
      %p234 = scmp.ne.s32.totalorder %s226, %s228
      %p235 = scmp.eq.s32.totalorder %s34, 1
      %p236 = por %p234, %p235
      %p237 = scmp.ne.s32.totalorder %s228, %s229
      %p238 = scmp.eq.s32.totalorder %s34, 0
      %p239 = por %p237, %p238
      %p240 = scmp.ne.s32.totalorder %s228, %s229
      %p241 = scmp.eq.s32.totalorder %s35, 1
      %p242 = por %p240, %p241
      %p244 = scmp.ne.s32.totalorder %s229, %s243
      %p245 = scmp.eq.s32.totalorder %s35, 0
      %p246 = por %p244, %p245
      %s248 = sadd.s32 %s247, 1
      %p251 = scmp.eq.s32.totalorder %s29, 1
      %p252 = scmp.ne.s32.totalorder %s247, %s249
      %p253 = scmp.eq.s32.totalorder %s29, 0
      %p254 = por %p252, %p253
      %p255 = scmp.ne.s32.totalorder %s247, %s249
      %p256 = scmp.eq.s32.totalorder %s34, 1
      %p257 = por %p255, %p256
      %p258 = scmp.ne.s32.totalorder %s249, %s250
      %p259 = scmp.eq.s32.totalorder %s34, 0
      %p260 = por %p258, %p259
      %p261 = scmp.ne.s32.totalorder %s249, %s250
      %p262 = scmp.eq.s32.totalorder %s35, 1
      %p263 = por %p261, %p262
      %p265 = scmp.ne.s32.totalorder %s250, %s264
      %p266 = scmp.eq.s32.totalorder %s35, 0
      %p267 = por %p265, %p266
      %s269 = sadd.s32 %s268, 1
      %p272 = scmp.eq.s32.totalorder %s29, 1
      %p273 = scmp.ne.s32.totalorder %s268, %s270
      %p274 = scmp.eq.s32.totalorder %s29, 0
      %p275 = por %p273, %p274
      %p276 = scmp.ne.s32.totalorder %s268, %s270
      %p277 = scmp.eq.s32.totalorder %s34, 1
      %p278 = por %p276, %p277
      %p279 = scmp.ne.s32.totalorder %s270, %s271
      %p280 = scmp.eq.s32.totalorder %s34, 0
      %p281 = por %p279, %p280
      %p282 = scmp.ne.s32.totalorder %s270, %s271
      %p283 = scmp.eq.s32.totalorder %s35, 1
      %p284 = por %p282, %p283
      %p286 = scmp.ne.s32.totalorder %s271, %s285
      %p287 = scmp.eq.s32.totalorder %s35, 0
      %p288 = por %p286, %p287
      %s290 = sadd.s32 %s289, 1
      %p293 = scmp.eq.s32.totalorder %s29, 1
      %p294 = scmp.ne.s32.totalorder %s289, %s291
      %p295 = scmp.eq.s32.totalorder %s29, 0
      %p296 = por %p294, %p295
      %p297 = scmp.ne.s32.totalorder %s289, %s291
      %p298 = scmp.eq.s32.totalorder %s34, 1
      %p299 = por %p297, %p298
      %p300 = scmp.ne.s32.totalorder %s291, %s292
      %p301 = scmp.eq.s32.totalorder %s34, 0
      %p302 = por %p300, %p301
      %p303 = scmp.ne.s32.totalorder %s291, %s292
      %p304 = scmp.eq.s32.totalorder %s35, 1
      %p305 = por %p303, %p304
      %p307 = scmp.ne.s32.totalorder %s292, %s306
      %p308 = scmp.eq.s32.totalorder %s35, 0
      %p309 = por %p307, %p308
      %s311 = sadd.s32 %s310, 1
      %p314 = scmp.eq.s32.totalorder %s29, 1
      %p315 = scmp.ne.s32.totalorder %s310, %s312
      %p316 = scmp.eq.s32.totalorder %s29, 0
      %p317 = por %p315, %p316
      %p318 = scmp.ne.s32.totalorder %s310, %s312
      %p319 = scmp.eq.s32.totalorder %s34, 1
      %p320 = por %p318, %p319
      %p321 = scmp.ne.s32.totalorder %s312, %s313
      %p322 = scmp.eq.s32.totalorder %s34, 0
      %p323 = por %p321, %p322
      %p324 = scmp.ne.s32.totalorder %s312, %s313
      %p325 = scmp.eq.s32.totalorder %s35, 1
      %p326 = por %p324, %p325
      %p328 = scmp.ne.s32.totalorder %s313, %s327
      %p329 = scmp.eq.s32.totalorder %s35, 0
      %p330 = por %p328, %p329
      %s332 = sadd.s32 %s331, 1
      %p335 = scmp.eq.s32.totalorder %s29, 1
      %p336 = scmp.ne.s32.totalorder %s331, %s333
      %p337 = scmp.eq.s32.totalorder %s29, 0
      %p338 = por %p336, %p337
      %p339 = scmp.ne.s32.totalorder %s331, %s333
      %p340 = scmp.eq.s32.totalorder %s34, 1
      %p341 = por %p339, %p340
      %p342 = scmp.ne.s32.totalorder %s333, %s334
      %p343 = scmp.eq.s32.totalorder %s34, 0
      %p344 = por %p342, %p343
      %p345 = scmp.ne.s32.totalorder %s333, %s334
      %p346 = scmp.eq.s32.totalorder %s35, 1
      %p347 = por %p345, %p346
      %p349 = scmp.ne.s32.totalorder %s334, %s348
      %p350 = scmp.eq.s32.totalorder %s35, 0
      %p351 = por %p349, %p350
      %s353 = sadd.s32 %s352, 1
      %p356 = scmp.eq.s32.totalorder %s29, 1
      %p357 = scmp.ne.s32.totalorder %s352, %s354
      %p358 = scmp.eq.s32.totalorder %s29, 0
      %p359 = por %p357, %p358
      %p360 = scmp.ne.s32.totalorder %s352, %s354
      %p361 = scmp.eq.s32.totalorder %s34, 1
      %p362 = por %p360, %p361
      %p363 = scmp.ne.s32.totalorder %s354, %s355
      %p364 = scmp.eq.s32.totalorder %s34, 0
      %p365 = por %p363, %p364
      %p366 = scmp.ne.s32.totalorder %s354, %s355
      %p367 = scmp.eq.s32.totalorder %s35, 1
      %p368 = por %p366, %p367
      %p370 = scmp.ne.s32.totalorder %s355, %s369
      %p371 = scmp.eq.s32.totalorder %s35, 0
      %p372 = por %p370, %p371
      %s374 = sadd.s32 %s373, 1
      %p377 = scmp.eq.s32.totalorder %s29, 1
      %p378 = scmp.ne.s32.totalorder %s373, %s375
      %p379 = scmp.eq.s32.totalorder %s29, 0
      %p380 = por %p378, %p379
      %p381 = scmp.ne.s32.totalorder %s373, %s375
      %p382 = scmp.eq.s32.totalorder %s34, 1
      %p383 = por %p381, %p382
      %p384 = scmp.ne.s32.totalorder %s375, %s376
      %p385 = scmp.eq.s32.totalorder %s34, 0
      %p386 = por %p384, %p385
      %p387 = scmp.ne.s32.totalorder %s375, %s376
      %p388 = scmp.eq.s32.totalorder %s35, 1
      %p389 = por %p387, %p388
      %p391 = scmp.ne.s32.totalorder %s376, %s390
      %p392 = scmp.eq.s32.totalorder %s35, 0
      %p393 = por %p391, %p392
      %s395 = sadd.s32 %s394, 1
      %p398 = scmp.eq.s32.totalorder %s29, 1
      %p399 = scmp.ne.s32.totalorder %s394, %s396
      %p400 = scmp.eq.s32.totalorder %s29, 0
      %p401 = por %p399, %p400
      %p402 = scmp.ne.s32.totalorder %s394, %s396
      %p403 = scmp.eq.s32.totalorder %s34, 1
      %p404 = por %p402, %p403
      %p405 = scmp.ne.s32.totalorder %s396, %s397
      %p406 = scmp.eq.s32.totalorder %s34, 0
      %p407 = por %p405, %p406
      %p408 = scmp.ne.s32.totalorder %s396, %s397
      %p409 = scmp.eq.s32.totalorder %s35, 1
      %p410 = por %p408, %p409
      %p412 = scmp.ne.s32.totalorder %s397, %s411
      %p413 = scmp.eq.s32.totalorder %s35, 0
      %p414 = por %p412, %p413
      %s415 = ssub.s32 %s29, %s36
      %p416 = scmp.eq.s32.totalorder %s415, 0
      %s418 = sadd.s32 %s417, 1
      %s419 = scalar_select %p416, %s417, %s418
      %p422 = pneg %p416
      %p423 = scmp.eq.s32.totalorder %s29, 1
      %p424 = por %p422, %p423
      %p425 = scmp.ne.s32.totalorder %s417, %s420
      %p426 = scmp.eq.s32.totalorder %s29, 0
      %p427 = por %p425, %p426
      %p428 = scmp.ne.s32.totalorder %s417, %s420
      %p429 = scmp.eq.s32.totalorder %s34, 1
      %p430 = por %p428, %p429
      %p431 = scmp.ne.s32.totalorder %s420, %s421
      %p432 = scmp.eq.s32.totalorder %s34, 0
      %p433 = por %p431, %p432
      %p434 = scmp.ne.s32.totalorder %s420, %s421
      %p435 = scmp.eq.s32.totalorder %s35, 1
      %p436 = por %p434, %p435
      %p438 = scmp.ne.s32.totalorder %s421, %s437
      %p439 = scmp.eq.s32.totalorder %s35, 0
      %p440 = por %p438, %p439
      %p441 = scmp.le.s32.totalorder 1, %s29
      %p442 = scmp.lt.s32.totalorder %s29, 3
      %p443 = pnand %p441, %p442
      %p444 = pneg %p443
      // Predicated region
      $region9: #{generator_forward.1} parent=5 // pred_check
        _
      $region10: #{generator_forward.1} parent=5 // pred_check_branch
        %446 = sbr.rel (%p443) target = $region12
      $region11: #{generator_forward.1} parent=5 // pred_region
        %s447 = ssub.s32 %s29, 1
        // Predicated region
        $region13: #{generator_forward.1} parent=11 // pred_check
          %p448 = pneg %p50
        $region14: #{generator_forward.1} parent=11 // pred_check_branch
          %450 = sbr.rel (%p448) target = $region16
        $region15: #{generator_forward.1} parent=11 // pred_region
          %452 = vsyncadd [#allocation12], 0
          %s454 = sshll.u32 %s0, 4
          %s455 = int_to_ptr.hbm [resolvable:$true] %s454
          %457 = dma.hbm_to_smem %s455, 32, [#allocation10], [#allocation12]
        $region16: #{generator_forward.1} parent=11 // pred_fallthru
          _
        // Predicated region
        $region17: #{generator_forward.1} parent=11 // pred_check
          %p458 = pneg %p71
        $region18: #{generator_forward.1} parent=11 // pred_check_branch
          %460 = sbr.rel (%p458) target = $region20
        $region19: #{generator_forward.1} parent=11 // pred_region
          _
        $region20: #{generator_forward.1} parent=11 // pred_fallthru
          _
        // Predicated region
        $region21: #{generator_forward.1} parent=11 // pred_check
          %p461 = pneg %p92
        $region22: #{generator_forward.1} parent=11 // pred_check_branch
          %463 = sbr.rel (%p461) target = $region24
        $region23: #{generator_forward.1} parent=11 // pred_region
          _
        $region24: #{generator_forward.1} parent=11 // pred_fallthru
          _
        // Predicated region
        $region25: #{generator_forward.1} parent=11 // pred_check
          %p464 = pneg %p113
        $region26: #{generator_forward.1} parent=11 // pred_check_branch
          %466 = sbr.rel (%p464) target = $region28
        $region27: #{generator_forward.1} parent=11 // pred_region
          _
        $region28: #{generator_forward.1} parent=11 // pred_fallthru
          _
        // Predicated region
        $region29: #{generator_forward.1} parent=11 // pred_check
          %p467 = pneg %p134
        $region30: #{generator_forward.1} parent=11 // pred_check_branch
          %469 = sbr.rel (%p467) target = $region32
        $region31: #{generator_forward.1} parent=11 // pred_region
          %471 = vsyncadd [#allocation11], 0
          %s472 = sshll.u32 %s4, 4
          %s473 = int_to_ptr.hbm [resolvable:$true] %s472
          %s474 = sshll.u32 [#allocation13], 4
          %s475 = int_to_ptr.vmem [resolvable:$true] %s474
          %480 = dma.hbm_to_vmem [thread:$0]  %s473, 1024, %s475, [#allocation11], 128, 128, 8
        $region32: #{generator_forward.1} parent=11 // pred_fallthru
          _
        // Predicated region
        $region33: #{generator_forward.1} parent=11 // pred_check
          %p481 = pneg %p155
        $region34: #{generator_forward.1} parent=11 // pred_check_branch
          %483 = sbr.rel (%p481) target = $region36
        $region35: #{generator_forward.1} parent=11 // pred_region
          _
        $region36: #{generator_forward.1} parent=11 // pred_fallthru
          _
        // Predicated region
        $region37: #{generator_forward.1} parent=11 // pred_check
          %p484 = pneg %p176
        $region38: #{generator_forward.1} parent=11 // pred_check_branch
          %486 = sbr.rel (%p484) target = $region40
        $region39: #{generator_forward.1} parent=11 // pred_region
          _
        $region40: #{generator_forward.1} parent=11 // pred_fallthru
          _
        // Predicated region
        $region41: #{generator_forward.1} parent=11 // pred_check
          %p487 = pneg %p197
        $region42: #{generator_forward.1} parent=11 // pred_check_branch
          %489 = sbr.rel (%p487) target = $region44
        $region43: #{generator_forward.1} parent=11 // pred_region
          _
        $region44: #{generator_forward.1} parent=11 // pred_fallthru
          _
        // Predicated region
        $region45: #{generator_forward.1} parent=11 // pred_check
          %p490 = pneg %p218
        $region46: #{generator_forward.1} parent=11 // pred_check_branch
          %492 = sbr.rel (%p490) target = $region48
        $region47: #{generator_forward.1} parent=11 // pred_region
          %494 = vsyncadd [#allocation15], 0
          %s495 = sshll.u32 %s8, 4
          %s496 = int_to_ptr.hbm [resolvable:$true] %s495
          %s497 = sshll.u32 [#allocation14], 4
          %s498 = int_to_ptr.vmem [resolvable:$true] %s497
          %503 = dma.hbm_to_vmem [thread:$0]  %s496, 256, %s498, [#allocation15], 64, 64, 4
        $region48: #{generator_forward.1} parent=11 // pred_fallthru
          _
        // Predicated region
        $region49: #{generator_forward.1} parent=11 // pred_check
          %p504 = pneg %p239
        $region50: #{generator_forward.1} parent=11 // pred_check_branch
          %506 = sbr.rel (%p504) target = $region52
        $region51: #{generator_forward.1} parent=11 // pred_region
          %508 = vsyncadd [#allocation15], 0
          %s509 = sshll.u32 %s9, 4
          %s510 = int_to_ptr.hbm [resolvable:$true] %s509
          %s511 = sshll.u32 [#allocation16], 4
          %s512 = int_to_ptr.vmem [resolvable:$true] %s511
          %517 = dma.hbm_to_vmem [thread:$0]  %s510, 1536, %s512, [#allocation15], 192, 192, 12
        $region52: #{generator_forward.1} parent=11 // pred_fallthru
          _
        // Predicated region
        $region53: #{generator_forward.1} parent=11 // pred_check
          %p518 = pneg %p260
        $region54: #{generator_forward.1} parent=11 // pred_check_branch
          %520 = sbr.rel (%p518) target = $region56
        $region55: #{generator_forward.1} parent=11 // pred_region
          _
        $region56: #{generator_forward.1} parent=11 // pred_fallthru
          _
        // Predicated region
        $region57: #{generator_forward.1} parent=11 // pred_check
          %p521 = pneg %p281
        $region58: #{generator_forward.1} parent=11 // pred_check_branch
          %523 = sbr.rel (%p521) target = $region60
        $region59: #{generator_forward.1} parent=11 // pred_region
          _
        $region60: #{generator_forward.1} parent=11 // pred_fallthru
          _
        // Predicated region
        $region61: #{generator_forward.1} parent=11 // pred_check
          %p524 = pneg %p302
        $region62: #{generator_forward.1} parent=11 // pred_check_branch
          %526 = sbr.rel (%p524) target = $region64
        $region63: #{generator_forward.1} parent=11 // pred_region
          %528 = vsyncadd [#allocation18], 0
          %s529 = sshll.u32 %s12, 4
          %s530 = int_to_ptr.hbm [resolvable:$true] %s529
          %s531 = sshll.u32 [#allocation17], 4
          %s532 = int_to_ptr.vmem [resolvable:$true] %s531
          %537 = dma.hbm_to_vmem [thread:$0]  %s530, 1024, %s532, [#allocation18], 64, 64, 4
        $region64: #{generator_forward.1} parent=11 // pred_fallthru
          _
        // Predicated region
        $region65: #{generator_forward.1} parent=11 // pred_check
          %p538 = pneg %p323
        $region66: #{generator_forward.1} parent=11 // pred_check_branch
          %540 = sbr.rel (%p538) target = $region68
        $region67: #{generator_forward.1} parent=11 // pred_region
          %542 = vsyncadd [#allocation18], 0
          %s543 = sshll.u32 %s13, 4
          %s544 = int_to_ptr.hbm [resolvable:$true] %s543
          %s545 = sshll.u32 [#allocation19], 4
          %s546 = int_to_ptr.vmem [resolvable:$true] %s545
          %551 = dma.hbm_to_vmem [thread:$0]  %s544, 512, %s546, [#allocation18], 128, 128, 8
        $region68: #{generator_forward.1} parent=11 // pred_fallthru
          _
        // Predicated region
        $region69: #{generator_forward.1} parent=11 // pred_check
          %p552 = pneg %p344
        $region70: #{generator_forward.1} parent=11 // pred_check_branch
          %554 = sbr.rel (%p552) target = $region72
        $region71: #{generator_forward.1} parent=11 // pred_region
          _
        $region72: #{generator_forward.1} parent=11 // pred_fallthru
          _
        // Predicated region
        $region73: #{generator_forward.1} parent=11 // pred_check
          %p555 = pneg %p365
        $region74: #{generator_forward.1} parent=11 // pred_check_branch
          %557 = sbr.rel (%p555) target = $region76
        $region75: #{generator_forward.1} parent=11 // pred_region
          _
        $region76: #{generator_forward.1} parent=11 // pred_fallthru
          _
        // Predicated region
        $region77: #{generator_forward.1} parent=11 // pred_check
          %p558 = pneg %p386
        $region78: #{generator_forward.1} parent=11 // pred_check_branch
          %560 = sbr.rel (%p558) target = $region80
        $region79: #{generator_forward.1} parent=11 // pred_region
          %562 = vsyncadd [#allocation21], 0
          %s563 = sshll.u32 %s16, 4
          %s564 = int_to_ptr.hbm [resolvable:$true] %s563
          %s565 = sshll.u32 [#allocation20], 4
          %s566 = int_to_ptr.vmem [resolvable:$true] %s565
          %571 = dma.hbm_to_vmem [thread:$0]  %s564, 16384, %s566, [#allocation21], 256, 256, 16
        $region80: #{generator_forward.1} parent=11 // pred_fallthru
          _
        // Predicated region
        $region81: #{generator_forward.1} parent=11 // pred_check
          %p572 = pneg %p407
        $region82: #{generator_forward.1} parent=11 // pred_check_branch
          %574 = sbr.rel (%p572) target = $region84
        $region83: #{generator_forward.1} parent=11 // pred_region
          %576 = vsyncadd [#allocation21], 0
          %s577 = sshll.u32 %s17, 4
          %s578 = int_to_ptr.hbm [resolvable:$true] %s577
          %s579 = sshll.u32 [#allocation22], 4
          %s580 = int_to_ptr.vmem [resolvable:$true] %s579
          %585 = dma.hbm_to_vmem [thread:$0]  %s578, 128, %s580, [#allocation21], 64, 64, 4
        $region84: #{generator_forward.1} parent=11 // pred_fallthru
          _
      $region12: #{generator_forward.1} parent=5 // pred_fallthru
        _
      %p586 = scmp.lt.s32.totalorder %s29, 2
      // Predicated region
      $region85: #{generator_forward.1} parent=5 // pred_check
        %p587 = pneg %p586
      $region86: #{generator_forward.1} parent=5 // pred_check_branch
        %589 = sbr.rel (%p587) target = $region88
      $region87: #{generator_forward.1} parent=5 // pred_region
        _
      $region88: #{generator_forward.1} parent=5 // pred_fallthru
        _
      %p590 = scmp.le.s32.totalorder 1, %s29
      %p591 = scmp.lt.s32.totalorder %s29, 3
      %p592 = pnand %p590, %p591
      %p593 = pneg %p592
      // Predicated region
      $region89: #{generator_forward.1} parent=5 // pred_check
        _
      $region90: #{generator_forward.1} parent=5 // pred_check_branch
        %595 = sbr.rel (%p592) target = $region92
      $region91: #{generator_forward.1} parent=5 // pred_region
        %s596 = ssub.s32 %s29, 1
        // Predicated region
        $region93: #{generator_forward.1} parent=91 // pred_check
          %p597 = pneg %p50
        $region94: #{generator_forward.1} parent=91 // pred_check_branch
          %599 = sbr.rel (%p597) target = $region96
        $region95: #{generator_forward.1} parent=91 // pred_region
          %601 = dma.done [#allocation12], 32
        $region96: #{generator_forward.1} parent=91 // pred_fallthru
          _
        // Predicated region
        $region97: #{generator_forward.1} parent=91 // pred_check
          %p602 = pneg %p134
        $region98: #{generator_forward.1} parent=91 // pred_check_branch
          %604 = sbr.rel (%p602) target = $region100
        $region99: #{generator_forward.1} parent=91 // pred_region
          %606 = dma.done [#allocation11], 1024
        $region100: #{generator_forward.1} parent=91 // pred_fallthru
          _
        // Predicated region
        $region101: #{generator_forward.1} parent=91 // pred_check
          %p607 = pneg %p218
        $region102: #{generator_forward.1} parent=91 // pred_check_branch
          %609 = sbr.rel (%p607) target = $region104
        $region103: #{generator_forward.1} parent=91 // pred_region
          %611 = dma.done [#allocation15], 256
        $region104: #{generator_forward.1} parent=91 // pred_fallthru
          _
        // Predicated region
        $region105: #{generator_forward.1} parent=91 // pred_check
          %p612 = pneg %p239
        $region106: #{generator_forward.1} parent=91 // pred_check_branch
          %614 = sbr.rel (%p612) target = $region108
        $region107: #{generator_forward.1} parent=91 // pred_region
          %616 = dma.done [#allocation15], 1536
        $region108: #{generator_forward.1} parent=91 // pred_fallthru
          _
        // Predicated region
        $region109: #{generator_forward.1} parent=91 // pred_check
          %p617 = pneg %p302
        $region110: #{generator_forward.1} parent=91 // pred_check_branch
          %619 = sbr.rel (%p617) target = $region112
        $region111: #{generator_forward.1} parent=91 // pred_region
          %621 = dma.done [#allocation18], 1024
        $region112: #{generator_forward.1} parent=91 // pred_fallthru
          _
        // Predicated region
        $region113: #{generator_forward.1} parent=91 // pred_check
          %p622 = pneg %p323
        $region114: #{generator_forward.1} parent=91 // pred_check_branch
          %624 = sbr.rel (%p622) target = $region116
        $region115: #{generator_forward.1} parent=91 // pred_region
          %626 = dma.done [#allocation18], 512
        $region116: #{generator_forward.1} parent=91 // pred_fallthru
          _
        // Predicated region
        $region117: #{generator_forward.1} parent=91 // pred_check
          %p627 = pneg %p386
        $region118: #{generator_forward.1} parent=91 // pred_check_branch
          %629 = sbr.rel (%p627) target = $region120
        $region119: #{generator_forward.1} parent=91 // pred_region
          %631 = dma.done [#allocation21], 16384
        $region120: #{generator_forward.1} parent=91 // pred_fallthru
          _
        // Predicated region
        $region121: #{generator_forward.1} parent=91 // pred_check
          %p632 = pneg %p407
        $region122: #{generator_forward.1} parent=91 // pred_check_branch
          %634 = sbr.rel (%p632) target = $region124
        $region123: #{generator_forward.1} parent=91 // pred_region
          %636 = dma.done [#allocation21], 128
        $region124: #{generator_forward.1} parent=91 // pred_fallthru
          _
        %637 = sfence
        %p638 = pneg %p50
        %p639 = pneg %p47
        %p640 = pneg %p71
        %p641 = pneg %p68
        %p642 = pneg %p92
        %p643 = pneg %p89
        %p644 = pneg %p113
        %p645 = pneg %p110
        %p646 = pneg %p134
        %p647 = pneg %p131
        %p648 = pneg %p155
        %p649 = pneg %p152
        %p650 = pneg %p176
        %p651 = pneg %p173
        %p652 = pneg %p197
        %p653 = pneg %p194
        %p654 = pneg %p218
        %p655 = pneg %p215
        %p656 = pneg %p239
        %p657 = pneg %p236
        %p658 = pneg %p260
        %p659 = pneg %p257
        %p660 = pneg %p281
        %p661 = pneg %p278
        %p662 = pneg %p302
        %p663 = pneg %p299
        %p664 = pneg %p323
        %p665 = pneg %p320
        %p666 = pneg %p344
        %p667 = pneg %p341
        %p668 = pneg %p365
        %p669 = pneg %p362
        %p670 = pneg %p386
        %p671 = pneg %p383
        %p672 = pneg %p407
        %p673 = pneg %p404
        %p674 = pneg %p433
        %p675 = pneg %p430
        %p676 = scmp.lt.s32.totalorder %s34, 1
        %s677 = scalar_select %p676, %s34, 1
        %s678 = smul.addr %s677, 16
        %s679 = smul.addr %s678, 8
        %s680 = scalar_lea.vmem %s18, %s679
        %p681 = scmp.lt.s32.totalorder %s34, 1
        %s682 = scalar_select %p681, %s34, 1
        %s683 = smul.addr %s682, 16
        %s684 = smul.addr %s683, 8
        %s685 = scalar_lea.vmem %s18, %s684
        %s689 = smul.u32 %s34, 128
        %s690 = sld [smem:[#allocation10 + %s689]]
        %v691 = vld [vmem:[%s1] sm:$0xff]
        %v692 = vld [vmem:[%s1 + $0x8] sm:$0xff]
        %v693 = vld [vmem:[%s1 + $0x10] sm:$0xff]
        %v694 = vld [vmem:[%s1 + $0x18] sm:$0xff]
        %v695 = vld [vmem:[%s1 + $0x20] sm:$0xff]
        %v696 = vld [vmem:[%s1 + $0x28] sm:$0xff]
        %v697 = vld [vmem:[%s1 + $0x30] sm:$0xff]
        %v698 = vld [vmem:[%s1 + $0x38] sm:$0xff]
        %v699 = vstv %s690
        %v700 = vmul.f32 %v699, %v691
        %v701 = vmul.f32 %v699, %v692
        %v702 = vmul.f32 %v699, %v693
        %v703 = vmul.f32 %v699, %v694
        %v704 = vmul.f32 %v699, %v695
        %v705 = vmul.f32 %v699, %v696
        %v706 = vmul.f32 %v699, %v697
        %v707 = vmul.f32 %v699, %v698
        %s708 = sadd.s32 %s689, 1
        %s709 = sld [smem:[#allocation10 + %s708]]
        %s710 = scalar_lea.vmem %s1, 64
        %v711 = vld [vmem:[%s710] sm:$0xff]
        %v712 = vld [vmem:[%s710 + $0x8] sm:$0xff]
        %v713 = vld [vmem:[%s710 + $0x10] sm:$0xff]
        %v714 = vld [vmem:[%s710 + $0x18] sm:$0xff]
        %v715 = vld [vmem:[%s710 + $0x20] sm:$0xff]
        %v716 = vld [vmem:[%s710 + $0x28] sm:$0xff]
        %v717 = vld [vmem:[%s710 + $0x30] sm:$0xff]
        %v718 = vld [vmem:[%s710 + $0x38] sm:$0xff]
        %v719 = vstv %s709
        %v720 = vmul.f32 %v719, %v711
        %v721 = vmul.f32 %v719, %v712
        %v722 = vmul.f32 %v719, %v713
        %v723 = vmul.f32 %v719, %v714
        %v724 = vmul.f32 %v719, %v715
        %v725 = vmul.f32 %v719, %v716
        %v726 = vmul.f32 %v719, %v717
        %v727 = vmul.f32 %v719, %v718
        %v728 = vadd.f32 %v700, %v720
        %v729 = vadd.f32 %v701, %v721
        %v730 = vadd.f32 %v702, %v722
        %v731 = vadd.f32 %v703, %v723
        %v732 = vadd.f32 %v704, %v724
        %v733 = vadd.f32 %v705, %v725
        %v734 = vadd.f32 %v706, %v726
        %v735 = vadd.f32 %v707, %v727
        %s736 = sadd.s32 %s689, 2
        %s737 = sld [smem:[#allocation10 + %s736]]
        %s738 = scalar_lea.vmem %s1, 128
        %v739 = vld [vmem:[%s738] sm:$0xff]
        %v740 = vld [vmem:[%s738 + $0x8] sm:$0xff]
        %v741 = vld [vmem:[%s738 + $0x10] sm:$0xff]
        %v742 = vld [vmem:[%s738 + $0x18] sm:$0xff]
        %v743 = vld [vmem:[%s738 + $0x20] sm:$0xff]
        %v744 = vld [vmem:[%s738 + $0x28] sm:$0xff]
        %v745 = vld [vmem:[%s738 + $0x30] sm:$0xff]
        %v746 = vld [vmem:[%s738 + $0x38] sm:$0xff]
        %v747 = vstv %s737
        %v748 = vmul.f32 %v747, %v739
        %v749 = vmul.f32 %v747, %v740
        %v750 = vmul.f32 %v747, %v741
        %v751 = vmul.f32 %v747, %v742
        %v752 = vmul.f32 %v747, %v743
        %v753 = vmul.f32 %v747, %v744
        %v754 = vmul.f32 %v747, %v745
        %v755 = vmul.f32 %v747, %v746
        %v756 = vadd.f32 %v728, %v748
        %v757 = vadd.f32 %v729, %v749
        %v758 = vadd.f32 %v730, %v750
        %v759 = vadd.f32 %v731, %v751
        %v760 = vadd.f32 %v732, %v752
        %v761 = vadd.f32 %v733, %v753
        %v762 = vadd.f32 %v734, %v754
        %v763 = vadd.f32 %v735, %v755
        %s764 = sadd.s32 %s689, 3
        %s765 = sld [smem:[#allocation10 + %s764]]
        %s766 = scalar_lea.vmem %s1, 192
        %v767 = vld [vmem:[%s766] sm:$0xff]
        %v768 = vld [vmem:[%s766 + $0x8] sm:$0xff]
        %v769 = vld [vmem:[%s766 + $0x10] sm:$0xff]
        %v770 = vld [vmem:[%s766 + $0x18] sm:$0xff]
        %v771 = vld [vmem:[%s766 + $0x20] sm:$0xff]
        %v772 = vld [vmem:[%s766 + $0x28] sm:$0xff]
        %v773 = vld [vmem:[%s766 + $0x30] sm:$0xff]
        %v774 = vld [vmem:[%s766 + $0x38] sm:$0xff]
        %v775 = vstv %s765
        %v776 = vmul.f32 %v775, %v767
        %v777 = vmul.f32 %v775, %v768
        %v778 = vmul.f32 %v775, %v769
        %v779 = vmul.f32 %v775, %v770
        %v780 = vmul.f32 %v775, %v771
        %v781 = vmul.f32 %v775, %v772
        %v782 = vmul.f32 %v775, %v773
        %v783 = vmul.f32 %v775, %v774
        %v784 = vadd.f32 %v756, %v776
        %v785 = vadd.f32 %v757, %v777
        %v786 = vadd.f32 %v758, %v778
        %v787 = vadd.f32 %v759, %v779
        %v788 = vadd.f32 %v760, %v780
        %v789 = vadd.f32 %v761, %v781
        %v790 = vadd.f32 %v762, %v782
        %v791 = vadd.f32 %v763, %v783
        %s792 = sadd.s32 %s689, 4
        %s793 = sld [smem:[#allocation10 + %s792]]
        %s794 = scalar_lea.vmem %s1, 256
        %v795 = vld [vmem:[%s794] sm:$0xff]
        %v796 = vld [vmem:[%s794 + $0x8] sm:$0xff]
        %v797 = vld [vmem:[%s794 + $0x10] sm:$0xff]
        %v798 = vld [vmem:[%s794 + $0x18] sm:$0xff]
        %v799 = vld [vmem:[%s794 + $0x20] sm:$0xff]
        %v800 = vld [vmem:[%s794 + $0x28] sm:$0xff]
        %v801 = vld [vmem:[%s794 + $0x30] sm:$0xff]
        %v802 = vld [vmem:[%s794 + $0x38] sm:$0xff]
        %v803 = vstv %s793
        %v804 = vmul.f32 %v803, %v795
        %v805 = vmul.f32 %v803, %v796
        %v806 = vmul.f32 %v803, %v797
        %v807 = vmul.f32 %v803, %v798
        %v808 = vmul.f32 %v803, %v799
        %v809 = vmul.f32 %v803, %v800
        %v810 = vmul.f32 %v803, %v801
        %v811 = vmul.f32 %v803, %v802
        %v812 = vadd.f32 %v784, %v804
        %v813 = vadd.f32 %v785, %v805
        %v814 = vadd.f32 %v786, %v806
        %v815 = vadd.f32 %v787, %v807
        %v816 = vadd.f32 %v788, %v808
        %v817 = vadd.f32 %v789, %v809
        %v818 = vadd.f32 %v790, %v810
        %v819 = vadd.f32 %v791, %v811
        %s820 = sadd.s32 %s689, 5
        %s821 = sld [smem:[#allocation10 + %s820]]
        %s822 = scalar_lea.vmem %s1, 320
        %v823 = vld [vmem:[%s822] sm:$0xff]
        %v824 = vld [vmem:[%s822 + $0x8] sm:$0xff]
        %v825 = vld [vmem:[%s822 + $0x10] sm:$0xff]
        %v826 = vld [vmem:[%s822 + $0x18] sm:$0xff]
        %v827 = vld [vmem:[%s822 + $0x20] sm:$0xff]
        %v828 = vld [vmem:[%s822 + $0x28] sm:$0xff]
        %v829 = vld [vmem:[%s822 + $0x30] sm:$0xff]
        %v830 = vld [vmem:[%s822 + $0x38] sm:$0xff]
        %v831 = vstv %s821
        %v832 = vmul.f32 %v831, %v823
        %v833 = vmul.f32 %v831, %v824
        %v834 = vmul.f32 %v831, %v825
        %v835 = vmul.f32 %v831, %v826
        %v836 = vmul.f32 %v831, %v827
        %v837 = vmul.f32 %v831, %v828
        %v838 = vmul.f32 %v831, %v829
        %v839 = vmul.f32 %v831, %v830
        %v840 = vadd.f32 %v812, %v832
        %v841 = vadd.f32 %v813, %v833
        %v842 = vadd.f32 %v814, %v834
        %v843 = vadd.f32 %v815, %v835
        %v844 = vadd.f32 %v816, %v836
        %v845 = vadd.f32 %v817, %v837
        %v846 = vadd.f32 %v818, %v838
        %v847 = vadd.f32 %v819, %v839
        %s848 = sadd.s32 %s689, 6
        %s849 = sld [smem:[#allocation10 + %s848]]
        %s850 = scalar_lea.vmem %s1, 384
        %v851 = vld [vmem:[%s850] sm:$0xff]
        %v852 = vld [vmem:[%s850 + $0x8] sm:$0xff]
        %v853 = vld [vmem:[%s850 + $0x10] sm:$0xff]
        %v854 = vld [vmem:[%s850 + $0x18] sm:$0xff]
        %v855 = vld [vmem:[%s850 + $0x20] sm:$0xff]
        %v856 = vld [vmem:[%s850 + $0x28] sm:$0xff]
        %v857 = vld [vmem:[%s850 + $0x30] sm:$0xff]
        %v858 = vld [vmem:[%s850 + $0x38] sm:$0xff]
        %v859 = vstv %s849
        %v860 = vmul.f32 %v859, %v851
        %v861 = vmul.f32 %v859, %v852
        %v862 = vmul.f32 %v859, %v853
        %v863 = vmul.f32 %v859, %v854
        %v864 = vmul.f32 %v859, %v855
        %v865 = vmul.f32 %v859, %v856
        %v866 = vmul.f32 %v859, %v857
        %v867 = vmul.f32 %v859, %v858
        %v868 = vadd.f32 %v840, %v860
        %v869 = vadd.f32 %v841, %v861
        %v870 = vadd.f32 %v842, %v862
        %v871 = vadd.f32 %v843, %v863
        %v872 = vadd.f32 %v844, %v864
        %v873 = vadd.f32 %v845, %v865
        %v874 = vadd.f32 %v846, %v866
        %v875 = vadd.f32 %v847, %v867
        %s876 = sadd.s32 %s689, 7
        %s877 = sld [smem:[#allocation10 + %s876]]
        %s878 = scalar_lea.vmem %s1, 448
        %v879 = vld [vmem:[%s878] sm:$0xff]
        %v880 = vld [vmem:[%s878 + $0x8] sm:$0xff]
        %v881 = vld [vmem:[%s878 + $0x10] sm:$0xff]
        %v882 = vld [vmem:[%s878 + $0x18] sm:$0xff]
        %v883 = vld [vmem:[%s878 + $0x20] sm:$0xff]
        %v884 = vld [vmem:[%s878 + $0x28] sm:$0xff]
        %v885 = vld [vmem:[%s878 + $0x30] sm:$0xff]
        %v886 = vld [vmem:[%s878 + $0x38] sm:$0xff]
        %v887 = vstv %s877
        %v888 = vmul.f32 %v887, %v879
        %v889 = vmul.f32 %v887, %v880
        %v890 = vmul.f32 %v887, %v881
        %v891 = vmul.f32 %v887, %v882
        %v892 = vmul.f32 %v887, %v883
        %v893 = vmul.f32 %v887, %v884
        %v894 = vmul.f32 %v887, %v885
        %v895 = vmul.f32 %v887, %v886
        %v896 = vadd.f32 %v868, %v888
        %v897 = vadd.f32 %v869, %v889
        %v898 = vadd.f32 %v870, %v890
        %v899 = vadd.f32 %v871, %v891
        %v900 = vadd.f32 %v872, %v892
        %v901 = vadd.f32 %v873, %v893
        %v902 = vadd.f32 %v874, %v894
        %v903 = vadd.f32 %v875, %v895
        %v904 = vld [vmem:[#allocation13] sm:$0xff]
        %v905 = vld [vmem:[#allocation13 + $0x8] sm:$0xff]
        %v906 = vld [vmem:[#allocation13 + $0x10] sm:$0xff]
        %v907 = vld [vmem:[#allocation13 + $0x18] sm:$0xff]
        %v908 = vld [vmem:[#allocation13 + $0x20] sm:$0xff]
        %v909 = vld [vmem:[#allocation13 + $0x28] sm:$0xff]
        %v910 = vld [vmem:[#allocation13 + $0x30] sm:$0xff]
        %v911 = vld [vmem:[#allocation13 + $0x38] sm:$0xff]
        %vm912 = vcmask 130048
        %v913 = vsel %vm912, %v896, 0.0
        %914 = vadd.xlane.f32.xlu0 %v913
        %v915 = vpop.xlane.xlu0 %914
        %v916 = vsel %vm912, %v897, 0.0
        %917 = vadd.xlane.f32.xlu0 %v916
        %v918 = vpop.xlane.xlu0 %917
        %v919 = vsel %vm912, %v898, 0.0
        %920 = vadd.xlane.f32.xlu0 %v919
        %v921 = vpop.xlane.xlu0 %920
        %v922 = vsel %vm912, %v899, 0.0
        %923 = vadd.xlane.f32.xlu0 %v922
        %v924 = vpop.xlane.xlu0 %923
        %v925 = vsel %vm912, %v900, 0.0
        %926 = vadd.xlane.f32.xlu0 %v925
        %v927 = vpop.xlane.xlu0 %926
        %v928 = vsel %vm912, %v901, 0.0
        %929 = vadd.xlane.f32.xlu0 %v928
        %v930 = vpop.xlane.xlu0 %929
        %v931 = vsel %vm912, %v902, 0.0
        %932 = vadd.xlane.f32.xlu0 %v931
        %v933 = vpop.xlane.xlu0 %932
        %v934 = vsel %vm912, %v903, 0.0
        %935 = vadd.xlane.f32.xlu0 %v934
        %v936 = vpop.xlane.xlu0 %935
        %vm937 = vcmask 523264
        %v939 = vsel %vm937, %v904, 0
        %v942 = vsel %vm937, %v905, 0
        %v945 = vsel %vm937, %v906, 0
        %v948 = vsel %vm937, %v907, 0
        %v951 = vsel %vm937, %v908, 0
        %v954 = vsel %vm937, %v909, 0
        %v957 = vsel %vm937, %v910, 0
        %v960 = vsel %vm937, %v911, 0
        %962 = vmatpush.msra.mxu0 0.0
        %963 = vmatpush.msra.mxu0 0.0
        %964 = vmatpush.msra.mxu0 0.0
        %965 = vmatpush.msra.mxu0 0.0
        %966 = vmatpush.msra.mxu0 0.0
        %967 = vmatpush.msra.mxu0 0.0
        %968 = vmatpush.msra.mxu0 0.0
        %969 = vmatpush.msra.mxu0 0.0
        %970 = vmatpush.msra.mxu0 %v936
        %971 = vmatpush.msra.mxu0 %v933
        %972 = vmatpush.msra.mxu0 %v930
        %973 = vmatpush.msra.mxu0 %v927
        %974 = vmatpush.msra.mxu0 %v924
        %975 = vmatpush.msra.mxu0 %v921
        %976 = vmatpush.msra.mxu0 %v918
        %977 = vmatpush.msra.mxu0 %v915
        %978 = vmatmul.f32.gmra.mxu0 %v939
        %v979 = vpop.f32.mrf.mxu0
        %v980 = vadd.f32 0.0, %v979
        %981 = vmatmul.f32.gmra.mxu0 %v942
        %v982 = vpop.f32.mrf.mxu0
        %v983 = vadd.f32 0.0, %v982
        %984 = vmatmul.f32.gmra.mxu0 %v945
        %v985 = vpop.f32.mrf.mxu0
        %v986 = vadd.f32 0.0, %v985
        %987 = vmatmul.f32.gmra.mxu0 %v948
        %v988 = vpop.f32.mrf.mxu0
        %v989 = vadd.f32 0.0, %v988
        %990 = vmatmul.f32.gmra.mxu0 %v951
        %v991 = vpop.f32.mrf.mxu0
        %v992 = vadd.f32 0.0, %v991
        %993 = vmatmul.f32.gmra.mxu0 %v954
        %v994 = vpop.f32.mrf.mxu0
        %v995 = vadd.f32 0.0, %v994
        %996 = vmatmul.f32.gmra.mxu0 %v957
        %v997 = vpop.f32.mrf.mxu0
        %v998 = vadd.f32 0.0, %v997
        %999 = vmatmul.f32.gmra.mxu0 %v960
        %v1000 = vpop.f32.mrf.mxu0
        %v1001 = vadd.f32 0.0, %v1000
        %1002 = vdwg.mxu0
        %v1003 = vmul.f32 %v980, 0.03125
        %v1004 = vmul.f32 %v983, 0.03125
        %v1005 = vmul.f32 %v986, 0.03125
        %v1006 = vmul.f32 %v989, 0.03125
        %v1007 = vmul.f32 %v992, 0.03125
        %v1008 = vmul.f32 %v995, 0.03125
        %v1009 = vmul.f32 %v998, 0.03125
        %v1010 = vmul.f32 %v1001, 0.03125
        %1012 = vset.pattern.permute.xlu0 0
        %1013 = vperm.xlu0 %1012, %v1003
        %v1014 = vpop.permute.xlu0 %1013
        %1017 = vset.pattern.permute.xlu0 0
        %1018 = vperm.xlu0 %1017, %v1004
        %v1019 = vpop.permute.xlu0 %1018
        %1022 = vset.pattern.permute.xlu0 0
        %1023 = vperm.xlu0 %1022, %v1005
        %v1024 = vpop.permute.xlu0 %1023
        %1027 = vset.pattern.permute.xlu0 0
        %1028 = vperm.xlu0 %1027, %v1006
        %v1029 = vpop.permute.xlu0 %1028
        %1032 = vset.pattern.permute.xlu0 0
        %1033 = vperm.xlu0 %1032, %v1007
        %v1034 = vpop.permute.xlu0 %1033
        %1037 = vset.pattern.permute.xlu0 0
        %1038 = vperm.xlu0 %1037, %v1008
        %v1039 = vpop.permute.xlu0 %1038
        %1042 = vset.pattern.permute.xlu0 0
        %1043 = vperm.xlu0 %1042, %v1009
        %v1044 = vpop.permute.xlu0 %1043
        %1047 = vset.pattern.permute.xlu0 0
        %1048 = vperm.xlu0 %1047, %v1010
        %v1049 = vpop.permute.xlu0 %1048
        %v1051 = vsub.f32 %v896, %v1014
        %v1052 = vsub.f32 %v897, %v1019
        %v1053 = vsub.f32 %v898, %v1024
        %v1054 = vsub.f32 %v899, %v1029
        %v1055 = vsub.f32 %v900, %v1034
        %v1056 = vsub.f32 %v901, %v1039
        %v1057 = vsub.f32 %v902, %v1044
        %v1058 = vsub.f32 %v903, %v1049
        %v1059 = vmul.f32 %v1051, %v1051
        %v1060 = vmul.f32 %v1052, %v1052
        %v1061 = vmul.f32 %v1053, %v1053
        %v1062 = vmul.f32 %v1054, %v1054
        %v1063 = vmul.f32 %v1055, %v1055
        %v1064 = vmul.f32 %v1056, %v1056
        %v1065 = vmul.f32 %v1057, %v1057
        %v1066 = vmul.f32 %v1058, %v1058
        %v1067 = vsel %vm912, %v1059, 0.0
        %1068 = vadd.xlane.f32.xlu0 %v1067
        %v1069 = vpop.xlane.xlu0 %1068
        %v1070 = vsel %vm912, %v1060, 0.0
        %1071 = vadd.xlane.f32.xlu0 %v1070
        %v1072 = vpop.xlane.xlu0 %1071
        %v1073 = vsel %vm912, %v1061, 0.0
        %1074 = vadd.xlane.f32.xlu0 %v1073
        %v1075 = vpop.xlane.xlu0 %1074
        %v1076 = vsel %vm912, %v1062, 0.0
        %1077 = vadd.xlane.f32.xlu0 %v1076
        %v1078 = vpop.xlane.xlu0 %1077
        %v1079 = vsel %vm912, %v1063, 0.0
        %1080 = vadd.xlane.f32.xlu0 %v1079
        %v1081 = vpop.xlane.xlu0 %1080
        %v1082 = vsel %vm912, %v1064, 0.0
        %1083 = vadd.xlane.f32.xlu0 %v1082
        %v1084 = vpop.xlane.xlu0 %1083
        %v1085 = vsel %vm912, %v1065, 0.0
        %1086 = vadd.xlane.f32.xlu0 %v1085
        %v1087 = vpop.xlane.xlu0 %1086
        %v1088 = vsel %vm912, %v1066, 0.0
        %1089 = vadd.xlane.f32.xlu0 %v1088
        %v1090 = vpop.xlane.xlu0 %1089
        %1091 = vmatpush.msra.mxu0 0.0
        %1092 = vmatpush.msra.mxu0 0.0
        %1093 = vmatpush.msra.mxu0 0.0
        %1094 = vmatpush.msra.mxu0 0.0
        %1095 = vmatpush.msra.mxu0 0.0
        %1096 = vmatpush.msra.mxu0 0.0
        %1097 = vmatpush.msra.mxu0 0.0
        %1098 = vmatpush.msra.mxu0 0.0
        %1099 = vmatpush.msra.mxu0 %v1090
        %1100 = vmatpush.msra.mxu0 %v1087
        %1101 = vmatpush.msra.mxu0 %v1084
        %1102 = vmatpush.msra.mxu0 %v1081
        %1103 = vmatpush.msra.mxu0 %v1078
        %1104 = vmatpush.msra.mxu0 %v1075
        %1105 = vmatpush.msra.mxu0 %v1072
        %1106 = vmatpush.msra.mxu0 %v1069
        %1107 = vmatmul.f32.gmra.mxu0 %v939
        %v1108 = vpop.f32.mrf.mxu0
        %v1109 = vadd.f32 0.0, %v1108
        %1110 = vmatmul.f32.gmra.mxu0 %v942
        %v1111 = vpop.f32.mrf.mxu0
        %v1112 = vadd.f32 0.0, %v1111
        %1113 = vmatmul.f32.gmra.mxu0 %v945
        %v1114 = vpop.f32.mrf.mxu0
        %v1115 = vadd.f32 0.0, %v1114
        %1116 = vmatmul.f32.gmra.mxu0 %v948
        %v1117 = vpop.f32.mrf.mxu0
        %v1118 = vadd.f32 0.0, %v1117
        %1119 = vmatmul.f32.gmra.mxu0 %v951
        %v1120 = vpop.f32.mrf.mxu0
        %v1121 = vadd.f32 0.0, %v1120
        %1122 = vmatmul.f32.gmra.mxu0 %v954
        %v1123 = vpop.f32.mrf.mxu0
        %v1124 = vadd.f32 0.0, %v1123
        %1125 = vmatmul.f32.gmra.mxu0 %v957
        %v1126 = vpop.f32.mrf.mxu0
        %v1127 = vadd.f32 0.0, %v1126
        %1128 = vmatmul.f32.gmra.mxu0 %v960
        %v1129 = vpop.f32.mrf.mxu0
        %v1130 = vadd.f32 0.0, %v1129
        %1131 = vdwg.mxu0
        %v1132 = vmul.f32 %v1109, 0.03125
        %v1133 = vmul.f32 %v1112, 0.03125
        %v1134 = vmul.f32 %v1115, 0.03125
        %v1135 = vmul.f32 %v1118, 0.03125
        %v1136 = vmul.f32 %v1121, 0.03125
        %v1137 = vmul.f32 %v1124, 0.03125
        %v1138 = vmul.f32 %v1127, 0.03125
        %v1139 = vmul.f32 %v1130, 0.03125
        %v1140 = vld [vmem:[%s2] sm:$0xff]
        %v1141 = vld [vmem:[%s2 + $0x8] sm:$0xff]
        %v1142 = vld [vmem:[%s2 + $0x10] sm:$0xff]
        %v1143 = vld [vmem:[%s2 + $0x18] sm:$0xff]
        %v1144 = vld [vmem:[%s2 + $0x20] sm:$0xff]
        %v1145 = vld [vmem:[%s2 + $0x28] sm:$0xff]
        %v1146 = vld [vmem:[%s2 + $0x30] sm:$0xff]
        %v1147 = vld [vmem:[%s2 + $0x38] sm:$0xff]
        %v1148 = vadd.f32 %v1132, 1e-05
        %v1149 = vadd.f32 %v1133, 1e-05
        %v1150 = vadd.f32 %v1134, 1e-05
        %v1151 = vadd.f32 %v1135, 1e-05
        %v1152 = vadd.f32 %v1136, 1e-05
        %v1153 = vadd.f32 %v1137, 1e-05
        %v1154 = vadd.f32 %v1138, 1e-05
        %v1155 = vadd.f32 %v1139, 1e-05
        %v1156 = vrsqrt.pop %v1148
        %v1157 = vmul.f32 %v1156, %v1148
        %v1158 = vmul.f32 %v1157, %v1156
        %v1159 = vmul.f32 0.5, %v1158
        %v1160 = vsub.f32 1.5, %v1159
        %v1161 = vmul.f32 %v1156, %v1160
        %vm1162 = vweird.f32 %v1148
        %vm1163 = vweird.f32 %v1156
        %vm1164 = vmor %vm1162, %vm1163
        %v1165 = vsel %vm1164, %v1156, %v1161
        %v1166 = vrsqrt.pop %v1149
        %v1167 = vmul.f32 %v1166, %v1149
        %v1168 = vmul.f32 %v1167, %v1166
        %v1169 = vmul.f32 0.5, %v1168
        %v1170 = vsub.f32 1.5, %v1169
        %v1171 = vmul.f32 %v1166, %v1170
        %vm1172 = vweird.f32 %v1149
        %vm1173 = vweird.f32 %v1166
        %vm1174 = vmor %vm1172, %vm1173
        %v1175 = vsel %vm1174, %v1166, %v1171
        %v1176 = vrsqrt.pop %v1150
        %v1177 = vmul.f32 %v1176, %v1150
        %v1178 = vmul.f32 %v1177, %v1176
        %v1179 = vmul.f32 0.5, %v1178
        %v1180 = vsub.f32 1.5, %v1179
        %v1181 = vmul.f32 %v1176, %v1180
        %vm1182 = vweird.f32 %v1150
        %vm1183 = vweird.f32 %v1176
        %vm1184 = vmor %vm1182, %vm1183
        %v1185 = vsel %vm1184, %v1176, %v1181
        %v1186 = vrsqrt.pop %v1151
        %v1187 = vmul.f32 %v1186, %v1151
        %v1188 = vmul.f32 %v1187, %v1186
        %v1189 = vmul.f32 0.5, %v1188
        %v1190 = vsub.f32 1.5, %v1189
        %v1191 = vmul.f32 %v1186, %v1190
        %vm1192 = vweird.f32 %v1151
        %vm1193 = vweird.f32 %v1186
        %vm1194 = vmor %vm1192, %vm1193
        %v1195 = vsel %vm1194, %v1186, %v1191
        %v1196 = vrsqrt.pop %v1152
        %v1197 = vmul.f32 %v1196, %v1152
        %v1198 = vmul.f32 %v1197, %v1196
        %v1199 = vmul.f32 0.5, %v1198
        %v1200 = vsub.f32 1.5, %v1199
        %v1201 = vmul.f32 %v1196, %v1200
        %vm1202 = vweird.f32 %v1152
        %vm1203 = vweird.f32 %v1196
        %vm1204 = vmor %vm1202, %vm1203
        %v1205 = vsel %vm1204, %v1196, %v1201
        %v1206 = vrsqrt.pop %v1153
        %v1207 = vmul.f32 %v1206, %v1153
        %v1208 = vmul.f32 %v1207, %v1206
        %v1209 = vmul.f32 0.5, %v1208
        %v1210 = vsub.f32 1.5, %v1209
        %v1211 = vmul.f32 %v1206, %v1210
        %vm1212 = vweird.f32 %v1153
        %vm1213 = vweird.f32 %v1206
        %vm1214 = vmor %vm1212, %vm1213
        %v1215 = vsel %vm1214, %v1206, %v1211
        %v1216 = vrsqrt.pop %v1154
        %v1217 = vmul.f32 %v1216, %v1154
        %v1218 = vmul.f32 %v1217, %v1216
        %v1219 = vmul.f32 0.5, %v1218
        %v1220 = vsub.f32 1.5, %v1219
        %v1221 = vmul.f32 %v1216, %v1220
        %vm1222 = vweird.f32 %v1154
        %vm1223 = vweird.f32 %v1216
        %vm1224 = vmor %vm1222, %vm1223
        %v1225 = vsel %vm1224, %v1216, %v1221
        %v1226 = vrsqrt.pop %v1155
        %v1227 = vmul.f32 %v1226, %v1155
        %v1228 = vmul.f32 %v1227, %v1226
        %v1229 = vmul.f32 0.5, %v1228
        %v1230 = vsub.f32 1.5, %v1229
        %v1231 = vmul.f32 %v1226, %v1230
        %vm1232 = vweird.f32 %v1155
        %vm1233 = vweird.f32 %v1226
        %vm1234 = vmor %vm1232, %vm1233
        %v1235 = vsel %vm1234, %v1226, %v1231
        %v1236 = vmul.f32 %v1140, %v1165
        %v1237 = vmul.f32 %v1141, %v1175
        %v1238 = vmul.f32 %v1142, %v1185
        %v1239 = vmul.f32 %v1143, %v1195
        %v1240 = vmul.f32 %v1144, %v1205
        %v1241 = vmul.f32 %v1145, %v1215
        %v1242 = vmul.f32 %v1146, %v1225
        %v1243 = vmul.f32 %v1147, %v1235
        %1245 = vset.pattern.permute.xlu0 0
        %1246 = vperm.xlu0 %1245, %v1236
        %v1247 = vpop.permute.xlu0 %1246
        %1250 = vset.pattern.permute.xlu0 0
        %1251 = vperm.xlu0 %1250, %v1237
        %v1252 = vpop.permute.xlu0 %1251
        %1255 = vset.pattern.permute.xlu0 0
        %1256 = vperm.xlu0 %1255, %v1238
        %v1257 = vpop.permute.xlu0 %1256
        %1260 = vset.pattern.permute.xlu0 0
        %1261 = vperm.xlu0 %1260, %v1239
        %v1262 = vpop.permute.xlu0 %1261
        %1265 = vset.pattern.permute.xlu0 0
        %1266 = vperm.xlu0 %1265, %v1240
        %v1267 = vpop.permute.xlu0 %1266
        %1270 = vset.pattern.permute.xlu0 0
        %1271 = vperm.xlu0 %1270, %v1241
        %v1272 = vpop.permute.xlu0 %1271
        %1275 = vset.pattern.permute.xlu0 0
        %1276 = vperm.xlu0 %1275, %v1242
        %v1277 = vpop.permute.xlu0 %1276
        %1280 = vset.pattern.permute.xlu0 0
        %1281 = vperm.xlu0 %1280, %v1243
        %v1282 = vpop.permute.xlu0 %1281
        %v1284 = vmul.f32 %v1051, %v1247
        %v1285 = vmul.f32 %v1052, %v1252
        %v1286 = vmul.f32 %v1053, %v1257
        %v1287 = vmul.f32 %v1054, %v1262
        %v1288 = vmul.f32 %v1055, %v1267
        %v1289 = vmul.f32 %v1056, %v1272
        %v1290 = vmul.f32 %v1057, %v1277
        %v1291 = vmul.f32 %v1058, %v1282
        %v1292 = vld [vmem:[%s3] sm:$0xff]
        %v1293 = vld [vmem:[%s3 + $0x8] sm:$0xff]
        %v1294 = vld [vmem:[%s3 + $0x10] sm:$0xff]
        %v1295 = vld [vmem:[%s3 + $0x18] sm:$0xff]
        %v1296 = vld [vmem:[%s3 + $0x20] sm:$0xff]
        %v1297 = vld [vmem:[%s3 + $0x28] sm:$0xff]
        %v1298 = vld [vmem:[%s3 + $0x30] sm:$0xff]
        %v1299 = vld [vmem:[%s3 + $0x38] sm:$0xff]
        %1301 = vset.pattern.permute.xlu0 0
        %1302 = vperm.xlu0 %1301, %v1292
        %v1303 = vpop.permute.xlu0 %1302
        %1306 = vset.pattern.permute.xlu0 0
        %1307 = vperm.xlu0 %1306, %v1293
        %v1308 = vpop.permute.xlu0 %1307
        %1311 = vset.pattern.permute.xlu0 0
        %1312 = vperm.xlu0 %1311, %v1294
        %v1313 = vpop.permute.xlu0 %1312
        %1316 = vset.pattern.permute.xlu0 0
        %1317 = vperm.xlu0 %1316, %v1295
        %v1318 = vpop.permute.xlu0 %1317
        %1321 = vset.pattern.permute.xlu0 0
        %1322 = vperm.xlu0 %1321, %v1296
        %v1323 = vpop.permute.xlu0 %1322
        %1326 = vset.pattern.permute.xlu0 0
        %1327 = vperm.xlu0 %1326, %v1297
        %v1328 = vpop.permute.xlu0 %1327
        %1331 = vset.pattern.permute.xlu0 0
        %1332 = vperm.xlu0 %1331, %v1298
        %v1333 = vpop.permute.xlu0 %1332
        %1336 = vset.pattern.permute.xlu0 0
        %1337 = vperm.xlu0 %1336, %v1299
        %v1338 = vpop.permute.xlu0 %1337
        %v1340 = vadd.f32 %v1284, %v1303
        %v1341 = vadd.f32 %v1285, %v1308
        %v1342 = vadd.f32 %v1286, %v1313
        %v1343 = vadd.f32 %v1287, %v1318
        %v1344 = vadd.f32 %v1288, %v1323
        %v1345 = vadd.f32 %v1289, %v1328
        %v1346 = vadd.f32 %v1290, %v1333
        %v1347 = vadd.f32 %v1291, %v1338
        %v1348 = vmax.f32 %v1340, 0.0
        %v1349 = vmax.f32 %v1341, 0.0
        %v1350 = vmax.f32 %v1342, 0.0
        %v1351 = vmax.f32 %v1343, 0.0
        %v1352 = vmax.f32 %v1344, 0.0
        %v1353 = vmax.f32 %v1345, 0.0
        %v1354 = vmax.f32 %v1346, 0.0
        %v1355 = vmax.f32 %v1347, 0.0
        %vm1356 = vcmask 35840
        %1357 = vst.msk [vmem:[#allocation2] sm:$0xf] %vm1356, 0
        %1358 = vst.msk [vmem:[#allocation2 + $0x4] sm:$0xf] %vm1356, 0
        %1359 = vst.msk [vmem:[#allocation2 + $0x8] sm:$0xf] %vm1356, 0
        %1360 = vst.msk [vmem:[#allocation2 + $0xc] sm:$0xf] %vm1356, 0
        %1361 = vst.msk [vmem:[#allocation2 + $0x10] sm:$0xf] %vm1356, 0
        %1362 = vst.msk [vmem:[#allocation2 + $0x14] sm:$0xf] %vm1356, 0
        %1363 = vst.msk [vmem:[#allocation2 + $0x18] sm:$0xf] %vm1356, 0
        %1364 = vst.msk [vmem:[#allocation2 + $0x1c] sm:$0xf] %vm1356, 0
        %vm1365 = vcmask 208040
        %1366 = vst.msk [vmem:[#allocation2] sm:$0xf] %vm1365, 0
        %1367 = vst.msk [vmem:[#allocation2 + $0x4] sm:$0xf] %vm1365, 0
        %1368 = vst.msk [vmem:[#allocation2 + $0x8] sm:$0xf] %vm1365, 0
        %1369 = vst.msk [vmem:[#allocation2 + $0xc] sm:$0xf] %vm1365, 0
        %1370 = vst.msk [vmem:[#allocation2 + $0x10] sm:$0xf] %vm1365, 0
        %1371 = vst.msk [vmem:[#allocation2 + $0x14] sm:$0xf] %vm1365, 0
        %1372 = vst.msk [vmem:[#allocation2 + $0x18] sm:$0xf] %vm1365, 0
        %1373 = vst.msk [vmem:[#allocation2 + $0x1c] sm:$0xf] %vm1365, 0
        %v1374 = vpack.c.bf16 %v1348, %v1348
        %v1375 = vpack.c.bf16 %v1349, %v1349
        %v1376 = vpack.c.bf16 %v1350, %v1350
        %v1377 = vpack.c.bf16 %v1351, %v1351
        %v1378 = vpack.c.bf16 %v1352, %v1352
        %v1379 = vpack.c.bf16 %v1353, %v1353
        %v1380 = vpack.c.bf16 %v1354, %v1354
        %v1381 = vpack.c.bf16 %v1355, %v1355
        %1390 = vrot.lane.b32.xlu0 %v1374, 5
        %v1391 = vpop.permute.xlu0 %1390
        %1392 = vrot.lane.b32.xlu0 %v1375, 5
        %v1393 = vpop.permute.xlu0 %1392
        %1394 = vrot.lane.b32.xlu0 %v1376, 5
        %v1395 = vpop.permute.xlu0 %1394
        %1396 = vrot.lane.b32.xlu0 %v1377, 5
        %v1397 = vpop.permute.xlu0 %1396
        %1398 = vrot.lane.b32.xlu0 %v1378, 5
        %v1399 = vpop.permute.xlu0 %1398
        %1400 = vrot.lane.b32.xlu0 %v1379, 5
        %v1401 = vpop.permute.xlu0 %1400
        %1402 = vrot.lane.b32.xlu0 %v1380, 5
        %v1403 = vpop.permute.xlu0 %1402
        %1404 = vrot.lane.b32.xlu0 %v1381, 5
        %v1405 = vpop.permute.xlu0 %1404
        %vm1414 = vcmask 166952
        %1415 = vst.msk [vmem:[#allocation2] sm:$0xf] %vm1414, %v1391
        %1416 = vst.msk [vmem:[#allocation2 + $0x4] sm:$0xf] %vm1414, %v1393
        %1417 = vst.msk [vmem:[#allocation2 + $0x8] sm:$0xf] %vm1414, %v1395
        %1418 = vst.msk [vmem:[#allocation2 + $0xc] sm:$0xf] %vm1414, %v1397
        %1419 = vst.msk [vmem:[#allocation2 + $0x10] sm:$0xf] %vm1414, %v1399
        %1420 = vst.msk [vmem:[#allocation2 + $0x14] sm:$0xf] %vm1414, %v1401
        %1421 = vst.msk [vmem:[#allocation2 + $0x18] sm:$0xf] %vm1414, %v1403
        %1422 = vst.msk [vmem:[#allocation2 + $0x1c] sm:$0xf] %vm1414, %v1405
        %v1423 = vlaneseq
        %v1424 = vand.u32 %v1423, 127
        %v1425 = vand.u32 %v1424, 3
        %vm1426 = vcmp.ge.s32.totalorder %v1425, 1
        %vm1427 = vcmp.le.s32.totalorder %v1425, 2
        %v1428 = vld [vmem:[#allocation2] sm:$0xf]
        %v1429 = vld [vmem:[#allocation2 + $0x4] sm:$0xf]
        %v1430 = vld [vmem:[#allocation2 + $0x8] sm:$0xf]
        %v1431 = vld [vmem:[#allocation2 + $0xc] sm:$0xf]
        %v1432 = vld [vmem:[#allocation2 + $0x10] sm:$0xf]
        %v1433 = vld [vmem:[#allocation2 + $0x14] sm:$0xf]
        %v1434 = vld [vmem:[#allocation2 + $0x18] sm:$0xf]
        %v1435 = vld [vmem:[#allocation2 + $0x1c] sm:$0xf]
        %vm1436 = vmpackc.low %vm1426, %vm1426
        %v1437 = vsel %vm1436, %v1428, 0
        %v1438 = vsel %vm1436, %v1429, 0
        %v1439 = vsel %vm1436, %v1430, 0
        %v1440 = vsel %vm1436, %v1431, 0
        %v1441 = vsel %vm1436, %v1432, 0
        %v1442 = vsel %vm1436, %v1433, 0
        %v1443 = vsel %vm1436, %v1434, 0
        %v1444 = vsel %vm1436, %v1435, 0
        %vm1445 = vcmask 125952
        %1446 = vst.msk [vmem:[#allocation3] sm:$0xf] %vm1445, %v1437
        %1447 = vst.msk [vmem:[#allocation3 + $0x4] sm:$0xf] %vm1445, %v1438
        %1448 = vst.msk [vmem:[#allocation3 + $0x8] sm:$0xf] %vm1445, %v1439
        %1449 = vst.msk [vmem:[#allocation3 + $0xc] sm:$0xf] %vm1445, %v1440
        %1450 = vst.msk [vmem:[#allocation3 + $0x10] sm:$0xf] %vm1445, %v1441
        %1451 = vst.msk [vmem:[#allocation3 + $0x14] sm:$0xf] %vm1445, %v1442
        %1452 = vst.msk [vmem:[#allocation3 + $0x18] sm:$0xf] %vm1445, %v1443
        %1453 = vst.msk [vmem:[#allocation3 + $0x1c] sm:$0xf] %vm1445, %v1444
        %v1454 = vld [vmem:[#allocation2] sm:$0xf]
        %v1455 = vld [vmem:[#allocation2 + $0x4] sm:$0xf]
        %v1456 = vld [vmem:[#allocation2 + $0x8] sm:$0xf]
        %v1457 = vld [vmem:[#allocation2 + $0xc] sm:$0xf]
        %v1458 = vld [vmem:[#allocation2 + $0x10] sm:$0xf]
        %v1459 = vld [vmem:[#allocation2 + $0x14] sm:$0xf]
        %v1460 = vld [vmem:[#allocation2 + $0x18] sm:$0xf]
        %v1461 = vld [vmem:[#allocation2 + $0x1c] sm:$0xf]
        %1470 = vrot.lane.b32.xlu0 %v1454, 127
        %v1471 = vpop.permute.xlu0 %1470
        %1472 = vrot.lane.b32.xlu0 %v1455, 127
        %v1473 = vpop.permute.xlu0 %1472
        %1474 = vrot.lane.b32.xlu0 %v1456, 127
        %v1475 = vpop.permute.xlu0 %1474
        %1476 = vrot.lane.b32.xlu0 %v1457, 127
        %v1477 = vpop.permute.xlu0 %1476
        %1478 = vrot.lane.b32.xlu0 %v1458, 127
        %v1479 = vpop.permute.xlu0 %1478
        %1480 = vrot.lane.b32.xlu0 %v1459, 127
        %v1481 = vpop.permute.xlu0 %1480
        %1482 = vrot.lane.b32.xlu0 %v1460, 127
        %v1483 = vpop.permute.xlu0 %1482
        %1484 = vrot.lane.b32.xlu0 %v1461, 127
        %v1485 = vpop.permute.xlu0 %1484
        %1494 = vst.msk [vmem:[#allocation3 + $0x20] sm:$0xf] %vm1445, %v1471
        %1495 = vst.msk [vmem:[#allocation3 + $0x24] sm:$0xf] %vm1445, %v1473
        %1496 = vst.msk [vmem:[#allocation3 + $0x28] sm:$0xf] %vm1445, %v1475
        %1497 = vst.msk [vmem:[#allocation3 + $0x2c] sm:$0xf] %vm1445, %v1477
        %1498 = vst.msk [vmem:[#allocation3 + $0x30] sm:$0xf] %vm1445, %v1479
        %1499 = vst.msk [vmem:[#allocation3 + $0x34] sm:$0xf] %vm1445, %v1481
        %1500 = vst.msk [vmem:[#allocation3 + $0x38] sm:$0xf] %vm1445, %v1483
        %1501 = vst.msk [vmem:[#allocation3 + $0x3c] sm:$0xf] %vm1445, %v1485
        %v1502 = vld [vmem:[#allocation2] sm:$0xf]
        %v1503 = vld [vmem:[#allocation2 + $0x4] sm:$0xf]
        %v1504 = vld [vmem:[#allocation2 + $0x8] sm:$0xf]
        %v1505 = vld [vmem:[#allocation2 + $0xc] sm:$0xf]
        %v1506 = vld [vmem:[#allocation2 + $0x10] sm:$0xf]
        %v1507 = vld [vmem:[#allocation2 + $0x14] sm:$0xf]
        %v1508 = vld [vmem:[#allocation2 + $0x18] sm:$0xf]
        %v1509 = vld [vmem:[#allocation2 + $0x1c] sm:$0xf]
        %vm1510 = vmpackc.low %vm1427, %vm1427
        %v1511 = vsel %vm1510, 65537, 0
        %1512 = vrot.lane.b32.xlu0 %v1511, 2
        %v1513 = vpop.permute.xlu0 %1512
        %v1514 = vunpack.c.l.b16 %v1513
        %v1515 = vunpack.c.h.b16 %v1513
        %v1516 = vunpack.c.l.b16 0
        %v1517 = vunpack.c.h.b16 0
        %vm1518 = vcmp.ne.s32.totalorder %v1514, %v1516
        %vm1519 = vcmp.ne.s32.totalorder %v1515, %v1517
        %vm1520 = vmpackc.low %vm1519, %vm1518
        %v1521 = vsel %vm1520, %v1502, 0
        %v1522 = vsel %vm1520, %v1503, 0
        %v1523 = vsel %vm1520, %v1504, 0
        %v1524 = vsel %vm1520, %v1505, 0
        %v1525 = vsel %vm1520, %v1506, 0
        %v1526 = vsel %vm1520, %v1507, 0
        %v1527 = vsel %vm1520, %v1508, 0
        %v1528 = vsel %vm1520, %v1509, 0
        %1537 = vrot.lane.b32.xlu0 %v1521, 126
        %v1538 = vpop.permute.xlu0 %1537
        %1539 = vrot.lane.b32.xlu0 %v1522, 126
        %v1540 = vpop.permute.xlu0 %1539
        %1541 = vrot.lane.b32.xlu0 %v1523, 126
        %v1542 = vpop.permute.xlu0 %1541
        %1543 = vrot.lane.b32.xlu0 %v1524, 126
        %v1544 = vpop.permute.xlu0 %1543
        %1545 = vrot.lane.b32.xlu0 %v1525, 126
        %v1546 = vpop.permute.xlu0 %1545
        %1547 = vrot.lane.b32.xlu0 %v1526, 126
        %v1548 = vpop.permute.xlu0 %1547
        %1549 = vrot.lane.b32.xlu0 %v1527, 126
        %v1550 = vpop.permute.xlu0 %1549
        %1551 = vrot.lane.b32.xlu0 %v1528, 126
        %v1552 = vpop.permute.xlu0 %1551
        %1561 = vst.msk [vmem:[#allocation3 + $0x40] sm:$0xf] %vm1445, %v1538
        %1562 = vst.msk [vmem:[#allocation3 + $0x44] sm:$0xf] %vm1445, %v1540
        %1563 = vst.msk [vmem:[#allocation3 + $0x48] sm:$0xf] %vm1445, %v1542
        %1564 = vst.msk [vmem:[#allocation3 + $0x4c] sm:$0xf] %vm1445, %v1544
        %1565 = vst.msk [vmem:[#allocation3 + $0x50] sm:$0xf] %vm1445, %v1546
        %1566 = vst.msk [vmem:[#allocation3 + $0x54] sm:$0xf] %vm1445, %v1548
        %1567 = vst.msk [vmem:[#allocation3 + $0x58] sm:$0xf] %vm1445, %v1550
        %1568 = vst.msk [vmem:[#allocation3 + $0x5c] sm:$0xf] %vm1445, %v1552
        %v1569 = vld [vmem:[#allocation2] sm:$0xf]
        %v1570 = vld [vmem:[#allocation2 + $0x4] sm:$0xf]
        %v1571 = vld [vmem:[#allocation2 + $0x8] sm:$0xf]
        %v1572 = vld [vmem:[#allocation2 + $0xc] sm:$0xf]
        %v1573 = vld [vmem:[#allocation2 + $0x10] sm:$0xf]
        %v1574 = vld [vmem:[#allocation2 + $0x14] sm:$0xf]
        %v1575 = vld [vmem:[#allocation2 + $0x18] sm:$0xf]
        %v1576 = vld [vmem:[#allocation2 + $0x1c] sm:$0xf]
        %v1577 = vsel %vm1436, 65537, 0
        %1578 = vrot.lane.b32.xlu0 %v1577, 4
        %v1579 = vpop.permute.xlu0 %1578
        %v1580 = vunpack.c.l.b16 %v1579
        %v1581 = vunpack.c.h.b16 %v1579
        %v1582 = vunpack.c.l.b16 0
        %v1583 = vunpack.c.h.b16 0
        %vm1584 = vcmp.ne.s32.totalorder %v1580, %v1582
        %vm1585 = vcmp.ne.s32.totalorder %v1581, %v1583
        %vm1586 = vmpackc.low %vm1585, %vm1584
        %v1587 = vsel %vm1586, %v1569, 0
        %v1588 = vsel %vm1586, %v1570, 0
        %v1589 = vsel %vm1586, %v1571, 0
        %v1590 = vsel %vm1586, %v1572, 0
        %v1591 = vsel %vm1586, %v1573, 0
        %v1592 = vsel %vm1586, %v1574, 0
        %v1593 = vsel %vm1586, %v1575, 0
        %v1594 = vsel %vm1586, %v1576, 0
        %1603 = vrot.lane.b32.xlu0 %v1587, 124
        %v1604 = vpop.permute.xlu0 %1603
        %1605 = vrot.lane.b32.xlu0 %v1588, 124
        %v1606 = vpop.permute.xlu0 %1605
        %1607 = vrot.lane.b32.xlu0 %v1589, 124
        %v1608 = vpop.permute.xlu0 %1607
        %1609 = vrot.lane.b32.xlu0 %v1590, 124
        %v1610 = vpop.permute.xlu0 %1609
        %1611 = vrot.lane.b32.xlu0 %v1591, 124
        %v1612 = vpop.permute.xlu0 %1611
        %1613 = vrot.lane.b32.xlu0 %v1592, 124
        %v1614 = vpop.permute.xlu0 %1613
        %1615 = vrot.lane.b32.xlu0 %v1593, 124
        %v1616 = vpop.permute.xlu0 %1615
        %1617 = vrot.lane.b32.xlu0 %v1594, 124
        %v1618 = vpop.permute.xlu0 %1617
        %1627 = vst.msk [vmem:[#allocation3 + $0x60] sm:$0xf] %vm1445, %v1604
        %1628 = vst.msk [vmem:[#allocation3 + $0x64] sm:$0xf] %vm1445, %v1606
        %1629 = vst.msk [vmem:[#allocation3 + $0x68] sm:$0xf] %vm1445, %v1608
        %1630 = vst.msk [vmem:[#allocation3 + $0x6c] sm:$0xf] %vm1445, %v1610
        %1631 = vst.msk [vmem:[#allocation3 + $0x70] sm:$0xf] %vm1445, %v1612
        %1632 = vst.msk [vmem:[#allocation3 + $0x74] sm:$0xf] %vm1445, %v1614
        %1633 = vst.msk [vmem:[#allocation3 + $0x78] sm:$0xf] %vm1445, %v1616
        %1634 = vst.msk [vmem:[#allocation3 + $0x7c] sm:$0xf] %vm1445, %v1618
        %v1635 = vld [vmem:[#allocation2] sm:$0xf]
        %v1636 = vld [vmem:[#allocation2 + $0x4] sm:$0xf]
        %v1637 = vld [vmem:[#allocation2 + $0x8] sm:$0xf]
        %v1638 = vld [vmem:[#allocation2 + $0xc] sm:$0xf]
        %v1639 = vld [vmem:[#allocation2 + $0x10] sm:$0xf]
        %v1640 = vld [vmem:[#allocation2 + $0x14] sm:$0xf]
        %v1641 = vld [vmem:[#allocation2 + $0x18] sm:$0xf]
        %v1642 = vld [vmem:[#allocation2 + $0x1c] sm:$0xf]
        %1651 = vrot.lane.b32.xlu0 %v1635, 123
        %v1652 = vpop.permute.xlu0 %1651
        %1653 = vrot.lane.b32.xlu0 %v1636, 123
        %v1654 = vpop.permute.xlu0 %1653
        %1655 = vrot.lane.b32.xlu0 %v1637, 123
        %v1656 = vpop.permute.xlu0 %1655
        %1657 = vrot.lane.b32.xlu0 %v1638, 123
        %v1658 = vpop.permute.xlu0 %1657
        %1659 = vrot.lane.b32.xlu0 %v1639, 123
        %v1660 = vpop.permute.xlu0 %1659
        %1661 = vrot.lane.b32.xlu0 %v1640, 123
        %v1662 = vpop.permute.xlu0 %1661
        %1663 = vrot.lane.b32.xlu0 %v1641, 123
        %v1664 = vpop.permute.xlu0 %1663
        %1665 = vrot.lane.b32.xlu0 %v1642, 123
        %v1666 = vpop.permute.xlu0 %1665
        %1675 = vst.msk [vmem:[#allocation3 + $0x80] sm:$0xf] %vm1445, %v1652
        %1676 = vst.msk [vmem:[#allocation3 + $0x84] sm:$0xf] %vm1445, %v1654
        %1677 = vst.msk [vmem:[#allocation3 + $0x88] sm:$0xf] %vm1445, %v1656
        %1678 = vst.msk [vmem:[#allocation3 + $0x8c] sm:$0xf] %vm1445, %v1658
        %1679 = vst.msk [vmem:[#allocation3 + $0x90] sm:$0xf] %vm1445, %v1660
        %1680 = vst.msk [vmem:[#allocation3 + $0x94] sm:$0xf] %vm1445, %v1662
        %1681 = vst.msk [vmem:[#allocation3 + $0x98] sm:$0xf] %vm1445, %v1664
        %1682 = vst.msk [vmem:[#allocation3 + $0x9c] sm:$0xf] %vm1445, %v1666
        %v1683 = vld [vmem:[#allocation2] sm:$0xf]
        %v1684 = vld [vmem:[#allocation2 + $0x4] sm:$0xf]
        %v1685 = vld [vmem:[#allocation2 + $0x8] sm:$0xf]
        %v1686 = vld [vmem:[#allocation2 + $0xc] sm:$0xf]
        %v1687 = vld [vmem:[#allocation2 + $0x10] sm:$0xf]
        %v1688 = vld [vmem:[#allocation2 + $0x14] sm:$0xf]
        %v1689 = vld [vmem:[#allocation2 + $0x18] sm:$0xf]
        %v1690 = vld [vmem:[#allocation2 + $0x1c] sm:$0xf]
        %1691 = vrot.lane.b32.xlu0 %v1511, 6
        %v1692 = vpop.permute.xlu0 %1691
        %v1693 = vunpack.c.l.b16 %v1692
        %v1694 = vunpack.c.h.b16 %v1692
        %v1695 = vunpack.c.l.b16 0
        %v1696 = vunpack.c.h.b16 0
        %vm1697 = vcmp.ne.s32.totalorder %v1693, %v1695
        %vm1698 = vcmp.ne.s32.totalorder %v1694, %v1696
        %vm1699 = vmpackc.low %vm1698, %vm1697
        %v1700 = vsel %vm1699, %v1683, 0
        %v1701 = vsel %vm1699, %v1684, 0
        %v1702 = vsel %vm1699, %v1685, 0
        %v1703 = vsel %vm1699, %v1686, 0
        %v1704 = vsel %vm1699, %v1687, 0
        %v1705 = vsel %vm1699, %v1688, 0
        %v1706 = vsel %vm1699, %v1689, 0
        %v1707 = vsel %vm1699, %v1690, 0
        %1716 = vrot.lane.b32.xlu0 %v1700, 122
        %v1717 = vpop.permute.xlu0 %1716
        %1718 = vrot.lane.b32.xlu0 %v1701, 122
        %v1719 = vpop.permute.xlu0 %1718
        %1720 = vrot.lane.b32.xlu0 %v1702, 122
        %v1721 = vpop.permute.xlu0 %1720
        %1722 = vrot.lane.b32.xlu0 %v1703, 122
        %v1723 = vpop.permute.xlu0 %1722
        %1724 = vrot.lane.b32.xlu0 %v1704, 122
        %v1725 = vpop.permute.xlu0 %1724
        %1726 = vrot.lane.b32.xlu0 %v1705, 122
        %v1727 = vpop.permute.xlu0 %1726
        %1728 = vrot.lane.b32.xlu0 %v1706, 122
        %v1729 = vpop.permute.xlu0 %1728
        %1730 = vrot.lane.b32.xlu0 %v1707, 122
        %v1731 = vpop.permute.xlu0 %1730
        %1740 = vst.msk [vmem:[#allocation3 + $0xa0] sm:$0xf] %vm1445, %v1717
        %1741 = vst.msk [vmem:[#allocation3 + $0xa4] sm:$0xf] %vm1445, %v1719
        %1742 = vst.msk [vmem:[#allocation3 + $0xa8] sm:$0xf] %vm1445, %v1721
        %1743 = vst.msk [vmem:[#allocation3 + $0xac] sm:$0xf] %vm1445, %v1723
        %1744 = vst.msk [vmem:[#allocation3 + $0xb0] sm:$0xf] %vm1445, %v1725
        %1745 = vst.msk [vmem:[#allocation3 + $0xb4] sm:$0xf] %vm1445, %v1727
        %1746 = vst.msk [vmem:[#allocation3 + $0xb8] sm:$0xf] %vm1445, %v1729
        %1747 = vst.msk [vmem:[#allocation3 + $0xbc] sm:$0xf] %vm1445, %v1731
        %v1748 = vld [vmem:[#allocation2] sm:$0xf]
        %v1749 = vld [vmem:[#allocation2 + $0x4] sm:$0xf]
        %v1750 = vld [vmem:[#allocation2 + $0x8] sm:$0xf]
        %v1751 = vld [vmem:[#allocation2 + $0xc] sm:$0xf]
        %v1752 = vld [vmem:[#allocation2 + $0x10] sm:$0xf]
        %v1753 = vld [vmem:[#allocation2 + $0x14] sm:$0xf]
        %v1754 = vld [vmem:[#allocation2 + $0x18] sm:$0xf]
        %v1755 = vld [vmem:[#allocation2 + $0x1c] sm:$0xf]
        %1756 = vrot.lane.b32.xlu0 %v1577, 8
        %v1757 = vpop.permute.xlu0 %1756
        %v1758 = vunpack.c.l.b16 %v1757
        %v1759 = vunpack.c.h.b16 %v1757
        %v1760 = vunpack.c.l.b16 0
        %v1761 = vunpack.c.h.b16 0
        %vm1762 = vcmp.ne.s32.totalorder %v1758, %v1760
        %vm1763 = vcmp.ne.s32.totalorder %v1759, %v1761
        %vm1764 = vmpackc.low %vm1763, %vm1762
        %v1765 = vsel %vm1764, %v1748, 0
        %v1766 = vsel %vm1764, %v1749, 0
        %v1767 = vsel %vm1764, %v1750, 0
        %v1768 = vsel %vm1764, %v1751, 0
        %v1769 = vsel %vm1764, %v1752, 0
        %v1770 = vsel %vm1764, %v1753, 0
        %v1771 = vsel %vm1764, %v1754, 0
        %v1772 = vsel %vm1764, %v1755, 0
        %1781 = vrot.lane.b32.xlu0 %v1765, 120
        %v1782 = vpop.permute.xlu0 %1781
        %1783 = vrot.lane.b32.xlu0 %v1766, 120
        %v1784 = vpop.permute.xlu0 %1783
        %1785 = vrot.lane.b32.xlu0 %v1767, 120
        %v1786 = vpop.permute.xlu0 %1785
        %1787 = vrot.lane.b32.xlu0 %v1768, 120
        %v1788 = vpop.permute.xlu0 %1787
        %1789 = vrot.lane.b32.xlu0 %v1769, 120
        %v1790 = vpop.permute.xlu0 %1789
        %1791 = vrot.lane.b32.xlu0 %v1770, 120
        %v1792 = vpop.permute.xlu0 %1791
        %1793 = vrot.lane.b32.xlu0 %v1771, 120
        %v1794 = vpop.permute.xlu0 %1793
        %1795 = vrot.lane.b32.xlu0 %v1772, 120
        %v1796 = vpop.permute.xlu0 %1795
        %1805 = vst.msk [vmem:[#allocation3 + $0xc0] sm:$0xf] %vm1445, %v1782
        %1806 = vst.msk [vmem:[#allocation3 + $0xc4] sm:$0xf] %vm1445, %v1784
        %1807 = vst.msk [vmem:[#allocation3 + $0xc8] sm:$0xf] %vm1445, %v1786
        %1808 = vst.msk [vmem:[#allocation3 + $0xcc] sm:$0xf] %vm1445, %v1788
        %1809 = vst.msk [vmem:[#allocation3 + $0xd0] sm:$0xf] %vm1445, %v1790
        %1810 = vst.msk [vmem:[#allocation3 + $0xd4] sm:$0xf] %vm1445, %v1792
        %1811 = vst.msk [vmem:[#allocation3 + $0xd8] sm:$0xf] %vm1445, %v1794
        %1812 = vst.msk [vmem:[#allocation3 + $0xdc] sm:$0xf] %vm1445, %v1796
        %v1813 = vld [vmem:[#allocation2] sm:$0xf]
        %v1814 = vld [vmem:[#allocation2 + $0x4] sm:$0xf]
        %v1815 = vld [vmem:[#allocation2 + $0x8] sm:$0xf]
        %v1816 = vld [vmem:[#allocation2 + $0xc] sm:$0xf]
        %v1817 = vld [vmem:[#allocation2 + $0x10] sm:$0xf]
        %v1818 = vld [vmem:[#allocation2 + $0x14] sm:$0xf]
        %v1819 = vld [vmem:[#allocation2 + $0x18] sm:$0xf]
        %v1820 = vld [vmem:[#allocation2 + $0x1c] sm:$0xf]
        %1829 = vrot.lane.b32.xlu0 %v1813, 119
        %v1830 = vpop.permute.xlu0 %1829
        %1831 = vrot.lane.b32.xlu0 %v1814, 119
        %v1832 = vpop.permute.xlu0 %1831
        %1833 = vrot.lane.b32.xlu0 %v1815, 119
        %v1834 = vpop.permute.xlu0 %1833
        %1835 = vrot.lane.b32.xlu0 %v1816, 119
        %v1836 = vpop.permute.xlu0 %1835
        %1837 = vrot.lane.b32.xlu0 %v1817, 119
        %v1838 = vpop.permute.xlu0 %1837
        %1839 = vrot.lane.b32.xlu0 %v1818, 119
        %v1840 = vpop.permute.xlu0 %1839
        %1841 = vrot.lane.b32.xlu0 %v1819, 119
        %v1842 = vpop.permute.xlu0 %1841
        %1843 = vrot.lane.b32.xlu0 %v1820, 119
        %v1844 = vpop.permute.xlu0 %1843
        %1853 = vst.msk [vmem:[#allocation3 + $0xe0] sm:$0xf] %vm1445, %v1830
        %1854 = vst.msk [vmem:[#allocation3 + $0xe4] sm:$0xf] %vm1445, %v1832
        %1855 = vst.msk [vmem:[#allocation3 + $0xe8] sm:$0xf] %vm1445, %v1834
        %1856 = vst.msk [vmem:[#allocation3 + $0xec] sm:$0xf] %vm1445, %v1836
        %1857 = vst.msk [vmem:[#allocation3 + $0xf0] sm:$0xf] %vm1445, %v1838
        %1858 = vst.msk [vmem:[#allocation3 + $0xf4] sm:$0xf] %vm1445, %v1840
        %1859 = vst.msk [vmem:[#allocation3 + $0xf8] sm:$0xf] %vm1445, %v1842
        %1860 = vst.msk [vmem:[#allocation3 + $0xfc] sm:$0xf] %vm1445, %v1844
        %v1861 = vld [vmem:[#allocation2] sm:$0xf]
        %v1862 = vld [vmem:[#allocation2 + $0x4] sm:$0xf]
        %v1863 = vld [vmem:[#allocation2 + $0x8] sm:$0xf]
        %v1864 = vld [vmem:[#allocation2 + $0xc] sm:$0xf]
        %v1865 = vld [vmem:[#allocation2 + $0x10] sm:$0xf]
        %v1866 = vld [vmem:[#allocation2 + $0x14] sm:$0xf]
        %v1867 = vld [vmem:[#allocation2 + $0x18] sm:$0xf]
        %v1868 = vld [vmem:[#allocation2 + $0x1c] sm:$0xf]
        %1869 = vrot.lane.b32.xlu0 %v1511, 10
        %v1870 = vpop.permute.xlu0 %1869
        %v1871 = vunpack.c.l.b16 %v1870
        %v1872 = vunpack.c.h.b16 %v1870
        %v1873 = vunpack.c.l.b16 0
        %v1874 = vunpack.c.h.b16 0
        %vm1875 = vcmp.ne.s32.totalorder %v1871, %v1873
        %vm1876 = vcmp.ne.s32.totalorder %v1872, %v1874
        %vm1877 = vmpackc.low %vm1876, %vm1875
        %v1878 = vsel %vm1877, %v1861, 0
        %v1879 = vsel %vm1877, %v1862, 0
        %v1880 = vsel %vm1877, %v1863, 0
        %v1881 = vsel %vm1877, %v1864, 0
        %v1882 = vsel %vm1877, %v1865, 0
        %v1883 = vsel %vm1877, %v1866, 0
        %v1884 = vsel %vm1877, %v1867, 0
        %v1885 = vsel %vm1877, %v1868, 0
        %1894 = vrot.lane.b32.xlu0 %v1878, 118
        %v1895 = vpop.permute.xlu0 %1894
        %1896 = vrot.lane.b32.xlu0 %v1879, 118
        %v1897 = vpop.permute.xlu0 %1896
        %1898 = vrot.lane.b32.xlu0 %v1880, 118
        %v1899 = vpop.permute.xlu0 %1898
        %1900 = vrot.lane.b32.xlu0 %v1881, 118
        %v1901 = vpop.permute.xlu0 %1900
        %1902 = vrot.lane.b32.xlu0 %v1882, 118
        %v1903 = vpop.permute.xlu0 %1902
        %1904 = vrot.lane.b32.xlu0 %v1883, 118
        %v1905 = vpop.permute.xlu0 %1904
        %1906 = vrot.lane.b32.xlu0 %v1884, 118
        %v1907 = vpop.permute.xlu0 %1906
        %1908 = vrot.lane.b32.xlu0 %v1885, 118
        %v1909 = vpop.permute.xlu0 %1908
        %1918 = vst.msk [vmem:[#allocation3 + $0x100] sm:$0xf] %vm1445, %v1895
        %1919 = vst.msk [vmem:[#allocation3 + $0x104] sm:$0xf] %vm1445, %v1897
        %1920 = vst.msk [vmem:[#allocation3 + $0x108] sm:$0xf] %vm1445, %v1899
        %1921 = vst.msk [vmem:[#allocation3 + $0x10c] sm:$0xf] %vm1445, %v1901
        %1922 = vst.msk [vmem:[#allocation3 + $0x110] sm:$0xf] %vm1445, %v1903
        %1923 = vst.msk [vmem:[#allocation3 + $0x114] sm:$0xf] %vm1445, %v1905
        %1924 = vst.msk [vmem:[#allocation3 + $0x118] sm:$0xf] %vm1445, %v1907
        %1925 = vst.msk [vmem:[#allocation3 + $0x11c] sm:$0xf] %vm1445, %v1909
        %v1926 = vld [vmem:[%s5] sm:$0xff]
        %v1927 = vld [vmem:[%s5 + $0x8] sm:$0xff]
        %v1928 = vld [vmem:[%s5 + $0x10] sm:$0xf]
        %v1929 = vld [vmem:[%s5 + $0x14] sm:$0xff]
        %v1930 = vld [vmem:[%s5 + $0x1c] sm:$0xff]
        %v1931 = vld [vmem:[%s5 + $0x24] sm:$0xf]
        %v1932 = vld [vmem:[%s5 + $0x28] sm:$0xff]
        %v1933 = vld [vmem:[%s5 + $0x30] sm:$0xff]
        %v1934 = vld [vmem:[%s5 + $0x38] sm:$0xf]
        %v1935 = vld [vmem:[%s5 + $0x3c] sm:$0xff]
        %v1936 = vld [vmem:[%s5 + $0x44] sm:$0xff]
        %v1937 = vld [vmem:[%s5 + $0x4c] sm:$0xf]
        %v1938 = vld [vmem:[%s5 + $0x50] sm:$0xff]
        %v1939 = vld [vmem:[%s5 + $0x58] sm:$0xff]
        %v1940 = vld [vmem:[%s5 + $0x60] sm:$0xf]
        %v1941 = vld [vmem:[%s5 + $0x64] sm:$0xff]
        %v1942 = vld [vmem:[%s5 + $0x6c] sm:$0xff]
        %v1943 = vld [vmem:[%s5 + $0x74] sm:$0xf]
        %v1944 = vld [vmem:[%s5 + $0x78] sm:$0xff]
        %v1945 = vld [vmem:[%s5 + $0x80] sm:$0xff]
        %v1946 = vld [vmem:[%s5 + $0x88] sm:$0xf]
        %v1947 = vld [vmem:[%s5 + $0x8c] sm:$0xff]
        %v1948 = vld [vmem:[%s5 + $0x94] sm:$0xff]
        %v1949 = vld [vmem:[%s5 + $0x9c] sm:$0xf]
        %v1950 = vld [vmem:[%s5 + $0xa0] sm:$0xff]
        %v1951 = vld [vmem:[%s5 + $0xa8] sm:$0xff]
        %v1952 = vld [vmem:[%s5 + $0xb0] sm:$0xf]
        %v1953 = vld [vmem:[%s5 + $0xb4] sm:$0xff]
        %v1954 = vld [vmem:[%s5 + $0xbc] sm:$0xff]
        %v1955 = vld [vmem:[%s5 + $0xc4] sm:$0xf]
        %v1956 = vld [vmem:[%s5 + $0xc8] sm:$0xff]
        %v1957 = vld [vmem:[%s5 + $0xd0] sm:$0xff]
        %v1958 = vld [vmem:[%s5 + $0xd8] sm:$0xf]
        %v1959 = vld [vmem:[%s5 + $0xdc] sm:$0xff]
        %v1960 = vld [vmem:[%s5 + $0xe4] sm:$0xff]
        %v1961 = vld [vmem:[%s5 + $0xec] sm:$0xf]
        %v1962 = vld [vmem:[%s5 + $0xf0] sm:$0xff]
        %v1963 = vld [vmem:[%s5 + $0xf8] sm:$0xff]
        %v1964 = vld [vmem:[%s5 + $0x100] sm:$0xf]
        %v1965 = vld [vmem:[%s5 + $0x104] sm:$0xff]
        %v1966 = vld [vmem:[%s5 + $0x10c] sm:$0xff]
        %v1967 = vld [vmem:[%s5 + $0x114] sm:$0xf]
        %v1968 = vld [vmem:[%s5 + $0x118] sm:$0xff]
        %v1969 = vld [vmem:[%s5 + $0x120] sm:$0xff]
        %v1970 = vld [vmem:[%s5 + $0x128] sm:$0xf]
        %v1971 = vld [vmem:[%s5 + $0x12c] sm:$0xff]
        %v1972 = vld [vmem:[%s5 + $0x134] sm:$0xff]
        %v1973 = vld [vmem:[%s5 + $0x13c] sm:$0xf]
        %v1974 = vld [vmem:[#allocation3] sm:$0xf]
        %v1975 = vld [vmem:[#allocation3 + $0x4] sm:$0xf]
        %v1976 = vld [vmem:[#allocation3 + $0x8] sm:$0xf]
        %v1977 = vld [vmem:[#allocation3 + $0xc] sm:$0xf]
        %v1978 = vld [vmem:[#allocation3 + $0x10] sm:$0xf]
        %v1979 = vld [vmem:[#allocation3 + $0x14] sm:$0xf]
        %v1980 = vld [vmem:[#allocation3 + $0x18] sm:$0xf]
        %v1981 = vld [vmem:[#allocation3 + $0x1c] sm:$0xf]
        %v1982 = vld [vmem:[#allocation3 + $0x20] sm:$0xf]
        %v1983 = vld [vmem:[#allocation3 + $0x24] sm:$0xf]
        %v1984 = vld [vmem:[#allocation3 + $0x28] sm:$0xf]
        %v1985 = vld [vmem:[#allocation3 + $0x2c] sm:$0xf]
        %v1986 = vld [vmem:[#allocation3 + $0x30] sm:$0xf]
        %v1987 = vld [vmem:[#allocation3 + $0x34] sm:$0xf]
        %v1988 = vld [vmem:[#allocation3 + $0x38] sm:$0xf]
        %v1989 = vld [vmem:[#allocation3 + $0x3c] sm:$0xf]
        %v1990 = vld [vmem:[#allocation3 + $0x40] sm:$0xf]
        %v1991 = vld [vmem:[#allocation3 + $0x44] sm:$0xf]
        %v1992 = vld [vmem:[#allocation3 + $0x48] sm:$0xf]
        %v1993 = vld [vmem:[#allocation3 + $0x4c] sm:$0xf]
        %v1994 = vld [vmem:[#allocation3 + $0x50] sm:$0xf]
        %v1995 = vld [vmem:[#allocation3 + $0x54] sm:$0xf]
        %v1996 = vld [vmem:[#allocation3 + $0x58] sm:$0xf]
        %v1997 = vld [vmem:[#allocation3 + $0x5c] sm:$0xf]
        %v1998 = vld [vmem:[#allocation3 + $0x60] sm:$0xf]
        %v1999 = vld [vmem:[#allocation3 + $0x64] sm:$0xf]
        %v2000 = vld [vmem:[#allocation3 + $0x68] sm:$0xf]
        %v2001 = vld [vmem:[#allocation3 + $0x6c] sm:$0xf]
        %v2002 = vld [vmem:[#allocation3 + $0x70] sm:$0xf]
        %v2003 = vld [vmem:[#allocation3 + $0x74] sm:$0xf]
        %v2004 = vld [vmem:[#allocation3 + $0x78] sm:$0xf]
        %v2005 = vld [vmem:[#allocation3 + $0x7c] sm:$0xf]
        %v2006 = vld [vmem:[#allocation3 + $0x80] sm:$0xf]
        %v2007 = vld [vmem:[#allocation3 + $0x84] sm:$0xf]
        %v2008 = vld [vmem:[#allocation3 + $0x88] sm:$0xf]
        %v2009 = vld [vmem:[#allocation3 + $0x8c] sm:$0xf]
        %v2010 = vld [vmem:[#allocation3 + $0x90] sm:$0xf]
        %v2011 = vld [vmem:[#allocation3 + $0x94] sm:$0xf]
        %v2012 = vld [vmem:[#allocation3 + $0x98] sm:$0xf]
        %v2013 = vld [vmem:[#allocation3 + $0x9c] sm:$0xf]
        %v2014 = vld [vmem:[#allocation3 + $0xa0] sm:$0xf]
        %v2015 = vld [vmem:[#allocation3 + $0xa4] sm:$0xf]
        %v2016 = vld [vmem:[#allocation3 + $0xa8] sm:$0xf]
        %v2017 = vld [vmem:[#allocation3 + $0xac] sm:$0xf]
        %v2018 = vld [vmem:[#allocation3 + $0xb0] sm:$0xf]
        %v2019 = vld [vmem:[#allocation3 + $0xb4] sm:$0xf]
        %v2020 = vld [vmem:[#allocation3 + $0xb8] sm:$0xf]
        %v2021 = vld [vmem:[#allocation3 + $0xbc] sm:$0xf]
        %v2022 = vld [vmem:[#allocation3 + $0xc0] sm:$0xf]
        %v2023 = vld [vmem:[#allocation3 + $0xc4] sm:$0xf]
        %v2024 = vld [vmem:[#allocation3 + $0xc8] sm:$0xf]
        %v2025 = vld [vmem:[#allocation3 + $0xcc] sm:$0xf]
        %v2026 = vld [vmem:[#allocation3 + $0xd0] sm:$0xf]
        %v2027 = vld [vmem:[#allocation3 + $0xd4] sm:$0xf]
        %v2028 = vld [vmem:[#allocation3 + $0xd8] sm:$0xf]
        %v2029 = vld [vmem:[#allocation3 + $0xdc] sm:$0xf]
        %v2030 = vld [vmem:[#allocation3 + $0xe0] sm:$0xf]
        %v2031 = vld [vmem:[#allocation3 + $0xe4] sm:$0xf]
        %v2032 = vld [vmem:[#allocation3 + $0xe8] sm:$0xf]
        %v2033 = vld [vmem:[#allocation3 + $0xec] sm:$0xf]
        %v2034 = vld [vmem:[#allocation3 + $0xf0] sm:$0xf]
        %v2035 = vld [vmem:[#allocation3 + $0xf4] sm:$0xf]
        %v2036 = vld [vmem:[#allocation3 + $0xf8] sm:$0xf]
        %v2037 = vld [vmem:[#allocation3 + $0xfc] sm:$0xf]
        %v2038 = vld [vmem:[#allocation3 + $0x100] sm:$0xf]
        %v2039 = vld [vmem:[#allocation3 + $0x104] sm:$0xf]
        %v2040 = vld [vmem:[#allocation3 + $0x108] sm:$0xf]
        %v2041 = vld [vmem:[#allocation3 + $0x10c] sm:$0xf]
        %v2042 = vld [vmem:[#allocation3 + $0x110] sm:$0xf]
        %v2043 = vld [vmem:[#allocation3 + $0x114] sm:$0xf]
        %v2044 = vld [vmem:[#allocation3 + $0x118] sm:$0xf]
        %v2045 = vld [vmem:[#allocation3 + $0x11c] sm:$0xf]
        %v2094 = vunpack.c.l.b16 %v1926
        %v2095 = vunpack.c.h.b16 %v1926
        %v2096 = vunpack.c.l.b16 %v1927
        %v2097 = vunpack.c.h.b16 %v1927
        %v2098 = vunpack.c.l.b16 %v1928
        %v2099 = vunpack.c.l.b16 %v1929
        %v2100 = vunpack.c.h.b16 %v1929
        %v2101 = vunpack.c.l.b16 %v1930
        %v2102 = vunpack.c.h.b16 %v1930
        %v2103 = vunpack.c.l.b16 %v1931
        %v2104 = vunpack.c.l.b16 %v1932
        %v2105 = vunpack.c.h.b16 %v1932
        %v2106 = vunpack.c.l.b16 %v1933
        %v2107 = vunpack.c.h.b16 %v1933
        %v2108 = vunpack.c.l.b16 %v1934
        %v2109 = vunpack.c.l.b16 %v1935
        %v2110 = vunpack.c.h.b16 %v1935
        %v2111 = vunpack.c.l.b16 %v1936
        %v2112 = vunpack.c.h.b16 %v1936
        %v2113 = vunpack.c.l.b16 %v1937
        %v2114 = vunpack.c.l.b16 %v1938
        %v2115 = vunpack.c.h.b16 %v1938
        %v2116 = vunpack.c.l.b16 %v1939
        %v2117 = vunpack.c.h.b16 %v1939
        %v2118 = vunpack.c.l.b16 %v1940
        %v2119 = vunpack.c.l.b16 %v1941
        %v2120 = vunpack.c.h.b16 %v1941
        %v2121 = vunpack.c.l.b16 %v1942
        %v2122 = vunpack.c.h.b16 %v1942
        %v2123 = vunpack.c.l.b16 %v1943
        %v2124 = vunpack.c.l.b16 %v1944
        %v2125 = vunpack.c.h.b16 %v1944
        %v2126 = vunpack.c.l.b16 %v1945
        %v2127 = vunpack.c.h.b16 %v1945
        %v2128 = vunpack.c.l.b16 %v1946
        %v2129 = vunpack.c.l.b16 %v1947
        %v2130 = vunpack.c.h.b16 %v1947
        %v2131 = vunpack.c.l.b16 %v1948
        %v2132 = vunpack.c.h.b16 %v1948
        %v2133 = vunpack.c.l.b16 %v1949
        %v2134 = vunpack.c.l.b16 %v1950
        %v2135 = vunpack.c.h.b16 %v1950
        %v2136 = vunpack.c.l.b16 %v1951
        %v2137 = vunpack.c.h.b16 %v1951
        %v2138 = vunpack.c.l.b16 %v1952
        %v2139 = vunpack.c.l.b16 %v1953
        %v2140 = vunpack.c.h.b16 %v1953
        %v2141 = vunpack.c.l.b16 %v1954
        %v2142 = vunpack.c.h.b16 %v1954
        %v2143 = vunpack.c.l.b16 %v1955
        %v2144 = vunpack.c.l.b16 %v1956
        %v2145 = vunpack.c.h.b16 %v1956
        %v2146 = vunpack.c.l.b16 %v1957
        %v2147 = vunpack.c.h.b16 %v1957
        %v2148 = vunpack.c.l.b16 %v1958
        %v2149 = vunpack.c.l.b16 %v1959
        %v2150 = vunpack.c.h.b16 %v1959
        %v2151 = vunpack.c.l.b16 %v1960
        %v2152 = vunpack.c.h.b16 %v1960
        %v2153 = vunpack.c.l.b16 %v1961
        %v2154 = vunpack.c.l.b16 %v1962
        %v2155 = vunpack.c.h.b16 %v1962
        %v2156 = vunpack.c.l.b16 %v1963
        %v2157 = vunpack.c.h.b16 %v1963
        %v2158 = vunpack.c.l.b16 %v1964
        %v2159 = vunpack.c.l.b16 %v1965
        %v2160 = vunpack.c.h.b16 %v1965
        %v2161 = vunpack.c.l.b16 %v1966
        %v2162 = vunpack.c.h.b16 %v1966
        %v2163 = vunpack.c.l.b16 %v1967
        %v2164 = vunpack.c.l.b16 %v1968
        %v2165 = vunpack.c.h.b16 %v1968
        %v2166 = vunpack.c.l.b16 %v1969
        %v2167 = vunpack.c.h.b16 %v1969
        %v2168 = vunpack.c.l.b16 %v1970
        %v2169 = vunpack.c.l.b16 %v1971
        %v2170 = vunpack.c.h.b16 %v1971
        %v2171 = vunpack.c.l.b16 %v1972
        %v2172 = vunpack.c.h.b16 %v1972
        %v2173 = vunpack.c.l.b16 %v1973
        %v2174 = vpack.c.b16 %v2099, %v2094
        %v2175 = vpack.c.b16 %v2100, %v2095
        %v2176 = vpack.c.b16 %v2101, %v2096
        %v2177 = vpack.c.b16 %v2102, %v2097
        %v2178 = vpack.c.b16 %v2103, %v2098
        %v2179 = vpack.c.b16 %v2109, %v2104
        %v2180 = vpack.c.b16 %v2110, %v2105
        %v2181 = vpack.c.b16 %v2111, %v2106
        %v2182 = vpack.c.b16 %v2112, %v2107
        %v2183 = vpack.c.b16 %v2113, %v2108
        %v2184 = vpack.c.b16 %v2119, %v2114
        %v2185 = vpack.c.b16 %v2120, %v2115
        %v2186 = vpack.c.b16 %v2121, %v2116
        %v2187 = vpack.c.b16 %v2122, %v2117
        %v2188 = vpack.c.b16 %v2123, %v2118
        %v2189 = vpack.c.b16 %v2129, %v2124
        %v2190 = vpack.c.b16 %v2130, %v2125
        %v2191 = vpack.c.b16 %v2131, %v2126
        %v2192 = vpack.c.b16 %v2132, %v2127
        %v2193 = vpack.c.b16 %v2133, %v2128
        %v2194 = vpack.c.b16 %v2139, %v2134
        %v2195 = vpack.c.b16 %v2140, %v2135
        %v2196 = vpack.c.b16 %v2141, %v2136
        %v2197 = vpack.c.b16 %v2142, %v2137
        %v2198 = vpack.c.b16 %v2143, %v2138
        %v2199 = vpack.c.b16 %v2149, %v2144
        %v2200 = vpack.c.b16 %v2150, %v2145
        %v2201 = vpack.c.b16 %v2151, %v2146
        %v2202 = vpack.c.b16 %v2152, %v2147
        %v2203 = vpack.c.b16 %v2153, %v2148
        %v2204 = vpack.c.b16 %v2159, %v2154
        %v2205 = vpack.c.b16 %v2160, %v2155
        %v2206 = vpack.c.b16 %v2161, %v2156
        %v2207 = vpack.c.b16 %v2162, %v2157
        %v2208 = vpack.c.b16 %v2163, %v2158
        %v2209 = vpack.c.b16 %v2169, %v2164
        %v2210 = vpack.c.b16 %v2170, %v2165
        %v2211 = vpack.c.b16 %v2171, %v2166
        %v2212 = vpack.c.b16 %v2172, %v2167
        %v2213 = vpack.c.b16 %v2173, %v2168
        %v2318 = vunpack.c.l.b16 %v1974
        %v2319 = vunpack.c.l.b16 %v1975
        %v2320 = vunpack.c.l.b16 %v1976
        %v2321 = vunpack.c.l.b16 %v1977
        %v2322 = vunpack.c.l.b16 %v1978
        %v2323 = vunpack.c.l.b16 %v1979
        %v2324 = vunpack.c.l.b16 %v1980
        %v2325 = vunpack.c.l.b16 %v1981
        %v2326 = vunpack.c.l.b16 %v1982
        %v2327 = vunpack.c.l.b16 %v1983
        %v2328 = vunpack.c.l.b16 %v1984
        %v2329 = vunpack.c.l.b16 %v1985
        %v2330 = vunpack.c.l.b16 %v1986
        %v2331 = vunpack.c.l.b16 %v1987
        %v2332 = vunpack.c.l.b16 %v1988
        %v2333 = vunpack.c.l.b16 %v1989
        %v2334 = vunpack.c.l.b16 %v1990
        %v2335 = vunpack.c.l.b16 %v1991
        %v2336 = vunpack.c.l.b16 %v1992
        %v2337 = vunpack.c.l.b16 %v1993
        %v2338 = vunpack.c.l.b16 %v1994
        %v2339 = vunpack.c.l.b16 %v1995
        %v2340 = vunpack.c.l.b16 %v1996
        %v2341 = vunpack.c.l.b16 %v1997
        %v2342 = vunpack.c.l.b16 %v1998
        %v2343 = vunpack.c.l.b16 %v1999
        %v2344 = vunpack.c.l.b16 %v2000
        %v2345 = vunpack.c.l.b16 %v2001
        %v2346 = vunpack.c.l.b16 %v2002
        %v2347 = vunpack.c.l.b16 %v2003
        %v2348 = vunpack.c.l.b16 %v2004
        %v2349 = vunpack.c.l.b16 %v2005
        %v2350 = vunpack.c.l.b16 %v2006
        %v2351 = vunpack.c.l.b16 %v2007
        %v2352 = vunpack.c.l.b16 %v2008
        %v2353 = vunpack.c.l.b16 %v2009
        %v2354 = vunpack.c.l.b16 %v2010
        %v2355 = vunpack.c.l.b16 %v2011
        %v2356 = vunpack.c.l.b16 %v2012
        %v2357 = vunpack.c.l.b16 %v2013
        %v2358 = vunpack.c.l.b16 %v2014
        %v2359 = vunpack.c.l.b16 %v2015
        %v2360 = vunpack.c.l.b16 %v2016
        %v2361 = vunpack.c.l.b16 %v2017
        %v2362 = vunpack.c.l.b16 %v2018
        %v2363 = vunpack.c.l.b16 %v2019
        %v2364 = vunpack.c.l.b16 %v2020
        %v2365 = vunpack.c.l.b16 %v2021
        %v2366 = vunpack.c.l.b16 %v2022
        %v2367 = vunpack.c.l.b16 %v2023
        %v2368 = vunpack.c.l.b16 %v2024
        %v2369 = vunpack.c.l.b16 %v2025
        %v2370 = vunpack.c.l.b16 %v2026
        %v2371 = vunpack.c.l.b16 %v2027
        %v2372 = vunpack.c.l.b16 %v2028
        %v2373 = vunpack.c.l.b16 %v2029
        %v2374 = vunpack.c.l.b16 %v2030
        %v2375 = vunpack.c.l.b16 %v2031
        %v2376 = vunpack.c.l.b16 %v2032
        %v2377 = vunpack.c.l.b16 %v2033
        %v2378 = vunpack.c.l.b16 %v2034
        %v2379 = vunpack.c.l.b16 %v2035
        %v2380 = vunpack.c.l.b16 %v2036
        %v2381 = vunpack.c.l.b16 %v2037
        %v2382 = vunpack.c.l.b16 %v2038
        %v2383 = vunpack.c.l.b16 %v2039
        %v2384 = vunpack.c.l.b16 %v2040
        %v2385 = vunpack.c.l.b16 %v2041
        %v2386 = vunpack.c.l.b16 %v2042
        %v2387 = vunpack.c.l.b16 %v2043
        %v2388 = vunpack.c.l.b16 %v2044
        %v2389 = vunpack.c.l.b16 %v2045
        %v2390 = vpack.c.b16 %v2319, %v2318
        %v2391 = vpack.c.b16 %v2321, %v2320
        %v2392 = vpack.c.b16 %v2323, %v2322
        %v2393 = vpack.c.b16 %v2325, %v2324
        %v2394 = vpack.c.b16 %v2327, %v2326
        %v2395 = vpack.c.b16 %v2329, %v2328
        %v2396 = vpack.c.b16 %v2331, %v2330
        %v2397 = vpack.c.b16 %v2333, %v2332
        %v2398 = vpack.c.b16 %v2335, %v2334
        %v2399 = vpack.c.b16 %v2337, %v2336
        %v2400 = vpack.c.b16 %v2339, %v2338
        %v2401 = vpack.c.b16 %v2341, %v2340
        %v2402 = vpack.c.b16 %v2343, %v2342
        %v2403 = vpack.c.b16 %v2345, %v2344
        %v2404 = vpack.c.b16 %v2347, %v2346
        %v2405 = vpack.c.b16 %v2349, %v2348
        %v2406 = vpack.c.b16 %v2351, %v2350
        %v2407 = vpack.c.b16 %v2353, %v2352
        %v2408 = vpack.c.b16 %v2355, %v2354
        %v2409 = vpack.c.b16 %v2357, %v2356
        %v2410 = vpack.c.b16 %v2359, %v2358
        %v2411 = vpack.c.b16 %v2361, %v2360
        %v2412 = vpack.c.b16 %v2363, %v2362
        %v2413 = vpack.c.b16 %v2365, %v2364
        %v2414 = vpack.c.b16 %v2367, %v2366
        %v2415 = vpack.c.b16 %v2369, %v2368
        %v2416 = vpack.c.b16 %v2371, %v2370
        %v2417 = vpack.c.b16 %v2373, %v2372
        %v2418 = vpack.c.b16 %v2375, %v2374
        %v2419 = vpack.c.b16 %v2377, %v2376
        %v2420 = vpack.c.b16 %v2379, %v2378
        %v2421 = vpack.c.b16 %v2381, %v2380
        %v2422 = vpack.c.b16 %v2383, %v2382
        %v2423 = vpack.c.b16 %v2385, %v2384
        %v2424 = vpack.c.b16 %v2387, %v2386
        %v2425 = vpack.c.b16 %v2389, %v2388
        %v2463 = vsel %vm937, %v2178, 0
        %v2466 = vsel %vm937, %v2183, 0
        %v2469 = vsel %vm937, %v2188, 0
        %v2472 = vsel %vm937, %v2193, 0
        %v2475 = vsel %vm937, %v2198, 0
        %v2478 = vsel %vm937, %v2203, 0
        %v2481 = vsel %vm937, %v2208, 0
        %v2484 = vsel %vm937, %v2213, 0
        %2486 = vmatpush.bf16.msra.mxu0 %v2397
        %2487 = vmatpush.bf16.msra.mxu0 %v2396
        %2488 = vmatpush.bf16.msra.mxu0 %v2395
        %2489 = vmatpush.bf16.msra.mxu0 %v2394
        %2490 = vmatpush.bf16.msra.mxu0 %v2393
        %2491 = vmatpush.bf16.msra.mxu0 %v2392
        %2492 = vmatpush.bf16.msra.mxu0 %v2391
        %2493 = vmatpush.bf16.msra.mxu0 %v2390
        %2494 = vmatmul.bf16.gmra.mxu0 %v2174
        %v2495 = vpop.f32.mrf.mxu0
        %v2496 = vadd.f32 0.0, %v2495
        %v2497 = vpop.f32.mrf.mxu0
        %v2498 = vadd.f32 0.0, %v2497
        %2499 = vmatmul.bf16.gmra.mxu0 %v2179
        %v2500 = vpop.f32.mrf.mxu0
        %v2501 = vadd.f32 0.0, %v2500
        %v2502 = vpop.f32.mrf.mxu0
        %v2503 = vadd.f32 0.0, %v2502
        %2504 = vmatmul.bf16.gmra.mxu0 %v2184
        %v2505 = vpop.f32.mrf.mxu0
        %v2506 = vadd.f32 0.0, %v2505
        %v2507 = vpop.f32.mrf.mxu0
        %v2508 = vadd.f32 0.0, %v2507
        %2509 = vmatmul.bf16.gmra.mxu0 %v2189
        %v2510 = vpop.f32.mrf.mxu0
        %v2511 = vadd.f32 0.0, %v2510
        %v2512 = vpop.f32.mrf.mxu0
        %v2513 = vadd.f32 0.0, %v2512
        %2514 = vmatmul.bf16.gmra.mxu0 %v2194
        %v2515 = vpop.f32.mrf.mxu0
        %v2516 = vadd.f32 0.0, %v2515
        %v2517 = vpop.f32.mrf.mxu0
        %v2518 = vadd.f32 0.0, %v2517
        %2519 = vmatmul.bf16.gmra.mxu0 %v2199
        %v2520 = vpop.f32.mrf.mxu0
        %v2521 = vadd.f32 0.0, %v2520
        %v2522 = vpop.f32.mrf.mxu0
        %v2523 = vadd.f32 0.0, %v2522
        %2524 = vmatmul.bf16.gmra.mxu0 %v2204
        %v2525 = vpop.f32.mrf.mxu0
        %v2526 = vadd.f32 0.0, %v2525
        %v2527 = vpop.f32.mrf.mxu0
        %v2528 = vadd.f32 0.0, %v2527
        %2529 = vmatmul.bf16.gmra.mxu0 %v2209
        %v2530 = vpop.f32.mrf.mxu0
        %v2531 = vadd.f32 0.0, %v2530
        %v2532 = vpop.f32.mrf.mxu0
        %v2533 = vadd.f32 0.0, %v2532
        %2534 = vdwg.mxu0
        %2535 = vmatpush.bf16.msra.mxu0 %v2405
        %2536 = vmatpush.bf16.msra.mxu0 %v2404
        %2537 = vmatpush.bf16.msra.mxu0 %v2403
        %2538 = vmatpush.bf16.msra.mxu0 %v2402
        %2539 = vmatpush.bf16.msra.mxu0 %v2401
        %2540 = vmatpush.bf16.msra.mxu0 %v2400
        %2541 = vmatpush.bf16.msra.mxu0 %v2399
        %2542 = vmatpush.bf16.msra.mxu0 %v2398
        %2543 = vmatmul.bf16.gmra.mxu0 %v2175
        %v2544 = vpop.f32.mrf.mxu0
        %v2545 = vadd.f32 %v2496, %v2544
        %v2546 = vpop.f32.mrf.mxu0
        %v2547 = vadd.f32 %v2498, %v2546
        %2548 = vmatmul.bf16.gmra.mxu0 %v2180
        %v2549 = vpop.f32.mrf.mxu0
        %v2550 = vadd.f32 %v2501, %v2549
        %v2551 = vpop.f32.mrf.mxu0
        %v2552 = vadd.f32 %v2503, %v2551
        %2553 = vmatmul.bf16.gmra.mxu0 %v2185
        %v2554 = vpop.f32.mrf.mxu0
        %v2555 = vadd.f32 %v2506, %v2554
        %v2556 = vpop.f32.mrf.mxu0
        %v2557 = vadd.f32 %v2508, %v2556
        %2558 = vmatmul.bf16.gmra.mxu0 %v2190
        %v2559 = vpop.f32.mrf.mxu0
        %v2560 = vadd.f32 %v2511, %v2559
        %v2561 = vpop.f32.mrf.mxu0
        %v2562 = vadd.f32 %v2513, %v2561
        %2563 = vmatmul.bf16.gmra.mxu0 %v2195
        %v2564 = vpop.f32.mrf.mxu0
        %v2565 = vadd.f32 %v2516, %v2564
        %v2566 = vpop.f32.mrf.mxu0
        %v2567 = vadd.f32 %v2518, %v2566
        %2568 = vmatmul.bf16.gmra.mxu0 %v2200
        %v2569 = vpop.f32.mrf.mxu0
        %v2570 = vadd.f32 %v2521, %v2569
        %v2571 = vpop.f32.mrf.mxu0
        %v2572 = vadd.f32 %v2523, %v2571
        %2573 = vmatmul.bf16.gmra.mxu0 %v2205
        %v2574 = vpop.f32.mrf.mxu0
        %v2575 = vadd.f32 %v2526, %v2574
        %v2576 = vpop.f32.mrf.mxu0
        %v2577 = vadd.f32 %v2528, %v2576
        %2578 = vmatmul.bf16.gmra.mxu0 %v2210
        %v2579 = vpop.f32.mrf.mxu0
        %v2580 = vadd.f32 %v2531, %v2579
        %v2581 = vpop.f32.mrf.mxu0
        %v2582 = vadd.f32 %v2533, %v2581
        %2583 = vdwg.mxu0
        %2584 = vmatpush.bf16.msra.mxu0 %v2413
        %2585 = vmatpush.bf16.msra.mxu0 %v2412
        %2586 = vmatpush.bf16.msra.mxu0 %v2411
        %2587 = vmatpush.bf16.msra.mxu0 %v2410
        %2588 = vmatpush.bf16.msra.mxu0 %v2409
        %2589 = vmatpush.bf16.msra.mxu0 %v2408
        %2590 = vmatpush.bf16.msra.mxu0 %v2407
        %2591 = vmatpush.bf16.msra.mxu0 %v2406
        %2592 = vmatmul.bf16.gmra.mxu0 %v2176
        %v2593 = vpop.f32.mrf.mxu0
        %v2594 = vadd.f32 %v2545, %v2593
        %v2595 = vpop.f32.mrf.mxu0
        %v2596 = vadd.f32 %v2547, %v2595
        %2597 = vmatmul.bf16.gmra.mxu0 %v2181
        %v2598 = vpop.f32.mrf.mxu0
        %v2599 = vadd.f32 %v2550, %v2598
        %v2600 = vpop.f32.mrf.mxu0
        %v2601 = vadd.f32 %v2552, %v2600
        %2602 = vmatmul.bf16.gmra.mxu0 %v2186
        %v2603 = vpop.f32.mrf.mxu0
        %v2604 = vadd.f32 %v2555, %v2603
        %v2605 = vpop.f32.mrf.mxu0
        %v2606 = vadd.f32 %v2557, %v2605
        %2607 = vmatmul.bf16.gmra.mxu0 %v2191
        %v2608 = vpop.f32.mrf.mxu0
        %v2609 = vadd.f32 %v2560, %v2608
        %v2610 = vpop.f32.mrf.mxu0
        %v2611 = vadd.f32 %v2562, %v2610
        %2612 = vmatmul.bf16.gmra.mxu0 %v2196
        %v2613 = vpop.f32.mrf.mxu0
        %v2614 = vadd.f32 %v2565, %v2613
        %v2615 = vpop.f32.mrf.mxu0
        %v2616 = vadd.f32 %v2567, %v2615
        %2617 = vmatmul.bf16.gmra.mxu0 %v2201
        %v2618 = vpop.f32.mrf.mxu0
        %v2619 = vadd.f32 %v2570, %v2618
        %v2620 = vpop.f32.mrf.mxu0
        %v2621 = vadd.f32 %v2572, %v2620
        %2622 = vmatmul.bf16.gmra.mxu0 %v2206
        %v2623 = vpop.f32.mrf.mxu0
        %v2624 = vadd.f32 %v2575, %v2623
        %v2625 = vpop.f32.mrf.mxu0
        %v2626 = vadd.f32 %v2577, %v2625
        %2627 = vmatmul.bf16.gmra.mxu0 %v2211
        %v2628 = vpop.f32.mrf.mxu0
        %v2629 = vadd.f32 %v2580, %v2628
        %v2630 = vpop.f32.mrf.mxu0
        %v2631 = vadd.f32 %v2582, %v2630
        %2632 = vdwg.mxu0
        %2633 = vmatpush.bf16.msra.mxu0 %v2421
        %2634 = vmatpush.bf16.msra.mxu0 %v2420
        %2635 = vmatpush.bf16.msra.mxu0 %v2419
        %2636 = vmatpush.bf16.msra.mxu0 %v2418
        %2637 = vmatpush.bf16.msra.mxu0 %v2417
        %2638 = vmatpush.bf16.msra.mxu0 %v2416
        %2639 = vmatpush.bf16.msra.mxu0 %v2415
        %2640 = vmatpush.bf16.msra.mxu0 %v2414
        %2641 = vmatmul.bf16.gmra.mxu0 %v2177
        %v2642 = vpop.f32.mrf.mxu0
        %v2643 = vadd.f32 %v2594, %v2642
        %v2644 = vpop.f32.mrf.mxu0
        %v2645 = vadd.f32 %v2596, %v2644
        %2646 = vmatmul.bf16.gmra.mxu0 %v2182
        %v2647 = vpop.f32.mrf.mxu0
        %v2648 = vadd.f32 %v2599, %v2647
        %v2649 = vpop.f32.mrf.mxu0
        %v2650 = vadd.f32 %v2601, %v2649
        %2651 = vmatmul.bf16.gmra.mxu0 %v2187
        %v2652 = vpop.f32.mrf.mxu0
        %v2653 = vadd.f32 %v2604, %v2652
        %v2654 = vpop.f32.mrf.mxu0
        %v2655 = vadd.f32 %v2606, %v2654
        %2656 = vmatmul.bf16.gmra.mxu0 %v2192
        %v2657 = vpop.f32.mrf.mxu0
        %v2658 = vadd.f32 %v2609, %v2657
        %v2659 = vpop.f32.mrf.mxu0
        %v2660 = vadd.f32 %v2611, %v2659
        %2661 = vmatmul.bf16.gmra.mxu0 %v2197
        %v2662 = vpop.f32.mrf.mxu0
        %v2663 = vadd.f32 %v2614, %v2662
        %v2664 = vpop.f32.mrf.mxu0
        %v2665 = vadd.f32 %v2616, %v2664
        %2666 = vmatmul.bf16.gmra.mxu0 %v2202
        %v2667 = vpop.f32.mrf.mxu0
        %v2668 = vadd.f32 %v2619, %v2667
        %v2669 = vpop.f32.mrf.mxu0
        %v2670 = vadd.f32 %v2621, %v2669
        %2671 = vmatmul.bf16.gmra.mxu0 %v2207
        %v2672 = vpop.f32.mrf.mxu0
        %v2673 = vadd.f32 %v2624, %v2672
        %v2674 = vpop.f32.mrf.mxu0
        %v2675 = vadd.f32 %v2626, %v2674
        %2676 = vmatmul.bf16.gmra.mxu0 %v2212
        %v2677 = vpop.f32.mrf.mxu0
        %v2678 = vadd.f32 %v2629, %v2677
        %v2679 = vpop.f32.mrf.mxu0
        %v2680 = vadd.f32 %v2631, %v2679
        %2681 = vdwg.mxu0
        %2682 = vmatpush.bf16.msra.mxu0 0
        %2683 = vmatpush.bf16.msra.mxu0 0
        %2684 = vmatpush.bf16.msra.mxu0 0
        %2685 = vmatpush.bf16.msra.mxu0 0
        %2686 = vmatpush.bf16.msra.mxu0 %v2425
        %2687 = vmatpush.bf16.msra.mxu0 %v2424
        %2688 = vmatpush.bf16.msra.mxu0 %v2423
        %2689 = vmatpush.bf16.msra.mxu0 %v2422
        %2690 = vmatmul.bf16.gmra.mxu0 %v2463
        %v2691 = vpop.f32.mrf.mxu0
        %v2692 = vadd.f32 %v2643, %v2691
        %v2693 = vpop.f32.mrf.mxu0
        %v2694 = vadd.f32 %v2645, %v2693
        %2695 = vmatmul.bf16.gmra.mxu0 %v2466
        %v2696 = vpop.f32.mrf.mxu0
        %v2697 = vadd.f32 %v2648, %v2696
        %v2698 = vpop.f32.mrf.mxu0
        %v2699 = vadd.f32 %v2650, %v2698
        %2700 = vmatmul.bf16.gmra.mxu0 %v2469
        %v2701 = vpop.f32.mrf.mxu0
        %v2702 = vadd.f32 %v2653, %v2701
        %v2703 = vpop.f32.mrf.mxu0
        %v2704 = vadd.f32 %v2655, %v2703
        %2705 = vmatmul.bf16.gmra.mxu0 %v2472
        %v2706 = vpop.f32.mrf.mxu0
        %v2707 = vadd.f32 %v2658, %v2706
        %v2708 = vpop.f32.mrf.mxu0
        %v2709 = vadd.f32 %v2660, %v2708
        %2710 = vmatmul.bf16.gmra.mxu0 %v2475
        %v2711 = vpop.f32.mrf.mxu0
        %v2712 = vadd.f32 %v2663, %v2711
        %v2713 = vpop.f32.mrf.mxu0
        %v2714 = vadd.f32 %v2665, %v2713
        %2715 = vmatmul.bf16.gmra.mxu0 %v2478
        %v2716 = vpop.f32.mrf.mxu0
        %v2717 = vadd.f32 %v2668, %v2716
        %v2718 = vpop.f32.mrf.mxu0
        %v2719 = vadd.f32 %v2670, %v2718
        %2720 = vmatmul.bf16.gmra.mxu0 %v2481
        %v2721 = vpop.f32.mrf.mxu0
        %v2722 = vadd.f32 %v2673, %v2721
        %v2723 = vpop.f32.mrf.mxu0
        %v2724 = vadd.f32 %v2675, %v2723
        %2725 = vmatmul.bf16.gmra.mxu0 %v2484
        %v2726 = vpop.f32.mrf.mxu0
        %v2727 = vadd.f32 %v2678, %v2726
        %v2728 = vpop.f32.mrf.mxu0
        %v2729 = vadd.f32 %v2680, %v2728
        %2730 = vdwg.mxu0
        %v2731 = vld [vmem:[%s6] sm:$0xff]
        %v2732 = vld [vmem:[%s6 + $0x8] sm:$0xff]
        %v2733 = vld [vmem:[%s6 + $0x10] sm:$0xff]
        %v2734 = vld [vmem:[%s6 + $0x18] sm:$0xff]
        %v2735 = vld [vmem:[%s7] sm:$0xff]
        %v2736 = vld [vmem:[%s7 + $0x8] sm:$0xff]
        %v2737 = vld [vmem:[%s7 + $0x10] sm:$0xff]
        %v2738 = vld [vmem:[%s7 + $0x18] sm:$0xff]
        %v2739 = vsel %vm912, %v2692, 0.0
        %2740 = vadd.xlane.f32.xlu0 %v2739
        %v2741 = vpop.xlane.xlu0 %2740
        %v2742 = vsel %vm912, %v2694, 0.0
        %2743 = vadd.xlane.f32.xlu0 %v2742
        %v2744 = vpop.xlane.xlu0 %2743
        %v2745 = vsel %vm912, %v2697, 0.0
        %2746 = vadd.xlane.f32.xlu0 %v2745
        %v2747 = vpop.xlane.xlu0 %2746
        %v2748 = vsel %vm912, %v2699, 0.0
        %2749 = vadd.xlane.f32.xlu0 %v2748
        %v2750 = vpop.xlane.xlu0 %2749
        %v2751 = vsel %vm912, %v2702, 0.0
        %2752 = vadd.xlane.f32.xlu0 %v2751
        %v2753 = vpop.xlane.xlu0 %2752
        %v2754 = vsel %vm912, %v2704, 0.0
        %2755 = vadd.xlane.f32.xlu0 %v2754
        %v2756 = vpop.xlane.xlu0 %2755
        %v2757 = vsel %vm912, %v2707, 0.0
        %2758 = vadd.xlane.f32.xlu0 %v2757
        %v2759 = vpop.xlane.xlu0 %2758
        %v2760 = vsel %vm912, %v2709, 0.0
        %2761 = vadd.xlane.f32.xlu0 %v2760
        %v2762 = vpop.xlane.xlu0 %2761
        %v2763 = vsel %vm912, %v2712, 0.0
        %2764 = vadd.xlane.f32.xlu0 %v2763
        %v2765 = vpop.xlane.xlu0 %2764
        %v2766 = vsel %vm912, %v2714, 0.0
        %2767 = vadd.xlane.f32.xlu0 %v2766
        %v2768 = vpop.xlane.xlu0 %2767
        %v2769 = vsel %vm912, %v2717, 0.0
        %2770 = vadd.xlane.f32.xlu0 %v2769
        %v2771 = vpop.xlane.xlu0 %2770
        %v2772 = vsel %vm912, %v2719, 0.0
        %2773 = vadd.xlane.f32.xlu0 %v2772
        %v2774 = vpop.xlane.xlu0 %2773
        %v2775 = vsel %vm912, %v2722, 0.0
        %2776 = vadd.xlane.f32.xlu0 %v2775
        %v2777 = vpop.xlane.xlu0 %2776
        %v2778 = vsel %vm912, %v2724, 0.0
        %2779 = vadd.xlane.f32.xlu0 %v2778
        %v2780 = vpop.xlane.xlu0 %2779
        %v2781 = vsel %vm912, %v2727, 0.0
        %2782 = vadd.xlane.f32.xlu0 %v2781
        %v2783 = vpop.xlane.xlu0 %2782
        %v2784 = vsel %vm912, %v2729, 0.0
        %2785 = vadd.xlane.f32.xlu0 %v2784
        %v2786 = vpop.xlane.xlu0 %2785
        %v2787 = vadd.f32 %v2741, %v2753
        %v2788 = vadd.f32 %v2744, %v2756
        %v2789 = vadd.f32 %v2747, %v2759
        %v2790 = vadd.f32 %v2750, %v2762
        %v2791 = vadd.f32 %v2787, %v2765
        %v2792 = vadd.f32 %v2788, %v2768
        %v2793 = vadd.f32 %v2789, %v2771
        %v2794 = vadd.f32 %v2790, %v2774
        %v2795 = vadd.f32 %v2791, %v2777
        %v2796 = vadd.f32 %v2792, %v2780
        %v2797 = vadd.f32 %v2793, %v2783
        %v2798 = vadd.f32 %v2794, %v2786
        %v2799 = vmul.f32 %v2795, 0.015625
        %v2800 = vmul.f32 %v2796, 0.015625
        %v2801 = vmul.f32 %v2797, 0.015625
        %v2802 = vmul.f32 %v2798, 0.015625
        %2804 = vset.pattern.permute.xlu0 0
        %2805 = vperm.xlu0 %2804, %v2799
        %v2806 = vpop.permute.xlu0 %2805
        %2809 = vset.pattern.permute.xlu0 0
        %2810 = vperm.xlu0 %2809, %v2800
        %v2811 = vpop.permute.xlu0 %2810
        %2814 = vset.pattern.permute.xlu0 0
        %2815 = vperm.xlu0 %2814, %v2801
        %v2816 = vpop.permute.xlu0 %2815
        %2819 = vset.pattern.permute.xlu0 0
        %2820 = vperm.xlu0 %2819, %v2802
        %v2821 = vpop.permute.xlu0 %2820
        %v2823 = vsub.f32 %v2692, %v2806
        %v2824 = vsub.f32 %v2694, %v2811
        %v2825 = vsub.f32 %v2697, %v2816
        %v2826 = vsub.f32 %v2699, %v2821
        %v2827 = vsub.f32 %v2702, %v2806
        %v2828 = vsub.f32 %v2704, %v2811
        %v2829 = vsub.f32 %v2707, %v2816
        %v2830 = vsub.f32 %v2709, %v2821
        %v2831 = vsub.f32 %v2712, %v2806
        %v2832 = vsub.f32 %v2714, %v2811
        %v2833 = vsub.f32 %v2717, %v2816
        %v2834 = vsub.f32 %v2719, %v2821
        %v2835 = vsub.f32 %v2722, %v2806
        %v2836 = vsub.f32 %v2724, %v2811
        %v2837 = vsub.f32 %v2727, %v2816
        %v2838 = vsub.f32 %v2729, %v2821
        %v2839 = vmul.f32 %v2823, %v2823
        %v2840 = vmul.f32 %v2824, %v2824
        %v2841 = vmul.f32 %v2825, %v2825
        %v2842 = vmul.f32 %v2826, %v2826
        %v2843 = vmul.f32 %v2827, %v2827
        %v2844 = vmul.f32 %v2828, %v2828
        %v2845 = vmul.f32 %v2829, %v2829
        %v2846 = vmul.f32 %v2830, %v2830
        %v2847 = vmul.f32 %v2831, %v2831
        %v2848 = vmul.f32 %v2832, %v2832
        %v2849 = vmul.f32 %v2833, %v2833
        %v2850 = vmul.f32 %v2834, %v2834
        %v2851 = vmul.f32 %v2835, %v2835
        %v2852 = vmul.f32 %v2836, %v2836
        %v2853 = vmul.f32 %v2837, %v2837
        %v2854 = vmul.f32 %v2838, %v2838
        %v2855 = vsel %vm912, %v2839, 0.0
        %2856 = vadd.xlane.f32.xlu0 %v2855
        %v2857 = vpop.xlane.xlu0 %2856
        %v2858 = vsel %vm912, %v2840, 0.0
        %2859 = vadd.xlane.f32.xlu0 %v2858
        %v2860 = vpop.xlane.xlu0 %2859
        %v2861 = vsel %vm912, %v2841, 0.0
        %2862 = vadd.xlane.f32.xlu0 %v2861
        %v2863 = vpop.xlane.xlu0 %2862
        %v2864 = vsel %vm912, %v2842, 0.0
        %2865 = vadd.xlane.f32.xlu0 %v2864
        %v2866 = vpop.xlane.xlu0 %2865
        %v2867 = vsel %vm912, %v2843, 0.0
        %2868 = vadd.xlane.f32.xlu0 %v2867
        %v2869 = vpop.xlane.xlu0 %2868
        %v2870 = vsel %vm912, %v2844, 0.0
        %2871 = vadd.xlane.f32.xlu0 %v2870
        %v2872 = vpop.xlane.xlu0 %2871
        %v2873 = vsel %vm912, %v2845, 0.0
        %2874 = vadd.xlane.f32.xlu0 %v2873
        %v2875 = vpop.xlane.xlu0 %2874
        %v2876 = vsel %vm912, %v2846, 0.0
        %2877 = vadd.xlane.f32.xlu0 %v2876
        %v2878 = vpop.xlane.xlu0 %2877
        %v2879 = vsel %vm912, %v2847, 0.0
        %2880 = vadd.xlane.f32.xlu0 %v2879
        %v2881 = vpop.xlane.xlu0 %2880
        %v2882 = vsel %vm912, %v2848, 0.0
        %2883 = vadd.xlane.f32.xlu0 %v2882
        %v2884 = vpop.xlane.xlu0 %2883
        %v2885 = vsel %vm912, %v2849, 0.0
        %2886 = vadd.xlane.f32.xlu0 %v2885
        %v2887 = vpop.xlane.xlu0 %2886
        %v2888 = vsel %vm912, %v2850, 0.0
        %2889 = vadd.xlane.f32.xlu0 %v2888
        %v2890 = vpop.xlane.xlu0 %2889
        %v2891 = vsel %vm912, %v2851, 0.0
        %2892 = vadd.xlane.f32.xlu0 %v2891
        %v2893 = vpop.xlane.xlu0 %2892
        %v2894 = vsel %vm912, %v2852, 0.0
        %2895 = vadd.xlane.f32.xlu0 %v2894
        %v2896 = vpop.xlane.xlu0 %2895
        %v2897 = vsel %vm912, %v2853, 0.0
        %2898 = vadd.xlane.f32.xlu0 %v2897
        %v2899 = vpop.xlane.xlu0 %2898
        %v2900 = vsel %vm912, %v2854, 0.0
        %2901 = vadd.xlane.f32.xlu0 %v2900
        %v2902 = vpop.xlane.xlu0 %2901
        %v2903 = vadd.f32 %v2857, %v2869
        %v2904 = vadd.f32 %v2860, %v2872
        %v2905 = vadd.f32 %v2863, %v2875
        %v2906 = vadd.f32 %v2866, %v2878
        %v2907 = vadd.f32 %v2903, %v2881
        %v2908 = vadd.f32 %v2904, %v2884
        %v2909 = vadd.f32 %v2905, %v2887
        %v2910 = vadd.f32 %v2906, %v2890
        %v2911 = vadd.f32 %v2907, %v2893
        %v2912 = vadd.f32 %v2908, %v2896
        %v2913 = vadd.f32 %v2909, %v2899
        %v2914 = vadd.f32 %v2910, %v2902
        %v2915 = vmul.f32 %v2911, 0.015625
        %v2916 = vmul.f32 %v2912, 0.015625
        %v2917 = vmul.f32 %v2913, 0.015625
        %v2918 = vmul.f32 %v2914, 0.015625
        %v2919 = vadd.f32 %v2915, 1e-05
        %v2920 = vadd.f32 %v2916, 1e-05
        %v2921 = vadd.f32 %v2917, 1e-05
        %v2922 = vadd.f32 %v2918, 1e-05
        %v2923 = vrsqrt.pop %v2919
        %v2924 = vmul.f32 %v2923, %v2919
        %v2925 = vmul.f32 %v2924, %v2923
        %v2926 = vmul.f32 0.5, %v2925
        %v2927 = vsub.f32 1.5, %v2926
        %v2928 = vmul.f32 %v2923, %v2927
        %vm2929 = vweird.f32 %v2919
        %vm2930 = vweird.f32 %v2923
        %vm2931 = vmor %vm2929, %vm2930
        %v2932 = vsel %vm2931, %v2923, %v2928
        %v2933 = vrsqrt.pop %v2920
        %v2934 = vmul.f32 %v2933, %v2920
        %v2935 = vmul.f32 %v2934, %v2933
        %v2936 = vmul.f32 0.5, %v2935
        %v2937 = vsub.f32 1.5, %v2936
        %v2938 = vmul.f32 %v2933, %v2937
        %vm2939 = vweird.f32 %v2920
        %vm2940 = vweird.f32 %v2933
        %vm2941 = vmor %vm2939, %vm2940
        %v2942 = vsel %vm2941, %v2933, %v2938
        %v2943 = vrsqrt.pop %v2921
        %v2944 = vmul.f32 %v2943, %v2921
        %v2945 = vmul.f32 %v2944, %v2943
        %v2946 = vmul.f32 0.5, %v2945
        %v2947 = vsub.f32 1.5, %v2946
        %v2948 = vmul.f32 %v2943, %v2947
        %vm2949 = vweird.f32 %v2921
        %vm2950 = vweird.f32 %v2943
        %vm2951 = vmor %vm2949, %vm2950
        %v2952 = vsel %vm2951, %v2943, %v2948
        %v2953 = vrsqrt.pop %v2922
        %v2954 = vmul.f32 %v2953, %v2922
        %v2955 = vmul.f32 %v2954, %v2953
        %v2956 = vmul.f32 0.5, %v2955
        %v2957 = vsub.f32 1.5, %v2956
        %v2958 = vmul.f32 %v2953, %v2957
        %vm2959 = vweird.f32 %v2922
        %vm2960 = vweird.f32 %v2953
        %vm2961 = vmor %vm2959, %vm2960
        %v2962 = vsel %vm2961, %v2953, %v2958
        %v2963 = vmul.f32 %v2731, %v2932
        %v2964 = vmul.f32 %v2732, %v2942
        %v2965 = vmul.f32 %v2733, %v2952
        %v2966 = vmul.f32 %v2734, %v2962
        %2968 = vset.pattern.permute.xlu0 0
        %2969 = vperm.xlu0 %2968, %v2963
        %v2970 = vpop.permute.xlu0 %2969
        %2973 = vset.pattern.permute.xlu0 0
        %2974 = vperm.xlu0 %2973, %v2964
        %v2975 = vpop.permute.xlu0 %2974
        %2978 = vset.pattern.permute.xlu0 0
        %2979 = vperm.xlu0 %2978, %v2965
        %v2980 = vpop.permute.xlu0 %2979
        %2983 = vset.pattern.permute.xlu0 0
        %2984 = vperm.xlu0 %2983, %v2966
        %v2985 = vpop.permute.xlu0 %2984
        %v2987 = vmul.f32 %v2823, %v2970
        %v2988 = vmul.f32 %v2824, %v2975
        %v2989 = vmul.f32 %v2825, %v2980
        %v2990 = vmul.f32 %v2826, %v2985
        %v2991 = vmul.f32 %v2827, %v2970
        %v2992 = vmul.f32 %v2828, %v2975
        %v2993 = vmul.f32 %v2829, %v2980
        %v2994 = vmul.f32 %v2830, %v2985
        %v2995 = vmul.f32 %v2831, %v2970
        %v2996 = vmul.f32 %v2832, %v2975
        %v2997 = vmul.f32 %v2833, %v2980
        %v2998 = vmul.f32 %v2834, %v2985
        %v2999 = vmul.f32 %v2835, %v2970
        %v3000 = vmul.f32 %v2836, %v2975
        %v3001 = vmul.f32 %v2837, %v2980
        %v3002 = vmul.f32 %v2838, %v2985
        %3004 = vset.pattern.permute.xlu0 0
        %3005 = vperm.xlu0 %3004, %v2735
        %v3006 = vpop.permute.xlu0 %3005
        %3009 = vset.pattern.permute.xlu0 0
        %3010 = vperm.xlu0 %3009, %v2736
        %v3011 = vpop.permute.xlu0 %3010
        %3014 = vset.pattern.permute.xlu0 0
        %3015 = vperm.xlu0 %3014, %v2737
        %v3016 = vpop.permute.xlu0 %3015
        %3019 = vset.pattern.permute.xlu0 0
        %3020 = vperm.xlu0 %3019, %v2738
        %v3021 = vpop.permute.xlu0 %3020
        %v3023 = vadd.f32 %v2987, %v3006
        %v3024 = vadd.f32 %v2988, %v3011
        %v3025 = vadd.f32 %v2989, %v3016
        %v3026 = vadd.f32 %v2990, %v3021
        %v3027 = vadd.f32 %v2991, %v3006
        %v3028 = vadd.f32 %v2992, %v3011
        %v3029 = vadd.f32 %v2993, %v3016
        %v3030 = vadd.f32 %v2994, %v3021
        %v3031 = vadd.f32 %v2995, %v3006
        %v3032 = vadd.f32 %v2996, %v3011
        %v3033 = vadd.f32 %v2997, %v3016
        %v3034 = vadd.f32 %v2998, %v3021
        %v3035 = vadd.f32 %v2999, %v3006
        %v3036 = vadd.f32 %v3000, %v3011
        %v3037 = vadd.f32 %v3001, %v3016
        %v3038 = vadd.f32 %v3002, %v3021
        %v3039 = vmax.f32 %v3023, 0.0
        %v3040 = vmax.f32 %v3024, 0.0
        %v3041 = vmax.f32 %v3025, 0.0
        %v3042 = vmax.f32 %v3026, 0.0
        %v3043 = vmax.f32 %v3027, 0.0
        %v3044 = vmax.f32 %v3028, 0.0
        %v3045 = vmax.f32 %v3029, 0.0
        %v3046 = vmax.f32 %v3030, 0.0
        %v3047 = vmax.f32 %v3031, 0.0
        %v3048 = vmax.f32 %v3032, 0.0
        %v3049 = vmax.f32 %v3033, 0.0
        %v3050 = vmax.f32 %v3034, 0.0
        %v3051 = vmax.f32 %v3035, 0.0
        %v3052 = vmax.f32 %v3036, 0.0
        %v3053 = vmax.f32 %v3037, 0.0
        %v3054 = vmax.f32 %v3038, 0.0
        %v3055 = vld [vmem:[#allocation14] sm:$0xf]
        %v3056 = vld [vmem:[#allocation14 + $0x4] sm:$0xf]
        %s3057 = scalar_lea.vmem [#allocation14], 8
        %v3058 = vld [vmem:[%s3057] sm:$0xf]
        %v3059 = vld [vmem:[%s3057 + $0x4] sm:$0xf]
        %v3060 = vpack.c.bf16 %v3040, %v3039
        %v3061 = vpack.c.bf16 %v3042, %v3041
        %v3062 = vpack.c.bf16 %v3044, %v3043
        %v3063 = vpack.c.bf16 %v3046, %v3045
        %v3064 = vpack.c.bf16 %v3048, %v3047
        %v3065 = vpack.c.bf16 %v3050, %v3049
        %v3066 = vpack.c.bf16 %v3052, %v3051
        %v3067 = vpack.c.bf16 %v3054, %v3053
        %v3070 = vunpack.c.l.b16 %v3058
        %v3071 = vunpack.c.l.b16 %v3059
        %v3072 = vpack.c.b16 %v3071, %v3070
        %v3075 = vsel %vm912, %v3062, 0
        %v3078 = vsel %vm912, %v3063, 0
        %3080 = vmatpush.bf16.msra.mxu0 0
        %3081 = vmatpush.bf16.msra.mxu0 0
        %3082 = vmatpush.bf16.msra.mxu0 0
        %3083 = vmatpush.bf16.msra.mxu0 0
        %3084 = vmatpush.bf16.msra.mxu0 0
        %3085 = vmatpush.bf16.msra.mxu0 0
        %3086 = vmatpush.bf16.msra.mxu0 0
        %3087 = vmatpush.bf16.msra.mxu0 %v3072
        %3088 = vmatmul.bf16.gmra.mxu0 %v3075
        %v3089 = vpop.f32.mrf.mxu0
        %v3090 = vadd.f32 0.0, %v3089
        %v3091 = vpop.f32.mrf.mxu0
        %v3092 = vadd.f32 0.0, %v3091
        %3093 = vmatmul.bf16.gmra.mxu0 %v3078
        %v3094 = vpop.f32.mrf.mxu0
        %v3095 = vadd.f32 0.0, %v3094
        %v3096 = vpop.f32.mrf.mxu0
        %v3097 = vadd.f32 0.0, %v3096
        %3098 = vdwg.mxu0
        %v3101 = vunpack.c.l.b16 %v3055
        %v3102 = vunpack.c.l.b16 %v3056
        %v3103 = vpack.c.b16 %v3102, %v3101
        %v3106 = vsel %vm912, %v3060, 0
        %v3109 = vsel %vm912, %v3061, 0
        %3111 = vmatpush.bf16.msra.mxu0 0
        %3112 = vmatpush.bf16.msra.mxu0 0
        %3113 = vmatpush.bf16.msra.mxu0 0
        %3114 = vmatpush.bf16.msra.mxu0 0
        %3115 = vmatpush.bf16.msra.mxu0 0
        %3116 = vmatpush.bf16.msra.mxu0 0
        %3117 = vmatpush.bf16.msra.mxu0 0
        %3118 = vmatpush.bf16.msra.mxu0 %v3103
        %3119 = vmatmul.bf16.gmra.mxu0 %v3106
        %v3120 = vpop.f32.mrf.mxu0
        %v3121 = vadd.f32 %v3090, %v3120
        %v3122 = vpop.f32.mrf.mxu0
        %v3123 = vadd.f32 %v3092, %v3122
        %3124 = vmatmul.bf16.gmra.mxu0 %v3109
        %v3125 = vpop.f32.mrf.mxu0
        %v3126 = vadd.f32 %v3095, %v3125
        %v3127 = vpop.f32.mrf.mxu0
        %v3128 = vadd.f32 %v3097, %v3127
        %3129 = vdwg.mxu0
        %v3130 = vpack.c.bf16 %v3121, %v3121
        %v3131 = vpack.c.bf16 %v3123, %v3123
        %v3132 = vpack.c.bf16 %v3126, %v3126
        %v3133 = vpack.c.bf16 %v3128, %v3128
        %v3135 = vsel %vm912, %v3066, 0
        %v3138 = vsel %vm912, %v3067, 0
        %3140 = vmatpush.bf16.msra.mxu0 0
        %3141 = vmatpush.bf16.msra.mxu0 0
        %3142 = vmatpush.bf16.msra.mxu0 0
        %3143 = vmatpush.bf16.msra.mxu0 0
        %3144 = vmatpush.bf16.msra.mxu0 0
        %3145 = vmatpush.bf16.msra.mxu0 0
        %3146 = vmatpush.bf16.msra.mxu0 0
        %3147 = vmatpush.bf16.msra.mxu0 %v3072
        %3148 = vmatmul.bf16.gmra.mxu0 %v3135
        %v3149 = vpop.f32.mrf.mxu0
        %v3150 = vadd.f32 0.0, %v3149
        %v3151 = vpop.f32.mrf.mxu0
        %v3152 = vadd.f32 0.0, %v3151
        %3153 = vmatmul.bf16.gmra.mxu0 %v3138
        %v3154 = vpop.f32.mrf.mxu0
        %v3155 = vadd.f32 0.0, %v3154
        %v3156 = vpop.f32.mrf.mxu0
        %v3157 = vadd.f32 0.0, %v3156
        %3158 = vdwg.mxu0
        %v3160 = vsel %vm912, %v3064, 0
        %v3163 = vsel %vm912, %v3065, 0
        %3165 = vmatpush.bf16.msra.mxu0 0
        %3166 = vmatpush.bf16.msra.mxu0 0
        %3167 = vmatpush.bf16.msra.mxu0 0
        %3168 = vmatpush.bf16.msra.mxu0 0
        %3169 = vmatpush.bf16.msra.mxu0 0
        %3170 = vmatpush.bf16.msra.mxu0 0
        %3171 = vmatpush.bf16.msra.mxu0 0
        %3172 = vmatpush.bf16.msra.mxu0 %v3103
        %3173 = vmatmul.bf16.gmra.mxu0 %v3160
        %v3174 = vpop.f32.mrf.mxu0
        %v3175 = vadd.f32 %v3150, %v3174
        %v3176 = vpop.f32.mrf.mxu0
        %v3177 = vadd.f32 %v3152, %v3176
        %3178 = vmatmul.bf16.gmra.mxu0 %v3163
        %v3179 = vpop.f32.mrf.mxu0
        %v3180 = vadd.f32 %v3155, %v3179
        %v3181 = vpop.f32.mrf.mxu0
        %v3182 = vadd.f32 %v3157, %v3181
        %3183 = vdwg.mxu0
        %v3184 = vpack.c.bf16 %v3175, %v3175
        %v3185 = vpack.c.bf16 %v3177, %v3177
        %v3186 = vpack.c.bf16 %v3180, %v3180
        %v3187 = vpack.c.bf16 %v3182, %v3182
        %vm3188 = vcmask 68608
        %3189 = vst.msk [vmem:[#allocation4] sm:$0xf] %vm3188, 0
        %3190 = vst.msk [vmem:[#allocation4 + $0x4] sm:$0xf] %vm3188, 0
        %3191 = vst.msk [vmem:[#allocation4 + $0x8] sm:$0xf] %vm3188, 0
        %3192 = vst.msk [vmem:[#allocation4 + $0xc] sm:$0xf] %vm3188, 0
        %vm3193 = vcmask 667208
        %3194 = vst.msk [vmem:[#allocation4] sm:$0xf] %vm3193, 0
        %3195 = vst.msk [vmem:[#allocation4 + $0x4] sm:$0xf] %vm3193, 0
        %3196 = vst.msk [vmem:[#allocation4 + $0x8] sm:$0xf] %vm3193, 0
        %3197 = vst.msk [vmem:[#allocation4 + $0xc] sm:$0xf] %vm3193, 0
        %3202 = vrot.lane.b32.xlu0 %v3130, 9
        %v3203 = vpop.permute.xlu0 %3202
        %3204 = vrot.lane.b32.xlu0 %v3131, 9
        %v3205 = vpop.permute.xlu0 %3204
        %3206 = vrot.lane.b32.xlu0 %v3132, 9
        %v3207 = vpop.permute.xlu0 %3206
        %3208 = vrot.lane.b32.xlu0 %v3133, 9
        %v3209 = vpop.permute.xlu0 %3208
        %vm3214 = vcmask 134216
        %3215 = vst.msk [vmem:[#allocation4] sm:$0xf] %vm3214, %v3203
        %3216 = vst.msk [vmem:[#allocation4 + $0x4] sm:$0xf] %vm3214, %v3205
        %3217 = vst.msk [vmem:[#allocation4 + $0x8] sm:$0xf] %vm3214, %v3207
        %3218 = vst.msk [vmem:[#allocation4 + $0xc] sm:$0xf] %vm3214, %v3209
        %3223 = vrot.lane.b32.xlu0 %v3184, 17
        %v3224 = vpop.permute.xlu0 %3223
        %3225 = vrot.lane.b32.xlu0 %v3185, 17
        %v3226 = vpop.permute.xlu0 %3225
        %3227 = vrot.lane.b32.xlu0 %v3186, 17
        %v3228 = vpop.permute.xlu0 %3227
        %3229 = vrot.lane.b32.xlu0 %v3187, 17
        %v3230 = vpop.permute.xlu0 %3229
        %vm3235 = vcmask 199816
        %3236 = vst.msk [vmem:[#allocation4] sm:$0xf] %vm3235, %v3224
        %3237 = vst.msk [vmem:[#allocation4 + $0x4] sm:$0xf] %vm3235, %v3226
        %3238 = vst.msk [vmem:[#allocation4 + $0x8] sm:$0xf] %vm3235, %v3228
        %3239 = vst.msk [vmem:[#allocation4 + $0xc] sm:$0xf] %vm3235, %v3230
        %3240 = vrot.lane.b32.xlu0 %v3130, 17
        %v3241 = vpop.permute.xlu0 %3240
        %3242 = vrot.lane.b32.xlu0 %v3131, 17
        %v3243 = vpop.permute.xlu0 %3242
        %3244 = vrot.lane.b32.xlu0 %v3132, 17
        %v3245 = vpop.permute.xlu0 %3244
        %3246 = vrot.lane.b32.xlu0 %v3133, 17
        %v3247 = vpop.permute.xlu0 %3246
        %vm3252 = vcmask 265416
        %3253 = vst.msk [vmem:[#allocation4] sm:$0xf] %vm3252, %v3241
        %3254 = vst.msk [vmem:[#allocation4 + $0x4] sm:$0xf] %vm3252, %v3243
        %3255 = vst.msk [vmem:[#allocation4 + $0x8] sm:$0xf] %vm3252, %v3245
        %3256 = vst.msk [vmem:[#allocation4 + $0xc] sm:$0xf] %vm3252, %v3247
        %3257 = vrot.lane.b32.xlu0 %v3184, 25
        %v3258 = vpop.permute.xlu0 %3257
        %3259 = vrot.lane.b32.xlu0 %v3185, 25
        %v3260 = vpop.permute.xlu0 %3259
        %3261 = vrot.lane.b32.xlu0 %v3186, 25
        %v3262 = vpop.permute.xlu0 %3261
        %3263 = vrot.lane.b32.xlu0 %v3187, 25
        %v3264 = vpop.permute.xlu0 %3263
        %vm3269 = vcmask 331016
        %3270 = vst.msk [vmem:[#allocation4] sm:$0xf] %vm3269, %v3258
        %3271 = vst.msk [vmem:[#allocation4 + $0x4] sm:$0xf] %vm3269, %v3260
        %3272 = vst.msk [vmem:[#allocation4 + $0x8] sm:$0xf] %vm3269, %v3262
        %3273 = vst.msk [vmem:[#allocation4 + $0xc] sm:$0xf] %vm3269, %v3264
        %3274 = vrot.lane.b32.xlu0 %v3130, 25
        %v3275 = vpop.permute.xlu0 %3274
        %3276 = vrot.lane.b32.xlu0 %v3131, 25
        %v3277 = vpop.permute.xlu0 %3276
        %3278 = vrot.lane.b32.xlu0 %v3132, 25
        %v3279 = vpop.permute.xlu0 %3278
        %3280 = vrot.lane.b32.xlu0 %v3133, 25
        %v3281 = vpop.permute.xlu0 %3280
        %vm3286 = vcmask 396616
        %3287 = vst.msk [vmem:[#allocation4] sm:$0xf] %vm3286, %v3275
        %3288 = vst.msk [vmem:[#allocation4 + $0x4] sm:$0xf] %vm3286, %v3277
        %3289 = vst.msk [vmem:[#allocation4 + $0x8] sm:$0xf] %vm3286, %v3279
        %3290 = vst.msk [vmem:[#allocation4 + $0xc] sm:$0xf] %vm3286, %v3281
        %3291 = vrot.lane.b32.xlu0 %v3184, 33
        %v3292 = vpop.permute.xlu0 %3291
        %3293 = vrot.lane.b32.xlu0 %v3185, 33
        %v3294 = vpop.permute.xlu0 %3293
        %3295 = vrot.lane.b32.xlu0 %v3186, 33
        %v3296 = vpop.permute.xlu0 %3295
        %3297 = vrot.lane.b32.xlu0 %v3187, 33
        %v3298 = vpop.permute.xlu0 %3297
        %vm3303 = vcmask 462216
        %3304 = vst.msk [vmem:[#allocation4] sm:$0xf] %vm3303, %v3292
        %3305 = vst.msk [vmem:[#allocation4 + $0x4] sm:$0xf] %vm3303, %v3294
        %3306 = vst.msk [vmem:[#allocation4 + $0x8] sm:$0xf] %vm3303, %v3296
        %3307 = vst.msk [vmem:[#allocation4 + $0xc] sm:$0xf] %vm3303, %v3298
        %3308 = vrot.lane.b32.xlu0 %v3130, 33
        %v3309 = vpop.permute.xlu0 %3308
        %3310 = vrot.lane.b32.xlu0 %v3131, 33
        %v3311 = vpop.permute.xlu0 %3310
        %3312 = vrot.lane.b32.xlu0 %v3132, 33
        %v3313 = vpop.permute.xlu0 %3312
        %3314 = vrot.lane.b32.xlu0 %v3133, 33
        %v3315 = vpop.permute.xlu0 %3314
        %vm3320 = vcmask 527816
        %3321 = vst.msk [vmem:[#allocation4] sm:$0xf] %vm3320, %v3309
        %3322 = vst.msk [vmem:[#allocation4 + $0x4] sm:$0xf] %vm3320, %v3311
        %3323 = vst.msk [vmem:[#allocation4 + $0x8] sm:$0xf] %vm3320, %v3313
        %3324 = vst.msk [vmem:[#allocation4 + $0xc] sm:$0xf] %vm3320, %v3315
        %3325 = vrot.lane.b32.xlu0 %v3184, 41
        %v3326 = vpop.permute.xlu0 %3325
        %3327 = vrot.lane.b32.xlu0 %v3185, 41
        %v3328 = vpop.permute.xlu0 %3327
        %3329 = vrot.lane.b32.xlu0 %v3186, 41
        %v3330 = vpop.permute.xlu0 %3329
        %3331 = vrot.lane.b32.xlu0 %v3187, 41
        %v3332 = vpop.permute.xlu0 %3331
        %vm3337 = vcmask 593416
        %3338 = vst.msk [vmem:[#allocation4] sm:$0xf] %vm3337, %v3326
        %3339 = vst.msk [vmem:[#allocation4 + $0x4] sm:$0xf] %vm3337, %v3328
        %3340 = vst.msk [vmem:[#allocation4 + $0x8] sm:$0xf] %vm3337, %v3330
        %3341 = vst.msk [vmem:[#allocation4 + $0xc] sm:$0xf] %vm3337, %v3332
        %v3342 = vand.u32 %v1424, 7
        %vm3343 = vcmp.ge.s32.totalorder %v3342, 1
        %vm3344 = vcmp.le.s32.totalorder %v3342, 6
        %v3345 = vld [vmem:[#allocation4] sm:$0xf]
        %v3346 = vld [vmem:[#allocation4 + $0x4] sm:$0xf]
        %v3347 = vld [vmem:[#allocation4 + $0x8] sm:$0xf]
        %v3348 = vld [vmem:[#allocation4 + $0xc] sm:$0xf]
        %vm3349 = vmpackc.low %vm3343, %vm3343
        %v3350 = vsel %vm3349, %v3345, 0
        %v3351 = vsel %vm3349, %v3346, 0
        %v3352 = vsel %vm3349, %v3347, 0
        %v3353 = vsel %vm3349, %v3348, 0
        %vm3354 = vcmask 519168
        %3355 = vst.msk [vmem:[#allocation5] sm:$0xf] %vm3354, %v3350
        %3356 = vst.msk [vmem:[#allocation5 + $0x4] sm:$0xf] %vm3354, %v3351
        %3357 = vst.msk [vmem:[#allocation5 + $0x8] sm:$0xf] %vm3354, %v3352
        %3358 = vst.msk [vmem:[#allocation5 + $0xc] sm:$0xf] %vm3354, %v3353
        %v3359 = vld [vmem:[#allocation4] sm:$0xf]
        %v3360 = vld [vmem:[#allocation4 + $0x4] sm:$0xf]
        %v3361 = vld [vmem:[#allocation4 + $0x8] sm:$0xf]
        %v3362 = vld [vmem:[#allocation4 + $0xc] sm:$0xf]
        %3367 = vrot.lane.b32.xlu0 %v3359, 127
        %v3368 = vpop.permute.xlu0 %3367
        %3369 = vrot.lane.b32.xlu0 %v3360, 127
        %v3370 = vpop.permute.xlu0 %3369
        %3371 = vrot.lane.b32.xlu0 %v3361, 127
        %v3372 = vpop.permute.xlu0 %3371
        %3373 = vrot.lane.b32.xlu0 %v3362, 127
        %v3374 = vpop.permute.xlu0 %3373
        %3379 = vst.msk [vmem:[#allocation5 + $0x10] sm:$0xf] %vm3354, %v3368
        %3380 = vst.msk [vmem:[#allocation5 + $0x14] sm:$0xf] %vm3354, %v3370
        %3381 = vst.msk [vmem:[#allocation5 + $0x18] sm:$0xf] %vm3354, %v3372
        %3382 = vst.msk [vmem:[#allocation5 + $0x1c] sm:$0xf] %vm3354, %v3374
        %v3383 = vld [vmem:[#allocation4] sm:$0xf]
        %v3384 = vld [vmem:[#allocation4 + $0x4] sm:$0xf]
        %v3385 = vld [vmem:[#allocation4 + $0x8] sm:$0xf]
        %v3386 = vld [vmem:[#allocation4 + $0xc] sm:$0xf]
        %vm3387 = vmpackc.low %vm3344, %vm3344
        %v3388 = vsel %vm3387, 65537, 0
        %3389 = vrot.lane.b32.xlu0 %v3388, 2
        %v3390 = vpop.permute.xlu0 %3389
        %v3391 = vunpack.c.l.b16 %v3390
        %v3392 = vunpack.c.h.b16 %v3390
        %v3393 = vunpack.c.l.b16 0
        %v3394 = vunpack.c.h.b16 0
        %vm3395 = vcmp.ne.s32.totalorder %v3391, %v3393
        %vm3396 = vcmp.ne.s32.totalorder %v3392, %v3394
        %vm3397 = vmpackc.low %vm3396, %vm3395
        %v3398 = vsel %vm3397, %v3383, 0
        %v3399 = vsel %vm3397, %v3384, 0
        %v3400 = vsel %vm3397, %v3385, 0
        %v3401 = vsel %vm3397, %v3386, 0
        %3406 = vrot.lane.b32.xlu0 %v3398, 126
        %v3407 = vpop.permute.xlu0 %3406
        %3408 = vrot.lane.b32.xlu0 %v3399, 126
        %v3409 = vpop.permute.xlu0 %3408
        %3410 = vrot.lane.b32.xlu0 %v3400, 126
        %v3411 = vpop.permute.xlu0 %3410
        %3412 = vrot.lane.b32.xlu0 %v3401, 126
        %v3413 = vpop.permute.xlu0 %3412
        %3418 = vst.msk [vmem:[#allocation5 + $0x20] sm:$0xf] %vm3354, %v3407
        %3419 = vst.msk [vmem:[#allocation5 + $0x24] sm:$0xf] %vm3354, %v3409
        %3420 = vst.msk [vmem:[#allocation5 + $0x28] sm:$0xf] %vm3354, %v3411
        %3421 = vst.msk [vmem:[#allocation5 + $0x2c] sm:$0xf] %vm3354, %v3413
        %v3422 = vld [vmem:[#allocation4] sm:$0xf]
        %v3423 = vld [vmem:[#allocation4 + $0x4] sm:$0xf]
        %v3424 = vld [vmem:[#allocation4 + $0x8] sm:$0xf]
        %v3425 = vld [vmem:[#allocation4 + $0xc] sm:$0xf]
        %v3426 = vsel %vm3349, 65537, 0
        %3427 = vrot.lane.b32.xlu0 %v3426, 8
        %v3428 = vpop.permute.xlu0 %3427
        %v3429 = vunpack.c.l.b16 %v3428
        %v3430 = vunpack.c.h.b16 %v3428
        %v3431 = vunpack.c.l.b16 0
        %v3432 = vunpack.c.h.b16 0
        %vm3433 = vcmp.ne.s32.totalorder %v3429, %v3431
        %vm3434 = vcmp.ne.s32.totalorder %v3430, %v3432
        %vm3435 = vmpackc.low %vm3434, %vm3433
        %v3436 = vsel %vm3435, %v3422, 0
        %v3437 = vsel %vm3435, %v3423, 0
        %v3438 = vsel %vm3435, %v3424, 0
        %v3439 = vsel %vm3435, %v3425, 0
        %3444 = vrot.lane.b32.xlu0 %v3436, 120
        %v3445 = vpop.permute.xlu0 %3444
        %3446 = vrot.lane.b32.xlu0 %v3437, 120
        %v3447 = vpop.permute.xlu0 %3446
        %3448 = vrot.lane.b32.xlu0 %v3438, 120
        %v3449 = vpop.permute.xlu0 %3448
        %3450 = vrot.lane.b32.xlu0 %v3439, 120
        %v3451 = vpop.permute.xlu0 %3450
        %3456 = vst.msk [vmem:[#allocation5 + $0x30] sm:$0xf] %vm3354, %v3445
        %3457 = vst.msk [vmem:[#allocation5 + $0x34] sm:$0xf] %vm3354, %v3447
        %3458 = vst.msk [vmem:[#allocation5 + $0x38] sm:$0xf] %vm3354, %v3449
        %3459 = vst.msk [vmem:[#allocation5 + $0x3c] sm:$0xf] %vm3354, %v3451
        %v3460 = vld [vmem:[#allocation4] sm:$0xf]
        %v3461 = vld [vmem:[#allocation4 + $0x4] sm:$0xf]
        %v3462 = vld [vmem:[#allocation4 + $0x8] sm:$0xf]
        %v3463 = vld [vmem:[#allocation4 + $0xc] sm:$0xf]
        %3468 = vrot.lane.b32.xlu0 %v3460, 119
        %v3469 = vpop.permute.xlu0 %3468
        %3470 = vrot.lane.b32.xlu0 %v3461, 119
        %v3471 = vpop.permute.xlu0 %3470
        %3472 = vrot.lane.b32.xlu0 %v3462, 119
        %v3473 = vpop.permute.xlu0 %3472
        %3474 = vrot.lane.b32.xlu0 %v3463, 119
        %v3475 = vpop.permute.xlu0 %3474
        %3480 = vst.msk [vmem:[#allocation5 + $0x40] sm:$0xf] %vm3354, %v3469
        %3481 = vst.msk [vmem:[#allocation5 + $0x44] sm:$0xf] %vm3354, %v3471
        %3482 = vst.msk [vmem:[#allocation5 + $0x48] sm:$0xf] %vm3354, %v3473
        %3483 = vst.msk [vmem:[#allocation5 + $0x4c] sm:$0xf] %vm3354, %v3475
        %v3484 = vld [vmem:[#allocation4] sm:$0xf]
        %v3485 = vld [vmem:[#allocation4 + $0x4] sm:$0xf]
        %v3486 = vld [vmem:[#allocation4 + $0x8] sm:$0xf]
        %v3487 = vld [vmem:[#allocation4 + $0xc] sm:$0xf]
        %3488 = vrot.lane.b32.xlu0 %v3388, 10
        %v3489 = vpop.permute.xlu0 %3488
        %v3490 = vunpack.c.l.b16 %v3489
        %v3491 = vunpack.c.h.b16 %v3489
        %v3492 = vunpack.c.l.b16 0
        %v3493 = vunpack.c.h.b16 0
        %vm3494 = vcmp.ne.s32.totalorder %v3490, %v3492
        %vm3495 = vcmp.ne.s32.totalorder %v3491, %v3493
        %vm3496 = vmpackc.low %vm3495, %vm3494
        %v3497 = vsel %vm3496, %v3484, 0
        %v3498 = vsel %vm3496, %v3485, 0
        %v3499 = vsel %vm3496, %v3486, 0
        %v3500 = vsel %vm3496, %v3487, 0
        %3505 = vrot.lane.b32.xlu0 %v3497, 118
        %v3506 = vpop.permute.xlu0 %3505
        %3507 = vrot.lane.b32.xlu0 %v3498, 118
        %v3508 = vpop.permute.xlu0 %3507
        %3509 = vrot.lane.b32.xlu0 %v3499, 118
        %v3510 = vpop.permute.xlu0 %3509
        %3511 = vrot.lane.b32.xlu0 %v3500, 118
        %v3512 = vpop.permute.xlu0 %3511
        %3517 = vst.msk [vmem:[#allocation5 + $0x50] sm:$0xf] %vm3354, %v3506
        %3518 = vst.msk [vmem:[#allocation5 + $0x54] sm:$0xf] %vm3354, %v3508
        %3519 = vst.msk [vmem:[#allocation5 + $0x58] sm:$0xf] %vm3354, %v3510
        %3520 = vst.msk [vmem:[#allocation5 + $0x5c] sm:$0xf] %vm3354, %v3512
        %v3521 = vld [vmem:[#allocation4] sm:$0xf]
        %v3522 = vld [vmem:[#allocation4 + $0x4] sm:$0xf]
        %v3523 = vld [vmem:[#allocation4 + $0x8] sm:$0xf]
        %v3524 = vld [vmem:[#allocation4 + $0xc] sm:$0xf]
        %3525 = vrot.lane.b32.xlu0 %v3426, 16
        %v3526 = vpop.permute.xlu0 %3525
        %v3527 = vunpack.c.l.b16 %v3526
        %v3528 = vunpack.c.h.b16 %v3526
        %v3529 = vunpack.c.l.b16 0
        %v3530 = vunpack.c.h.b16 0
        %vm3531 = vcmp.ne.s32.totalorder %v3527, %v3529
        %vm3532 = vcmp.ne.s32.totalorder %v3528, %v3530
        %vm3533 = vmpackc.low %vm3532, %vm3531
        %v3534 = vsel %vm3533, %v3521, 0
        %v3535 = vsel %vm3533, %v3522, 0
        %v3536 = vsel %vm3533, %v3523, 0
        %v3537 = vsel %vm3533, %v3524, 0
        %3542 = vrot.lane.b32.xlu0 %v3534, 112
        %v3543 = vpop.permute.xlu0 %3542
        %3544 = vrot.lane.b32.xlu0 %v3535, 112
        %v3545 = vpop.permute.xlu0 %3544
        %3546 = vrot.lane.b32.xlu0 %v3536, 112
        %v3547 = vpop.permute.xlu0 %3546
        %3548 = vrot.lane.b32.xlu0 %v3537, 112
        %v3549 = vpop.permute.xlu0 %3548
        %3554 = vst.msk [vmem:[#allocation5 + $0x60] sm:$0xf] %vm3354, %v3543
        %3555 = vst.msk [vmem:[#allocation5 + $0x64] sm:$0xf] %vm3354, %v3545
        %3556 = vst.msk [vmem:[#allocation5 + $0x68] sm:$0xf] %vm3354, %v3547
        %3557 = vst.msk [vmem:[#allocation5 + $0x6c] sm:$0xf] %vm3354, %v3549
        %v3558 = vld [vmem:[#allocation4] sm:$0xf]
        %v3559 = vld [vmem:[#allocation4 + $0x4] sm:$0xf]
        %v3560 = vld [vmem:[#allocation4 + $0x8] sm:$0xf]
        %v3561 = vld [vmem:[#allocation4 + $0xc] sm:$0xf]
        %3566 = vrot.lane.b32.xlu0 %v3558, 111
        %v3567 = vpop.permute.xlu0 %3566
        %3568 = vrot.lane.b32.xlu0 %v3559, 111
        %v3569 = vpop.permute.xlu0 %3568
        %3570 = vrot.lane.b32.xlu0 %v3560, 111
        %v3571 = vpop.permute.xlu0 %3570
        %3572 = vrot.lane.b32.xlu0 %v3561, 111
        %v3573 = vpop.permute.xlu0 %3572
        %3578 = vst.msk [vmem:[#allocation5 + $0x70] sm:$0xf] %vm3354, %v3567
        %3579 = vst.msk [vmem:[#allocation5 + $0x74] sm:$0xf] %vm3354, %v3569
        %3580 = vst.msk [vmem:[#allocation5 + $0x78] sm:$0xf] %vm3354, %v3571
        %3581 = vst.msk [vmem:[#allocation5 + $0x7c] sm:$0xf] %vm3354, %v3573
        %v3582 = vld [vmem:[#allocation4] sm:$0xf]
        %v3583 = vld [vmem:[#allocation4 + $0x4] sm:$0xf]
        %v3584 = vld [vmem:[#allocation4 + $0x8] sm:$0xf]
        %v3585 = vld [vmem:[#allocation4 + $0xc] sm:$0xf]
        %3586 = vrot.lane.b32.xlu0 %v3388, 18
        %v3587 = vpop.permute.xlu0 %3586
        %v3588 = vunpack.c.l.b16 %v3587
        %v3589 = vunpack.c.h.b16 %v3587
        %v3590 = vunpack.c.l.b16 0
        %v3591 = vunpack.c.h.b16 0
        %vm3592 = vcmp.ne.s32.totalorder %v3588, %v3590
        %vm3593 = vcmp.ne.s32.totalorder %v3589, %v3591
        %vm3594 = vmpackc.low %vm3593, %vm3592
        %v3595 = vsel %vm3594, %v3582, 0
        %v3596 = vsel %vm3594, %v3583, 0
        %v3597 = vsel %vm3594, %v3584, 0
        %v3598 = vsel %vm3594, %v3585, 0
        %3603 = vrot.lane.b32.xlu0 %v3595, 110
        %v3604 = vpop.permute.xlu0 %3603
        %3605 = vrot.lane.b32.xlu0 %v3596, 110
        %v3606 = vpop.permute.xlu0 %3605
        %3607 = vrot.lane.b32.xlu0 %v3597, 110
        %v3608 = vpop.permute.xlu0 %3607
        %3609 = vrot.lane.b32.xlu0 %v3598, 110
        %v3610 = vpop.permute.xlu0 %3609
        %3615 = vst.msk [vmem:[#allocation5 + $0x80] sm:$0xf] %vm3354, %v3604
        %3616 = vst.msk [vmem:[#allocation5 + $0x84] sm:$0xf] %vm3354, %v3606
        %3617 = vst.msk [vmem:[#allocation5 + $0x88] sm:$0xf] %vm3354, %v3608
        %3618 = vst.msk [vmem:[#allocation5 + $0x8c] sm:$0xf] %vm3354, %v3610
        %v3619 = vld [vmem:[#allocation16] sm:$0xff]
        %v3620 = vld [vmem:[#allocation16 + $0x8] sm:$0xf]
        %v3621 = vld [vmem:[#allocation16 + $0xc] sm:$0xff]
        %v3622 = vld [vmem:[#allocation16 + $0x14] sm:$0xf]
        %v3623 = vld [vmem:[#allocation16 + $0x18] sm:$0xff]
        %v3624 = vld [vmem:[#allocation16 + $0x20] sm:$0xf]
        %v3625 = vld [vmem:[#allocation16 + $0x24] sm:$0xff]
        %v3626 = vld [vmem:[#allocation16 + $0x2c] sm:$0xf]
        %v3627 = vld [vmem:[#allocation16 + $0x30] sm:$0xff]
        %v3628 = vld [vmem:[#allocation16 + $0x38] sm:$0xf]
        %v3629 = vld [vmem:[#allocation16 + $0x3c] sm:$0xff]
        %v3630 = vld [vmem:[#allocation16 + $0x44] sm:$0xf]
        %v3631 = vld [vmem:[#allocation16 + $0x48] sm:$0xff]
        %v3632 = vld [vmem:[#allocation16 + $0x50] sm:$0xf]
        %v3633 = vld [vmem:[#allocation16 + $0x54] sm:$0xff]
        %v3634 = vld [vmem:[#allocation16 + $0x5c] sm:$0xf]
        %v3635 = vld [vmem:[#allocation5] sm:$0xf]
        %v3636 = vld [vmem:[#allocation5 + $0x4] sm:$0xf]
        %v3637 = vld [vmem:[#allocation5 + $0x8] sm:$0xf]
        %v3638 = vld [vmem:[#allocation5 + $0xc] sm:$0xf]
        %v3639 = vld [vmem:[#allocation5 + $0x10] sm:$0xf]
        %v3640 = vld [vmem:[#allocation5 + $0x14] sm:$0xf]
        %v3641 = vld [vmem:[#allocation5 + $0x18] sm:$0xf]
        %v3642 = vld [vmem:[#allocation5 + $0x1c] sm:$0xf]
        %v3643 = vld [vmem:[#allocation5 + $0x20] sm:$0xf]
        %v3644 = vld [vmem:[#allocation5 + $0x24] sm:$0xf]
        %v3645 = vld [vmem:[#allocation5 + $0x28] sm:$0xf]
        %v3646 = vld [vmem:[#allocation5 + $0x2c] sm:$0xf]
        %v3647 = vld [vmem:[#allocation5 + $0x30] sm:$0xf]
        %v3648 = vld [vmem:[#allocation5 + $0x34] sm:$0xf]
        %v3649 = vld [vmem:[#allocation5 + $0x38] sm:$0xf]
        %v3650 = vld [vmem:[#allocation5 + $0x3c] sm:$0xf]
        %v3651 = vld [vmem:[#allocation5 + $0x40] sm:$0xf]
        %v3652 = vld [vmem:[#allocation5 + $0x44] sm:$0xf]
        %v3653 = vld [vmem:[#allocation5 + $0x48] sm:$0xf]
        %v3654 = vld [vmem:[#allocation5 + $0x4c] sm:$0xf]
        %v3655 = vld [vmem:[#allocation5 + $0x50] sm:$0xf]
        %v3656 = vld [vmem:[#allocation5 + $0x54] sm:$0xf]
        %v3657 = vld [vmem:[#allocation5 + $0x58] sm:$0xf]
        %v3658 = vld [vmem:[#allocation5 + $0x5c] sm:$0xf]
        %v3659 = vld [vmem:[#allocation5 + $0x60] sm:$0xf]
        %v3660 = vld [vmem:[#allocation5 + $0x64] sm:$0xf]
        %v3661 = vld [vmem:[#allocation5 + $0x68] sm:$0xf]
        %v3662 = vld [vmem:[#allocation5 + $0x6c] sm:$0xf]
        %v3663 = vld [vmem:[#allocation5 + $0x70] sm:$0xf]
        %v3664 = vld [vmem:[#allocation5 + $0x74] sm:$0xf]
        %v3665 = vld [vmem:[#allocation5 + $0x78] sm:$0xf]
        %v3666 = vld [vmem:[#allocation5 + $0x7c] sm:$0xf]
        %v3667 = vld [vmem:[#allocation5 + $0x80] sm:$0xf]
        %v3668 = vld [vmem:[#allocation5 + $0x84] sm:$0xf]
        %v3669 = vld [vmem:[#allocation5 + $0x88] sm:$0xf]
        %v3670 = vld [vmem:[#allocation5 + $0x8c] sm:$0xf]
        %v3687 = vunpack.c.l.b16 %v3619
        %v3688 = vunpack.c.h.b16 %v3619
        %v3689 = vunpack.c.l.b16 %v3620
        %v3690 = vunpack.c.l.b16 %v3621
        %v3691 = vunpack.c.h.b16 %v3621
        %v3692 = vunpack.c.l.b16 %v3622
        %v3693 = vunpack.c.l.b16 %v3623
        %v3694 = vunpack.c.h.b16 %v3623
        %v3695 = vunpack.c.l.b16 %v3624
        %v3696 = vunpack.c.l.b16 %v3625
        %v3697 = vunpack.c.h.b16 %v3625
        %v3698 = vunpack.c.l.b16 %v3626
        %v3699 = vunpack.c.l.b16 %v3627
        %v3700 = vunpack.c.h.b16 %v3627
        %v3701 = vunpack.c.l.b16 %v3628
        %v3702 = vunpack.c.l.b16 %v3629
        %v3703 = vunpack.c.h.b16 %v3629
        %v3704 = vunpack.c.l.b16 %v3630
        %v3705 = vunpack.c.l.b16 %v3631
        %v3706 = vunpack.c.h.b16 %v3631
        %v3707 = vunpack.c.l.b16 %v3632
        %v3708 = vunpack.c.l.b16 %v3633
        %v3709 = vunpack.c.h.b16 %v3633
        %v3710 = vunpack.c.l.b16 %v3634
        %v3711 = vpack.c.b16 %v3690, %v3687
        %v3712 = vpack.c.b16 %v3691, %v3688
        %v3713 = vpack.c.b16 %v3692, %v3689
        %v3714 = vpack.c.b16 %v3696, %v3693
        %v3715 = vpack.c.b16 %v3697, %v3694
        %v3716 = vpack.c.b16 %v3698, %v3695
        %v3717 = vpack.c.b16 %v3702, %v3699
        %v3718 = vpack.c.b16 %v3703, %v3700
        %v3719 = vpack.c.b16 %v3704, %v3701
        %v3720 = vpack.c.b16 %v3708, %v3705
        %v3721 = vpack.c.b16 %v3709, %v3706
        %v3722 = vpack.c.b16 %v3710, %v3707
        %v3767 = vunpack.c.l.b16 %v3635
        %v3768 = vunpack.c.l.b16 %v3636
        %v3769 = vunpack.c.l.b16 %v3637
        %v3770 = vunpack.c.l.b16 %v3638
        %v3771 = vunpack.c.l.b16 %v3639
        %v3772 = vunpack.c.l.b16 %v3640
        %v3773 = vunpack.c.l.b16 %v3641
        %v3774 = vunpack.c.l.b16 %v3642
        %v3775 = vunpack.c.l.b16 %v3643
        %v3776 = vunpack.c.l.b16 %v3644
        %v3777 = vunpack.c.l.b16 %v3645
        %v3778 = vunpack.c.l.b16 %v3646
        %v3779 = vunpack.c.l.b16 %v3647
        %v3780 = vunpack.c.l.b16 %v3648
        %v3781 = vunpack.c.l.b16 %v3649
        %v3782 = vunpack.c.l.b16 %v3650
        %v3783 = vunpack.c.l.b16 %v3651
        %v3784 = vunpack.c.l.b16 %v3652
        %v3785 = vunpack.c.l.b16 %v3653
        %v3786 = vunpack.c.l.b16 %v3654
        %v3787 = vunpack.c.l.b16 %v3655
        %v3788 = vunpack.c.l.b16 %v3656
        %v3789 = vunpack.c.l.b16 %v3657
        %v3790 = vunpack.c.l.b16 %v3658
        %v3791 = vunpack.c.l.b16 %v3659
        %v3792 = vunpack.c.l.b16 %v3660
        %v3793 = vunpack.c.l.b16 %v3661
        %v3794 = vunpack.c.l.b16 %v3662
        %v3795 = vunpack.c.l.b16 %v3663
        %v3796 = vunpack.c.l.b16 %v3664
        %v3797 = vunpack.c.l.b16 %v3665
        %v3798 = vunpack.c.l.b16 %v3666
        %v3799 = vunpack.c.l.b16 %v3667
        %v3800 = vunpack.c.l.b16 %v3668
        %v3801 = vunpack.c.l.b16 %v3669
        %v3802 = vunpack.c.l.b16 %v3670
        %v3803 = vpack.c.b16 %v3768, %v3767
        %v3804 = vpack.c.b16 %v3770, %v3769
        %v3805 = vpack.c.b16 %v3772, %v3771
        %v3806 = vpack.c.b16 %v3774, %v3773
        %v3807 = vpack.c.b16 %v3776, %v3775
        %v3808 = vpack.c.b16 %v3778, %v3777
        %v3809 = vpack.c.b16 %v3780, %v3779
        %v3810 = vpack.c.b16 %v3782, %v3781
        %v3811 = vpack.c.b16 %v3784, %v3783
        %v3812 = vpack.c.b16 %v3786, %v3785
        %v3813 = vpack.c.b16 %v3788, %v3787
        %v3814 = vpack.c.b16 %v3790, %v3789
        %v3815 = vpack.c.b16 %v3792, %v3791
        %v3816 = vpack.c.b16 %v3794, %v3793
        %v3817 = vpack.c.b16 %v3796, %v3795
        %v3818 = vpack.c.b16 %v3798, %v3797
        %v3819 = vpack.c.b16 %v3800, %v3799
        %v3820 = vpack.c.b16 %v3802, %v3801
        %vm3839 = vcmask 261120
        %v3841 = vsel %vm3839, %v3713, 0
        %v3844 = vsel %vm3839, %v3716, 0
        %v3847 = vsel %vm3839, %v3719, 0
        %v3850 = vsel %vm3839, %v3722, 0
        %3852 = vmatpush.bf16.msra.mxu0 %v3810
        %3853 = vmatpush.bf16.msra.mxu0 %v3809
        %3854 = vmatpush.bf16.msra.mxu0 %v3808
        %3855 = vmatpush.bf16.msra.mxu0 %v3807
        %3856 = vmatpush.bf16.msra.mxu0 %v3806
        %3857 = vmatpush.bf16.msra.mxu0 %v3805
        %3858 = vmatpush.bf16.msra.mxu0 %v3804
        %3859 = vmatpush.bf16.msra.mxu0 %v3803
        %3860 = vmatmul.bf16.gmra.mxu0 %v3711
        %v3861 = vpop.f32.mrf.mxu0
        %v3862 = vadd.f32 0.0, %v3861
        %v3863 = vpop.f32.mrf.mxu0
        %v3864 = vadd.f32 0.0, %v3863
        %3865 = vmatmul.bf16.gmra.mxu0 %v3714
        %v3866 = vpop.f32.mrf.mxu0
        %v3867 = vadd.f32 0.0, %v3866
        %v3868 = vpop.f32.mrf.mxu0
        %v3869 = vadd.f32 0.0, %v3868
        %3870 = vmatmul.bf16.gmra.mxu0 %v3717
        %v3871 = vpop.f32.mrf.mxu0
        %v3872 = vadd.f32 0.0, %v3871
        %v3873 = vpop.f32.mrf.mxu0
        %v3874 = vadd.f32 0.0, %v3873
        %3875 = vmatmul.bf16.gmra.mxu0 %v3720
        %v3876 = vpop.f32.mrf.mxu0
        %v3877 = vadd.f32 0.0, %v3876
        %v3878 = vpop.f32.mrf.mxu0
        %v3879 = vadd.f32 0.0, %v3878
        %3880 = vdwg.mxu0
        %3881 = vmatpush.bf16.msra.mxu0 %v3818
        %3882 = vmatpush.bf16.msra.mxu0 %v3817
        %3883 = vmatpush.bf16.msra.mxu0 %v3816
        %3884 = vmatpush.bf16.msra.mxu0 %v3815
        %3885 = vmatpush.bf16.msra.mxu0 %v3814
        %3886 = vmatpush.bf16.msra.mxu0 %v3813
        %3887 = vmatpush.bf16.msra.mxu0 %v3812
        %3888 = vmatpush.bf16.msra.mxu0 %v3811
        %3889 = vmatmul.bf16.gmra.mxu0 %v3712
        %v3890 = vpop.f32.mrf.mxu0
        %v3891 = vadd.f32 %v3862, %v3890
        %v3892 = vpop.f32.mrf.mxu0
        %v3893 = vadd.f32 %v3864, %v3892
        %3894 = vmatmul.bf16.gmra.mxu0 %v3715
        %v3895 = vpop.f32.mrf.mxu0
        %v3896 = vadd.f32 %v3867, %v3895
        %v3897 = vpop.f32.mrf.mxu0
        %v3898 = vadd.f32 %v3869, %v3897
        %3899 = vmatmul.bf16.gmra.mxu0 %v3718
        %v3900 = vpop.f32.mrf.mxu0
        %v3901 = vadd.f32 %v3872, %v3900
        %v3902 = vpop.f32.mrf.mxu0
        %v3903 = vadd.f32 %v3874, %v3902
        %3904 = vmatmul.bf16.gmra.mxu0 %v3721
        %v3905 = vpop.f32.mrf.mxu0
        %v3906 = vadd.f32 %v3877, %v3905
        %v3907 = vpop.f32.mrf.mxu0
        %v3908 = vadd.f32 %v3879, %v3907
        %3909 = vdwg.mxu0
        %3910 = vmatpush.bf16.msra.mxu0 0
        %3911 = vmatpush.bf16.msra.mxu0 0
        %3912 = vmatpush.bf16.msra.mxu0 0
        %3913 = vmatpush.bf16.msra.mxu0 0
        %3914 = vmatpush.bf16.msra.mxu0 0
        %3915 = vmatpush.bf16.msra.mxu0 0
        %3916 = vmatpush.bf16.msra.mxu0 %v3820
        %3917 = vmatpush.bf16.msra.mxu0 %v3819
        %3918 = vmatmul.bf16.gmra.mxu0 %v3841
        %v3919 = vpop.f32.mrf.mxu0
        %v3920 = vadd.f32 %v3891, %v3919
        %v3921 = vpop.f32.mrf.mxu0
        %v3922 = vadd.f32 %v3893, %v3921
        %3923 = vmatmul.bf16.gmra.mxu0 %v3844
        %v3924 = vpop.f32.mrf.mxu0
        %v3925 = vadd.f32 %v3896, %v3924
        %v3926 = vpop.f32.mrf.mxu0
        %v3927 = vadd.f32 %v3898, %v3926
        %3928 = vmatmul.bf16.gmra.mxu0 %v3847
        %v3929 = vpop.f32.mrf.mxu0
        %v3930 = vadd.f32 %v3901, %v3929
        %v3931 = vpop.f32.mrf.mxu0
        %v3932 = vadd.f32 %v3903, %v3931
        %3933 = vmatmul.bf16.gmra.mxu0 %v3850
        %v3934 = vpop.f32.mrf.mxu0
        %v3935 = vadd.f32 %v3906, %v3934
        %v3936 = vpop.f32.mrf.mxu0
        %v3937 = vadd.f32 %v3908, %v3936
        %3938 = vdwg.mxu0
        %v3939 = vld [vmem:[%s10] sm:$0xff]
        %v3940 = vld [vmem:[%s10 + $0x8] sm:$0xff]
        %v3941 = vld [vmem:[%s11] sm:$0xff]
        %v3942 = vld [vmem:[%s11 + $0x8] sm:$0xff]
        %v3943 = vsel %vm937, %v3920, 0.0
        %3944 = vadd.xlane.f32.xlu0 %v3943
        %v3945 = vpop.xlane.xlu0 %3944
        %v3946 = vsel %vm937, %v3922, 0.0
        %3947 = vadd.xlane.f32.xlu0 %v3946
        %v3948 = vpop.xlane.xlu0 %3947
        %v3949 = vsel %vm937, %v3925, 0.0
        %3950 = vadd.xlane.f32.xlu0 %v3949
        %v3951 = vpop.xlane.xlu0 %3950
        %v3952 = vsel %vm937, %v3927, 0.0
        %3953 = vadd.xlane.f32.xlu0 %v3952
        %v3954 = vpop.xlane.xlu0 %3953
        %v3955 = vsel %vm937, %v3930, 0.0
        %3956 = vadd.xlane.f32.xlu0 %v3955
        %v3957 = vpop.xlane.xlu0 %3956
        %v3958 = vsel %vm937, %v3932, 0.0
        %3959 = vadd.xlane.f32.xlu0 %v3958
        %v3960 = vpop.xlane.xlu0 %3959
        %v3961 = vsel %vm937, %v3935, 0.0
        %3962 = vadd.xlane.f32.xlu0 %v3961
        %v3963 = vpop.xlane.xlu0 %3962
        %v3964 = vsel %vm937, %v3937, 0.0
        %3965 = vadd.xlane.f32.xlu0 %v3964
        %v3966 = vpop.xlane.xlu0 %3965
        %v3967 = vadd.f32 %v3945, %v3951
        %v3968 = vadd.f32 %v3948, %v3954
        %v3969 = vadd.f32 %v3967, %v3957
        %v3970 = vadd.f32 %v3968, %v3960
        %v3971 = vadd.f32 %v3969, %v3963
        %v3972 = vadd.f32 %v3970, %v3966
        %v3973 = vmul.f32 %v3971, 0.00390625
        %v3974 = vmul.f32 %v3972, 0.00390625
        %3976 = vset.pattern.permute.xlu0 0
        %3977 = vperm.xlu0 %3976, %v3973
        %v3978 = vpop.permute.xlu0 %3977
        %3981 = vset.pattern.permute.xlu0 0
        %3982 = vperm.xlu0 %3981, %v3974
        %v3983 = vpop.permute.xlu0 %3982
        %v3985 = vsub.f32 %v3920, %v3978
        %v3986 = vsub.f32 %v3922, %v3983
        %v3987 = vsub.f32 %v3925, %v3978
        %v3988 = vsub.f32 %v3927, %v3983
        %v3989 = vsub.f32 %v3930, %v3978
        %v3990 = vsub.f32 %v3932, %v3983
        %v3991 = vsub.f32 %v3935, %v3978
        %v3992 = vsub.f32 %v3937, %v3983
        %v3993 = vmul.f32 %v3985, %v3985
        %v3994 = vmul.f32 %v3986, %v3986
        %v3995 = vmul.f32 %v3987, %v3987
        %v3996 = vmul.f32 %v3988, %v3988
        %v3997 = vmul.f32 %v3989, %v3989
        %v3998 = vmul.f32 %v3990, %v3990
        %v3999 = vmul.f32 %v3991, %v3991
        %v4000 = vmul.f32 %v3992, %v3992
        %v4001 = vsel %vm937, %v3993, 0.0
        %4002 = vadd.xlane.f32.xlu0 %v4001
        %v4003 = vpop.xlane.xlu0 %4002
        %v4004 = vsel %vm937, %v3994, 0.0
        %4005 = vadd.xlane.f32.xlu0 %v4004
        %v4006 = vpop.xlane.xlu0 %4005
        %v4007 = vsel %vm937, %v3995, 0.0
        %4008 = vadd.xlane.f32.xlu0 %v4007
        %v4009 = vpop.xlane.xlu0 %4008
        %v4010 = vsel %vm937, %v3996, 0.0
        %4011 = vadd.xlane.f32.xlu0 %v4010
        %v4012 = vpop.xlane.xlu0 %4011
        %v4013 = vsel %vm937, %v3997, 0.0
        %4014 = vadd.xlane.f32.xlu0 %v4013
        %v4015 = vpop.xlane.xlu0 %4014
        %v4016 = vsel %vm937, %v3998, 0.0
        %4017 = vadd.xlane.f32.xlu0 %v4016
        %v4018 = vpop.xlane.xlu0 %4017
        %v4019 = vsel %vm937, %v3999, 0.0
        %4020 = vadd.xlane.f32.xlu0 %v4019
        %v4021 = vpop.xlane.xlu0 %4020
        %v4022 = vsel %vm937, %v4000, 0.0
        %4023 = vadd.xlane.f32.xlu0 %v4022
        %v4024 = vpop.xlane.xlu0 %4023
        %v4025 = vadd.f32 %v4003, %v4009
        %v4026 = vadd.f32 %v4006, %v4012
        %v4027 = vadd.f32 %v4025, %v4015
        %v4028 = vadd.f32 %v4026, %v4018
        %v4029 = vadd.f32 %v4027, %v4021
        %v4030 = vadd.f32 %v4028, %v4024
        %v4031 = vmul.f32 %v4029, 0.00390625
        %v4032 = vmul.f32 %v4030, 0.00390625
        %v4033 = vadd.f32 %v4031, 1e-05
        %v4034 = vadd.f32 %v4032, 1e-05
        %v4035 = vrsqrt.pop %v4033
        %v4036 = vmul.f32 %v4035, %v4033
        %v4037 = vmul.f32 %v4036, %v4035
        %v4038 = vmul.f32 0.5, %v4037
        %v4039 = vsub.f32 1.5, %v4038
        %v4040 = vmul.f32 %v4035, %v4039
        %vm4041 = vweird.f32 %v4033
        %vm4042 = vweird.f32 %v4035
        %vm4043 = vmor %vm4041, %vm4042
        %v4044 = vsel %vm4043, %v4035, %v4040
        %v4045 = vrsqrt.pop %v4034
        %v4046 = vmul.f32 %v4045, %v4034
        %v4047 = vmul.f32 %v4046, %v4045
        %v4048 = vmul.f32 0.5, %v4047
        %v4049 = vsub.f32 1.5, %v4048
        %v4050 = vmul.f32 %v4045, %v4049
        %vm4051 = vweird.f32 %v4034
        %vm4052 = vweird.f32 %v4045
        %vm4053 = vmor %vm4051, %vm4052
        %v4054 = vsel %vm4053, %v4045, %v4050
        %v4055 = vmul.f32 %v3939, %v4044
        %v4056 = vmul.f32 %v3940, %v4054
        %4058 = vset.pattern.permute.xlu0 0
        %4059 = vperm.xlu0 %4058, %v4055
        %v4060 = vpop.permute.xlu0 %4059
        %4063 = vset.pattern.permute.xlu0 0
        %4064 = vperm.xlu0 %4063, %v4056
        %v4065 = vpop.permute.xlu0 %4064
        %v4067 = vmul.f32 %v3985, %v4060
        %v4068 = vmul.f32 %v3986, %v4065
        %v4069 = vmul.f32 %v3987, %v4060
        %v4070 = vmul.f32 %v3988, %v4065
        %v4071 = vmul.f32 %v3989, %v4060
        %v4072 = vmul.f32 %v3990, %v4065
        %v4073 = vmul.f32 %v3991, %v4060
        %v4074 = vmul.f32 %v3992, %v4065
        %4076 = vset.pattern.permute.xlu0 0
        %4077 = vperm.xlu0 %4076, %v3941
        %v4078 = vpop.permute.xlu0 %4077
        %4081 = vset.pattern.permute.xlu0 0
        %4082 = vperm.xlu0 %4081, %v3942
        %v4083 = vpop.permute.xlu0 %4082
        %v4085 = vadd.f32 %v4067, %v4078
        %v4086 = vadd.f32 %v4068, %v4083
        %v4087 = vadd.f32 %v4069, %v4078
        %v4088 = vadd.f32 %v4070, %v4083
        %v4089 = vadd.f32 %v4071, %v4078
        %v4090 = vadd.f32 %v4072, %v4083
        %v4091 = vadd.f32 %v4073, %v4078
        %v4092 = vadd.f32 %v4074, %v4083
        %v4093 = vmax.f32 %v4085, 0.0
        %v4094 = vmax.f32 %v4086, 0.0
        %v4095 = vmax.f32 %v4087, 0.0
        %v4096 = vmax.f32 %v4088, 0.0
        %v4097 = vmax.f32 %v4089, 0.0
        %v4098 = vmax.f32 %v4090, 0.0
        %v4099 = vmax.f32 %v4091, 0.0
        %v4100 = vmax.f32 %v4092, 0.0
        %v4101 = vld [vmem:[#allocation17] sm:$0xf]
        %v4102 = vld [vmem:[#allocation17 + $0x4] sm:$0xf]
        %v4103 = vld [vmem:[#allocation17 + $0x8] sm:$0xf]
        %v4104 = vld [vmem:[#allocation17 + $0xc] sm:$0xf]
        %v4105 = vld [vmem:[#allocation17 + $0x10] sm:$0xf]
        %v4106 = vld [vmem:[#allocation17 + $0x14] sm:$0xf]
        %v4107 = vld [vmem:[#allocation17 + $0x18] sm:$0xf]
        %v4108 = vld [vmem:[#allocation17 + $0x1c] sm:$0xf]
        %s4109 = scalar_lea.vmem [#allocation17], 32
        %v4110 = vld [vmem:[%s4109] sm:$0xf]
        %v4111 = vld [vmem:[%s4109 + $0x4] sm:$0xf]
        %v4112 = vld [vmem:[%s4109 + $0x8] sm:$0xf]
        %v4113 = vld [vmem:[%s4109 + $0xc] sm:$0xf]
        %v4114 = vld [vmem:[%s4109 + $0x10] sm:$0xf]
        %v4115 = vld [vmem:[%s4109 + $0x14] sm:$0xf]
        %v4116 = vld [vmem:[%s4109 + $0x18] sm:$0xf]
        %v4117 = vld [vmem:[%s4109 + $0x1c] sm:$0xf]
        %v4118 = vpack.c.bf16 %v4094, %v4093
        %v4119 = vpack.c.bf16 %v4096, %v4095
        %v4120 = vpack.c.bf16 %v4098, %v4097
        %v4121 = vpack.c.bf16 %v4100, %v4099
        %v4130 = vunpack.c.l.b16 %v4110
        %v4131 = vunpack.c.l.b16 %v4111
        %v4132 = vunpack.c.l.b16 %v4112
        %v4133 = vunpack.c.l.b16 %v4113
        %v4134 = vunpack.c.l.b16 %v4114
        %v4135 = vunpack.c.l.b16 %v4115
        %v4136 = vunpack.c.l.b16 %v4116
        %v4137 = vunpack.c.l.b16 %v4117
        %v4138 = vpack.c.b16 %v4131, %v4130
        %v4139 = vpack.c.b16 %v4133, %v4132
        %v4140 = vpack.c.b16 %v4135, %v4134
        %v4141 = vpack.c.b16 %v4137, %v4136
        %v4147 = vsel %vm937, %v4119, 0
        %4149 = vmatpush.bf16.msra.mxu0 0
        %4150 = vmatpush.bf16.msra.mxu0 0
        %4151 = vmatpush.bf16.msra.mxu0 0
        %4152 = vmatpush.bf16.msra.mxu0 0
        %4153 = vmatpush.bf16.msra.mxu0 %v4141
        %4154 = vmatpush.bf16.msra.mxu0 %v4140
        %4155 = vmatpush.bf16.msra.mxu0 %v4139
        %4156 = vmatpush.bf16.msra.mxu0 %v4138
        %4157 = vmatmul.bf16.gmra.mxu0 %v4147
        %v4158 = vpop.f32.mrf.mxu0
        %v4159 = vadd.f32 0.0, %v4158
        %v4160 = vpop.f32.mrf.mxu0
        %v4161 = vadd.f32 0.0, %v4160
        %4162 = vdwg.mxu0
        %v4171 = vunpack.c.l.b16 %v4101
        %v4172 = vunpack.c.l.b16 %v4102
        %v4173 = vunpack.c.l.b16 %v4103
        %v4174 = vunpack.c.l.b16 %v4104
        %v4175 = vunpack.c.l.b16 %v4105
        %v4176 = vunpack.c.l.b16 %v4106
        %v4177 = vunpack.c.l.b16 %v4107
        %v4178 = vunpack.c.l.b16 %v4108
        %v4179 = vpack.c.b16 %v4172, %v4171
        %v4180 = vpack.c.b16 %v4174, %v4173
        %v4181 = vpack.c.b16 %v4176, %v4175
        %v4182 = vpack.c.b16 %v4178, %v4177
        %v4188 = vsel %vm937, %v4118, 0
        %4190 = vmatpush.bf16.msra.mxu0 0
        %4191 = vmatpush.bf16.msra.mxu0 0
        %4192 = vmatpush.bf16.msra.mxu0 0
        %4193 = vmatpush.bf16.msra.mxu0 0
        %4194 = vmatpush.bf16.msra.mxu0 %v4182
        %4195 = vmatpush.bf16.msra.mxu0 %v4181
        %4196 = vmatpush.bf16.msra.mxu0 %v4180
        %4197 = vmatpush.bf16.msra.mxu0 %v4179
        %4198 = vmatmul.bf16.gmra.mxu0 %v4188
        %v4199 = vpop.f32.mrf.mxu0
        %v4200 = vadd.f32 %v4159, %v4199
        %v4201 = vpop.f32.mrf.mxu0
        %v4202 = vadd.f32 %v4161, %v4201
        %4203 = vdwg.mxu0
        %v4204 = vpack.c.bf16 %v4200, %v4200
        %v4205 = vpack.c.bf16 %v4202, %v4202
        %v4207 = vsel %vm937, %v4121, 0
        %4209 = vmatpush.bf16.msra.mxu0 0
        %4210 = vmatpush.bf16.msra.mxu0 0
        %4211 = vmatpush.bf16.msra.mxu0 0
        %4212 = vmatpush.bf16.msra.mxu0 0
        %4213 = vmatpush.bf16.msra.mxu0 %v4141
        %4214 = vmatpush.bf16.msra.mxu0 %v4140
        %4215 = vmatpush.bf16.msra.mxu0 %v4139
        %4216 = vmatpush.bf16.msra.mxu0 %v4138
        %4217 = vmatmul.bf16.gmra.mxu0 %v4207
        %v4218 = vpop.f32.mrf.mxu0
        %v4219 = vadd.f32 0.0, %v4218
        %v4220 = vpop.f32.mrf.mxu0
        %v4221 = vadd.f32 0.0, %v4220
        %4222 = vdwg.mxu0
        %v4224 = vsel %vm937, %v4120, 0
        %4226 = vmatpush.bf16.msra.mxu0 0
        %4227 = vmatpush.bf16.msra.mxu0 0
        %4228 = vmatpush.bf16.msra.mxu0 0
        %4229 = vmatpush.bf16.msra.mxu0 0
        %4230 = vmatpush.bf16.msra.mxu0 %v4182
        %4231 = vmatpush.bf16.msra.mxu0 %v4181
        %4232 = vmatpush.bf16.msra.mxu0 %v4180
        %4233 = vmatpush.bf16.msra.mxu0 %v4179
        %4234 = vmatmul.bf16.gmra.mxu0 %v4224
        %v4235 = vpop.f32.mrf.mxu0
        %v4236 = vadd.f32 %v4219, %v4235
        %v4237 = vpop.f32.mrf.mxu0
        %v4238 = vadd.f32 %v4221, %v4237
        %4239 = vdwg.mxu0
        %v4240 = vpack.c.bf16 %v4236, %v4236
        %v4241 = vpack.c.bf16 %v4238, %v4238
        %vm4242 = vcmask 134144
        %4243 = vst.msk [vmem:[#allocation6] sm:$0xf] %vm4242, 0
        %4244 = vst.msk [vmem:[#allocation6 + $0xc] sm:$0xf] %vm4242, 0
        %vm4245 = vcmask 273544
        %4246 = vst.msk [vmem:[#allocation6 + $0x8] sm:$0xf] %vm4245, 0
        %4247 = vst.msk [vmem:[#allocation6 + $0x14] sm:$0xf] %vm4245, 0
        %4250 = vrot.lane.b32.xlu0 %v4204, 17
        %v4251 = vpop.permute.xlu0 %4250
        %4252 = vrot.lane.b32.xlu0 %v4205, 17
        %v4253 = vpop.permute.xlu0 %4252
        %vm4256 = vcmask 265352
        %4257 = vst.msk [vmem:[#allocation6] sm:$0xf] %vm4256, %v4251
        %4258 = vst.msk [vmem:[#allocation6 + $0xc] sm:$0xf] %vm4256, %v4253
        %4261 = vrot.lane.b32.xlu0 %v4240, 33
        %v4262 = vpop.permute.xlu0 %4261
        %4263 = vrot.lane.b32.xlu0 %v4241, 33
        %v4264 = vpop.permute.xlu0 %4263
        %vm4267 = vcmask 396552
        %4268 = vst.msk [vmem:[#allocation6] sm:$0xf] %vm4267, %v4262
        %4269 = vst.msk [vmem:[#allocation6 + $0xc] sm:$0xf] %vm4267, %v4264
        %4270 = vrot.lane.b32.xlu0 %v4204, 33
        %v4271 = vpop.permute.xlu0 %4270
        %4272 = vrot.lane.b32.xlu0 %v4205, 33
        %v4273 = vpop.permute.xlu0 %4272
        %vm4276 = vcmask 527752
        %4277 = vst.msk [vmem:[#allocation6] sm:$0xf] %vm4276, %v4271
        %4278 = vst.msk [vmem:[#allocation6 + $0xc] sm:$0xf] %vm4276, %v4273
        %4279 = vrot.lane.b32.xlu0 %v4240, 49
        %v4280 = vpop.permute.xlu0 %4279
        %4281 = vrot.lane.b32.xlu0 %v4241, 49
        %v4282 = vpop.permute.xlu0 %4281
        %vm4285 = vcmask 658952
        %4286 = vst.msk [vmem:[#allocation6] sm:$0xf] %vm4285, %v4280
        %4287 = vst.msk [vmem:[#allocation6 + $0xc] sm:$0xf] %vm4285, %v4282
        %4288 = vrot.lane.b32.xlu0 %v4204, 49
        %v4289 = vpop.permute.xlu0 %4288
        %4290 = vrot.lane.b32.xlu0 %v4205, 49
        %v4291 = vpop.permute.xlu0 %4290
        %vm4294 = vcmask 790152
        %4295 = vst.msk [vmem:[#allocation6] sm:$0xf] %vm4294, %v4289
        %4296 = vst.msk [vmem:[#allocation6 + $0xc] sm:$0xf] %vm4294, %v4291
        %4297 = vrot.lane.b32.xlu0 %v4240, 65
        %v4298 = vpop.permute.xlu0 %4297
        %4299 = vrot.lane.b32.xlu0 %v4241, 65
        %v4300 = vpop.permute.xlu0 %4299
        %vm4303 = vcmask 921352
        %4304 = vst.msk [vmem:[#allocation6] sm:$0xf] %vm4303, %v4298
        %4305 = vst.msk [vmem:[#allocation6 + $0xc] sm:$0xf] %vm4303, %v4300
        %4306 = vrot.lane.b32.xlu0 %v4204, 65
        %v4307 = vpop.permute.xlu0 %4306
        %4308 = vrot.lane.b32.xlu0 %v4205, 65
        %v4309 = vpop.permute.xlu0 %4308
        %v4310 = vrot.slane %v4307, 4
        %v4311 = vrot.slane %v4309, 4
        %vm4312 = vcmask 531456
        %v4313 = vsel %vm4312, %v4310, %v4307
        %v4314 = vsel %vm4312, %v4311, %v4309
        %vm4317 = vcmask 1044360
        %vm4318 = vcmask 7172
        %vm4319 = vmor %vm4318, %vm4317
        %4320 = vst.msk [vmem:[#allocation6] sm:$0xff] %vm4319, %v4313
        %4321 = vst.msk [vmem:[#allocation6 + $0xc] sm:$0xff] %vm4319, %v4314
        %4322 = vrot.lane.b32.xlu0 %v4240, 81
        %v4323 = vpop.permute.xlu0 %4322
        %4324 = vrot.lane.b32.xlu0 %v4241, 81
        %v4325 = vpop.permute.xlu0 %4324
        %vm4328 = vcmask 134152
        %4329 = vst.msk [vmem:[#allocation6 + $0x4] sm:$0xf] %vm4328, %v4323
        %4330 = vst.msk [vmem:[#allocation6 + $0x10] sm:$0xf] %vm4328, %v4325
        %4331 = vrot.lane.b32.xlu0 %v4204, 81
        %v4332 = vpop.permute.xlu0 %4331
        %4333 = vrot.lane.b32.xlu0 %v4205, 81
        %v4334 = vpop.permute.xlu0 %4333
        %4337 = vst.msk [vmem:[#allocation6 + $0x4] sm:$0xf] %vm4256, %v4332
        %4338 = vst.msk [vmem:[#allocation6 + $0x10] sm:$0xf] %vm4256, %v4334
        %4339 = vrot.lane.b32.xlu0 %v4240, 97
        %v4340 = vpop.permute.xlu0 %4339
        %4341 = vrot.lane.b32.xlu0 %v4241, 97
        %v4342 = vpop.permute.xlu0 %4341
        %4345 = vst.msk [vmem:[#allocation6 + $0x4] sm:$0xf] %vm4267, %v4340
        %4346 = vst.msk [vmem:[#allocation6 + $0x10] sm:$0xf] %vm4267, %v4342
        %4347 = vrot.lane.b32.xlu0 %v4204, 97
        %v4348 = vpop.permute.xlu0 %4347
        %4349 = vrot.lane.b32.xlu0 %v4205, 97
        %v4350 = vpop.permute.xlu0 %4349
        %4353 = vst.msk [vmem:[#allocation6 + $0x4] sm:$0xf] %vm4276, %v4348
        %4354 = vst.msk [vmem:[#allocation6 + $0x10] sm:$0xf] %vm4276, %v4350
        %4355 = vrot.lane.b32.xlu0 %v4240, 113
        %v4356 = vpop.permute.xlu0 %4355
        %4357 = vrot.lane.b32.xlu0 %v4241, 113
        %v4358 = vpop.permute.xlu0 %4357
        %4361 = vst.msk [vmem:[#allocation6 + $0x4] sm:$0xf] %vm4285, %v4356
        %4362 = vst.msk [vmem:[#allocation6 + $0x10] sm:$0xf] %vm4285, %v4358
        %4363 = vrot.lane.b32.xlu0 %v4204, 113
        %v4364 = vpop.permute.xlu0 %4363
        %4365 = vrot.lane.b32.xlu0 %v4205, 113
        %v4366 = vpop.permute.xlu0 %4365
        %4369 = vst.msk [vmem:[#allocation6 + $0x4] sm:$0xf] %vm4294, %v4364
        %4370 = vst.msk [vmem:[#allocation6 + $0x10] sm:$0xf] %vm4294, %v4366
        %4371 = vrot.lane.b32.xlu0 %v4240, 1
        %v4372 = vpop.permute.xlu0 %4371
        %4373 = vrot.lane.b32.xlu0 %v4241, 1
        %v4374 = vpop.permute.xlu0 %4373
        %4377 = vst.msk [vmem:[#allocation6 + $0x4] sm:$0xf] %vm4303, %v4372
        %4378 = vst.msk [vmem:[#allocation6 + $0x10] sm:$0xf] %vm4303, %v4374
        %4379 = vrot.lane.b32.xlu0 %v4204, 1
        %v4380 = vpop.permute.xlu0 %4379
        %4381 = vrot.lane.b32.xlu0 %v4205, 1
        %v4382 = vpop.permute.xlu0 %4381
        %v4383 = vrot.slane %v4380, 4
        %v4384 = vrot.slane %v4382, 4
        %vm4385 = vcmask 7168
        %v4386 = vsel %vm4385, %v4383, %v4380
        %v4387 = vsel %vm4385, %v4384, %v4382
        %4390 = vst.msk [vmem:[#allocation6 + $0x4] sm:$0xff] %vm4319, %v4386
        %4391 = vst.msk [vmem:[#allocation6 + $0x10] sm:$0xff] %vm4319, %v4387
        %4392 = vrot.lane.b32.xlu0 %v4240, 17
        %v4393 = vpop.permute.xlu0 %4392
        %4394 = vrot.lane.b32.xlu0 %v4241, 17
        %v4395 = vpop.permute.xlu0 %4394
        %4398 = vst.msk [vmem:[#allocation6 + $0x8] sm:$0xf] %vm4328, %v4393
        %4399 = vst.msk [vmem:[#allocation6 + $0x14] sm:$0xf] %vm4328, %v4395
        %v4400 = vadd.s32 %v1424, 128
        %v4401 = vand.u32 %v1424, 15
        %v4402 = vand.u32 %v4400, 15
        %vm4403 = vcmp.ge.s32.totalorder %v4401, 1
        %vm4404 = vcmp.ge.s32.totalorder %v4402, 1
        %vm4405 = vcmp.le.s32.totalorder %v4401, 14
        %vm4406 = vcmp.le.s32.totalorder %v4402, 14
        %v4407 = vld [vmem:[#allocation6] sm:$0xff]
        %v4408 = vld [vmem:[#allocation6 + $0xc] sm:$0xff]
        %vm4409 = vmpackc.low %vm4404, %vm4403
        %v4410 = vsel %vm4409, %v4407, 0
        %v4411 = vsel %vm4409, %v4408, 0
        %4412 = vst [vmem:[#allocation7] sm:$0xff] %v4410
        %4413 = vst [vmem:[#allocation7 + $0x8] sm:$0xff] %v4411
        %v4414 = vld [vmem:[#allocation6] sm:$0xff]
        %v4415 = vld [vmem:[#allocation6 + $0x8] sm:$0xf]
        %v4416 = vld [vmem:[#allocation6 + $0xc] sm:$0xff]
        %v4417 = vld [vmem:[#allocation6 + $0x14] sm:$0xf]
        %4422 = vrot.lane.b32.xlu0 %v4414, 127
        %v4423 = vpop.permute.xlu0 %4422
        %4424 = vrot.lane.b32.xlu0 %v4415, 127
        %v4425 = vpop.permute.xlu0 %4424
        %4426 = vrot.lane.b32.xlu0 %v4416, 127
        %v4427 = vpop.permute.xlu0 %4426
        %4428 = vrot.lane.b32.xlu0 %v4417, 127
        %v4429 = vpop.permute.xlu0 %4428
        %v4430 = vrot.slane %v4423, 4
        %v4431 = vrot.slane %v4425, 4
        %v4432 = vrot.slane %v4427, 4
        %v4433 = vrot.slane %v4429, 4
        %vm4434 = vcmask 1043456
        %v4435 = vsel %vm4434, %v4430, %v4431
        %vm4436 = vcmask 1039360
        %v4437 = vsel %vm4436, %v4423, %v4435
        %v4438 = vsel %vm4434, %v4432, %v4433
        %v4439 = vsel %vm4436, %v4427, %v4438
        %4442 = vst [vmem:[#allocation7 + $0x10] sm:$0xff] %v4437
        %4443 = vst [vmem:[#allocation7 + $0x18] sm:$0xff] %v4439
        %v4444 = vld [vmem:[#allocation6] sm:$0xff]
        %v4445 = vld [vmem:[#allocation6 + $0x8] sm:$0xf]
        %v4446 = vld [vmem:[#allocation6 + $0xc] sm:$0xff]
        %v4447 = vld [vmem:[#allocation6 + $0x14] sm:$0xf]
        %vm4448 = vmpackc.low %vm4406, %vm4405
        %v4449 = vsel %vm4448, 65537, 0
        %4450 = vrot.lane.b32.xlu0 %v4449, 2
        %v4451 = vpop.permute.xlu0 %4450
        %v4452 = vrot.slane %v4451, 4
        %vm4453 = vcmask 15360
        %v4454 = vsel %vm4453, %v4452, %v4451
        %v4455 = vunpack.c.l.b16 %v4454
        %v4456 = vunpack.c.h.b16 %v4454
        %v4457 = vunpack.c.l.b16 0
        %v4458 = vunpack.c.h.b16 0
        %vm4459 = vcmp.ne.s32.totalorder %v4455, %v4457
        %vm4460 = vcmp.ne.s32.totalorder %v4456, %v4458
        %vm4461 = vmpackc.low %vm4460, %vm4459
        %v4462 = vunpack.c.l.b16 %v4452
        %v4463 = vunpack.c.h.b16 %v4452
        %v4464 = vunpack.c.l.b16 0
        %v4465 = vunpack.c.h.b16 0
        %vm4466 = vcmp.ne.s32.totalorder %v4462, %v4464
        %vm4467 = vcmp.ne.s32.totalorder %v4463, %v4465
        %vm4468 = vmpackc.low %vm4467, %vm4466
        %v4469 = vsel %vm4461, %v4444, 0
        %v4470 = vsel %vm4468, %v4445, 0
        %v4471 = vsel %vm4461, %v4446, 0
        %v4472 = vsel %vm4468, %v4447, 0
        %4477 = vrot.lane.b32.xlu0 %v4469, 126
        %v4478 = vpop.permute.xlu0 %4477
        %4479 = vrot.lane.b32.xlu0 %v4470, 126
        %v4480 = vpop.permute.xlu0 %4479
        %4481 = vrot.lane.b32.xlu0 %v4471, 126
        %v4482 = vpop.permute.xlu0 %4481
        %4483 = vrot.lane.b32.xlu0 %v4472, 126
        %v4484 = vpop.permute.xlu0 %4483
        %v4485 = vrot.slane %v4478, 4
        %v4486 = vrot.slane %v4480, 4
        %v4487 = vrot.slane %v4482, 4
        %v4488 = vrot.slane %v4484, 4
        %v4489 = vsel %vm4434, %v4485, %v4486
        %vm4490 = vcmask 1031168
        %v4491 = vsel %vm4490, %v4478, %v4489
        %v4492 = vsel %vm4434, %v4487, %v4488
        %v4493 = vsel %vm4490, %v4482, %v4492
        %4496 = vst [vmem:[#allocation7 + $0x20] sm:$0xff] %v4491
        %4497 = vst [vmem:[#allocation7 + $0x28] sm:$0xff] %v4493
        %v4498 = vld [vmem:[#allocation6] sm:$0xff]
        %v4499 = vld [vmem:[#allocation6 + $0x8] sm:$0xf]
        %v4500 = vld [vmem:[#allocation6 + $0xc] sm:$0xff]
        %v4501 = vld [vmem:[#allocation6 + $0x14] sm:$0xf]
        %v4502 = vsel %vm4409, 65537, 0
        %4503 = vrot.lane.b32.xlu0 %v4502, 16
        %v4504 = vpop.permute.xlu0 %4503
        %v4505 = vrot.slane %v4504, 4
        %vm4506 = vcmask 130048
        %v4507 = vsel %vm4506, %v4505, %v4504
        %v4508 = vunpack.c.l.b16 %v4507
        %v4509 = vunpack.c.h.b16 %v4507
        %v4510 = vunpack.c.l.b16 0
        %v4511 = vunpack.c.h.b16 0
        %vm4512 = vcmp.ne.s32.totalorder %v4508, %v4510
        %vm4513 = vcmp.ne.s32.totalorder %v4509, %v4511
        %vm4514 = vmpackc.low %vm4513, %vm4512
        %v4515 = vunpack.c.l.b16 %v4505
        %v4516 = vunpack.c.h.b16 %v4505
        %v4517 = vunpack.c.l.b16 0
        %v4518 = vunpack.c.h.b16 0
        %vm4519 = vcmp.ne.s32.totalorder %v4515, %v4517
        %vm4520 = vcmp.ne.s32.totalorder %v4516, %v4518
        %vm4521 = vmpackc.low %vm4520, %vm4519
        %v4522 = vsel %vm4514, %v4498, 0
        %v4523 = vsel %vm4521, %v4499, 0
        %v4524 = vsel %vm4514, %v4500, 0
        %v4525 = vsel %vm4521, %v4501, 0
        %4530 = vrot.lane.b32.xlu0 %v4522, 112
        %v4531 = vpop.permute.xlu0 %4530
        %4532 = vrot.lane.b32.xlu0 %v4523, 112
        %v4533 = vpop.permute.xlu0 %4532
        %4534 = vrot.lane.b32.xlu0 %v4524, 112
        %v4535 = vpop.permute.xlu0 %4534
        %4536 = vrot.lane.b32.xlu0 %v4525, 112
        %v4537 = vpop.permute.xlu0 %4536
        %v4538 = vrot.slane %v4531, 4
        %v4539 = vrot.slane %v4533, 4
        %v4540 = vrot.slane %v4535, 4
        %v4541 = vrot.slane %v4537, 4
        %v4542 = vsel %vm4434, %v4538, %v4539
        %vm4543 = vcmask 916480
        %v4544 = vsel %vm4543, %v4531, %v4542
        %v4545 = vsel %vm4434, %v4540, %v4541
        %v4546 = vsel %vm4543, %v4535, %v4545
        %4549 = vst [vmem:[#allocation7 + $0x30] sm:$0xff] %v4544
        %4550 = vst [vmem:[#allocation7 + $0x38] sm:$0xff] %v4546
        %v4551 = vld [vmem:[#allocation6] sm:$0xff]
        %v4552 = vld [vmem:[#allocation6 + $0x8] sm:$0xf]
        %v4553 = vld [vmem:[#allocation6 + $0xc] sm:$0xff]
        %v4554 = vld [vmem:[#allocation6 + $0x14] sm:$0xf]
        %4559 = vrot.lane.b32.xlu0 %v4551, 111
        %v4560 = vpop.permute.xlu0 %4559
        %4561 = vrot.lane.b32.xlu0 %v4552, 111
        %v4562 = vpop.permute.xlu0 %4561
        %4563 = vrot.lane.b32.xlu0 %v4553, 111
        %v4564 = vpop.permute.xlu0 %4563
        %4565 = vrot.lane.b32.xlu0 %v4554, 111
        %v4566 = vpop.permute.xlu0 %4565
        %v4567 = vrot.slane %v4560, 4
        %v4568 = vrot.slane %v4562, 4
        %v4569 = vrot.slane %v4564, 4
        %v4570 = vrot.slane %v4566, 4
        %v4571 = vsel %vm4434, %v4567, %v4568
        %vm4572 = vcmask 908288
        %v4573 = vsel %vm4572, %v4560, %v4571
        %v4574 = vsel %vm4434, %v4569, %v4570
        %v4575 = vsel %vm4572, %v4564, %v4574
        %4578 = vst [vmem:[#allocation7 + $0x40] sm:$0xff] %v4573
        %4579 = vst [vmem:[#allocation7 + $0x48] sm:$0xff] %v4575
        %v4580 = vld [vmem:[#allocation6] sm:$0xff]
        %v4581 = vld [vmem:[#allocation6 + $0x8] sm:$0xf]
        %v4582 = vld [vmem:[#allocation6 + $0xc] sm:$0xff]
        %v4583 = vld [vmem:[#allocation6 + $0x14] sm:$0xf]
        %4584 = vrot.lane.b32.xlu0 %v4449, 18
        %v4585 = vpop.permute.xlu0 %4584
        %v4586 = vrot.slane %v4585, 4
        %vm4587 = vcmask 146432
        %v4588 = vsel %vm4587, %v4586, %v4585
        %v4589 = vunpack.c.l.b16 %v4588
        %v4590 = vunpack.c.h.b16 %v4588
        %v4591 = vunpack.c.l.b16 0
        %v4592 = vunpack.c.h.b16 0
        %vm4593 = vcmp.ne.s32.totalorder %v4589, %v4591
        %vm4594 = vcmp.ne.s32.totalorder %v4590, %v4592
        %vm4595 = vmpackc.low %vm4594, %vm4593
        %v4596 = vunpack.c.l.b16 %v4586
        %v4597 = vunpack.c.h.b16 %v4586
        %v4598 = vunpack.c.l.b16 0
        %v4599 = vunpack.c.h.b16 0
        %vm4600 = vcmp.ne.s32.totalorder %v4596, %v4598
        %vm4601 = vcmp.ne.s32.totalorder %v4597, %v4599
        %vm4602 = vmpackc.low %vm4601, %vm4600
        %v4603 = vsel %vm4595, %v4580, 0
        %v4604 = vsel %vm4602, %v4581, 0
        %v4605 = vsel %vm4595, %v4582, 0
        %v4606 = vsel %vm4602, %v4583, 0
        %4611 = vrot.lane.b32.xlu0 %v4603, 110
        %v4612 = vpop.permute.xlu0 %4611
        %4613 = vrot.lane.b32.xlu0 %v4604, 110
        %v4614 = vpop.permute.xlu0 %4613
        %4615 = vrot.lane.b32.xlu0 %v4605, 110
        %v4616 = vpop.permute.xlu0 %4615
        %4617 = vrot.lane.b32.xlu0 %v4606, 110
        %v4618 = vpop.permute.xlu0 %4617
        %v4619 = vrot.slane %v4612, 4
        %v4620 = vrot.slane %v4614, 4
        %v4621 = vrot.slane %v4616, 4
        %v4622 = vrot.slane %v4618, 4
        %v4623 = vsel %vm4434, %v4619, %v4620
        %vm4624 = vcmask 900096
        %v4625 = vsel %vm4624, %v4612, %v4623
        %v4626 = vsel %vm4434, %v4621, %v4622
        %v4627 = vsel %vm4624, %v4616, %v4626
        %4630 = vst [vmem:[#allocation7 + $0x50] sm:$0xff] %v4625
        %4631 = vst [vmem:[#allocation7 + $0x58] sm:$0xff] %v4627
        %v4632 = vld [vmem:[#allocation6] sm:$0xff]
        %v4633 = vld [vmem:[#allocation6 + $0x8] sm:$0xf]
        %v4634 = vld [vmem:[#allocation6 + $0xc] sm:$0xff]
        %v4635 = vld [vmem:[#allocation6 + $0x14] sm:$0xf]
        %4636 = vrot.lane.b32.xlu0 %v4502, 32
        %v4637 = vpop.permute.xlu0 %4636
        %v4638 = vrot.slane %v4637, 4
        %vm4639 = vcmask 261120
        %v4640 = vsel %vm4639, %v4638, %v4637
        %v4641 = vunpack.c.l.b16 %v4640
        %v4642 = vunpack.c.h.b16 %v4640
        %v4643 = vunpack.c.l.b16 0
        %v4644 = vunpack.c.h.b16 0
        %vm4645 = vcmp.ne.s32.totalorder %v4641, %v4643
        %vm4646 = vcmp.ne.s32.totalorder %v4642, %v4644
        %vm4647 = vmpackc.low %vm4646, %vm4645
        %v4648 = vunpack.c.l.b16 %v4638
        %v4649 = vunpack.c.h.b16 %v4638
        %v4650 = vunpack.c.l.b16 0
        %v4651 = vunpack.c.h.b16 0
        %vm4652 = vcmp.ne.s32.totalorder %v4648, %v4650
        %vm4653 = vcmp.ne.s32.totalorder %v4649, %v4651
        %vm4654 = vmpackc.low %vm4653, %vm4652
        %v4655 = vsel %vm4647, %v4632, 0
        %v4656 = vsel %vm4654, %v4633, 0
        %v4657 = vsel %vm4647, %v4634, 0
        %v4658 = vsel %vm4654, %v4635, 0
        %4663 = vrot.lane.b32.xlu0 %v4655, 96
        %v4664 = vpop.permute.xlu0 %4663
        %4665 = vrot.lane.b32.xlu0 %v4656, 96
        %v4666 = vpop.permute.xlu0 %4665
        %4667 = vrot.lane.b32.xlu0 %v4657, 96
        %v4668 = vpop.permute.xlu0 %4667
        %4669 = vrot.lane.b32.xlu0 %v4658, 96
        %v4670 = vpop.permute.xlu0 %4669
        %v4671 = vrot.slane %v4664, 4
        %v4672 = vrot.slane %v4666, 4
        %v4673 = vrot.slane %v4668, 4
        %v4674 = vrot.slane %v4670, 4
        %v4675 = vsel %vm4434, %v4671, %v4672
        %vm4676 = vcmask 785408
        %v4677 = vsel %vm4676, %v4664, %v4675
        %v4678 = vsel %vm4434, %v4673, %v4674
        %v4679 = vsel %vm4676, %v4668, %v4678
        %4682 = vst [vmem:[#allocation7 + $0x60] sm:$0xff] %v4677
        %4683 = vst [vmem:[#allocation7 + $0x68] sm:$0xff] %v4679
        %v4684 = vld [vmem:[#allocation6] sm:$0xff]
        %v4685 = vld [vmem:[#allocation6 + $0x8] sm:$0xf]
        %v4686 = vld [vmem:[#allocation6 + $0xc] sm:$0xff]
        %v4687 = vld [vmem:[#allocation6 + $0x14] sm:$0xf]
        %4692 = vrot.lane.b32.xlu0 %v4684, 95
        %v4693 = vpop.permute.xlu0 %4692
        %4694 = vrot.lane.b32.xlu0 %v4685, 95
        %v4695 = vpop.permute.xlu0 %4694
        %4696 = vrot.lane.b32.xlu0 %v4686, 95
        %v4697 = vpop.permute.xlu0 %4696
        %4698 = vrot.lane.b32.xlu0 %v4687, 95
        %v4699 = vpop.permute.xlu0 %4698
        %v4700 = vrot.slane %v4693, 4
        %v4701 = vrot.slane %v4695, 4
        %v4702 = vrot.slane %v4697, 4
        %v4703 = vrot.slane %v4699, 4
        %v4704 = vsel %vm4434, %v4700, %v4701
        %vm4705 = vcmask 777216
        %v4706 = vsel %vm4705, %v4693, %v4704
        %v4707 = vsel %vm4434, %v4702, %v4703
        %v4708 = vsel %vm4705, %v4697, %v4707
        %4711 = vst [vmem:[#allocation7 + $0x70] sm:$0xff] %v4706
        %4712 = vst [vmem:[#allocation7 + $0x78] sm:$0xff] %v4708
        %v4713 = vld [vmem:[#allocation6] sm:$0xff]
        %v4714 = vld [vmem:[#allocation6 + $0x8] sm:$0xf]
        %v4715 = vld [vmem:[#allocation6 + $0xc] sm:$0xff]
        %v4716 = vld [vmem:[#allocation6 + $0x14] sm:$0xf]
        %4717 = vrot.lane.b32.xlu0 %v4449, 34
        %v4718 = vpop.permute.xlu0 %4717
        %v4719 = vrot.slane %v4718, 4
        %vm4720 = vcmask 277504
        %v4721 = vsel %vm4720, %v4719, %v4718
        %v4722 = vunpack.c.l.b16 %v4721
        %v4723 = vunpack.c.h.b16 %v4721
        %v4724 = vunpack.c.l.b16 0
        %v4725 = vunpack.c.h.b16 0
        %vm4726 = vcmp.ne.s32.totalorder %v4722, %v4724
        %vm4727 = vcmp.ne.s32.totalorder %v4723, %v4725
        %vm4728 = vmpackc.low %vm4727, %vm4726
        %v4729 = vunpack.c.l.b16 %v4719
        %v4730 = vunpack.c.h.b16 %v4719
        %v4731 = vunpack.c.l.b16 0
        %v4732 = vunpack.c.h.b16 0
        %vm4733 = vcmp.ne.s32.totalorder %v4729, %v4731
        %vm4734 = vcmp.ne.s32.totalorder %v4730, %v4732
        %vm4735 = vmpackc.low %vm4734, %vm4733
        %v4736 = vsel %vm4728, %v4713, 0
        %v4737 = vsel %vm4735, %v4714, 0
        %v4738 = vsel %vm4728, %v4715, 0
        %v4739 = vsel %vm4735, %v4716, 0
        %4744 = vrot.lane.b32.xlu0 %v4736, 94
        %v4745 = vpop.permute.xlu0 %4744
        %4746 = vrot.lane.b32.xlu0 %v4737, 94
        %v4747 = vpop.permute.xlu0 %4746
        %4748 = vrot.lane.b32.xlu0 %v4738, 94
        %v4749 = vpop.permute.xlu0 %4748
        %4750 = vrot.lane.b32.xlu0 %v4739, 94
        %v4751 = vpop.permute.xlu0 %4750
        %v4752 = vrot.slane %v4745, 4
        %v4753 = vrot.slane %v4747, 4
        %v4754 = vrot.slane %v4749, 4
        %v4755 = vrot.slane %v4751, 4
        %v4756 = vsel %vm4434, %v4752, %v4753
        %vm4757 = vcmask 769024
        %v4758 = vsel %vm4757, %v4745, %v4756
        %v4759 = vsel %vm4434, %v4754, %v4755
        %v4760 = vsel %vm4757, %v4749, %v4759
        %4763 = vst [vmem:[#allocation7 + $0x80] sm:$0xff] %v4758
        %4764 = vst [vmem:[#allocation7 + $0x88] sm:$0xff] %v4760
        %v4765 = vld [vmem:[#allocation19] sm:$0xff]
        %v4766 = vld [vmem:[#allocation19 + $0x8] sm:$0xff]
        %v4767 = vld [vmem:[#allocation19 + $0x10] sm:$0xff]
        %v4768 = vld [vmem:[#allocation19 + $0x18] sm:$0xff]
        %v4769 = vld [vmem:[#allocation7] sm:$0xff]
        %v4770 = vld [vmem:[#allocation7 + $0x8] sm:$0xff]
        %v4771 = vld [vmem:[#allocation7 + $0x10] sm:$0xff]
        %v4772 = vld [vmem:[#allocation7 + $0x18] sm:$0xff]
        %v4773 = vld [vmem:[#allocation7 + $0x20] sm:$0xff]
        %v4774 = vld [vmem:[#allocation7 + $0x28] sm:$0xff]
        %v4775 = vld [vmem:[#allocation7 + $0x30] sm:$0xff]
        %v4776 = vld [vmem:[#allocation7 + $0x38] sm:$0xff]
        %v4777 = vld [vmem:[#allocation7 + $0x40] sm:$0xff]
        %v4778 = vld [vmem:[#allocation7 + $0x48] sm:$0xff]
        %v4779 = vld [vmem:[#allocation7 + $0x50] sm:$0xff]
        %v4780 = vld [vmem:[#allocation7 + $0x58] sm:$0xff]
        %v4781 = vld [vmem:[#allocation7 + $0x60] sm:$0xff]
        %v4782 = vld [vmem:[#allocation7 + $0x68] sm:$0xff]
        %v4783 = vld [vmem:[#allocation7 + $0x70] sm:$0xff]
        %v4784 = vld [vmem:[#allocation7 + $0x78] sm:$0xff]
        %v4785 = vld [vmem:[#allocation7 + $0x80] sm:$0xff]
        %v4786 = vld [vmem:[#allocation7 + $0x88] sm:$0xff]
        %v4791 = vunpack.c.l.b16 %v4765
        %v4792 = vunpack.c.h.b16 %v4765
        %v4793 = vunpack.c.l.b16 %v4766
        %v4794 = vunpack.c.h.b16 %v4766
        %v4795 = vunpack.c.l.b16 %v4767
        %v4796 = vunpack.c.h.b16 %v4767
        %v4797 = vunpack.c.l.b16 %v4768
        %v4798 = vunpack.c.h.b16 %v4768
        %v4799 = vpack.c.b16 %v4793, %v4791
        %v4800 = vpack.c.b16 %v4794, %v4792
        %v4801 = vpack.c.b16 %v4797, %v4795
        %v4802 = vpack.c.b16 %v4798, %v4796
        %v4823 = vunpack.c.l.b16 %v4769
        %v4824 = vunpack.c.h.b16 %v4769
        %v4825 = vunpack.c.l.b16 %v4770
        %v4826 = vunpack.c.h.b16 %v4770
        %v4827 = vunpack.c.l.b16 %v4771
        %v4828 = vunpack.c.h.b16 %v4771
        %v4829 = vunpack.c.l.b16 %v4772
        %v4830 = vunpack.c.h.b16 %v4772
        %v4831 = vunpack.c.l.b16 %v4773
        %v4832 = vunpack.c.h.b16 %v4773
        %v4833 = vunpack.c.l.b16 %v4774
        %v4834 = vunpack.c.h.b16 %v4774
        %v4835 = vunpack.c.l.b16 %v4775
        %v4836 = vunpack.c.h.b16 %v4775
        %v4837 = vunpack.c.l.b16 %v4776
        %v4838 = vunpack.c.h.b16 %v4776
        %v4839 = vunpack.c.l.b16 %v4777
        %v4840 = vunpack.c.h.b16 %v4777
        %v4841 = vunpack.c.l.b16 %v4778
        %v4842 = vunpack.c.h.b16 %v4778
        %v4843 = vunpack.c.l.b16 %v4779
        %v4844 = vunpack.c.h.b16 %v4779
        %v4845 = vunpack.c.l.b16 %v4780
        %v4846 = vunpack.c.h.b16 %v4780
        %v4847 = vunpack.c.l.b16 %v4781
        %v4848 = vunpack.c.h.b16 %v4781
        %v4849 = vunpack.c.l.b16 %v4782
        %v4850 = vunpack.c.h.b16 %v4782
        %v4851 = vunpack.c.l.b16 %v4783
        %v4852 = vunpack.c.h.b16 %v4783
        %v4853 = vunpack.c.l.b16 %v4784
        %v4854 = vunpack.c.h.b16 %v4784
        %v4855 = vunpack.c.l.b16 %v4785
        %v4856 = vunpack.c.h.b16 %v4785
        %v4857 = vunpack.c.l.b16 %v4786
        %v4858 = vunpack.c.h.b16 %v4786
        %v4859 = vpack.c.b16 %v4825, %v4823
        %v4860 = vpack.c.b16 %v4826, %v4824
        %v4861 = vpack.c.b16 %v4829, %v4827
        %v4862 = vpack.c.b16 %v4830, %v4828
        %v4863 = vpack.c.b16 %v4833, %v4831
        %v4864 = vpack.c.b16 %v4834, %v4832
        %v4865 = vpack.c.b16 %v4837, %v4835
        %v4866 = vpack.c.b16 %v4838, %v4836
        %v4867 = vpack.c.b16 %v4841, %v4839
        %v4868 = vpack.c.b16 %v4842, %v4840
        %v4869 = vpack.c.b16 %v4845, %v4843
        %v4870 = vpack.c.b16 %v4846, %v4844
        %v4871 = vpack.c.b16 %v4849, %v4847
        %v4872 = vpack.c.b16 %v4850, %v4848
        %v4873 = vpack.c.b16 %v4853, %v4851
        %v4874 = vpack.c.b16 %v4854, %v4852
        %v4875 = vpack.c.b16 %v4857, %v4855
        %v4876 = vpack.c.b16 %v4858, %v4856
        %v4896 = vsel %vm912, %v4800, 0
        %v4899 = vsel %vm912, %v4802, 0
        %4901 = vmatpush.bf16.msra.mxu0 %v4873
        %4902 = vmatpush.bf16.msra.mxu0 %v4871
        %4903 = vmatpush.bf16.msra.mxu0 %v4869
        %4904 = vmatpush.bf16.msra.mxu0 %v4867
        %4905 = vmatpush.bf16.msra.mxu0 %v4865
        %4906 = vmatpush.bf16.msra.mxu0 %v4863
        %4907 = vmatpush.bf16.msra.mxu0 %v4861
        %4908 = vmatpush.bf16.msra.mxu0 %v4859
        %4909 = vmatmul.bf16.gmra.mxu0 %v4799
        %v4910 = vpop.f32.mrf.mxu0
        %v4911 = vadd.f32 0.0, %v4910
        %v4912 = vpop.f32.mrf.mxu0
        %v4913 = vadd.f32 0.0, %v4912
        %4914 = vmatmul.bf16.gmra.mxu0 %v4801
        %v4915 = vpop.f32.mrf.mxu0
        %v4916 = vadd.f32 0.0, %v4915
        %v4917 = vpop.f32.mrf.mxu0
        %v4918 = vadd.f32 0.0, %v4917
        %4919 = vdwg.mxu0
        %4920 = vmatpush.bf16.msra.mxu0 0
        %4921 = vmatpush.bf16.msra.mxu0 0
        %4922 = vmatpush.bf16.msra.mxu0 0
        %4923 = vmatpush.bf16.msra.mxu0 0
        %4924 = vmatpush.bf16.msra.mxu0 0
        %4925 = vmatpush.bf16.msra.mxu0 0
        %4926 = vmatpush.bf16.msra.mxu0 0
        %4927 = vmatpush.bf16.msra.mxu0 %v4875
        %4928 = vmatmul.bf16.gmra.mxu0 %v4896
        %v4929 = vpop.f32.mrf.mxu0
        %v4930 = vadd.f32 %v4911, %v4929
        %v4931 = vpop.f32.mrf.mxu0
        %v4932 = vadd.f32 %v4913, %v4931
        %4933 = vmatmul.bf16.gmra.mxu0 %v4899
        %v4934 = vpop.f32.mrf.mxu0
        %v4935 = vadd.f32 %v4916, %v4934
        %v4936 = vpop.f32.mrf.mxu0
        %v4937 = vadd.f32 %v4918, %v4936
        %4938 = vdwg.mxu0
        %4939 = vmatpush.bf16.msra.mxu0 %v4874
        %4940 = vmatpush.bf16.msra.mxu0 %v4872
        %4941 = vmatpush.bf16.msra.mxu0 %v4870
        %4942 = vmatpush.bf16.msra.mxu0 %v4868
        %4943 = vmatpush.bf16.msra.mxu0 %v4866
        %4944 = vmatpush.bf16.msra.mxu0 %v4864
        %4945 = vmatpush.bf16.msra.mxu0 %v4862
        %4946 = vmatpush.bf16.msra.mxu0 %v4860
        %4947 = vmatmul.bf16.gmra.mxu0 %v4799
        %v4948 = vpop.f32.mrf.mxu0
        %v4949 = vadd.f32 0.0, %v4948
        %v4950 = vpop.f32.mrf.mxu0
        %v4951 = vadd.f32 0.0, %v4950
        %4952 = vmatmul.bf16.gmra.mxu0 %v4801
        %v4953 = vpop.f32.mrf.mxu0
        %v4954 = vadd.f32 0.0, %v4953
        %v4955 = vpop.f32.mrf.mxu0
        %v4956 = vadd.f32 0.0, %v4955
        %4957 = vdwg.mxu0
        %4958 = vmatpush.bf16.msra.mxu0 0
        %4959 = vmatpush.bf16.msra.mxu0 0
        %4960 = vmatpush.bf16.msra.mxu0 0
        %4961 = vmatpush.bf16.msra.mxu0 0
        %4962 = vmatpush.bf16.msra.mxu0 0
        %4963 = vmatpush.bf16.msra.mxu0 0
        %4964 = vmatpush.bf16.msra.mxu0 0
        %4965 = vmatpush.bf16.msra.mxu0 %v4876
        %4966 = vmatmul.bf16.gmra.mxu0 %v4896
        %v4967 = vpop.f32.mrf.mxu0
        %v4968 = vadd.f32 %v4949, %v4967
        %v4969 = vpop.f32.mrf.mxu0
        %v4970 = vadd.f32 %v4951, %v4969
        %4971 = vmatmul.bf16.gmra.mxu0 %v4899
        %v4972 = vpop.f32.mrf.mxu0
        %v4973 = vadd.f32 %v4954, %v4972
        %v4974 = vpop.f32.mrf.mxu0
        %v4975 = vadd.f32 %v4956, %v4974
        %4976 = vdwg.mxu0
        %v4977 = vld [vmem:[%s14] sm:$0xff]
        %v4978 = vld [vmem:[%s15] sm:$0xff]
        %v4979 = vadd.f32 %v4930, %v4968
        %4980 = vadd.xlane.f32.xlu0 %v4979
        %v4981 = vpop.xlane.xlu0 %4980
        %v4982 = vadd.f32 %v4932, %v4970
        %4983 = vadd.xlane.f32.xlu0 %v4982
        %v4984 = vpop.xlane.xlu0 %4983
        %v4985 = vadd.f32 %v4935, %v4973
        %4986 = vadd.xlane.f32.xlu0 %v4985
        %v4987 = vpop.xlane.xlu0 %4986
        %v4988 = vadd.f32 %v4937, %v4975
        %4989 = vadd.xlane.f32.xlu0 %v4988
        %v4990 = vpop.xlane.xlu0 %4989
        %v4991 = vadd.f32 %v4981, %v4984
        %v4992 = vadd.f32 %v4991, %v4987
        %v4993 = vadd.f32 %v4992, %v4990
        %v4994 = vmul.f32 %v4993, 0.0009765625
        %4996 = vset.pattern.permute.xlu0 0
        %4997 = vperm.xlu0 %4996, %v4994
        %v4998 = vpop.permute.xlu0 %4997
        %v5000 = vsub.f32 %v4930, %v4998
        %v5001 = vsub.f32 %v4968, %v4998
        %v5002 = vsub.f32 %v4932, %v4998
        %v5003 = vsub.f32 %v4970, %v4998
        %v5004 = vsub.f32 %v4935, %v4998
        %v5005 = vsub.f32 %v4973, %v4998
        %v5006 = vsub.f32 %v4937, %v4998
        %v5007 = vsub.f32 %v4975, %v4998
        %v5008 = vmul.f32 %v5000, %v5000
        %v5009 = vmul.f32 %v5001, %v5001
        %v5010 = vmul.f32 %v5002, %v5002
        %v5011 = vmul.f32 %v5003, %v5003
        %v5012 = vmul.f32 %v5004, %v5004
        %v5013 = vmul.f32 %v5005, %v5005
        %v5014 = vmul.f32 %v5006, %v5006
        %v5015 = vmul.f32 %v5007, %v5007
        %v5016 = vadd.f32 %v5008, %v5009
        %5017 = vadd.xlane.f32.xlu0 %v5016
        %v5018 = vpop.xlane.xlu0 %5017
        %v5019 = vadd.f32 %v5010, %v5011
        %5020 = vadd.xlane.f32.xlu0 %v5019
        %v5021 = vpop.xlane.xlu0 %5020
        %v5022 = vadd.f32 %v5012, %v5013
        %5023 = vadd.xlane.f32.xlu0 %v5022
        %v5024 = vpop.xlane.xlu0 %5023
        %v5025 = vadd.f32 %v5014, %v5015
        %5026 = vadd.xlane.f32.xlu0 %v5025
        %v5027 = vpop.xlane.xlu0 %5026
        %v5028 = vadd.f32 %v5018, %v5021
        %v5029 = vadd.f32 %v5028, %v5024
        %v5030 = vadd.f32 %v5029, %v5027
        %v5031 = vmul.f32 %v5030, 0.0009765625
        %v5032 = vadd.f32 %v5031, 1e-05
        %v5033 = vrsqrt.pop %v5032
        %v5034 = vmul.f32 %v5033, %v5032
        %v5035 = vmul.f32 %v5034, %v5033
        %v5036 = vmul.f32 0.5, %v5035
        %v5037 = vsub.f32 1.5, %v5036
        %v5038 = vmul.f32 %v5033, %v5037
        %vm5039 = vweird.f32 %v5032
        %vm5040 = vweird.f32 %v5033
        %vm5041 = vmor %vm5039, %vm5040
        %v5042 = vsel %vm5041, %v5033, %v5038
        %v5043 = vmul.f32 %v4977, %v5042
        %5045 = vset.pattern.permute.xlu0 0
        %5046 = vperm.xlu0 %5045, %v5043
        %v5047 = vpop.permute.xlu0 %5046
        %v5049 = vmul.f32 %v5000, %v5047
        %v5050 = vmul.f32 %v5001, %v5047
        %v5051 = vmul.f32 %v5002, %v5047
        %v5052 = vmul.f32 %v5003, %v5047
        %v5053 = vmul.f32 %v5004, %v5047
        %v5054 = vmul.f32 %v5005, %v5047
        %v5055 = vmul.f32 %v5006, %v5047
        %v5056 = vmul.f32 %v5007, %v5047
        %5058 = vset.pattern.permute.xlu0 0
        %5059 = vperm.xlu0 %5058, %v4978
        %v5060 = vpop.permute.xlu0 %5059
        %v5062 = vadd.f32 %v5049, %v5060
        %v5063 = vadd.f32 %v5050, %v5060
        %v5064 = vadd.f32 %v5051, %v5060
        %v5065 = vadd.f32 %v5052, %v5060
        %v5066 = vadd.f32 %v5053, %v5060
        %v5067 = vadd.f32 %v5054, %v5060
        %v5068 = vadd.f32 %v5055, %v5060
        %v5069 = vadd.f32 %v5056, %v5060
        %v5070 = vmax.f32 %v5062, 0.0
        %v5071 = vmax.f32 %v5063, 0.0
        %v5072 = vmax.f32 %v5064, 0.0
        %v5073 = vmax.f32 %v5065, 0.0
        %v5074 = vmax.f32 %v5066, 0.0
        %v5075 = vmax.f32 %v5067, 0.0
        %v5076 = vmax.f32 %v5068, 0.0
        %v5077 = vmax.f32 %v5069, 0.0
        %v5078 = vld [vmem:[#allocation20] sm:$0xff]
        %v5079 = vld [vmem:[#allocation20 + $0x8] sm:$0xff]
        %v5080 = vld [vmem:[#allocation20 + $0x10] sm:$0xff]
        %v5081 = vld [vmem:[#allocation20 + $0x18] sm:$0xff]
        %v5082 = vld [vmem:[#allocation20 + $0x20] sm:$0xff]
        %v5083 = vld [vmem:[#allocation20 + $0x28] sm:$0xff]
        %v5084 = vld [vmem:[#allocation20 + $0x30] sm:$0xff]
        %v5085 = vld [vmem:[#allocation20 + $0x38] sm:$0xff]
        %v5086 = vld [vmem:[#allocation20 + $0x40] sm:$0xff]
        %v5087 = vld [vmem:[#allocation20 + $0x48] sm:$0xff]
        %v5088 = vld [vmem:[#allocation20 + $0x50] sm:$0xff]
        %v5089 = vld [vmem:[#allocation20 + $0x58] sm:$0xff]
        %v5090 = vld [vmem:[#allocation20 + $0x60] sm:$0xff]
        %v5091 = vld [vmem:[#allocation20 + $0x68] sm:$0xff]
        %v5092 = vld [vmem:[#allocation20 + $0x70] sm:$0xff]
        %v5093 = vld [vmem:[#allocation20 + $0x78] sm:$0xff]
        %v5094 = vld [vmem:[#allocation20 + $0x80] sm:$0xff]
        %v5095 = vld [vmem:[#allocation20 + $0x88] sm:$0xff]
        %v5096 = vld [vmem:[#allocation20 + $0x90] sm:$0xff]
        %v5097 = vld [vmem:[#allocation20 + $0x98] sm:$0xff]
        %v5098 = vld [vmem:[#allocation20 + $0xa0] sm:$0xff]
        %v5099 = vld [vmem:[#allocation20 + $0xa8] sm:$0xff]
        %v5100 = vld [vmem:[#allocation20 + $0xb0] sm:$0xff]
        %v5101 = vld [vmem:[#allocation20 + $0xb8] sm:$0xff]
        %v5102 = vld [vmem:[#allocation20 + $0xc0] sm:$0xff]
        %v5103 = vld [vmem:[#allocation20 + $0xc8] sm:$0xff]
        %v5104 = vld [vmem:[#allocation20 + $0xd0] sm:$0xff]
        %v5105 = vld [vmem:[#allocation20 + $0xd8] sm:$0xff]
        %v5106 = vld [vmem:[#allocation20 + $0xe0] sm:$0xff]
        %v5107 = vld [vmem:[#allocation20 + $0xe8] sm:$0xff]
        %v5108 = vld [vmem:[#allocation20 + $0xf0] sm:$0xff]
        %v5109 = vld [vmem:[#allocation20 + $0xf8] sm:$0xff]
        %v5110 = vld [vmem:[#allocation20 + $0x100] sm:$0xff]
        %v5111 = vld [vmem:[#allocation20 + $0x108] sm:$0xff]
        %v5112 = vld [vmem:[#allocation20 + $0x110] sm:$0xff]
        %v5113 = vld [vmem:[#allocation20 + $0x118] sm:$0xff]
        %v5114 = vld [vmem:[#allocation20 + $0x120] sm:$0xff]
        %v5115 = vld [vmem:[#allocation20 + $0x128] sm:$0xff]
        %v5116 = vld [vmem:[#allocation20 + $0x130] sm:$0xff]
        %v5117 = vld [vmem:[#allocation20 + $0x138] sm:$0xff]
        %v5118 = vld [vmem:[#allocation20 + $0x140] sm:$0xff]
        %v5119 = vld [vmem:[#allocation20 + $0x148] sm:$0xff]
        %v5120 = vld [vmem:[#allocation20 + $0x150] sm:$0xff]
        %v5121 = vld [vmem:[#allocation20 + $0x158] sm:$0xff]
        %v5122 = vld [vmem:[#allocation20 + $0x160] sm:$0xff]
        %v5123 = vld [vmem:[#allocation20 + $0x168] sm:$0xff]
        %v5124 = vld [vmem:[#allocation20 + $0x170] sm:$0xff]
        %v5125 = vld [vmem:[#allocation20 + $0x178] sm:$0xff]
        %v5126 = vld [vmem:[#allocation20 + $0x180] sm:$0xff]
        %v5127 = vld [vmem:[#allocation20 + $0x188] sm:$0xff]
        %v5128 = vld [vmem:[#allocation20 + $0x190] sm:$0xff]
        %v5129 = vld [vmem:[#allocation20 + $0x198] sm:$0xff]
        %v5130 = vld [vmem:[#allocation20 + $0x1a0] sm:$0xff]
        %v5131 = vld [vmem:[#allocation20 + $0x1a8] sm:$0xff]
        %v5132 = vld [vmem:[#allocation20 + $0x1b0] sm:$0xff]
        %v5133 = vld [vmem:[#allocation20 + $0x1b8] sm:$0xff]
        %v5134 = vld [vmem:[#allocation20 + $0x1c0] sm:$0xff]
        %v5135 = vld [vmem:[#allocation20 + $0x1c8] sm:$0xff]
        %v5136 = vld [vmem:[#allocation20 + $0x1d0] sm:$0xff]
        %v5137 = vld [vmem:[#allocation20 + $0x1d8] sm:$0xff]
        %v5138 = vld [vmem:[#allocation20 + $0x1e0] sm:$0xff]
        %v5139 = vld [vmem:[#allocation20 + $0x1e8] sm:$0xff]
        %v5140 = vld [vmem:[#allocation20 + $0x1f0] sm:$0xff]
        %v5141 = vld [vmem:[#allocation20 + $0x1f8] sm:$0xff]
        %s5142 = scalar_lea.vmem [#allocation20], 512
        %v5143 = vld [vmem:[%s5142] sm:$0xff]
        %v5144 = vld [vmem:[%s5142 + $0x8] sm:$0xff]
        %v5145 = vld [vmem:[%s5142 + $0x10] sm:$0xff]
        %v5146 = vld [vmem:[%s5142 + $0x18] sm:$0xff]
        %v5147 = vld [vmem:[%s5142 + $0x20] sm:$0xff]
        %v5148 = vld [vmem:[%s5142 + $0x28] sm:$0xff]
        %v5149 = vld [vmem:[%s5142 + $0x30] sm:$0xff]
        %v5150 = vld [vmem:[%s5142 + $0x38] sm:$0xff]
        %v5151 = vld [vmem:[%s5142 + $0x40] sm:$0xff]
        %v5152 = vld [vmem:[%s5142 + $0x48] sm:$0xff]
        %v5153 = vld [vmem:[%s5142 + $0x50] sm:$0xff]
        %v5154 = vld [vmem:[%s5142 + $0x58] sm:$0xff]
        %v5155 = vld [vmem:[%s5142 + $0x60] sm:$0xff]
        %v5156 = vld [vmem:[%s5142 + $0x68] sm:$0xff]
        %v5157 = vld [vmem:[%s5142 + $0x70] sm:$0xff]
        %v5158 = vld [vmem:[%s5142 + $0x78] sm:$0xff]
        %v5159 = vld [vmem:[%s5142 + $0x80] sm:$0xff]
        %v5160 = vld [vmem:[%s5142 + $0x88] sm:$0xff]
        %v5161 = vld [vmem:[%s5142 + $0x90] sm:$0xff]
        %v5162 = vld [vmem:[%s5142 + $0x98] sm:$0xff]
        %v5163 = vld [vmem:[%s5142 + $0xa0] sm:$0xff]
        %v5164 = vld [vmem:[%s5142 + $0xa8] sm:$0xff]
        %v5165 = vld [vmem:[%s5142 + $0xb0] sm:$0xff]
        %v5166 = vld [vmem:[%s5142 + $0xb8] sm:$0xff]
        %v5167 = vld [vmem:[%s5142 + $0xc0] sm:$0xff]
        %v5168 = vld [vmem:[%s5142 + $0xc8] sm:$0xff]
        %v5169 = vld [vmem:[%s5142 + $0xd0] sm:$0xff]
        %v5170 = vld [vmem:[%s5142 + $0xd8] sm:$0xff]
        %v5171 = vld [vmem:[%s5142 + $0xe0] sm:$0xff]
        %v5172 = vld [vmem:[%s5142 + $0xe8] sm:$0xff]
        %v5173 = vld [vmem:[%s5142 + $0xf0] sm:$0xff]
        %v5174 = vld [vmem:[%s5142 + $0xf8] sm:$0xff]
        %v5175 = vld [vmem:[%s5142 + $0x100] sm:$0xff]
        %v5176 = vld [vmem:[%s5142 + $0x108] sm:$0xff]
        %v5177 = vld [vmem:[%s5142 + $0x110] sm:$0xff]
        %v5178 = vld [vmem:[%s5142 + $0x118] sm:$0xff]
        %v5179 = vld [vmem:[%s5142 + $0x120] sm:$0xff]
        %v5180 = vld [vmem:[%s5142 + $0x128] sm:$0xff]
        %v5181 = vld [vmem:[%s5142 + $0x130] sm:$0xff]
        %v5182 = vld [vmem:[%s5142 + $0x138] sm:$0xff]
        %v5183 = vld [vmem:[%s5142 + $0x140] sm:$0xff]
        %v5184 = vld [vmem:[%s5142 + $0x148] sm:$0xff]
        %v5185 = vld [vmem:[%s5142 + $0x150] sm:$0xff]
        %v5186 = vld [vmem:[%s5142 + $0x158] sm:$0xff]
        %v5187 = vld [vmem:[%s5142 + $0x160] sm:$0xff]
        %v5188 = vld [vmem:[%s5142 + $0x168] sm:$0xff]
        %v5189 = vld [vmem:[%s5142 + $0x170] sm:$0xff]
        %v5190 = vld [vmem:[%s5142 + $0x178] sm:$0xff]
        %v5191 = vld [vmem:[%s5142 + $0x180] sm:$0xff]
        %v5192 = vld [vmem:[%s5142 + $0x188] sm:$0xff]
        %v5193 = vld [vmem:[%s5142 + $0x190] sm:$0xff]
        %v5194 = vld [vmem:[%s5142 + $0x198] sm:$0xff]
        %v5195 = vld [vmem:[%s5142 + $0x1a0] sm:$0xff]
        %v5196 = vld [vmem:[%s5142 + $0x1a8] sm:$0xff]
        %v5197 = vld [vmem:[%s5142 + $0x1b0] sm:$0xff]
        %v5198 = vld [vmem:[%s5142 + $0x1b8] sm:$0xff]
        %v5199 = vld [vmem:[%s5142 + $0x1c0] sm:$0xff]
        %v5200 = vld [vmem:[%s5142 + $0x1c8] sm:$0xff]
        %v5201 = vld [vmem:[%s5142 + $0x1d0] sm:$0xff]
        %v5202 = vld [vmem:[%s5142 + $0x1d8] sm:$0xff]
        %v5203 = vld [vmem:[%s5142 + $0x1e0] sm:$0xff]
        %v5204 = vld [vmem:[%s5142 + $0x1e8] sm:$0xff]
        %v5205 = vld [vmem:[%s5142 + $0x1f0] sm:$0xff]
        %v5206 = vld [vmem:[%s5142 + $0x1f8] sm:$0xff]
        %v5207 = vpack.c.bf16 %v5070, %v5070
        %v5208 = vpack.c.bf16 %v5071, %v5071
        %v5209 = vpack.c.bf16 %v5072, %v5072
        %v5210 = vpack.c.bf16 %v5073, %v5073
        %v5211 = vpack.c.bf16 %v5074, %v5074
        %v5212 = vpack.c.bf16 %v5075, %v5075
        %v5213 = vpack.c.bf16 %v5076, %v5076
        %v5214 = vpack.c.bf16 %v5077, %v5077
        %v5279 = vunpack.c.l.b16 %v5143
        %v5280 = vunpack.c.h.b16 %v5143
        %v5281 = vunpack.c.l.b16 %v5144
        %v5282 = vunpack.c.h.b16 %v5144
        %v5283 = vunpack.c.l.b16 %v5145
        %v5284 = vunpack.c.h.b16 %v5145
        %v5285 = vunpack.c.l.b16 %v5146
        %v5286 = vunpack.c.h.b16 %v5146
        %v5287 = vunpack.c.l.b16 %v5147
        %v5288 = vunpack.c.h.b16 %v5147
        %v5289 = vunpack.c.l.b16 %v5148
        %v5290 = vunpack.c.h.b16 %v5148
        %v5291 = vunpack.c.l.b16 %v5149
        %v5292 = vunpack.c.h.b16 %v5149
        %v5293 = vunpack.c.l.b16 %v5150
        %v5294 = vunpack.c.h.b16 %v5150
        %v5295 = vunpack.c.l.b16 %v5151
        %v5296 = vunpack.c.h.b16 %v5151
        %v5297 = vunpack.c.l.b16 %v5152
        %v5298 = vunpack.c.h.b16 %v5152
        %v5299 = vunpack.c.l.b16 %v5153
        %v5300 = vunpack.c.h.b16 %v5153
        %v5301 = vunpack.c.l.b16 %v5154
        %v5302 = vunpack.c.h.b16 %v5154
        %v5303 = vunpack.c.l.b16 %v5155
        %v5304 = vunpack.c.h.b16 %v5155
        %v5305 = vunpack.c.l.b16 %v5156
        %v5306 = vunpack.c.h.b16 %v5156
        %v5307 = vunpack.c.l.b16 %v5157
        %v5308 = vunpack.c.h.b16 %v5157
        %v5309 = vunpack.c.l.b16 %v5158
        %v5310 = vunpack.c.h.b16 %v5158
        %v5311 = vunpack.c.l.b16 %v5159
        %v5312 = vunpack.c.h.b16 %v5159
        %v5313 = vunpack.c.l.b16 %v5160
        %v5314 = vunpack.c.h.b16 %v5160
        %v5315 = vunpack.c.l.b16 %v5161
        %v5316 = vunpack.c.h.b16 %v5161
        %v5317 = vunpack.c.l.b16 %v5162
        %v5318 = vunpack.c.h.b16 %v5162
        %v5319 = vunpack.c.l.b16 %v5163
        %v5320 = vunpack.c.h.b16 %v5163
        %v5321 = vunpack.c.l.b16 %v5164
        %v5322 = vunpack.c.h.b16 %v5164
        %v5323 = vunpack.c.l.b16 %v5165
        %v5324 = vunpack.c.h.b16 %v5165
        %v5325 = vunpack.c.l.b16 %v5166
        %v5326 = vunpack.c.h.b16 %v5166
        %v5327 = vunpack.c.l.b16 %v5167
        %v5328 = vunpack.c.h.b16 %v5167
        %v5329 = vunpack.c.l.b16 %v5168
        %v5330 = vunpack.c.h.b16 %v5168
        %v5331 = vunpack.c.l.b16 %v5169
        %v5332 = vunpack.c.h.b16 %v5169
        %v5333 = vunpack.c.l.b16 %v5170
        %v5334 = vunpack.c.h.b16 %v5170
        %v5335 = vunpack.c.l.b16 %v5171
        %v5336 = vunpack.c.h.b16 %v5171
        %v5337 = vunpack.c.l.b16 %v5172
        %v5338 = vunpack.c.h.b16 %v5172
        %v5339 = vunpack.c.l.b16 %v5173
        %v5340 = vunpack.c.h.b16 %v5173
        %v5341 = vunpack.c.l.b16 %v5174
        %v5342 = vunpack.c.h.b16 %v5174
        %v5343 = vunpack.c.l.b16 %v5175
        %v5344 = vunpack.c.h.b16 %v5175
        %v5345 = vunpack.c.l.b16 %v5176
        %v5346 = vunpack.c.h.b16 %v5176
        %v5347 = vunpack.c.l.b16 %v5177
        %v5348 = vunpack.c.h.b16 %v5177
        %v5349 = vunpack.c.l.b16 %v5178
        %v5350 = vunpack.c.h.b16 %v5178
        %v5351 = vunpack.c.l.b16 %v5179
        %v5352 = vunpack.c.h.b16 %v5179
        %v5353 = vunpack.c.l.b16 %v5180
        %v5354 = vunpack.c.h.b16 %v5180
        %v5355 = vunpack.c.l.b16 %v5181
        %v5356 = vunpack.c.h.b16 %v5181
        %v5357 = vunpack.c.l.b16 %v5182
        %v5358 = vunpack.c.h.b16 %v5182
        %v5359 = vunpack.c.l.b16 %v5183
        %v5360 = vunpack.c.h.b16 %v5183
        %v5361 = vunpack.c.l.b16 %v5184
        %v5362 = vunpack.c.h.b16 %v5184
        %v5363 = vunpack.c.l.b16 %v5185
        %v5364 = vunpack.c.h.b16 %v5185
        %v5365 = vunpack.c.l.b16 %v5186
        %v5366 = vunpack.c.h.b16 %v5186
        %v5367 = vunpack.c.l.b16 %v5187
        %v5368 = vunpack.c.h.b16 %v5187
        %v5369 = vunpack.c.l.b16 %v5188
        %v5370 = vunpack.c.h.b16 %v5188
        %v5371 = vunpack.c.l.b16 %v5189
        %v5372 = vunpack.c.h.b16 %v5189
        %v5373 = vunpack.c.l.b16 %v5190
        %v5374 = vunpack.c.h.b16 %v5190
        %v5375 = vunpack.c.l.b16 %v5191
        %v5376 = vunpack.c.h.b16 %v5191
        %v5377 = vunpack.c.l.b16 %v5192
        %v5378 = vunpack.c.h.b16 %v5192
        %v5379 = vunpack.c.l.b16 %v5193
        %v5380 = vunpack.c.h.b16 %v5193
        %v5381 = vunpack.c.l.b16 %v5194
        %v5382 = vunpack.c.h.b16 %v5194
        %v5383 = vunpack.c.l.b16 %v5195
        %v5384 = vunpack.c.h.b16 %v5195
        %v5385 = vunpack.c.l.b16 %v5196
        %v5386 = vunpack.c.h.b16 %v5196
        %v5387 = vunpack.c.l.b16 %v5197
        %v5388 = vunpack.c.h.b16 %v5197
        %v5389 = vunpack.c.l.b16 %v5198
        %v5390 = vunpack.c.h.b16 %v5198
        %v5391 = vunpack.c.l.b16 %v5199
        %v5392 = vunpack.c.h.b16 %v5199
        %v5393 = vunpack.c.l.b16 %v5200
        %v5394 = vunpack.c.h.b16 %v5200
        %v5395 = vunpack.c.l.b16 %v5201
        %v5396 = vunpack.c.h.b16 %v5201
        %v5397 = vunpack.c.l.b16 %v5202
        %v5398 = vunpack.c.h.b16 %v5202
        %v5399 = vunpack.c.l.b16 %v5203
        %v5400 = vunpack.c.h.b16 %v5203
        %v5401 = vunpack.c.l.b16 %v5204
        %v5402 = vunpack.c.h.b16 %v5204
        %v5403 = vunpack.c.l.b16 %v5205
        %v5404 = vunpack.c.h.b16 %v5205
        %v5405 = vunpack.c.l.b16 %v5206
        %v5406 = vunpack.c.h.b16 %v5206
        %v5407 = vpack.c.b16 %v5283, %v5279
        %v5408 = vpack.c.b16 %v5284, %v5280
        %v5409 = vpack.c.b16 %v5285, %v5281
        %v5410 = vpack.c.b16 %v5286, %v5282
        %v5411 = vpack.c.b16 %v5291, %v5287
        %v5412 = vpack.c.b16 %v5292, %v5288
        %v5413 = vpack.c.b16 %v5293, %v5289
        %v5414 = vpack.c.b16 %v5294, %v5290
        %v5415 = vpack.c.b16 %v5299, %v5295
        %v5416 = vpack.c.b16 %v5300, %v5296
        %v5417 = vpack.c.b16 %v5301, %v5297
        %v5418 = vpack.c.b16 %v5302, %v5298
        %v5419 = vpack.c.b16 %v5307, %v5303
        %v5420 = vpack.c.b16 %v5308, %v5304
        %v5421 = vpack.c.b16 %v5309, %v5305
        %v5422 = vpack.c.b16 %v5310, %v5306
        %v5423 = vpack.c.b16 %v5315, %v5311
        %v5424 = vpack.c.b16 %v5316, %v5312
        %v5425 = vpack.c.b16 %v5317, %v5313
        %v5426 = vpack.c.b16 %v5318, %v5314
        %v5427 = vpack.c.b16 %v5323, %v5319
        %v5428 = vpack.c.b16 %v5324, %v5320
        %v5429 = vpack.c.b16 %v5325, %v5321
        %v5430 = vpack.c.b16 %v5326, %v5322
        %v5431 = vpack.c.b16 %v5331, %v5327
        %v5432 = vpack.c.b16 %v5332, %v5328
        %v5433 = vpack.c.b16 %v5333, %v5329
        %v5434 = vpack.c.b16 %v5334, %v5330
        %v5435 = vpack.c.b16 %v5339, %v5335
        %v5436 = vpack.c.b16 %v5340, %v5336
        %v5437 = vpack.c.b16 %v5341, %v5337
        %v5438 = vpack.c.b16 %v5342, %v5338
        %v5439 = vpack.c.b16 %v5347, %v5343
        %v5440 = vpack.c.b16 %v5348, %v5344
        %v5441 = vpack.c.b16 %v5349, %v5345
        %v5442 = vpack.c.b16 %v5350, %v5346
        %v5443 = vpack.c.b16 %v5355, %v5351
        %v5444 = vpack.c.b16 %v5356, %v5352
        %v5445 = vpack.c.b16 %v5357, %v5353
        %v5446 = vpack.c.b16 %v5358, %v5354
        %v5447 = vpack.c.b16 %v5363, %v5359
        %v5448 = vpack.c.b16 %v5364, %v5360
        %v5449 = vpack.c.b16 %v5365, %v5361
        %v5450 = vpack.c.b16 %v5366, %v5362
        %v5451 = vpack.c.b16 %v5371, %v5367
        %v5452 = vpack.c.b16 %v5372, %v5368
        %v5453 = vpack.c.b16 %v5373, %v5369
        %v5454 = vpack.c.b16 %v5374, %v5370
        %v5455 = vpack.c.b16 %v5379, %v5375
        %v5456 = vpack.c.b16 %v5380, %v5376
        %v5457 = vpack.c.b16 %v5381, %v5377
        %v5458 = vpack.c.b16 %v5382, %v5378
        %v5459 = vpack.c.b16 %v5387, %v5383
        %v5460 = vpack.c.b16 %v5388, %v5384
        %v5461 = vpack.c.b16 %v5389, %v5385
        %v5462 = vpack.c.b16 %v5390, %v5386
        %v5463 = vpack.c.b16 %v5395, %v5391
        %v5464 = vpack.c.b16 %v5396, %v5392
        %v5465 = vpack.c.b16 %v5397, %v5393
        %v5466 = vpack.c.b16 %v5398, %v5394
        %v5467 = vpack.c.b16 %v5403, %v5399
        %v5468 = vpack.c.b16 %v5404, %v5400
        %v5469 = vpack.c.b16 %v5405, %v5401
        %v5470 = vpack.c.b16 %v5406, %v5402
        %5535 = vmatpush.bf16.msra.mxu0 %v5435
        %5536 = vmatpush.bf16.msra.mxu0 %v5431
        %5537 = vmatpush.bf16.msra.mxu0 %v5427
        %5538 = vmatpush.bf16.msra.mxu0 %v5423
        %5539 = vmatpush.bf16.msra.mxu0 %v5419
        %5540 = vmatpush.bf16.msra.mxu0 %v5415
        %5541 = vmatpush.bf16.msra.mxu0 %v5411
        %5542 = vmatpush.bf16.msra.mxu0 %v5407
        %5543 = vmatmul.bf16.gmra.mxu0 %v5209
        %v5544 = vpop.f32.mrf.mxu0
        %v5545 = vadd.f32 0.0, %v5544
        %v5546 = vpop.f32.mrf.mxu0
        %5547 = vdwg.mxu0
        %5548 = vmatpush.bf16.msra.mxu0 %v5467
        %5549 = vmatpush.bf16.msra.mxu0 %v5463
        %5550 = vmatpush.bf16.msra.mxu0 %v5459
        %5551 = vmatpush.bf16.msra.mxu0 %v5455
        %5552 = vmatpush.bf16.msra.mxu0 %v5451
        %5553 = vmatpush.bf16.msra.mxu0 %v5447
        %5554 = vmatpush.bf16.msra.mxu0 %v5443
        %5555 = vmatpush.bf16.msra.mxu0 %v5439
        %5556 = vmatmul.bf16.gmra.mxu0 %v5210
        %v5557 = vpop.f32.mrf.mxu0
        %v5558 = vadd.f32 %v5545, %v5557
        %v5559 = vpop.f32.mrf.mxu0
        %5560 = vdwg.mxu0
        %5561 = vmatpush.bf16.msra.mxu0 %v5436
        %5562 = vmatpush.bf16.msra.mxu0 %v5432
        %5563 = vmatpush.bf16.msra.mxu0 %v5428
        %5564 = vmatpush.bf16.msra.mxu0 %v5424
        %5565 = vmatpush.bf16.msra.mxu0 %v5420
        %5566 = vmatpush.bf16.msra.mxu0 %v5416
        %5567 = vmatpush.bf16.msra.mxu0 %v5412
        %5568 = vmatpush.bf16.msra.mxu0 %v5408
        %5569 = vmatmul.bf16.gmra.mxu0 %v5209
        %v5570 = vpop.f32.mrf.mxu0
        %v5571 = vadd.f32 0.0, %v5570
        %v5572 = vpop.f32.mrf.mxu0
        %5573 = vdwg.mxu0
        %5574 = vmatpush.bf16.msra.mxu0 %v5468
        %5575 = vmatpush.bf16.msra.mxu0 %v5464
        %5576 = vmatpush.bf16.msra.mxu0 %v5460
        %5577 = vmatpush.bf16.msra.mxu0 %v5456
        %5578 = vmatpush.bf16.msra.mxu0 %v5452
        %5579 = vmatpush.bf16.msra.mxu0 %v5448
        %5580 = vmatpush.bf16.msra.mxu0 %v5444
        %5581 = vmatpush.bf16.msra.mxu0 %v5440
        %5582 = vmatmul.bf16.gmra.mxu0 %v5210
        %v5583 = vpop.f32.mrf.mxu0
        %v5584 = vadd.f32 %v5571, %v5583
        %v5585 = vpop.f32.mrf.mxu0
        %5586 = vdwg.mxu0
        %5587 = vmatpush.bf16.msra.mxu0 %v5437
        %5588 = vmatpush.bf16.msra.mxu0 %v5433
        %5589 = vmatpush.bf16.msra.mxu0 %v5429
        %5590 = vmatpush.bf16.msra.mxu0 %v5425
        %5591 = vmatpush.bf16.msra.mxu0 %v5421
        %5592 = vmatpush.bf16.msra.mxu0 %v5417
        %5593 = vmatpush.bf16.msra.mxu0 %v5413
        %5594 = vmatpush.bf16.msra.mxu0 %v5409
        %5595 = vmatmul.bf16.gmra.mxu0 %v5209
        %v5596 = vpop.f32.mrf.mxu0
        %v5597 = vadd.f32 0.0, %v5596
        %v5598 = vpop.f32.mrf.mxu0
        %5599 = vdwg.mxu0
        %5600 = vmatpush.bf16.msra.mxu0 %v5469
        %5601 = vmatpush.bf16.msra.mxu0 %v5465
        %5602 = vmatpush.bf16.msra.mxu0 %v5461
        %5603 = vmatpush.bf16.msra.mxu0 %v5457
        %5604 = vmatpush.bf16.msra.mxu0 %v5453
        %5605 = vmatpush.bf16.msra.mxu0 %v5449
        %5606 = vmatpush.bf16.msra.mxu0 %v5445
        %5607 = vmatpush.bf16.msra.mxu0 %v5441
        %5608 = vmatmul.bf16.gmra.mxu0 %v5210
        %v5609 = vpop.f32.mrf.mxu0
        %v5610 = vadd.f32 %v5597, %v5609
        %v5611 = vpop.f32.mrf.mxu0
        %5612 = vdwg.mxu0
        %5613 = vmatpush.bf16.msra.mxu0 %v5438
        %5614 = vmatpush.bf16.msra.mxu0 %v5434
        %5615 = vmatpush.bf16.msra.mxu0 %v5430
        %5616 = vmatpush.bf16.msra.mxu0 %v5426
        %5617 = vmatpush.bf16.msra.mxu0 %v5422
        %5618 = vmatpush.bf16.msra.mxu0 %v5418
        %5619 = vmatpush.bf16.msra.mxu0 %v5414
        %5620 = vmatpush.bf16.msra.mxu0 %v5410
        %5621 = vmatmul.bf16.gmra.mxu0 %v5209
        %v5622 = vpop.f32.mrf.mxu0
        %v5623 = vadd.f32 0.0, %v5622
        %v5624 = vpop.f32.mrf.mxu0
        %5625 = vdwg.mxu0
        %5626 = vmatpush.bf16.msra.mxu0 %v5470
        %5627 = vmatpush.bf16.msra.mxu0 %v5466
        %5628 = vmatpush.bf16.msra.mxu0 %v5462
        %5629 = vmatpush.bf16.msra.mxu0 %v5458
        %5630 = vmatpush.bf16.msra.mxu0 %v5454
        %5631 = vmatpush.bf16.msra.mxu0 %v5450
        %5632 = vmatpush.bf16.msra.mxu0 %v5446
        %5633 = vmatpush.bf16.msra.mxu0 %v5442
        %5634 = vmatmul.bf16.gmra.mxu0 %v5210
        %v5635 = vpop.f32.mrf.mxu0
        %v5636 = vadd.f32 %v5623, %v5635
        %v5637 = vpop.f32.mrf.mxu0
        %5638 = vdwg.mxu0
        %v5703 = vunpack.c.l.b16 %v5078
        %v5704 = vunpack.c.h.b16 %v5078
        %v5705 = vunpack.c.l.b16 %v5079
        %v5706 = vunpack.c.h.b16 %v5079
        %v5707 = vunpack.c.l.b16 %v5080
        %v5708 = vunpack.c.h.b16 %v5080
        %v5709 = vunpack.c.l.b16 %v5081
        %v5710 = vunpack.c.h.b16 %v5081
        %v5711 = vunpack.c.l.b16 %v5082
        %v5712 = vunpack.c.h.b16 %v5082
        %v5713 = vunpack.c.l.b16 %v5083
        %v5714 = vunpack.c.h.b16 %v5083
        %v5715 = vunpack.c.l.b16 %v5084
        %v5716 = vunpack.c.h.b16 %v5084
        %v5717 = vunpack.c.l.b16 %v5085
        %v5718 = vunpack.c.h.b16 %v5085
        %v5719 = vunpack.c.l.b16 %v5086
        %v5720 = vunpack.c.h.b16 %v5086
        %v5721 = vunpack.c.l.b16 %v5087
        %v5722 = vunpack.c.h.b16 %v5087
        %v5723 = vunpack.c.l.b16 %v5088
        %v5724 = vunpack.c.h.b16 %v5088
        %v5725 = vunpack.c.l.b16 %v5089
        %v5726 = vunpack.c.h.b16 %v5089
        %v5727 = vunpack.c.l.b16 %v5090
        %v5728 = vunpack.c.h.b16 %v5090
        %v5729 = vunpack.c.l.b16 %v5091
        %v5730 = vunpack.c.h.b16 %v5091
        %v5731 = vunpack.c.l.b16 %v5092
        %v5732 = vunpack.c.h.b16 %v5092
        %v5733 = vunpack.c.l.b16 %v5093
        %v5734 = vunpack.c.h.b16 %v5093
        %v5735 = vunpack.c.l.b16 %v5094
        %v5736 = vunpack.c.h.b16 %v5094
        %v5737 = vunpack.c.l.b16 %v5095
        %v5738 = vunpack.c.h.b16 %v5095
        %v5739 = vunpack.c.l.b16 %v5096
        %v5740 = vunpack.c.h.b16 %v5096
        %v5741 = vunpack.c.l.b16 %v5097
        %v5742 = vunpack.c.h.b16 %v5097
        %v5743 = vunpack.c.l.b16 %v5098
        %v5744 = vunpack.c.h.b16 %v5098
        %v5745 = vunpack.c.l.b16 %v5099
        %v5746 = vunpack.c.h.b16 %v5099
        %v5747 = vunpack.c.l.b16 %v5100
        %v5748 = vunpack.c.h.b16 %v5100
        %v5749 = vunpack.c.l.b16 %v5101
        %v5750 = vunpack.c.h.b16 %v5101
        %v5751 = vunpack.c.l.b16 %v5102
        %v5752 = vunpack.c.h.b16 %v5102
        %v5753 = vunpack.c.l.b16 %v5103
        %v5754 = vunpack.c.h.b16 %v5103
        %v5755 = vunpack.c.l.b16 %v5104
        %v5756 = vunpack.c.h.b16 %v5104
        %v5757 = vunpack.c.l.b16 %v5105
        %v5758 = vunpack.c.h.b16 %v5105
        %v5759 = vunpack.c.l.b16 %v5106
        %v5760 = vunpack.c.h.b16 %v5106
        %v5761 = vunpack.c.l.b16 %v5107
        %v5762 = vunpack.c.h.b16 %v5107
        %v5763 = vunpack.c.l.b16 %v5108
        %v5764 = vunpack.c.h.b16 %v5108
        %v5765 = vunpack.c.l.b16 %v5109
        %v5766 = vunpack.c.h.b16 %v5109
        %v5767 = vunpack.c.l.b16 %v5110
        %v5768 = vunpack.c.h.b16 %v5110
        %v5769 = vunpack.c.l.b16 %v5111
        %v5770 = vunpack.c.h.b16 %v5111
        %v5771 = vunpack.c.l.b16 %v5112
        %v5772 = vunpack.c.h.b16 %v5112
        %v5773 = vunpack.c.l.b16 %v5113
        %v5774 = vunpack.c.h.b16 %v5113
        %v5775 = vunpack.c.l.b16 %v5114
        %v5776 = vunpack.c.h.b16 %v5114
        %v5777 = vunpack.c.l.b16 %v5115
        %v5778 = vunpack.c.h.b16 %v5115
        %v5779 = vunpack.c.l.b16 %v5116
        %v5780 = vunpack.c.h.b16 %v5116
        %v5781 = vunpack.c.l.b16 %v5117
        %v5782 = vunpack.c.h.b16 %v5117
        %v5783 = vunpack.c.l.b16 %v5118
        %v5784 = vunpack.c.h.b16 %v5118
        %v5785 = vunpack.c.l.b16 %v5119
        %v5786 = vunpack.c.h.b16 %v5119
        %v5787 = vunpack.c.l.b16 %v5120
        %v5788 = vunpack.c.h.b16 %v5120
        %v5789 = vunpack.c.l.b16 %v5121
        %v5790 = vunpack.c.h.b16 %v5121
        %v5791 = vunpack.c.l.b16 %v5122
        %v5792 = vunpack.c.h.b16 %v5122
        %v5793 = vunpack.c.l.b16 %v5123
        %v5794 = vunpack.c.h.b16 %v5123
        %v5795 = vunpack.c.l.b16 %v5124
        %v5796 = vunpack.c.h.b16 %v5124
        %v5797 = vunpack.c.l.b16 %v5125
        %v5798 = vunpack.c.h.b16 %v5125
        %v5799 = vunpack.c.l.b16 %v5126
        %v5800 = vunpack.c.h.b16 %v5126
        %v5801 = vunpack.c.l.b16 %v5127
        %v5802 = vunpack.c.h.b16 %v5127
        %v5803 = vunpack.c.l.b16 %v5128
        %v5804 = vunpack.c.h.b16 %v5128
        %v5805 = vunpack.c.l.b16 %v5129
        %v5806 = vunpack.c.h.b16 %v5129
        %v5807 = vunpack.c.l.b16 %v5130
        %v5808 = vunpack.c.h.b16 %v5130
        %v5809 = vunpack.c.l.b16 %v5131
        %v5810 = vunpack.c.h.b16 %v5131
        %v5811 = vunpack.c.l.b16 %v5132
        %v5812 = vunpack.c.h.b16 %v5132
        %v5813 = vunpack.c.l.b16 %v5133
        %v5814 = vunpack.c.h.b16 %v5133
        %v5815 = vunpack.c.l.b16 %v5134
        %v5816 = vunpack.c.h.b16 %v5134
        %v5817 = vunpack.c.l.b16 %v5135
        %v5818 = vunpack.c.h.b16 %v5135
        %v5819 = vunpack.c.l.b16 %v5136
        %v5820 = vunpack.c.h.b16 %v5136
        %v5821 = vunpack.c.l.b16 %v5137
        %v5822 = vunpack.c.h.b16 %v5137
        %v5823 = vunpack.c.l.b16 %v5138
        %v5824 = vunpack.c.h.b16 %v5138
        %v5825 = vunpack.c.l.b16 %v5139
        %v5826 = vunpack.c.h.b16 %v5139
        %v5827 = vunpack.c.l.b16 %v5140
        %v5828 = vunpack.c.h.b16 %v5140
        %v5829 = vunpack.c.l.b16 %v5141
        %v5830 = vunpack.c.h.b16 %v5141
        %v5831 = vpack.c.b16 %v5707, %v5703
        %v5832 = vpack.c.b16 %v5708, %v5704
        %v5833 = vpack.c.b16 %v5709, %v5705
        %v5834 = vpack.c.b16 %v5710, %v5706
        %v5835 = vpack.c.b16 %v5715, %v5711
        %v5836 = vpack.c.b16 %v5716, %v5712
        %v5837 = vpack.c.b16 %v5717, %v5713
        %v5838 = vpack.c.b16 %v5718, %v5714
        %v5839 = vpack.c.b16 %v5723, %v5719
        %v5840 = vpack.c.b16 %v5724, %v5720
        %v5841 = vpack.c.b16 %v5725, %v5721
        %v5842 = vpack.c.b16 %v5726, %v5722
        %v5843 = vpack.c.b16 %v5731, %v5727
        %v5844 = vpack.c.b16 %v5732, %v5728
        %v5845 = vpack.c.b16 %v5733, %v5729
        %v5846 = vpack.c.b16 %v5734, %v5730
        %v5847 = vpack.c.b16 %v5739, %v5735
        %v5848 = vpack.c.b16 %v5740, %v5736
        %v5849 = vpack.c.b16 %v5741, %v5737
        %v5850 = vpack.c.b16 %v5742, %v5738
        %v5851 = vpack.c.b16 %v5747, %v5743
        %v5852 = vpack.c.b16 %v5748, %v5744
        %v5853 = vpack.c.b16 %v5749, %v5745
        %v5854 = vpack.c.b16 %v5750, %v5746
        %v5855 = vpack.c.b16 %v5755, %v5751
        %v5856 = vpack.c.b16 %v5756, %v5752
        %v5857 = vpack.c.b16 %v5757, %v5753
        %v5858 = vpack.c.b16 %v5758, %v5754
        %v5859 = vpack.c.b16 %v5763, %v5759
        %v5860 = vpack.c.b16 %v5764, %v5760
        %v5861 = vpack.c.b16 %v5765, %v5761
        %v5862 = vpack.c.b16 %v5766, %v5762
        %v5863 = vpack.c.b16 %v5771, %v5767
        %v5864 = vpack.c.b16 %v5772, %v5768
        %v5865 = vpack.c.b16 %v5773, %v5769
        %v5866 = vpack.c.b16 %v5774, %v5770
        %v5867 = vpack.c.b16 %v5779, %v5775
        %v5868 = vpack.c.b16 %v5780, %v5776
        %v5869 = vpack.c.b16 %v5781, %v5777
        %v5870 = vpack.c.b16 %v5782, %v5778
        %v5871 = vpack.c.b16 %v5787, %v5783
        %v5872 = vpack.c.b16 %v5788, %v5784
        %v5873 = vpack.c.b16 %v5789, %v5785
        %v5874 = vpack.c.b16 %v5790, %v5786
        %v5875 = vpack.c.b16 %v5795, %v5791
        %v5876 = vpack.c.b16 %v5796, %v5792
        %v5877 = vpack.c.b16 %v5797, %v5793
        %v5878 = vpack.c.b16 %v5798, %v5794
        %v5879 = vpack.c.b16 %v5803, %v5799
        %v5880 = vpack.c.b16 %v5804, %v5800
        %v5881 = vpack.c.b16 %v5805, %v5801
        %v5882 = vpack.c.b16 %v5806, %v5802
        %v5883 = vpack.c.b16 %v5811, %v5807
        %v5884 = vpack.c.b16 %v5812, %v5808
        %v5885 = vpack.c.b16 %v5813, %v5809
        %v5886 = vpack.c.b16 %v5814, %v5810
        %v5887 = vpack.c.b16 %v5819, %v5815
        %v5888 = vpack.c.b16 %v5820, %v5816
        %v5889 = vpack.c.b16 %v5821, %v5817
        %v5890 = vpack.c.b16 %v5822, %v5818
        %v5891 = vpack.c.b16 %v5827, %v5823
        %v5892 = vpack.c.b16 %v5828, %v5824
        %v5893 = vpack.c.b16 %v5829, %v5825
        %v5894 = vpack.c.b16 %v5830, %v5826
        %5959 = vmatpush.bf16.msra.mxu0 %v5859
        %5960 = vmatpush.bf16.msra.mxu0 %v5855
        %5961 = vmatpush.bf16.msra.mxu0 %v5851
        %5962 = vmatpush.bf16.msra.mxu0 %v5847
        %5963 = vmatpush.bf16.msra.mxu0 %v5843
        %5964 = vmatpush.bf16.msra.mxu0 %v5839
        %5965 = vmatpush.bf16.msra.mxu0 %v5835
        %5966 = vmatpush.bf16.msra.mxu0 %v5831
        %5967 = vmatmul.bf16.gmra.mxu0 %v5207
        %v5968 = vpop.f32.mrf.mxu0
        %v5969 = vadd.f32 %v5558, %v5968
        %v5970 = vpop.f32.mrf.mxu0
        %5971 = vdwg.mxu0
        %5972 = vmatpush.bf16.msra.mxu0 %v5891
        %5973 = vmatpush.bf16.msra.mxu0 %v5887
        %5974 = vmatpush.bf16.msra.mxu0 %v5883
        %5975 = vmatpush.bf16.msra.mxu0 %v5879
        %5976 = vmatpush.bf16.msra.mxu0 %v5875
        %5977 = vmatpush.bf16.msra.mxu0 %v5871
        %5978 = vmatpush.bf16.msra.mxu0 %v5867
        %5979 = vmatpush.bf16.msra.mxu0 %v5863
        %5980 = vmatmul.bf16.gmra.mxu0 %v5208
        %v5981 = vpop.f32.mrf.mxu0
        %v5982 = vadd.f32 %v5969, %v5981
        %v5983 = vpop.f32.mrf.mxu0
        %5984 = vdwg.mxu0
        %5985 = vmatpush.bf16.msra.mxu0 %v5860
        %5986 = vmatpush.bf16.msra.mxu0 %v5856
        %5987 = vmatpush.bf16.msra.mxu0 %v5852
        %5988 = vmatpush.bf16.msra.mxu0 %v5848
        %5989 = vmatpush.bf16.msra.mxu0 %v5844
        %5990 = vmatpush.bf16.msra.mxu0 %v5840
        %5991 = vmatpush.bf16.msra.mxu0 %v5836
        %5992 = vmatpush.bf16.msra.mxu0 %v5832
        %5993 = vmatmul.bf16.gmra.mxu0 %v5207
        %v5994 = vpop.f32.mrf.mxu0
        %v5995 = vadd.f32 %v5584, %v5994
        %v5996 = vpop.f32.mrf.mxu0
        %5997 = vdwg.mxu0
        %5998 = vmatpush.bf16.msra.mxu0 %v5892
        %5999 = vmatpush.bf16.msra.mxu0 %v5888
        %6000 = vmatpush.bf16.msra.mxu0 %v5884
        %6001 = vmatpush.bf16.msra.mxu0 %v5880
        %6002 = vmatpush.bf16.msra.mxu0 %v5876
        %6003 = vmatpush.bf16.msra.mxu0 %v5872
        %6004 = vmatpush.bf16.msra.mxu0 %v5868
        %6005 = vmatpush.bf16.msra.mxu0 %v5864
        %6006 = vmatmul.bf16.gmra.mxu0 %v5208
        %v6007 = vpop.f32.mrf.mxu0
        %v6008 = vadd.f32 %v5995, %v6007
        %v6009 = vpop.f32.mrf.mxu0
        %6010 = vdwg.mxu0
        %6011 = vmatpush.bf16.msra.mxu0 %v5861
        %6012 = vmatpush.bf16.msra.mxu0 %v5857
        %6013 = vmatpush.bf16.msra.mxu0 %v5853
        %6014 = vmatpush.bf16.msra.mxu0 %v5849
        %6015 = vmatpush.bf16.msra.mxu0 %v5845
        %6016 = vmatpush.bf16.msra.mxu0 %v5841
        %6017 = vmatpush.bf16.msra.mxu0 %v5837
        %6018 = vmatpush.bf16.msra.mxu0 %v5833
        %6019 = vmatmul.bf16.gmra.mxu0 %v5207
        %v6020 = vpop.f32.mrf.mxu0
        %v6021 = vadd.f32 %v5610, %v6020
        %v6022 = vpop.f32.mrf.mxu0
        %6023 = vdwg.mxu0
        %6024 = vmatpush.bf16.msra.mxu0 %v5893
        %6025 = vmatpush.bf16.msra.mxu0 %v5889
        %6026 = vmatpush.bf16.msra.mxu0 %v5885
        %6027 = vmatpush.bf16.msra.mxu0 %v5881
        %6028 = vmatpush.bf16.msra.mxu0 %v5877
        %6029 = vmatpush.bf16.msra.mxu0 %v5873
        %6030 = vmatpush.bf16.msra.mxu0 %v5869
        %6031 = vmatpush.bf16.msra.mxu0 %v5865
        %6032 = vmatmul.bf16.gmra.mxu0 %v5208
        %v6033 = vpop.f32.mrf.mxu0
        %v6034 = vadd.f32 %v6021, %v6033
        %v6035 = vpop.f32.mrf.mxu0
        %6036 = vdwg.mxu0
        %6037 = vmatpush.bf16.msra.mxu0 %v5862
        %6038 = vmatpush.bf16.msra.mxu0 %v5858
        %6039 = vmatpush.bf16.msra.mxu0 %v5854
        %6040 = vmatpush.bf16.msra.mxu0 %v5850
        %6041 = vmatpush.bf16.msra.mxu0 %v5846
        %6042 = vmatpush.bf16.msra.mxu0 %v5842
        %6043 = vmatpush.bf16.msra.mxu0 %v5838
        %6044 = vmatpush.bf16.msra.mxu0 %v5834
        %6045 = vmatmul.bf16.gmra.mxu0 %v5207
        %v6046 = vpop.f32.mrf.mxu0
        %v6047 = vadd.f32 %v5636, %v6046
        %v6048 = vpop.f32.mrf.mxu0
        %6049 = vdwg.mxu0
        %6050 = vmatpush.bf16.msra.mxu0 %v5894
        %6051 = vmatpush.bf16.msra.mxu0 %v5890
        %6052 = vmatpush.bf16.msra.mxu0 %v5886
        %6053 = vmatpush.bf16.msra.mxu0 %v5882
        %6054 = vmatpush.bf16.msra.mxu0 %v5878
        %6055 = vmatpush.bf16.msra.mxu0 %v5874
        %6056 = vmatpush.bf16.msra.mxu0 %v5870
        %6057 = vmatpush.bf16.msra.mxu0 %v5866
        %6058 = vmatmul.bf16.gmra.mxu0 %v5208
        %v6059 = vpop.f32.mrf.mxu0
        %v6060 = vadd.f32 %v6047, %v6059
        %v6061 = vpop.f32.mrf.mxu0
        %6062 = vdwg.mxu0
        %v6063 = vpack.c.bf16 %v6008, %v5982
        %v6064 = vpack.c.bf16 %v6060, %v6034
        %6065 = vmatpush.bf16.msra.mxu0 %v5435
        %6066 = vmatpush.bf16.msra.mxu0 %v5431
        %6067 = vmatpush.bf16.msra.mxu0 %v5427
        %6068 = vmatpush.bf16.msra.mxu0 %v5423
        %6069 = vmatpush.bf16.msra.mxu0 %v5419
        %6070 = vmatpush.bf16.msra.mxu0 %v5415
        %6071 = vmatpush.bf16.msra.mxu0 %v5411
        %6072 = vmatpush.bf16.msra.mxu0 %v5407
        %6073 = vmatmul.bf16.gmra.mxu0 %v5213
        %v6074 = vpop.f32.mrf.mxu0
        %v6075 = vadd.f32 0.0, %v6074
        %v6076 = vpop.f32.mrf.mxu0
        %6077 = vdwg.mxu0
        %6078 = vmatpush.bf16.msra.mxu0 %v5467
        %6079 = vmatpush.bf16.msra.mxu0 %v5463
        %6080 = vmatpush.bf16.msra.mxu0 %v5459
        %6081 = vmatpush.bf16.msra.mxu0 %v5455
        %6082 = vmatpush.bf16.msra.mxu0 %v5451
        %6083 = vmatpush.bf16.msra.mxu0 %v5447
        %6084 = vmatpush.bf16.msra.mxu0 %v5443
        %6085 = vmatpush.bf16.msra.mxu0 %v5439
        %6086 = vmatmul.bf16.gmra.mxu0 %v5214
        %v6087 = vpop.f32.mrf.mxu0
        %v6088 = vadd.f32 %v6075, %v6087
        %v6089 = vpop.f32.mrf.mxu0
        %6090 = vdwg.mxu0
        %6091 = vmatpush.bf16.msra.mxu0 %v5436
        %6092 = vmatpush.bf16.msra.mxu0 %v5432
        %6093 = vmatpush.bf16.msra.mxu0 %v5428
        %6094 = vmatpush.bf16.msra.mxu0 %v5424
        %6095 = vmatpush.bf16.msra.mxu0 %v5420
        %6096 = vmatpush.bf16.msra.mxu0 %v5416
        %6097 = vmatpush.bf16.msra.mxu0 %v5412
        %6098 = vmatpush.bf16.msra.mxu0 %v5408
        %6099 = vmatmul.bf16.gmra.mxu0 %v5213
        %v6100 = vpop.f32.mrf.mxu0
        %v6101 = vadd.f32 0.0, %v6100
        %v6102 = vpop.f32.mrf.mxu0
        %6103 = vdwg.mxu0
        %6104 = vmatpush.bf16.msra.mxu0 %v5468
        %6105 = vmatpush.bf16.msra.mxu0 %v5464
        %6106 = vmatpush.bf16.msra.mxu0 %v5460
        %6107 = vmatpush.bf16.msra.mxu0 %v5456
        %6108 = vmatpush.bf16.msra.mxu0 %v5452
        %6109 = vmatpush.bf16.msra.mxu0 %v5448
        %6110 = vmatpush.bf16.msra.mxu0 %v5444
        %6111 = vmatpush.bf16.msra.mxu0 %v5440
        %6112 = vmatmul.bf16.gmra.mxu0 %v5214
        %v6113 = vpop.f32.mrf.mxu0
        %v6114 = vadd.f32 %v6101, %v6113
        %v6115 = vpop.f32.mrf.mxu0
        %6116 = vdwg.mxu0
        %6117 = vmatpush.bf16.msra.mxu0 %v5437
        %6118 = vmatpush.bf16.msra.mxu0 %v5433
        %6119 = vmatpush.bf16.msra.mxu0 %v5429
        %6120 = vmatpush.bf16.msra.mxu0 %v5425
        %6121 = vmatpush.bf16.msra.mxu0 %v5421
        %6122 = vmatpush.bf16.msra.mxu0 %v5417
        %6123 = vmatpush.bf16.msra.mxu0 %v5413
        %6124 = vmatpush.bf16.msra.mxu0 %v5409
        %6125 = vmatmul.bf16.gmra.mxu0 %v5213
        %v6126 = vpop.f32.mrf.mxu0
        %v6127 = vadd.f32 0.0, %v6126
        %v6128 = vpop.f32.mrf.mxu0
        %6129 = vdwg.mxu0
        %6130 = vmatpush.bf16.msra.mxu0 %v5469
        %6131 = vmatpush.bf16.msra.mxu0 %v5465
        %6132 = vmatpush.bf16.msra.mxu0 %v5461
        %6133 = vmatpush.bf16.msra.mxu0 %v5457
        %6134 = vmatpush.bf16.msra.mxu0 %v5453
        %6135 = vmatpush.bf16.msra.mxu0 %v5449
        %6136 = vmatpush.bf16.msra.mxu0 %v5445
        %6137 = vmatpush.bf16.msra.mxu0 %v5441
        %6138 = vmatmul.bf16.gmra.mxu0 %v5214
        %v6139 = vpop.f32.mrf.mxu0
        %v6140 = vadd.f32 %v6127, %v6139
        %v6141 = vpop.f32.mrf.mxu0
        %6142 = vdwg.mxu0
        %6143 = vmatpush.bf16.msra.mxu0 %v5438
        %6144 = vmatpush.bf16.msra.mxu0 %v5434
        %6145 = vmatpush.bf16.msra.mxu0 %v5430
        %6146 = vmatpush.bf16.msra.mxu0 %v5426
        %6147 = vmatpush.bf16.msra.mxu0 %v5422
        %6148 = vmatpush.bf16.msra.mxu0 %v5418
        %6149 = vmatpush.bf16.msra.mxu0 %v5414
        %6150 = vmatpush.bf16.msra.mxu0 %v5410
        %6151 = vmatmul.bf16.gmra.mxu0 %v5213
        %v6152 = vpop.f32.mrf.mxu0
        %v6153 = vadd.f32 0.0, %v6152
        %v6154 = vpop.f32.mrf.mxu0
        %6155 = vdwg.mxu0
        %6156 = vmatpush.bf16.msra.mxu0 %v5470
        %6157 = vmatpush.bf16.msra.mxu0 %v5466
        %6158 = vmatpush.bf16.msra.mxu0 %v5462
        %6159 = vmatpush.bf16.msra.mxu0 %v5458
        %6160 = vmatpush.bf16.msra.mxu0 %v5454
        %6161 = vmatpush.bf16.msra.mxu0 %v5450
        %6162 = vmatpush.bf16.msra.mxu0 %v5446
        %6163 = vmatpush.bf16.msra.mxu0 %v5442
        %6164 = vmatmul.bf16.gmra.mxu0 %v5214
        %v6165 = vpop.f32.mrf.mxu0
        %v6166 = vadd.f32 %v6153, %v6165
        %v6167 = vpop.f32.mrf.mxu0
        %6168 = vdwg.mxu0
        %6169 = vmatpush.bf16.msra.mxu0 %v5859
        %6170 = vmatpush.bf16.msra.mxu0 %v5855
        %6171 = vmatpush.bf16.msra.mxu0 %v5851
        %6172 = vmatpush.bf16.msra.mxu0 %v5847
        %6173 = vmatpush.bf16.msra.mxu0 %v5843
        %6174 = vmatpush.bf16.msra.mxu0 %v5839
        %6175 = vmatpush.bf16.msra.mxu0 %v5835
        %6176 = vmatpush.bf16.msra.mxu0 %v5831
        %6177 = vmatmul.bf16.gmra.mxu0 %v5211
        %v6178 = vpop.f32.mrf.mxu0
        %v6179 = vadd.f32 %v6088, %v6178
        %v6180 = vpop.f32.mrf.mxu0
        %6181 = vdwg.mxu0
        %6182 = vmatpush.bf16.msra.mxu0 %v5891
        %6183 = vmatpush.bf16.msra.mxu0 %v5887
        %6184 = vmatpush.bf16.msra.mxu0 %v5883
        %6185 = vmatpush.bf16.msra.mxu0 %v5879
        %6186 = vmatpush.bf16.msra.mxu0 %v5875
        %6187 = vmatpush.bf16.msra.mxu0 %v5871
        %6188 = vmatpush.bf16.msra.mxu0 %v5867
        %6189 = vmatpush.bf16.msra.mxu0 %v5863
        %6190 = vmatmul.bf16.gmra.mxu0 %v5212
        %v6191 = vpop.f32.mrf.mxu0
        %v6192 = vadd.f32 %v6179, %v6191
        %v6193 = vpop.f32.mrf.mxu0
        %6194 = vdwg.mxu0
        %6195 = vmatpush.bf16.msra.mxu0 %v5860
        %6196 = vmatpush.bf16.msra.mxu0 %v5856
        %6197 = vmatpush.bf16.msra.mxu0 %v5852
        %6198 = vmatpush.bf16.msra.mxu0 %v5848
        %6199 = vmatpush.bf16.msra.mxu0 %v5844
        %6200 = vmatpush.bf16.msra.mxu0 %v5840
        %6201 = vmatpush.bf16.msra.mxu0 %v5836
        %6202 = vmatpush.bf16.msra.mxu0 %v5832
        %6203 = vmatmul.bf16.gmra.mxu0 %v5211
        %v6204 = vpop.f32.mrf.mxu0
        %v6205 = vadd.f32 %v6114, %v6204
        %v6206 = vpop.f32.mrf.mxu0
        %6207 = vdwg.mxu0
        %6208 = vmatpush.bf16.msra.mxu0 %v5892
        %6209 = vmatpush.bf16.msra.mxu0 %v5888
        %6210 = vmatpush.bf16.msra.mxu0 %v5884
        %6211 = vmatpush.bf16.msra.mxu0 %v5880
        %6212 = vmatpush.bf16.msra.mxu0 %v5876
        %6213 = vmatpush.bf16.msra.mxu0 %v5872
        %6214 = vmatpush.bf16.msra.mxu0 %v5868
        %6215 = vmatpush.bf16.msra.mxu0 %v5864
        %6216 = vmatmul.bf16.gmra.mxu0 %v5212
        %v6217 = vpop.f32.mrf.mxu0
        %v6218 = vadd.f32 %v6205, %v6217
        %v6219 = vpop.f32.mrf.mxu0
        %6220 = vdwg.mxu0
        %6221 = vmatpush.bf16.msra.mxu0 %v5861
        %6222 = vmatpush.bf16.msra.mxu0 %v5857
        %6223 = vmatpush.bf16.msra.mxu0 %v5853
        %6224 = vmatpush.bf16.msra.mxu0 %v5849
        %6225 = vmatpush.bf16.msra.mxu0 %v5845
        %6226 = vmatpush.bf16.msra.mxu0 %v5841
        %6227 = vmatpush.bf16.msra.mxu0 %v5837
        %6228 = vmatpush.bf16.msra.mxu0 %v5833
        %6229 = vmatmul.bf16.gmra.mxu0 %v5211
        %v6230 = vpop.f32.mrf.mxu0
        %v6231 = vadd.f32 %v6140, %v6230
        %v6232 = vpop.f32.mrf.mxu0
        %6233 = vdwg.mxu0
        %6234 = vmatpush.bf16.msra.mxu0 %v5893
        %6235 = vmatpush.bf16.msra.mxu0 %v5889
        %6236 = vmatpush.bf16.msra.mxu0 %v5885
        %6237 = vmatpush.bf16.msra.mxu0 %v5881
        %6238 = vmatpush.bf16.msra.mxu0 %v5877
        %6239 = vmatpush.bf16.msra.mxu0 %v5873
        %6240 = vmatpush.bf16.msra.mxu0 %v5869
        %6241 = vmatpush.bf16.msra.mxu0 %v5865
        %6242 = vmatmul.bf16.gmra.mxu0 %v5212
        %v6243 = vpop.f32.mrf.mxu0
        %v6244 = vadd.f32 %v6231, %v6243
        %v6245 = vpop.f32.mrf.mxu0
        %6246 = vdwg.mxu0
        %6247 = vmatpush.bf16.msra.mxu0 %v5862
        %6248 = vmatpush.bf16.msra.mxu0 %v5858
        %6249 = vmatpush.bf16.msra.mxu0 %v5854
        %6250 = vmatpush.bf16.msra.mxu0 %v5850
        %6251 = vmatpush.bf16.msra.mxu0 %v5846
        %6252 = vmatpush.bf16.msra.mxu0 %v5842
        %6253 = vmatpush.bf16.msra.mxu0 %v5838
        %6254 = vmatpush.bf16.msra.mxu0 %v5834
        %6255 = vmatmul.bf16.gmra.mxu0 %v5211
        %v6256 = vpop.f32.mrf.mxu0
        %v6257 = vadd.f32 %v6166, %v6256
        %v6258 = vpop.f32.mrf.mxu0
        %6259 = vdwg.mxu0
        %6260 = vmatpush.bf16.msra.mxu0 %v5894
        %6261 = vmatpush.bf16.msra.mxu0 %v5890
        %6262 = vmatpush.bf16.msra.mxu0 %v5886
        %6263 = vmatpush.bf16.msra.mxu0 %v5882
        %6264 = vmatpush.bf16.msra.mxu0 %v5878
        %6265 = vmatpush.bf16.msra.mxu0 %v5874
        %6266 = vmatpush.bf16.msra.mxu0 %v5870
        %6267 = vmatpush.bf16.msra.mxu0 %v5866
        %6268 = vmatmul.bf16.gmra.mxu0 %v5212
        %v6269 = vpop.f32.mrf.mxu0
        %v6270 = vadd.f32 %v6257, %v6269
        %v6271 = vpop.f32.mrf.mxu0
        %6272 = vdwg.mxu0
        %v6273 = vpack.c.bf16 %v6218, %v6192
        %v6274 = vpack.c.bf16 %v6270, %v6244
        %vm6275 = vcmask 265216
        %6276 = vst.msk [vmem:[#allocation8] sm:$0xf] %vm6275, 0
        %vm6277 = vcmask 535816
        %6278 = vst.msk [vmem:[#allocation8 + $0x20] sm:$0xf] %vm6277, 0
        %6280 = vrot.lane.b32.xlu0 %v6063, 33
        %v6281 = vpop.permute.xlu0 %6280
        %vm6283 = vcmask 527624
        %6284 = vst.msk [vmem:[#allocation8] sm:$0xf] %vm6283, %v6281
        %6286 = vrot.lane.b32.xlu0 %v6273, 65
        %v6287 = vpop.permute.xlu0 %6286
        %vm6289 = vcmask 790024
        %6290 = vst.msk [vmem:[#allocation8] sm:$0xf] %vm6289, %v6287
        %6291 = vrot.lane.b32.xlu0 %v6063, 65
        %v6292 = vpop.permute.xlu0 %6291
        %v6293 = vrot.slane %v6292, 4
        %v6294 = vsel %vm4312, %v6293, %v6292
        %vm6296 = vcmask 1044232
        %vm6297 = vmor %vm4318, %vm6296
        %6298 = vst.msk [vmem:[#allocation8] sm:$0xff] %vm6297, %v6294
        %6299 = vrot.lane.b32.xlu0 %v6273, 97
        %v6300 = vpop.permute.xlu0 %6299
        %vm6302 = vcmask 265224
        %6303 = vst.msk [vmem:[#allocation8 + $0x4] sm:$0xf] %vm6302, %v6300
        %6304 = vrot.lane.b32.xlu0 %v6063, 97
        %v6305 = vpop.permute.xlu0 %6304
        %6307 = vst.msk [vmem:[#allocation8 + $0x4] sm:$0xf] %vm6283, %v6305
        %6308 = vrot.lane.b32.xlu0 %v6273, 1
        %v6309 = vpop.permute.xlu0 %6308
        %6311 = vst.msk [vmem:[#allocation8 + $0x4] sm:$0xf] %vm6289, %v6309
        %6312 = vrot.lane.b32.xlu0 %v6063, 1
        %v6313 = vpop.permute.xlu0 %6312
        %v6314 = vrot.slane %v6313, 4
        %v6315 = vsel %vm4385, %v6314, %v6313
        %6317 = vst.msk [vmem:[#allocation8 + $0x4] sm:$0xff] %vm6297, %v6315
        %6318 = vrot.lane.b32.xlu0 %v6273, 33
        %v6319 = vpop.permute.xlu0 %6318
        %6321 = vst.msk [vmem:[#allocation8 + $0x8] sm:$0xf] %vm6302, %v6319
        %v6322 = vrot.slane %v6281, 4
        %vm6323 = vcmask 269312
        %v6324 = vsel %vm6323, %v6281, %v6322
        %6326 = vst.msk [vmem:[#allocation8 + $0x8] sm:$0xf] %vm6283, %v6324
        %v6327 = vrot.slane %v6287, 4
        %v6328 = vsel %vm4312, %v6287, %v6327
        %6330 = vst.msk [vmem:[#allocation8 + $0x8] sm:$0xf] %vm6289, %v6328
        %v6331 = vsel %vm4312, %v6292, %v6293
        %6333 = vst.msk [vmem:[#allocation8 + $0x8] sm:$0xff] %vm6297, %v6331
        %v6334 = vrot.slane %v6300, 4
        %6336 = vst.msk [vmem:[#allocation8 + $0xc] sm:$0xf] %vm6302, %v6334
        %v6337 = vrot.slane %v6305, 4
        %6339 = vst.msk [vmem:[#allocation8 + $0xc] sm:$0xf] %vm6283, %v6337
        %v6340 = vrot.slane %v6309, 4
        %v6341 = vsel %vm4385, %v6309, %v6340
        %6343 = vst.msk [vmem:[#allocation8 + $0xc] sm:$0xf] %vm6289, %v6341
        %v6344 = vsel %vm4385, %v6313, %v6314
        %6346 = vst.msk [vmem:[#allocation8 + $0xc] sm:$0xff] %vm6297, %v6344
        %v6347 = vrot.slane %v6319, 4
        %6349 = vst.msk [vmem:[#allocation8 + $0x10] sm:$0xf] %vm6302, %v6347
        %6351 = vrot.lane.b32.xlu0 %v6064, 33
        %v6352 = vpop.permute.xlu0 %6351
        %6354 = vst.msk [vmem:[#allocation8 + $0x10] sm:$0xf] %vm6283, %v6352
        %6356 = vrot.lane.b32.xlu0 %v6274, 65
        %v6357 = vpop.permute.xlu0 %6356
        %6359 = vst.msk [vmem:[#allocation8 + $0x10] sm:$0xf] %vm6289, %v6357
        %6360 = vrot.lane.b32.xlu0 %v6064, 65
        %v6361 = vpop.permute.xlu0 %6360
        %v6362 = vrot.slane %v6361, 4
        %v6363 = vsel %vm4312, %v6362, %v6361
        %6365 = vst.msk [vmem:[#allocation8 + $0x10] sm:$0xff] %vm6297, %v6363
        %6366 = vrot.lane.b32.xlu0 %v6274, 97
        %v6367 = vpop.permute.xlu0 %6366
        %6369 = vst.msk [vmem:[#allocation8 + $0x14] sm:$0xf] %vm6302, %v6367
        %6370 = vrot.lane.b32.xlu0 %v6064, 97
        %v6371 = vpop.permute.xlu0 %6370
        %6373 = vst.msk [vmem:[#allocation8 + $0x14] sm:$0xf] %vm6283, %v6371
        %6374 = vrot.lane.b32.xlu0 %v6274, 1
        %v6375 = vpop.permute.xlu0 %6374
        %6377 = vst.msk [vmem:[#allocation8 + $0x14] sm:$0xf] %vm6289, %v6375
        %6378 = vrot.lane.b32.xlu0 %v6064, 1
        %v6379 = vpop.permute.xlu0 %6378
        %v6380 = vrot.slane %v6379, 4
        %v6381 = vsel %vm4385, %v6380, %v6379
        %6383 = vst.msk [vmem:[#allocation8 + $0x14] sm:$0xff] %vm6297, %v6381
        %6384 = vrot.lane.b32.xlu0 %v6274, 33
        %v6385 = vpop.permute.xlu0 %6384
        %6387 = vst.msk [vmem:[#allocation8 + $0x18] sm:$0xf] %vm6302, %v6385
        %v6388 = vrot.slane %v6352, 4
        %v6389 = vsel %vm6323, %v6352, %v6388
        %6391 = vst.msk [vmem:[#allocation8 + $0x18] sm:$0xf] %vm6283, %v6389
        %v6392 = vrot.slane %v6357, 4
        %v6393 = vsel %vm4312, %v6357, %v6392
        %6395 = vst.msk [vmem:[#allocation8 + $0x18] sm:$0xf] %vm6289, %v6393
        %v6396 = vsel %vm4312, %v6361, %v6362
        %6398 = vst.msk [vmem:[#allocation8 + $0x18] sm:$0xff] %vm6297, %v6396
        %v6399 = vrot.slane %v6367, 4
        %6401 = vst.msk [vmem:[#allocation8 + $0x1c] sm:$0xf] %vm6302, %v6399
        %v6402 = vrot.slane %v6371, 4
        %6404 = vst.msk [vmem:[#allocation8 + $0x1c] sm:$0xf] %vm6283, %v6402
        %v6405 = vrot.slane %v6375, 4
        %v6406 = vsel %vm4385, %v6375, %v6405
        %6408 = vst.msk [vmem:[#allocation8 + $0x1c] sm:$0xf] %vm6289, %v6406
        %v6409 = vsel %vm4385, %v6379, %v6380
        %6411 = vst.msk [vmem:[#allocation8 + $0x1c] sm:$0xff] %vm6297, %v6409
        %v6412 = vrot.slane %v6385, 4
        %6414 = vst.msk [vmem:[#allocation8 + $0x20] sm:$0xf] %vm6302, %v6412
        %v6415 = vadd.s32 %v1424, 256
        %v6416 = vadd.s32 %v1424, 384
        %v6417 = vadd.s32 %v1424, 512
        %v6418 = vadd.s32 %v1424, 640
        %v6419 = vadd.s32 %v1424, 768
        %v6420 = vadd.s32 %v1424, 896
        %v6421 = vand.u32 %v1424, 31
        %v6422 = vand.u32 %v4400, 31
        %v6423 = vand.u32 %v6415, 31
        %v6424 = vand.u32 %v6416, 31
        %v6425 = vand.u32 %v6417, 31
        %v6426 = vand.u32 %v6418, 31
        %v6427 = vand.u32 %v6419, 31
        %v6428 = vand.u32 %v6420, 31
        %vm6429 = vcmp.ge.s32.totalorder %v6421, 1
        %vm6430 = vcmp.ge.s32.totalorder %v6422, 1
        %vm6431 = vcmp.ge.s32.totalorder %v6423, 1
        %vm6432 = vcmp.ge.s32.totalorder %v6424, 1
        %vm6433 = vcmp.ge.s32.totalorder %v6425, 1
        %vm6434 = vcmp.ge.s32.totalorder %v6426, 1
        %vm6435 = vcmp.ge.s32.totalorder %v6427, 1
        %vm6436 = vcmp.ge.s32.totalorder %v6428, 1
        %vm6437 = vcmp.le.s32.totalorder %v6421, 30
        %vm6438 = vcmp.le.s32.totalorder %v6422, 30
        %vm6439 = vcmp.le.s32.totalorder %v6423, 30
        %vm6440 = vcmp.le.s32.totalorder %v6424, 30
        %vm6441 = vcmp.le.s32.totalorder %v6425, 30
        %vm6442 = vcmp.le.s32.totalorder %v6426, 30
        %vm6443 = vcmp.le.s32.totalorder %v6427, 30
        %vm6444 = vcmp.le.s32.totalorder %v6428, 30
        %v6445 = vld [vmem:[#allocation8] sm:$0xff]
        %v6446 = vld [vmem:[#allocation8 + $0x8] sm:$0xff]
        %v6447 = vld [vmem:[#allocation8 + $0x10] sm:$0xff]
        %v6448 = vld [vmem:[#allocation8 + $0x18] sm:$0xff]
        %vm6449 = vmpackc.low %vm6430, %vm6429
        %vm6450 = vmpackc.low %vm6432, %vm6431
        %vm6451 = vmpackc.low %vm6434, %vm6433
        %vm6452 = vmpackc.low %vm6436, %vm6435
        %v6453 = vsel %vm6449, %v6445, 0
        %v6454 = vsel %vm6450, %v6446, 0
        %v6455 = vsel %vm6451, %v6447, 0
        %v6456 = vsel %vm6452, %v6448, 0
        %6457 = vst [vmem:[#allocation9] sm:$0xff] %v6453
        %6458 = vst [vmem:[#allocation9 + $0x8] sm:$0xff] %v6454
        %6459 = vst [vmem:[#allocation9 + $0x10] sm:$0xff] %v6455
        %6460 = vst [vmem:[#allocation9 + $0x18] sm:$0xff] %v6456
        %v6461 = vld [vmem:[#allocation8] sm:$0xff]
        %v6462 = vld [vmem:[#allocation8 + $0x8] sm:$0xff]
        %v6463 = vld [vmem:[#allocation8 + $0x10] sm:$0xff]
        %v6464 = vld [vmem:[#allocation8 + $0x18] sm:$0xff]
        %v6465 = vld [vmem:[#allocation8 + $0x20] sm:$0xf]
        %6471 = vrot.lane.b32.xlu0 %v6461, 127
        %v6472 = vpop.permute.xlu0 %6471
        %6473 = vrot.lane.b32.xlu0 %v6462, 127
        %v6474 = vpop.permute.xlu0 %6473
        %6475 = vrot.lane.b32.xlu0 %v6463, 127
        %v6476 = vpop.permute.xlu0 %6475
        %6477 = vrot.lane.b32.xlu0 %v6464, 127
        %v6478 = vpop.permute.xlu0 %6477
        %6479 = vrot.lane.b32.xlu0 %v6465, 127
        %v6480 = vpop.permute.xlu0 %6479
        %v6481 = vrot.slane %v6472, 4
        %v6482 = vrot.slane %v6474, 4
        %v6483 = vrot.slane %v6476, 4
        %v6484 = vrot.slane %v6478, 4
        %v6485 = vrot.slane %v6480, 4
        %v6486 = vsel %vm4434, %v6481, %v6482
        %v6487 = vsel %vm4436, %v6472, %v6486
        %v6488 = vsel %vm4434, %v6482, %v6483
        %v6489 = vsel %vm4436, %v6474, %v6488
        %v6490 = vsel %vm4434, %v6483, %v6484
        %v6491 = vsel %vm4436, %v6476, %v6490
        %v6492 = vsel %vm4434, %v6484, %v6485
        %v6493 = vsel %vm4436, %v6478, %v6492
        %6498 = vst [vmem:[#allocation9 + $0x20] sm:$0xff] %v6487
        %6499 = vst [vmem:[#allocation9 + $0x28] sm:$0xff] %v6489
        %6500 = vst [vmem:[#allocation9 + $0x30] sm:$0xff] %v6491
        %6501 = vst [vmem:[#allocation9 + $0x38] sm:$0xff] %v6493
        %v6502 = vld [vmem:[#allocation8] sm:$0xff]
        %v6503 = vld [vmem:[#allocation8 + $0x8] sm:$0xff]
        %v6504 = vld [vmem:[#allocation8 + $0x10] sm:$0xff]
        %v6505 = vld [vmem:[#allocation8 + $0x18] sm:$0xff]
        %v6506 = vld [vmem:[#allocation8 + $0x20] sm:$0xf]
        %vm6507 = vmpackc.low %vm6438, %vm6437
        %vm6508 = vmpackc.low %vm6440, %vm6439
        %vm6509 = vmpackc.low %vm6442, %vm6441
        %vm6510 = vmpackc.low %vm6444, %vm6443
        %v6511 = vsel %vm6507, 65537, 0
        %v6512 = vsel %vm6508, 65537, 0
        %v6513 = vsel %vm6509, 65537, 0
        %v6514 = vsel %vm6510, 65537, 0
        %6515 = vrot.lane.b32.xlu0 %v6511, 2
        %v6516 = vpop.permute.xlu0 %6515
        %6517 = vrot.lane.b32.xlu0 %v6512, 2
        %v6518 = vpop.permute.xlu0 %6517
        %6519 = vrot.lane.b32.xlu0 %v6513, 2
        %v6520 = vpop.permute.xlu0 %6519
        %6521 = vrot.lane.b32.xlu0 %v6514, 2
        %v6522 = vpop.permute.xlu0 %6521
        %v6523 = vrot.slane %v6516, 4
        %v6524 = vrot.slane %v6518, 4
        %v6525 = vrot.slane %v6520, 4
        %v6526 = vrot.slane %v6522, 4
        %v6527 = vsel %vm4453, %v6523, %v6516
        %v6528 = vsel %vm4434, %v6523, %v6524
        %v6529 = vsel %vm4453, %v6528, %v6518
        %v6530 = vsel %vm4434, %v6524, %v6525
        %v6531 = vsel %vm4453, %v6530, %v6520
        %v6532 = vsel %vm4434, %v6525, %v6526
        %v6533 = vsel %vm4453, %v6532, %v6522
        %v6534 = vunpack.c.l.b16 %v6527
        %v6535 = vunpack.c.h.b16 %v6527
        %v6536 = vunpack.c.l.b16 0
        %v6537 = vunpack.c.h.b16 0
        %vm6538 = vcmp.ne.s32.totalorder %v6534, %v6536
        %vm6539 = vcmp.ne.s32.totalorder %v6535, %v6537
        %vm6540 = vmpackc.low %vm6539, %vm6538
        %v6541 = vunpack.c.l.b16 %v6529
        %v6542 = vunpack.c.h.b16 %v6529
        %v6543 = vunpack.c.l.b16 0
        %v6544 = vunpack.c.h.b16 0
        %vm6545 = vcmp.ne.s32.totalorder %v6541, %v6543
        %vm6546 = vcmp.ne.s32.totalorder %v6542, %v6544
        %vm6547 = vmpackc.low %vm6546, %vm6545
        %v6548 = vunpack.c.l.b16 %v6531
        %v6549 = vunpack.c.h.b16 %v6531
        %v6550 = vunpack.c.l.b16 0
        %v6551 = vunpack.c.h.b16 0
        %vm6552 = vcmp.ne.s32.totalorder %v6548, %v6550
        %vm6553 = vcmp.ne.s32.totalorder %v6549, %v6551
        %vm6554 = vmpackc.low %vm6553, %vm6552
        %v6555 = vunpack.c.l.b16 %v6533
        %v6556 = vunpack.c.h.b16 %v6533
        %v6557 = vunpack.c.l.b16 0
        %v6558 = vunpack.c.h.b16 0
        %vm6559 = vcmp.ne.s32.totalorder %v6555, %v6557
        %vm6560 = vcmp.ne.s32.totalorder %v6556, %v6558
        %vm6561 = vmpackc.low %vm6560, %vm6559
        %v6562 = vunpack.c.l.b16 %v6526
        %v6563 = vunpack.c.h.b16 %v6526
        %v6564 = vunpack.c.l.b16 0
        %v6565 = vunpack.c.h.b16 0
        %vm6566 = vcmp.ne.s32.totalorder %v6562, %v6564
        %vm6567 = vcmp.ne.s32.totalorder %v6563, %v6565
        %vm6568 = vmpackc.low %vm6567, %vm6566
        %v6569 = vsel %vm6540, %v6502, 0
        %v6570 = vsel %vm6547, %v6503, 0
        %v6571 = vsel %vm6554, %v6504, 0
        %v6572 = vsel %vm6561, %v6505, 0
        %v6573 = vsel %vm6568, %v6506, 0
        %6579 = vrot.lane.b32.xlu0 %v6569, 126
        %v6580 = vpop.permute.xlu0 %6579
        %6581 = vrot.lane.b32.xlu0 %v6570, 126
        %v6582 = vpop.permute.xlu0 %6581
        %6583 = vrot.lane.b32.xlu0 %v6571, 126
        %v6584 = vpop.permute.xlu0 %6583
        %6585 = vrot.lane.b32.xlu0 %v6572, 126
        %v6586 = vpop.permute.xlu0 %6585
        %6587 = vrot.lane.b32.xlu0 %v6573, 126
        %v6588 = vpop.permute.xlu0 %6587
        %v6589 = vrot.slane %v6580, 4
        %v6590 = vrot.slane %v6582, 4
        %v6591 = vrot.slane %v6584, 4
        %v6592 = vrot.slane %v6586, 4
        %v6593 = vrot.slane %v6588, 4
        %v6594 = vsel %vm4434, %v6589, %v6590
        %v6595 = vsel %vm4490, %v6580, %v6594
        %v6596 = vsel %vm4434, %v6590, %v6591
        %v6597 = vsel %vm4490, %v6582, %v6596
        %v6598 = vsel %vm4434, %v6591, %v6592
        %v6599 = vsel %vm4490, %v6584, %v6598
        %v6600 = vsel %vm4434, %v6592, %v6593
        %v6601 = vsel %vm4490, %v6586, %v6600
        %6606 = vst [vmem:[#allocation9 + $0x40] sm:$0xff] %v6595
        %6607 = vst [vmem:[#allocation9 + $0x48] sm:$0xff] %v6597
        %6608 = vst [vmem:[#allocation9 + $0x50] sm:$0xff] %v6599
        %6609 = vst [vmem:[#allocation9 + $0x58] sm:$0xff] %v6601
        %v6610 = vld [vmem:[#allocation8] sm:$0xff]
        %v6611 = vld [vmem:[#allocation8 + $0x8] sm:$0xff]
        %v6612 = vld [vmem:[#allocation8 + $0x10] sm:$0xff]
        %v6613 = vld [vmem:[#allocation8 + $0x18] sm:$0xff]
        %v6614 = vld [vmem:[#allocation8 + $0x20] sm:$0xf]
        %v6615 = vsel %vm6449, 65537, 0
        %v6616 = vsel %vm6450, 65537, 0
        %v6617 = vsel %vm6451, 65537, 0
        %v6618 = vsel %vm6452, 65537, 0
        %6619 = vrot.lane.b32.xlu0 %v6615, 32
        %v6620 = vpop.permute.xlu0 %6619
        %6621 = vrot.lane.b32.xlu0 %v6616, 32
        %v6622 = vpop.permute.xlu0 %6621
        %6623 = vrot.lane.b32.xlu0 %v6617, 32
        %v6624 = vpop.permute.xlu0 %6623
        %6625 = vrot.lane.b32.xlu0 %v6618, 32
        %v6626 = vpop.permute.xlu0 %6625
        %v6627 = vrot.slane %v6620, 4
        %v6628 = vrot.slane %v6622, 4
        %v6629 = vrot.slane %v6624, 4
        %v6630 = vrot.slane %v6626, 4
        %v6631 = vsel %vm4639, %v6627, %v6620
        %v6632 = vsel %vm4434, %v6627, %v6628
        %v6633 = vsel %vm4639, %v6632, %v6622
        %v6634 = vsel %vm4434, %v6628, %v6629
        %v6635 = vsel %vm4639, %v6634, %v6624
        %v6636 = vsel %vm4434, %v6629, %v6630
        %v6637 = vsel %vm4639, %v6636, %v6626
        %v6638 = vunpack.c.l.b16 %v6631
        %v6639 = vunpack.c.h.b16 %v6631
        %v6640 = vunpack.c.l.b16 0
        %v6641 = vunpack.c.h.b16 0
        %vm6642 = vcmp.ne.s32.totalorder %v6638, %v6640
        %vm6643 = vcmp.ne.s32.totalorder %v6639, %v6641
        %vm6644 = vmpackc.low %vm6643, %vm6642
        %v6645 = vunpack.c.l.b16 %v6633
        %v6646 = vunpack.c.h.b16 %v6633
        %v6647 = vunpack.c.l.b16 0
        %v6648 = vunpack.c.h.b16 0
        %vm6649 = vcmp.ne.s32.totalorder %v6645, %v6647
        %vm6650 = vcmp.ne.s32.totalorder %v6646, %v6648
        %vm6651 = vmpackc.low %vm6650, %vm6649
        %v6652 = vunpack.c.l.b16 %v6635
        %v6653 = vunpack.c.h.b16 %v6635
        %v6654 = vunpack.c.l.b16 0
        %v6655 = vunpack.c.h.b16 0
        %vm6656 = vcmp.ne.s32.totalorder %v6652, %v6654
        %vm6657 = vcmp.ne.s32.totalorder %v6653, %v6655
        %vm6658 = vmpackc.low %vm6657, %vm6656
        %v6659 = vunpack.c.l.b16 %v6637
        %v6660 = vunpack.c.h.b16 %v6637
        %v6661 = vunpack.c.l.b16 0
        %v6662 = vunpack.c.h.b16 0
        %vm6663 = vcmp.ne.s32.totalorder %v6659, %v6661
        %vm6664 = vcmp.ne.s32.totalorder %v6660, %v6662
        %vm6665 = vmpackc.low %vm6664, %vm6663
        %v6666 = vunpack.c.l.b16 %v6630
        %v6667 = vunpack.c.h.b16 %v6630
        %v6668 = vunpack.c.l.b16 0
        %v6669 = vunpack.c.h.b16 0
        %vm6670 = vcmp.ne.s32.totalorder %v6666, %v6668
        %vm6671 = vcmp.ne.s32.totalorder %v6667, %v6669
        %vm6672 = vmpackc.low %vm6671, %vm6670
        %v6673 = vsel %vm6644, %v6610, 0
        %v6674 = vsel %vm6651, %v6611, 0
        %v6675 = vsel %vm6658, %v6612, 0
        %v6676 = vsel %vm6665, %v6613, 0
        %v6677 = vsel %vm6672, %v6614, 0
        %6683 = vrot.lane.b32.xlu0 %v6673, 96
        %v6684 = vpop.permute.xlu0 %6683
        %6685 = vrot.lane.b32.xlu0 %v6674, 96
        %v6686 = vpop.permute.xlu0 %6685
        %6687 = vrot.lane.b32.xlu0 %v6675, 96
        %v6688 = vpop.permute.xlu0 %6687
        %6689 = vrot.lane.b32.xlu0 %v6676, 96
        %v6690 = vpop.permute.xlu0 %6689
        %6691 = vrot.lane.b32.xlu0 %v6677, 96
        %v6692 = vpop.permute.xlu0 %6691
        %v6693 = vrot.slane %v6684, 4
        %v6694 = vrot.slane %v6686, 4
        %v6695 = vrot.slane %v6688, 4
        %v6696 = vrot.slane %v6690, 4
        %v6697 = vrot.slane %v6692, 4
        %v6698 = vsel %vm4434, %v6693, %v6694
        %v6699 = vsel %vm4676, %v6684, %v6698
        %v6700 = vsel %vm4434, %v6694, %v6695
        %v6701 = vsel %vm4676, %v6686, %v6700
        %v6702 = vsel %vm4434, %v6695, %v6696
        %v6703 = vsel %vm4676, %v6688, %v6702
        %v6704 = vsel %vm4434, %v6696, %v6697
        %v6705 = vsel %vm4676, %v6690, %v6704
        %6710 = vst [vmem:[#allocation9 + $0x60] sm:$0xff] %v6699
        %6711 = vst [vmem:[#allocation9 + $0x68] sm:$0xff] %v6701
        %6712 = vst [vmem:[#allocation9 + $0x70] sm:$0xff] %v6703
        %6713 = vst [vmem:[#allocation9 + $0x78] sm:$0xff] %v6705
        %v6714 = vld [vmem:[#allocation8] sm:$0xff]
        %v6715 = vld [vmem:[#allocation8 + $0x8] sm:$0xff]
        %v6716 = vld [vmem:[#allocation8 + $0x10] sm:$0xff]
        %v6717 = vld [vmem:[#allocation8 + $0x18] sm:$0xff]
        %v6718 = vld [vmem:[#allocation8 + $0x20] sm:$0xf]
        %6724 = vrot.lane.b32.xlu0 %v6714, 95
        %v6725 = vpop.permute.xlu0 %6724
        %6726 = vrot.lane.b32.xlu0 %v6715, 95
        %v6727 = vpop.permute.xlu0 %6726
        %6728 = vrot.lane.b32.xlu0 %v6716, 95
        %v6729 = vpop.permute.xlu0 %6728
        %6730 = vrot.lane.b32.xlu0 %v6717, 95
        %v6731 = vpop.permute.xlu0 %6730
        %6732 = vrot.lane.b32.xlu0 %v6718, 95
        %v6733 = vpop.permute.xlu0 %6732
        %v6734 = vrot.slane %v6725, 4
        %v6735 = vrot.slane %v6727, 4
        %v6736 = vrot.slane %v6729, 4
        %v6737 = vrot.slane %v6731, 4
        %v6738 = vrot.slane %v6733, 4
        %v6739 = vsel %vm4434, %v6734, %v6735
        %v6740 = vsel %vm4705, %v6725, %v6739
        %v6741 = vsel %vm4434, %v6735, %v6736
        %v6742 = vsel %vm4705, %v6727, %v6741
        %v6743 = vsel %vm4434, %v6736, %v6737
        %v6744 = vsel %vm4705, %v6729, %v6743
        %v6745 = vsel %vm4434, %v6737, %v6738
        %v6746 = vsel %vm4705, %v6731, %v6745
        %6751 = vst [vmem:[#allocation9 + $0x80] sm:$0xff] %v6740
        %6752 = vst [vmem:[#allocation9 + $0x88] sm:$0xff] %v6742
        %6753 = vst [vmem:[#allocation9 + $0x90] sm:$0xff] %v6744
        %6754 = vst [vmem:[#allocation9 + $0x98] sm:$0xff] %v6746
        %v6755 = vld [vmem:[#allocation8] sm:$0xff]
        %v6756 = vld [vmem:[#allocation8 + $0x8] sm:$0xff]
        %v6757 = vld [vmem:[#allocation8 + $0x10] sm:$0xff]
        %v6758 = vld [vmem:[#allocation8 + $0x18] sm:$0xff]
        %v6759 = vld [vmem:[#allocation8 + $0x20] sm:$0xf]
        %6760 = vrot.lane.b32.xlu0 %v6511, 34
        %v6761 = vpop.permute.xlu0 %6760
        %6762 = vrot.lane.b32.xlu0 %v6512, 34
        %v6763 = vpop.permute.xlu0 %6762
        %6764 = vrot.lane.b32.xlu0 %v6513, 34
        %v6765 = vpop.permute.xlu0 %6764
        %6766 = vrot.lane.b32.xlu0 %v6514, 34
        %v6767 = vpop.permute.xlu0 %6766
        %v6768 = vrot.slane %v6761, 4
        %v6769 = vrot.slane %v6763, 4
        %v6770 = vrot.slane %v6765, 4
        %v6771 = vrot.slane %v6767, 4
        %v6772 = vsel %vm4720, %v6768, %v6761
        %v6773 = vsel %vm4434, %v6768, %v6769
        %v6774 = vsel %vm4720, %v6773, %v6763
        %v6775 = vsel %vm4434, %v6769, %v6770
        %v6776 = vsel %vm4720, %v6775, %v6765
        %v6777 = vsel %vm4434, %v6770, %v6771
        %v6778 = vsel %vm4720, %v6777, %v6767
        %v6779 = vunpack.c.l.b16 %v6772
        %v6780 = vunpack.c.h.b16 %v6772
        %v6781 = vunpack.c.l.b16 0
        %v6782 = vunpack.c.h.b16 0
        %vm6783 = vcmp.ne.s32.totalorder %v6779, %v6781
        %vm6784 = vcmp.ne.s32.totalorder %v6780, %v6782
        %vm6785 = vmpackc.low %vm6784, %vm6783
        %v6786 = vunpack.c.l.b16 %v6774
        %v6787 = vunpack.c.h.b16 %v6774
        %v6788 = vunpack.c.l.b16 0
        %v6789 = vunpack.c.h.b16 0
        %vm6790 = vcmp.ne.s32.totalorder %v6786, %v6788
        %vm6791 = vcmp.ne.s32.totalorder %v6787, %v6789
        %vm6792 = vmpackc.low %vm6791, %vm6790
        %v6793 = vunpack.c.l.b16 %v6776
        %v6794 = vunpack.c.h.b16 %v6776
        %v6795 = vunpack.c.l.b16 0
        %v6796 = vunpack.c.h.b16 0
        %vm6797 = vcmp.ne.s32.totalorder %v6793, %v6795
        %vm6798 = vcmp.ne.s32.totalorder %v6794, %v6796
        %vm6799 = vmpackc.low %vm6798, %vm6797
        %v6800 = vunpack.c.l.b16 %v6778
        %v6801 = vunpack.c.h.b16 %v6778
        %v6802 = vunpack.c.l.b16 0
        %v6803 = vunpack.c.h.b16 0
        %vm6804 = vcmp.ne.s32.totalorder %v6800, %v6802
        %vm6805 = vcmp.ne.s32.totalorder %v6801, %v6803
        %vm6806 = vmpackc.low %vm6805, %vm6804
        %v6807 = vunpack.c.l.b16 %v6771
        %v6808 = vunpack.c.h.b16 %v6771
        %v6809 = vunpack.c.l.b16 0
        %v6810 = vunpack.c.h.b16 0
        %vm6811 = vcmp.ne.s32.totalorder %v6807, %v6809
        %vm6812 = vcmp.ne.s32.totalorder %v6808, %v6810
        %vm6813 = vmpackc.low %vm6812, %vm6811
        %v6814 = vsel %vm6785, %v6755, 0
        %v6815 = vsel %vm6792, %v6756, 0
        %v6816 = vsel %vm6799, %v6757, 0
        %v6817 = vsel %vm6806, %v6758, 0
        %v6818 = vsel %vm6813, %v6759, 0
        %6824 = vrot.lane.b32.xlu0 %v6814, 94
        %v6825 = vpop.permute.xlu0 %6824
        %6826 = vrot.lane.b32.xlu0 %v6815, 94
        %v6827 = vpop.permute.xlu0 %6826
        %6828 = vrot.lane.b32.xlu0 %v6816, 94
        %v6829 = vpop.permute.xlu0 %6828
        %6830 = vrot.lane.b32.xlu0 %v6817, 94
        %v6831 = vpop.permute.xlu0 %6830
        %6832 = vrot.lane.b32.xlu0 %v6818, 94
        %v6833 = vpop.permute.xlu0 %6832
        %v6834 = vrot.slane %v6825, 4
        %v6835 = vrot.slane %v6827, 4
        %v6836 = vrot.slane %v6829, 4
        %v6837 = vrot.slane %v6831, 4
        %v6838 = vrot.slane %v6833, 4
        %v6839 = vsel %vm4434, %v6834, %v6835
        %v6840 = vsel %vm4757, %v6825, %v6839
        %v6841 = vsel %vm4434, %v6835, %v6836
        %v6842 = vsel %vm4757, %v6827, %v6841
        %v6843 = vsel %vm4434, %v6836, %v6837
        %v6844 = vsel %vm4757, %v6829, %v6843
        %v6845 = vsel %vm4434, %v6837, %v6838
        %v6846 = vsel %vm4757, %v6831, %v6845
        %6851 = vst [vmem:[#allocation9 + $0xa0] sm:$0xff] %v6840
        %6852 = vst [vmem:[#allocation9 + $0xa8] sm:$0xff] %v6842
        %6853 = vst [vmem:[#allocation9 + $0xb0] sm:$0xff] %v6844
        %6854 = vst [vmem:[#allocation9 + $0xb8] sm:$0xff] %v6846
        %v6855 = vld [vmem:[#allocation8] sm:$0xff]
        %v6856 = vld [vmem:[#allocation8 + $0x8] sm:$0xff]
        %v6857 = vld [vmem:[#allocation8 + $0x10] sm:$0xff]
        %v6858 = vld [vmem:[#allocation8 + $0x18] sm:$0xff]
        %v6859 = vld [vmem:[#allocation8 + $0x20] sm:$0xf]
        %6860 = vrot.lane.b32.xlu0 %v6615, 64
        %v6861 = vpop.permute.xlu0 %6860
        %6862 = vrot.lane.b32.xlu0 %v6616, 64
        %v6863 = vpop.permute.xlu0 %6862
        %6864 = vrot.lane.b32.xlu0 %v6617, 64
        %v6865 = vpop.permute.xlu0 %6864
        %6866 = vrot.lane.b32.xlu0 %v6618, 64
        %v6867 = vpop.permute.xlu0 %6866
        %v6868 = vrot.slane %v6861, 4
        %v6869 = vrot.slane %v6863, 4
        %v6870 = vrot.slane %v6865, 4
        %v6871 = vrot.slane %v6867, 4
        %vm6872 = vcmask 523264
        %v6873 = vsel %vm6872, %v6868, %v6861
        %v6874 = vsel %vm4434, %v6868, %v6869
        %v6875 = vsel %vm6872, %v6874, %v6863
        %v6876 = vsel %vm4434, %v6869, %v6870
        %v6877 = vsel %vm6872, %v6876, %v6865
        %v6878 = vsel %vm4434, %v6870, %v6871
        %v6879 = vsel %vm6872, %v6878, %v6867
        %v6880 = vunpack.c.l.b16 %v6873
        %v6881 = vunpack.c.h.b16 %v6873
        %v6882 = vunpack.c.l.b16 0
        %v6883 = vunpack.c.h.b16 0
        %vm6884 = vcmp.ne.s32.totalorder %v6880, %v6882
        %vm6885 = vcmp.ne.s32.totalorder %v6881, %v6883
        %vm6886 = vmpackc.low %vm6885, %vm6884
        %v6887 = vunpack.c.l.b16 %v6875
        %v6888 = vunpack.c.h.b16 %v6875
        %v6889 = vunpack.c.l.b16 0
        %v6890 = vunpack.c.h.b16 0
        %vm6891 = vcmp.ne.s32.totalorder %v6887, %v6889
        %vm6892 = vcmp.ne.s32.totalorder %v6888, %v6890
        %vm6893 = vmpackc.low %vm6892, %vm6891
        %v6894 = vunpack.c.l.b16 %v6877
        %v6895 = vunpack.c.h.b16 %v6877
        %v6896 = vunpack.c.l.b16 0
        %v6897 = vunpack.c.h.b16 0
        %vm6898 = vcmp.ne.s32.totalorder %v6894, %v6896
        %vm6899 = vcmp.ne.s32.totalorder %v6895, %v6897
        %vm6900 = vmpackc.low %vm6899, %vm6898
        %v6901 = vunpack.c.l.b16 %v6879
        %v6902 = vunpack.c.h.b16 %v6879
        %v6903 = vunpack.c.l.b16 0
        %v6904 = vunpack.c.h.b16 0
        %vm6905 = vcmp.ne.s32.totalorder %v6901, %v6903
        %vm6906 = vcmp.ne.s32.totalorder %v6902, %v6904
        %vm6907 = vmpackc.low %vm6906, %vm6905
        %v6908 = vunpack.c.l.b16 %v6871
        %v6909 = vunpack.c.h.b16 %v6871
        %v6910 = vunpack.c.l.b16 0
        %v6911 = vunpack.c.h.b16 0
        %vm6912 = vcmp.ne.s32.totalorder %v6908, %v6910
        %vm6913 = vcmp.ne.s32.totalorder %v6909, %v6911
        %vm6914 = vmpackc.low %vm6913, %vm6912
        %v6915 = vsel %vm6886, %v6855, 0
        %v6916 = vsel %vm6893, %v6856, 0
        %v6917 = vsel %vm6900, %v6857, 0
        %v6918 = vsel %vm6907, %v6858, 0
        %v6919 = vsel %vm6914, %v6859, 0
        %6925 = vrot.lane.b32.xlu0 %v6915, 64
        %v6926 = vpop.permute.xlu0 %6925
        %6927 = vrot.lane.b32.xlu0 %v6916, 64
        %v6928 = vpop.permute.xlu0 %6927
        %6929 = vrot.lane.b32.xlu0 %v6917, 64
        %v6930 = vpop.permute.xlu0 %6929
        %6931 = vrot.lane.b32.xlu0 %v6918, 64
        %v6932 = vpop.permute.xlu0 %6931
        %6933 = vrot.lane.b32.xlu0 %v6919, 64
        %v6934 = vpop.permute.xlu0 %6933
        %v6935 = vrot.slane %v6926, 4
        %v6936 = vrot.slane %v6928, 4
        %v6937 = vrot.slane %v6930, 4
        %v6938 = vrot.slane %v6932, 4
        %v6939 = vrot.slane %v6934, 4
        %v6940 = vsel %vm4434, %v6935, %v6936
        %v6941 = vsel %vm6872, %v6926, %v6940
        %v6942 = vsel %vm4434, %v6936, %v6937
        %v6943 = vsel %vm6872, %v6928, %v6942
        %v6944 = vsel %vm4434, %v6937, %v6938
        %v6945 = vsel %vm6872, %v6930, %v6944
        %v6946 = vsel %vm4434, %v6938, %v6939
        %v6947 = vsel %vm6872, %v6932, %v6946
        %6952 = vst [vmem:[#allocation9 + $0xc0] sm:$0xff] %v6941
        %6953 = vst [vmem:[#allocation9 + $0xc8] sm:$0xff] %v6943
        %6954 = vst [vmem:[#allocation9 + $0xd0] sm:$0xff] %v6945
        %6955 = vst [vmem:[#allocation9 + $0xd8] sm:$0xff] %v6947
        %v6956 = vld [vmem:[#allocation8] sm:$0xff]
        %v6957 = vld [vmem:[#allocation8 + $0x8] sm:$0xff]
        %v6958 = vld [vmem:[#allocation8 + $0x10] sm:$0xff]
        %v6959 = vld [vmem:[#allocation8 + $0x18] sm:$0xff]
        %v6960 = vld [vmem:[#allocation8 + $0x20] sm:$0xf]
        %6966 = vrot.lane.b32.xlu0 %v6956, 63
        %v6967 = vpop.permute.xlu0 %6966
        %6968 = vrot.lane.b32.xlu0 %v6957, 63
        %v6969 = vpop.permute.xlu0 %6968
        %6970 = vrot.lane.b32.xlu0 %v6958, 63
        %v6971 = vpop.permute.xlu0 %6970
        %6972 = vrot.lane.b32.xlu0 %v6959, 63
        %v6973 = vpop.permute.xlu0 %6972
        %6974 = vrot.lane.b32.xlu0 %v6960, 63
        %v6975 = vpop.permute.xlu0 %6974
        %v6976 = vrot.slane %v6967, 4
        %v6977 = vrot.slane %v6969, 4
        %v6978 = vrot.slane %v6971, 4
        %v6979 = vrot.slane %v6973, 4
        %v6980 = vrot.slane %v6975, 4
        %v6981 = vsel %vm4434, %v6976, %v6977
        %vm6982 = vcmask 515072
        %v6983 = vsel %vm6982, %v6967, %v6981
        %v6984 = vsel %vm4434, %v6977, %v6978
        %v6985 = vsel %vm6982, %v6969, %v6984
        %v6986 = vsel %vm4434, %v6978, %v6979
        %v6987 = vsel %vm6982, %v6971, %v6986
        %v6988 = vsel %vm4434, %v6979, %v6980
        %v6989 = vsel %vm6982, %v6973, %v6988
        %6994 = vst [vmem:[#allocation9 + $0xe0] sm:$0xff] %v6983
        %6995 = vst [vmem:[#allocation9 + $0xe8] sm:$0xff] %v6985
        %6996 = vst [vmem:[#allocation9 + $0xf0] sm:$0xff] %v6987
        %6997 = vst [vmem:[#allocation9 + $0xf8] sm:$0xff] %v6989
        %v6998 = vld [vmem:[#allocation8] sm:$0xff]
        %v6999 = vld [vmem:[#allocation8 + $0x8] sm:$0xff]
        %v7000 = vld [vmem:[#allocation8 + $0x10] sm:$0xff]
        %v7001 = vld [vmem:[#allocation8 + $0x18] sm:$0xff]
        %v7002 = vld [vmem:[#allocation8 + $0x20] sm:$0xf]
        %7003 = vrot.lane.b32.xlu0 %v6511, 66
        %v7004 = vpop.permute.xlu0 %7003
        %7005 = vrot.lane.b32.xlu0 %v6512, 66
        %v7006 = vpop.permute.xlu0 %7005
        %7007 = vrot.lane.b32.xlu0 %v6513, 66
        %v7008 = vpop.permute.xlu0 %7007
        %7009 = vrot.lane.b32.xlu0 %v6514, 66
        %v7010 = vpop.permute.xlu0 %7009
        %v7011 = vrot.slane %v7004, 4
        %v7012 = vrot.slane %v7006, 4
        %v7013 = vrot.slane %v7008, 4
        %v7014 = vrot.slane %v7010, 4
        %vm7015 = vcmask 539648
        %v7016 = vsel %vm7015, %v7011, %v7004
        %v7017 = vsel %vm4434, %v7011, %v7012
        %v7018 = vsel %vm7015, %v7017, %v7006
        %v7019 = vsel %vm4434, %v7012, %v7013
        %v7020 = vsel %vm7015, %v7019, %v7008
        %v7021 = vsel %vm4434, %v7013, %v7014
        %v7022 = vsel %vm7015, %v7021, %v7010
        %v7023 = vunpack.c.l.b16 %v7016
        %v7024 = vunpack.c.h.b16 %v7016
        %v7025 = vunpack.c.l.b16 0
        %v7026 = vunpack.c.h.b16 0
        %vm7027 = vcmp.ne.s32.totalorder %v7023, %v7025
        %vm7028 = vcmp.ne.s32.totalorder %v7024, %v7026
        %vm7029 = vmpackc.low %vm7028, %vm7027
        %v7030 = vunpack.c.l.b16 %v7018
        %v7031 = vunpack.c.h.b16 %v7018
        %v7032 = vunpack.c.l.b16 0
        %v7033 = vunpack.c.h.b16 0
        %vm7034 = vcmp.ne.s32.totalorder %v7030, %v7032
        %vm7035 = vcmp.ne.s32.totalorder %v7031, %v7033
        %vm7036 = vmpackc.low %vm7035, %vm7034
        %v7037 = vunpack.c.l.b16 %v7020
        %v7038 = vunpack.c.h.b16 %v7020
        %v7039 = vunpack.c.l.b16 0
        %v7040 = vunpack.c.h.b16 0
        %vm7041 = vcmp.ne.s32.totalorder %v7037, %v7039
        %vm7042 = vcmp.ne.s32.totalorder %v7038, %v7040
        %vm7043 = vmpackc.low %vm7042, %vm7041
        %v7044 = vunpack.c.l.b16 %v7022
        %v7045 = vunpack.c.h.b16 %v7022
        %v7046 = vunpack.c.l.b16 0
        %v7047 = vunpack.c.h.b16 0
        %vm7048 = vcmp.ne.s32.totalorder %v7044, %v7046
        %vm7049 = vcmp.ne.s32.totalorder %v7045, %v7047
        %vm7050 = vmpackc.low %vm7049, %vm7048
        %v7051 = vunpack.c.l.b16 %v7014
        %v7052 = vunpack.c.h.b16 %v7014
        %v7053 = vunpack.c.l.b16 0
        %v7054 = vunpack.c.h.b16 0
        %vm7055 = vcmp.ne.s32.totalorder %v7051, %v7053
        %vm7056 = vcmp.ne.s32.totalorder %v7052, %v7054
        %vm7057 = vmpackc.low %vm7056, %vm7055
        %v7058 = vsel %vm7029, %v6998, 0
        %v7059 = vsel %vm7036, %v6999, 0
        %v7060 = vsel %vm7043, %v7000, 0
        %v7061 = vsel %vm7050, %v7001, 0
        %v7062 = vsel %vm7057, %v7002, 0
        %7068 = vrot.lane.b32.xlu0 %v7058, 62
        %v7069 = vpop.permute.xlu0 %7068
        %7070 = vrot.lane.b32.xlu0 %v7059, 62
        %v7071 = vpop.permute.xlu0 %7070
        %7072 = vrot.lane.b32.xlu0 %v7060, 62
        %v7073 = vpop.permute.xlu0 %7072
        %7074 = vrot.lane.b32.xlu0 %v7061, 62
        %v7075 = vpop.permute.xlu0 %7074
        %7076 = vrot.lane.b32.xlu0 %v7062, 62
        %v7077 = vpop.permute.xlu0 %7076
        %v7078 = vrot.slane %v7069, 4
        %v7079 = vrot.slane %v7071, 4
        %v7080 = vrot.slane %v7073, 4
        %v7081 = vrot.slane %v7075, 4
        %v7082 = vrot.slane %v7077, 4
        %v7083 = vsel %vm4434, %v7078, %v7079
        %vm7084 = vcmask 506880
        %v7085 = vsel %vm7084, %v7069, %v7083
        %v7086 = vsel %vm4434, %v7079, %v7080
        %v7087 = vsel %vm7084, %v7071, %v7086
        %v7088 = vsel %vm4434, %v7080, %v7081
        %v7089 = vsel %vm7084, %v7073, %v7088
        %v7090 = vsel %vm4434, %v7081, %v7082
        %v7091 = vsel %vm7084, %v7075, %v7090
        %7096 = vst [vmem:[#allocation9 + $0x100] sm:$0xff] %v7085
        %7097 = vst [vmem:[#allocation9 + $0x108] sm:$0xff] %v7087
        %7098 = vst [vmem:[#allocation9 + $0x110] sm:$0xff] %v7089
        %7099 = vst [vmem:[#allocation9 + $0x118] sm:$0xff] %v7091
        %v7100 = vld [vmem:[#allocation22] sm:$0xf]
        %v7101 = vld [vmem:[#allocation22 + $0x4] sm:$0x3]
        %v7102 = vld [vmem:[#allocation9] sm:$0xff]
        %v7103 = vld [vmem:[#allocation9 + $0x8] sm:$0xff]
        %v7104 = vld [vmem:[#allocation9 + $0x10] sm:$0xff]
        %v7105 = vld [vmem:[#allocation9 + $0x18] sm:$0xff]
        %v7106 = vld [vmem:[#allocation9 + $0x20] sm:$0xff]
        %v7107 = vld [vmem:[#allocation9 + $0x28] sm:$0xff]
        %v7108 = vld [vmem:[#allocation9 + $0x30] sm:$0xff]
        %v7109 = vld [vmem:[#allocation9 + $0x38] sm:$0xff]
        %v7110 = vld [vmem:[#allocation9 + $0x40] sm:$0xff]
        %v7111 = vld [vmem:[#allocation9 + $0x48] sm:$0xff]
        %v7112 = vld [vmem:[#allocation9 + $0x50] sm:$0xff]
        %v7113 = vld [vmem:[#allocation9 + $0x58] sm:$0xff]
        %v7114 = vld [vmem:[#allocation9 + $0x60] sm:$0xff]
        %v7115 = vld [vmem:[#allocation9 + $0x68] sm:$0xff]
        %v7116 = vld [vmem:[#allocation9 + $0x70] sm:$0xff]
        %v7117 = vld [vmem:[#allocation9 + $0x78] sm:$0xff]
        %v7118 = vld [vmem:[#allocation9 + $0x80] sm:$0xff]
        %v7119 = vld [vmem:[#allocation9 + $0x88] sm:$0xff]
        %v7120 = vld [vmem:[#allocation9 + $0x90] sm:$0xff]
        %v7121 = vld [vmem:[#allocation9 + $0x98] sm:$0xff]
        %v7122 = vld [vmem:[#allocation9 + $0xa0] sm:$0xff]
        %v7123 = vld [vmem:[#allocation9 + $0xa8] sm:$0xff]
        %v7124 = vld [vmem:[#allocation9 + $0xb0] sm:$0xff]
        %v7125 = vld [vmem:[#allocation9 + $0xb8] sm:$0xff]
        %v7126 = vld [vmem:[#allocation9 + $0xc0] sm:$0xff]
        %v7127 = vld [vmem:[#allocation9 + $0xc8] sm:$0xff]
        %v7128 = vld [vmem:[#allocation9 + $0xd0] sm:$0xff]
        %v7129 = vld [vmem:[#allocation9 + $0xd8] sm:$0xff]
        %v7130 = vld [vmem:[#allocation9 + $0xe0] sm:$0xff]
        %v7131 = vld [vmem:[#allocation9 + $0xe8] sm:$0xff]
        %v7132 = vld [vmem:[#allocation9 + $0xf0] sm:$0xff]
        %v7133 = vld [vmem:[#allocation9 + $0xf8] sm:$0xff]
        %v7134 = vld [vmem:[#allocation9 + $0x100] sm:$0xff]
        %v7135 = vld [vmem:[#allocation9 + $0x108] sm:$0xff]
        %v7136 = vld [vmem:[#allocation9 + $0x110] sm:$0xff]
        %v7137 = vld [vmem:[#allocation9 + $0x118] sm:$0xff]
        %v7140 = vunpack.c.l.b16 %v7100
        %v7141 = vunpack.c.l.b16 %v7101
        %v7142 = vpack.c.b16 %v7141, %v7140
        %v7179 = vunpack.c.l.b16 %v7102
        %v7180 = vunpack.c.h.b16 %v7102
        %v7181 = vunpack.c.l.b16 %v7103
        %v7182 = vunpack.c.h.b16 %v7103
        %v7183 = vunpack.c.l.b16 %v7104
        %v7184 = vunpack.c.h.b16 %v7104
        %v7185 = vunpack.c.l.b16 %v7105
        %v7186 = vunpack.c.h.b16 %v7105
        %v7187 = vunpack.c.l.b16 %v7106
        %v7188 = vunpack.c.h.b16 %v7106
        %v7189 = vunpack.c.l.b16 %v7107
        %v7190 = vunpack.c.h.b16 %v7107
        %v7191 = vunpack.c.l.b16 %v7108
        %v7192 = vunpack.c.h.b16 %v7108
        %v7193 = vunpack.c.l.b16 %v7109
        %v7194 = vunpack.c.h.b16 %v7109
        %v7195 = vunpack.c.l.b16 %v7110
        %v7196 = vunpack.c.h.b16 %v7110
        %v7197 = vunpack.c.l.b16 %v7111
        %v7198 = vunpack.c.h.b16 %v7111
        %v7199 = vunpack.c.l.b16 %v7112
        %v7200 = vunpack.c.h.b16 %v7112
        %v7201 = vunpack.c.l.b16 %v7113
        %v7202 = vunpack.c.h.b16 %v7113
        %v7203 = vunpack.c.l.b16 %v7114
        %v7204 = vunpack.c.h.b16 %v7114
        %v7205 = vunpack.c.l.b16 %v7115
        %v7206 = vunpack.c.h.b16 %v7115
        %v7207 = vunpack.c.l.b16 %v7116
        %v7208 = vunpack.c.h.b16 %v7116
        %v7209 = vunpack.c.l.b16 %v7117
        %v7210 = vunpack.c.h.b16 %v7117
        %v7211 = vunpack.c.l.b16 %v7118
        %v7212 = vunpack.c.h.b16 %v7118
        %v7213 = vunpack.c.l.b16 %v7119
        %v7214 = vunpack.c.h.b16 %v7119
        %v7215 = vunpack.c.l.b16 %v7120
        %v7216 = vunpack.c.h.b16 %v7120
        %v7217 = vunpack.c.l.b16 %v7121
        %v7218 = vunpack.c.h.b16 %v7121
        %v7219 = vunpack.c.l.b16 %v7122
        %v7220 = vunpack.c.h.b16 %v7122
        %v7221 = vunpack.c.l.b16 %v7123
        %v7222 = vunpack.c.h.b16 %v7123
        %v7223 = vunpack.c.l.b16 %v7124
        %v7224 = vunpack.c.h.b16 %v7124
        %v7225 = vunpack.c.l.b16 %v7125
        %v7226 = vunpack.c.h.b16 %v7125
        %v7227 = vunpack.c.l.b16 %v7126
        %v7228 = vunpack.c.h.b16 %v7126
        %v7229 = vunpack.c.l.b16 %v7127
        %v7230 = vunpack.c.h.b16 %v7127
        %v7231 = vunpack.c.l.b16 %v7128
        %v7232 = vunpack.c.h.b16 %v7128
        %v7233 = vunpack.c.l.b16 %v7129
        %v7234 = vunpack.c.h.b16 %v7129
        %v7235 = vunpack.c.l.b16 %v7130
        %v7236 = vunpack.c.h.b16 %v7130
        %v7237 = vunpack.c.l.b16 %v7131
        %v7238 = vunpack.c.h.b16 %v7131
        %v7239 = vunpack.c.l.b16 %v7132
        %v7240 = vunpack.c.h.b16 %v7132
        %v7241 = vunpack.c.l.b16 %v7133
        %v7242 = vunpack.c.h.b16 %v7133
        %v7243 = vunpack.c.l.b16 %v7134
        %v7244 = vunpack.c.h.b16 %v7134
        %v7245 = vunpack.c.l.b16 %v7135
        %v7246 = vunpack.c.h.b16 %v7135
        %v7247 = vunpack.c.l.b16 %v7136
        %v7248 = vunpack.c.h.b16 %v7136
        %v7249 = vunpack.c.l.b16 %v7137
        %v7250 = vunpack.c.h.b16 %v7137
        %v7251 = vpack.c.b16 %v7187, %v7179
        %v7252 = vpack.c.b16 %v7188, %v7180
        %v7253 = vpack.c.b16 %v7189, %v7181
        %v7254 = vpack.c.b16 %v7190, %v7182
        %v7255 = vpack.c.b16 %v7191, %v7183
        %v7256 = vpack.c.b16 %v7192, %v7184
        %v7257 = vpack.c.b16 %v7193, %v7185
        %v7258 = vpack.c.b16 %v7194, %v7186
        %v7259 = vpack.c.b16 %v7203, %v7195
        %v7260 = vpack.c.b16 %v7204, %v7196
        %v7261 = vpack.c.b16 %v7205, %v7197
        %v7262 = vpack.c.b16 %v7206, %v7198
        %v7263 = vpack.c.b16 %v7207, %v7199
        %v7264 = vpack.c.b16 %v7208, %v7200
        %v7265 = vpack.c.b16 %v7209, %v7201
        %v7266 = vpack.c.b16 %v7210, %v7202
        %v7267 = vpack.c.b16 %v7219, %v7211
        %v7268 = vpack.c.b16 %v7220, %v7212
        %v7269 = vpack.c.b16 %v7221, %v7213
        %v7270 = vpack.c.b16 %v7222, %v7214
        %v7271 = vpack.c.b16 %v7223, %v7215
        %v7272 = vpack.c.b16 %v7224, %v7216
        %v7273 = vpack.c.b16 %v7225, %v7217
        %v7274 = vpack.c.b16 %v7226, %v7218
        %v7275 = vpack.c.b16 %v7235, %v7227
        %v7276 = vpack.c.b16 %v7236, %v7228
        %v7277 = vpack.c.b16 %v7237, %v7229
        %v7278 = vpack.c.b16 %v7238, %v7230
        %v7279 = vpack.c.b16 %v7239, %v7231
        %v7280 = vpack.c.b16 %v7240, %v7232
        %v7281 = vpack.c.b16 %v7241, %v7233
        %v7282 = vpack.c.b16 %v7242, %v7234
        %v7283 = vpack.c.b16 %v7243, %v7243
        %v7284 = vpack.c.b16 %v7244, %v7244
        %v7285 = vpack.c.b16 %v7245, %v7245
        %v7286 = vpack.c.b16 %v7246, %v7246
        %v7287 = vpack.c.b16 %v7247, %v7247
        %v7288 = vpack.c.b16 %v7248, %v7248
        %v7289 = vpack.c.b16 %v7249, %v7249
        %v7290 = vpack.c.b16 %v7250, %v7250
        %vm7323 = vcmask 588800
        %v7325 = vsel %vm7323, %v7142, 0
        %vm7327 = vcmask 1043456
        %v7329 = vsel %vm7327, %v7283, 0
        %v7332 = vsel %vm7327, %v7284, 0
        %v7335 = vsel %vm7327, %v7285, 0
        %v7338 = vsel %vm7327, %v7286, 0
        %v7341 = vsel %vm7327, %v7287, 0
        %v7344 = vsel %vm7327, %v7288, 0
        %v7347 = vsel %vm7327, %v7289, 0
        %v7350 = vsel %vm7327, %v7290, 0
        %7352 = vmatpush.bf16.msra.mxu0 0
        %7353 = vmatpush.bf16.msra.mxu0 0
        %7354 = vmatpush.bf16.msra.mxu0 0
        %7355 = vmatpush.bf16.msra.mxu0 %v7329
        %7356 = vmatpush.bf16.msra.mxu0 %v7275
        %7357 = vmatpush.bf16.msra.mxu0 %v7267
        %7358 = vmatpush.bf16.msra.mxu0 %v7259
        %7359 = vmatpush.bf16.msra.mxu0 %v7251
        %7360 = vmatmul.bf16.gmra.mxu0 %v7325
        %v7361 = vpop.f32.mrf.mxu0
        %v7362 = vadd.f32 0.0, %v7361
        %v7363 = vpop.f32.mrf.mxu0
        %v7364 = vadd.f32 0.0, %v7363
        %7365 = vdwg.mxu0
        %7366 = vmatpush.bf16.msra.mxu0 0
        %7367 = vmatpush.bf16.msra.mxu0 0
        %7368 = vmatpush.bf16.msra.mxu0 0
        %7369 = vmatpush.bf16.msra.mxu0 %v7332
        %7370 = vmatpush.bf16.msra.mxu0 %v7276
        %7371 = vmatpush.bf16.msra.mxu0 %v7268
        %7372 = vmatpush.bf16.msra.mxu0 %v7260
        %7373 = vmatpush.bf16.msra.mxu0 %v7252
        %7374 = vmatmul.bf16.gmra.mxu0 %v7325
        %v7375 = vpop.f32.mrf.mxu0
        %v7376 = vadd.f32 0.0, %v7375
        %v7377 = vpop.f32.mrf.mxu0
        %v7378 = vadd.f32 0.0, %v7377
        %7379 = vdwg.mxu0
        %7380 = vmatpush.bf16.msra.mxu0 0
        %7381 = vmatpush.bf16.msra.mxu0 0
        %7382 = vmatpush.bf16.msra.mxu0 0
        %7383 = vmatpush.bf16.msra.mxu0 %v7335
        %7384 = vmatpush.bf16.msra.mxu0 %v7277
        %7385 = vmatpush.bf16.msra.mxu0 %v7269
        %7386 = vmatpush.bf16.msra.mxu0 %v7261
        %7387 = vmatpush.bf16.msra.mxu0 %v7253
        %7388 = vmatmul.bf16.gmra.mxu0 %v7325
        %v7389 = vpop.f32.mrf.mxu0
        %v7390 = vadd.f32 0.0, %v7389
        %v7391 = vpop.f32.mrf.mxu0
        %v7392 = vadd.f32 0.0, %v7391
        %7393 = vdwg.mxu0
        %7394 = vmatpush.bf16.msra.mxu0 0
        %7395 = vmatpush.bf16.msra.mxu0 0
        %7396 = vmatpush.bf16.msra.mxu0 0
        %7397 = vmatpush.bf16.msra.mxu0 %v7338
        %7398 = vmatpush.bf16.msra.mxu0 %v7278
        %7399 = vmatpush.bf16.msra.mxu0 %v7270
        %7400 = vmatpush.bf16.msra.mxu0 %v7262
        %7401 = vmatpush.bf16.msra.mxu0 %v7254
        %7402 = vmatmul.bf16.gmra.mxu0 %v7325
        %v7403 = vpop.f32.mrf.mxu0
        %v7404 = vadd.f32 0.0, %v7403
        %v7405 = vpop.f32.mrf.mxu0
        %v7406 = vadd.f32 0.0, %v7405
        %7407 = vdwg.mxu0
        %7408 = vmatpush.bf16.msra.mxu0 0
        %7409 = vmatpush.bf16.msra.mxu0 0
        %7410 = vmatpush.bf16.msra.mxu0 0
        %7411 = vmatpush.bf16.msra.mxu0 %v7341
        %7412 = vmatpush.bf16.msra.mxu0 %v7279
        %7413 = vmatpush.bf16.msra.mxu0 %v7271
        %7414 = vmatpush.bf16.msra.mxu0 %v7263
        %7415 = vmatpush.bf16.msra.mxu0 %v7255
        %7416 = vmatmul.bf16.gmra.mxu0 %v7325
        %v7417 = vpop.f32.mrf.mxu0
        %v7418 = vadd.f32 0.0, %v7417
        %v7419 = vpop.f32.mrf.mxu0
        %v7420 = vadd.f32 0.0, %v7419
        %7421 = vdwg.mxu0
        %7422 = vmatpush.bf16.msra.mxu0 0
        %7423 = vmatpush.bf16.msra.mxu0 0
        %7424 = vmatpush.bf16.msra.mxu0 0
        %7425 = vmatpush.bf16.msra.mxu0 %v7344
        %7426 = vmatpush.bf16.msra.mxu0 %v7280
        %7427 = vmatpush.bf16.msra.mxu0 %v7272
        %7428 = vmatpush.bf16.msra.mxu0 %v7264
        %7429 = vmatpush.bf16.msra.mxu0 %v7256
        %7430 = vmatmul.bf16.gmra.mxu0 %v7325
        %v7431 = vpop.f32.mrf.mxu0
        %v7432 = vadd.f32 0.0, %v7431
        %v7433 = vpop.f32.mrf.mxu0
        %v7434 = vadd.f32 0.0, %v7433
        %7435 = vdwg.mxu0
        %7436 = vmatpush.bf16.msra.mxu0 0
        %7437 = vmatpush.bf16.msra.mxu0 0
        %7438 = vmatpush.bf16.msra.mxu0 0
        %7439 = vmatpush.bf16.msra.mxu0 %v7347
        %7440 = vmatpush.bf16.msra.mxu0 %v7281
        %7441 = vmatpush.bf16.msra.mxu0 %v7273
        %7442 = vmatpush.bf16.msra.mxu0 %v7265
        %7443 = vmatpush.bf16.msra.mxu0 %v7257
        %7444 = vmatmul.bf16.gmra.mxu0 %v7325
        %v7445 = vpop.f32.mrf.mxu0
        %v7446 = vadd.f32 0.0, %v7445
        %v7447 = vpop.f32.mrf.mxu0
        %v7448 = vadd.f32 0.0, %v7447
        %7449 = vdwg.mxu0
        %7450 = vmatpush.bf16.msra.mxu0 0
        %7451 = vmatpush.bf16.msra.mxu0 0
        %7452 = vmatpush.bf16.msra.mxu0 0
        %7453 = vmatpush.bf16.msra.mxu0 %v7350
        %7454 = vmatpush.bf16.msra.mxu0 %v7282
        %7455 = vmatpush.bf16.msra.mxu0 %v7274
        %7456 = vmatpush.bf16.msra.mxu0 %v7266
        %7457 = vmatpush.bf16.msra.mxu0 %v7258
        %7458 = vmatmul.bf16.gmra.mxu0 %v7325
        %v7459 = vpop.f32.mrf.mxu0
        %v7460 = vadd.f32 0.0, %v7459
        %v7461 = vpop.f32.mrf.mxu0
        %v7462 = vadd.f32 0.0, %v7461
        %7463 = vdwg.mxu0
        %v7464 = vtanh.pop %v7362
        %v7465 = vtanh.pop %v7376
        %v7466 = vtanh.pop %v7390
        %v7467 = vtanh.pop %v7404
        %v7468 = vtanh.pop %v7418
        %v7469 = vtanh.pop %v7432
        %v7470 = vtanh.pop %v7446
        %v7471 = vtanh.pop %v7460
        %v7472 = vtanh.pop %v7364
        %v7473 = vtanh.pop %v7378
        %v7474 = vtanh.pop %v7392
        %v7475 = vtanh.pop %v7406
        %v7476 = vtanh.pop %v7420
        %v7477 = vtanh.pop %v7434
        %v7478 = vtanh.pop %v7448
        %v7479 = vtanh.pop %v7462
        %7480 = vst [vmem:[%s685] sm:$0xff] %v7464
        %7481 = vst [vmem:[%s685 + $0x8] sm:$0xff] %v7465
        %7482 = vst [vmem:[%s685 + $0x10] sm:$0xff] %v7466
        %7483 = vst [vmem:[%s685 + $0x18] sm:$0xff] %v7467
        %7484 = vst [vmem:[%s685 + $0x20] sm:$0xff] %v7468
        %7485 = vst [vmem:[%s685 + $0x28] sm:$0xff] %v7469
        %7486 = vst [vmem:[%s685 + $0x30] sm:$0xff] %v7470
        %7487 = vst [vmem:[%s685 + $0x38] sm:$0xff] %v7471
        %7488 = vst [vmem:[%s685 + $0x40] sm:$0xf] %v7472
        %7489 = vst [vmem:[%s685 + $0x48] sm:$0xf] %v7473
        %7490 = vst [vmem:[%s685 + $0x50] sm:$0xf] %v7474
        %7491 = vst [vmem:[%s685 + $0x58] sm:$0xf] %v7475
        %7492 = vst [vmem:[%s685 + $0x60] sm:$0xf] %v7476
        %7493 = vst [vmem:[%s685 + $0x68] sm:$0xf] %v7477
        %7494 = vst [vmem:[%s685 + $0x70] sm:$0xf] %v7478
        %7495 = vst [vmem:[%s685 + $0x78] sm:$0xf] %v7479
        %p7496 = scmp.lt.s32.totalorder %s34, 1
        %s7497 = scalar_select %p7496, %s34, 1
        %s7498 = smul.addr %s7497, 16
        %s7499 = smul.addr %s7498, 8
        %s7500 = scalar_lea.vmem %s18, %s7499
        // Predicated region
        $region125: #{generator_forward.1} parent=91 // pred_check
          %p7501 = pneg %p430
        $region126: #{generator_forward.1} parent=91 // pred_check_branch
          %7503 = sbr.rel (%p7501) target = $region128
        $region127: #{generator_forward.1} parent=91 // pred_region
          _
        $region128: #{generator_forward.1} parent=91 // pred_fallthru
          _
      $region92: #{generator_forward.1} parent=5 // pred_fallthru
        _
      %p7504 = scmp.le.s32.totalorder 2, %s29
      // Predicated region
      $region129: #{generator_forward.1} parent=5 // pred_check
        %p7505 = pneg %p7504
      $region130: #{generator_forward.1} parent=5 // pred_check_branch
        %7507 = sbr.rel (%p7505) target = $region132
      $region131: #{generator_forward.1} parent=5 // pred_region
        %s7508 = ssub.s32 %s29, 2
        // Predicated region
        $region133: #{generator_forward.1} parent=131 // pred_check
          %p7509 = pneg %p436
        $region134: #{generator_forward.1} parent=131 // pred_check_branch
          %7511 = sbr.rel (%p7509) target = $region136
        $region135: #{generator_forward.1} parent=131 // pred_region
          %p7512 = scmp.lt.s32.totalorder %s35, 1
          %s7513 = scalar_select %p7512, %s35, 1
          %s7514 = smul.addr %s7513, 16
          %s7515 = smul.addr %s7514, 8
          %s7516 = scalar_lea.vmem %s18, %s7515
        $region136: #{generator_forward.1} parent=131 // pred_fallthru
          _
      $region132: #{generator_forward.1} parent=5 // pred_fallthru
        _
    $region6: #{generator_forward.1} parent=1 // loop_footer
      %s33 = sadd.s32 1, %s29
    $region7: #{generator_forward.1} parent=1 // loop_footer_branch
      %28 = sbr.rel target = $region3
    $region8: #{generator_forward.1} parent=1 // loop_exit
      _
    %7517 = vsyncpa [#allocation11], 1
    %s7518 = scalar_lea.sflag [#allocation11], 1
    %7519 = vsyncpa %s7518, 1
    %7520 = vsyncpa [#allocation15], 1
    %7521 = vsyncpa [#allocation18], 1
    %7522 = vsyncpa [#allocation21], 1
    %7523 = vsyncpa [#allocation12], 1
    %s7524 = scalar_lea.sflag [#allocation12], 1
    %7525 = vsyncpa %s7524, 1

</llo_original>
